<compile_context>
chip_gen: v7x
topology: tpu7x:2x2x1
jax: 0.10.0
libtpu: 0.0.40
codegen_flags: <defaults>
</compile_context>

<pallas_src>
import numpy as np

import jax
import jax.numpy as jnp
from jax.experimental import pallas as pl
from jax.experimental.pallas import tpu as pltpu

# ----------------------------------------------------------------------------
# Static geometry (small shapes consistent with the module).
# ----------------------------------------------------------------------------
B, CIN, H, W = 2, 3, 16, 16          # input (B, CIN, H, W)
PATCH, EMBED, COUT = 4, 32, 3        # patch size / embed dim / output channels
C2, C1 = 16, 8                       # decoder channel widths
CIN_PAD, COUT_PAD = 8, 8             # pad tiny channel dims for clean tiles

# stage 1: token grid after patch embedding
H1, W1 = H // PATCH, W // PATCH                    # 4 x 4
NTOK = B * H1 * W1                                 # 32 tokens
KPE = PATCH * PATCH * CIN                          # 48

# stage 2: 8x8 maps in a zero-guarded flat (channels x columns) layout
H2, W2 = 2 * H1, 2 * W1                            # 8 x 8
HP2, WP2 = H2 + 2, W2 + 2                          # 10 x 10 (zero pad ring)
ND2 = B * HP2 * WP2                                # 200 data columns
M2 = 16                                            # data start (>= WP2+1, mult 8)
CW2 = 256                                          # cat2 / s2 width (lane dense)

# stage 3: 16x16 maps
H3, W3 = 2 * H2, 2 * W2                            # 16 x 16
HP3, WP3 = H3 + 2, W3 + 2                          # 18 x 18
ND3 = B * HP3 * WP3                                # 648 data columns
M3 = 24                                            # data start (>= WP3+1, mult 8)
CW3 = 896                                          # cat3 / dec1 / enc1 / mask width
W3WIN = 768                                        # fuse1 / head output window width
OW3 = M3                                           # output window start (guarded col)
XGFM = 24                                          # raw-x buffer front margin
XGW = 944                                          # raw-x buffer width (>= 43 + CW3)

# 3x3-conv tap offsets (static slice starts into the guarded flat buffers)
FUSE2_OFFS = tuple(M2 - (WP2 + 1) + dy * WP2 + dx
                   for dy in range(3) for dx in range(3))          # 5..27
CONV3_OFFS_CAT = tuple(OW3 - (WP3 + 1) + dy * WP3 + dx
                       for dy in range(3) for dx in range(3))      # 5..43
CONV3_OFFS_XG = tuple(XGFM - (WP3 + 1) + dy * WP3 + dx
                      for dy in range(3) for dx in range(3))       # 5..43

# ----------------------------------------------------------------------------
# Packed-parameter layouts.
# ----------------------------------------------------------------------------
EP_COLS = 184                                       # encoder pack width (f32)

DP_DEC2 = (0, 32)                                   # (4*C2, EMBED)
DP_SKIP2 = (32, 64)                                 # (4*C2, EMBED)
DP_FUSE2 = (64, 64 + 9 * 2 * C2)                    # (C2,   288)
DP_UP1 = (352, 352 + C2)                            # (4*C1, C2)
DP_SKIP1 = (368, 368 + 9 * CIN_PAD)                 # (C1,   72)
DP_FUSE1 = (440, 440 + 9 * 2 * C1)                  # (C1,   144)
DP_HEAD = (584, 584 + C1)                           # (COUT_PAD, C1)
DP_BIAS = 592                                       # 7 bias columns
DP_COLS = 640                                       # decoder pack width (bf16)


# ----------------------------------------------------------------------------
# Constant 0/1 index matrices (built once with numpy, become kernel inputs).
# ----------------------------------------------------------------------------
def _build_constants():
    # token (b,i,j) x sub-pixel (di,dj) -> stage-2 guarded column
    s2 = np.zeros((4 * NTOK, CW2), np.float32)
    for b in range(B):
        for i in range(H1):
            for j in range(W1):
                t = b * H1 * W1 + i * W1 + j
                for di in range(2):
                    for dj in range(2):
                        dd = di * 2 + dj
                        col = (M2 + b * HP2 * WP2
                               + (2 * i + di + 1) * WP2 + (2 * j + dj + 1))
                        s2[dd * NTOK + t, col] = 1.0

    # stage-2 interior pixel x sub-pixel (di,dj) -> stage-3 guarded column
    # (this IS the up1 pixel shuffle, now done in-kernel as a matmul)
    s3 = np.zeros((4 * ND2, CW3), np.float32)
    for b in range(B):
        for y2 in range(1, H2 + 1):
            for x2 in range(1, W2 + 1):
                c2 = b * HP2 * WP2 + y2 * WP2 + x2
                for di in range(2):
                    for dj in range(2):
                        dd = di * 2 + dj
                        y3 = 2 * (y2 - 1) + di + 1
                        x3 = 2 * (x2 - 1) + dj + 1
                        col = M3 + b * HP3 * WP3 + y3 * WP3 + x3
                        s3[dd * ND2 + c2, col] = 1.0

    # interior mask over the stage-3 guarded column space
    mask = np.zeros((1, CW3), np.float32)
    for b in range(B):
        for y in range(1, H3 + 1):
            for x in range(1, W3 + 1):
                mask[0, M3 + b * HP3 * WP3 + y * WP3 + x] = 1.0
    return s2, s3, mask


# ----------------------------------------------------------------------------
# THE fused kernel: encoder + full UNETR decoder + 1x1 head, no grid, all in
# VMEM, single pass.
# ----------------------------------------------------------------------------
def _unetr_kernel(xpatch_ref, xg_ref, encp_ref, decp_ref, s2_ref, s3_ref,
                  mask_ref, out_ref):
    f32, bf16 = jnp.float32, jnp.bfloat16

    # ---- encoder: patch embed + 4 GELU linears (f32, channels x tokens) -----
    encp = encp_ref[...]
    tok = jnp.dot(encp[:, 0:KPE], xpatch_ref[...], preferred_element_type=f32)
    tok = tok + encp[:, KPE:KPE + 1]
    feats = []
    for i in range(4):
        off = KPE + 1 + i * (EMBED + 1)
        w = encp[:, off:off + EMBED]
        b = encp[:, off + EMBED:off + EMBED + 1]
        tok = jax.nn.gelu(jnp.dot(w, tok, preferred_element_type=f32) + b)
        feats.append(tok)
    f_mid = feats[1].astype(bf16)
    f_last = feats[3].astype(bf16)

    # ---- decoder parameter pack (bf16 weights, biases upcast to f32) --------
    decp = decp_ref[...]
    w_dec2 = decp[:, DP_DEC2[0]:DP_DEC2[1]]
    w_skip2 = decp[:, DP_SKIP2[0]:DP_SKIP2[1]]
    w_fuse2 = decp[0:C2, DP_FUSE2[0]:DP_FUSE2[1]]
    w_up1 = decp[0:4 * C1, DP_UP1[0]:DP_UP1[1]]
    w_skip1 = decp[0:C1, DP_SKIP1[0]:DP_SKIP1[1]]
    w_fuse1 = decp[0:C1, DP_FUSE1[0]:DP_FUSE1[1]]
    w_head = decp[0:COUT_PAD, DP_HEAD[0]:DP_HEAD[1]]
    bias = decp[:, DP_BIAS:DP_BIAS + 7].astype(f32)
    b_dec2, b_skip2, b_fuse2 = bias[0:C2, 0:1], bias[0:C2, 1:2], bias[0:C2, 2:3]
    b_up1, b_skip1, b_fuse1 = bias[0:C1, 3:4], bias[0:C1, 4:5], bias[0:C1, 5:6]
    b_head = bias[0:COUT_PAD, 6:7]

    # ---- stage-2: 2x2 deconvs fused with 0/1 scatter matmuls ----------------
    def deconv2_scatter(tok_b, w4, bvec, relu):
        parts = []
        for dd in range(4):
            y = jnp.dot(w4[dd * C2:(dd + 1) * C2, :], tok_b,
                        preferred_element_type=f32) + bvec
            if relu:
                y = jnp.maximum(y, 0.0)
            parts.append(jnp.dot(y.astype(bf16),
                                 s2_ref[dd * NTOK:(dd + 1) * NTOK, :],
                                 preferred_element_type=f32))
        return (parts[0] + parts[1]) + (parts[2] + parts[3])      # (C2, CW2)

    dec2 = deconv2_scatter(f_last, w_dec2, b_dec2, relu=False)
    enc2 = deconv2_scatter(f_mid, w_skip2, b_skip2, relu=True)
    cat2 = jnp.concatenate([dec2, enc2], axis=0)                  # (2*C2, CW2) f32

    # ---- fuse2: 3x3 conv as ONE deep-K (K=288) bf16 MXU matmul --------------
    stk2 = jnp.concatenate([cat2[:, s:s + ND2] for s in FUSE2_OFFS],
                           axis=0).astype(bf16)                   # (288, ND2)
    f2 = jnp.maximum(jnp.dot(w_fuse2, stk2, preferred_element_type=f32)
                     + b_fuse2, 0.0)                              # (C2, ND2) f32
    f2b = f2.astype(bf16)

    # ---- up1: 2x2 deconv fused with the stage-2 -> stage-3 pixel shuffle ----
    parts = []
    for dd in range(4):
        y = jnp.dot(w_up1[dd * C1:(dd + 1) * C1, :], f2b,
                    preferred_element_type=f32) + b_up1
        parts.append(jnp.dot(y.astype(bf16),
                             s3_ref[dd * ND2:(dd + 1) * ND2, :],
                             preferred_element_type=f32))
    dec1 = (parts[0] + parts[1]) + (parts[2] + parts[3])          # (C1, CW3) f32

    # ---- skip1: 3x3 conv on raw x as deep-K (K=72) matmul, interior-masked --
    xg = xg_ref[...]                                              # (CIN_PAD, XGW)
    stk1 = jnp.concatenate([xg[:, s:s + CW3] for s in CONV3_OFFS_XG],
                           axis=0).astype(bf16)                   # (72, CW3)
    enc1 = jnp.maximum(jnp.dot(w_skip1, stk1, preferred_element_type=f32)
                       + b_skip1, 0.0)
    enc1 = enc1 * mask_ref[...]                                   # zero ring/guards

    cat3 = jnp.concatenate([dec1, enc1], axis=0)                  # (2*C1, CW3) f32

    # ---- fuse1: 3x3 conv as deep-K (K=144) matmul + 1x1 output head ---------
    stk3 = jnp.concatenate([cat3[:, s:s + W3WIN] for s in CONV3_OFFS_CAT],
                           axis=0).astype(bf16)                   # (144, W3WIN)
    f1 = jnp.maximum(jnp.dot(w_fuse1, stk3, preferred_element_type=f32)
                     + b_fuse1, 0.0)                              # (C1, W3WIN)
    out_ref[...] = (jnp.dot(w_head, f1.astype(bf16), preferred_element_type=f32)
                    + b_head)                                     # (8, 768) lane-dense


# ----------------------------------------------------------------------------
# Deterministic synthetic parameters (reference layouts, f32).
#   conv3x3  : (Cout, 9*Cin)   cols = (dy*3+dx)*Cin + ci
#   deconv2x2: (4*Cout, Cin)   rows = (di*2+dj)*Cout + co,  bias (Cout, 1)
#   linear   : (Dout, Din)
# ----------------------------------------------------------------------------
def init_params(key):
    def rnd(k, shape, scale=0.2):
        return jax.random.normal(k, shape, jnp.float32) * scale

    ks = iter(jax.random.split(key, 20))
    p = {}
    p["w_pe"], p["b_pe"] = rnd(next(ks), (EMBED, KPE)), rnd(next(ks), (EMBED, 1))
    p["w_enc"], p["b_enc"] = rnd(next(ks), (4, EMBED, EMBED)), rnd(next(ks), (4, EMBED, 1))
    p["w_dec2"], p["b_dec2"] = rnd(next(ks), (4 * C2, EMBED)), rnd(next(ks), (C2, 1))
    p["w_skip2"], p["b_skip2"] = rnd(next(ks), (4 * C2, EMBED)), rnd(next(ks), (C2, 1))
    p["w_fuse2"], p["b_fuse2"] = rnd(next(ks), (C2, 9 * 2 * C2)), rnd(next(ks), (C2, 1))
    p["w_up1"], p["b_up1"] = rnd(next(ks), (4 * C1, C2)), rnd(next(ks), (C1, 1))
    p["w_skip1"], p["b_skip1"] = rnd(next(ks), (C1, 9 * CIN)), rnd(next(ks), (C1, 1))
    p["w_fuse1"], p["b_fuse1"] = rnd(next(ks), (C1, 9 * 2 * C1)), rnd(next(ks), (C1, 1))
    p["w_head"], p["b_head"] = rnd(next(ks), (COUT, C1)), rnd(next(ks), (COUT, 1))
    return p


def pack_params(p):
    """One-time packing of all weights/constants into 5 kernel operands."""
    ep = jnp.zeros((EMBED, EP_COLS), jnp.float32)
    ep = ep.at[:, 0:KPE].set(p["w_pe"])
    ep = ep.at[:, KPE:KPE + 1].set(p["b_pe"])
    for i in range(4):
        off = KPE + 1 + i * (EMBED + 1)
        ep = ep.at[:, off:off + EMBED].set(p["w_enc"][i])
        ep = ep.at[:, off + EMBED:off + EMBED + 1].set(p["b_enc"][i])

    dp = jnp.zeros((4 * C2, DP_COLS), jnp.float32)
    dp = dp.at[:, DP_DEC2[0]:DP_DEC2[1]].set(p["w_dec2"])
    dp = dp.at[:, DP_SKIP2[0]:DP_SKIP2[1]].set(p["w_skip2"])
    dp = dp.at[0:C2, DP_FUSE2[0]:DP_FUSE2[1]].set(p["w_fuse2"])
    dp = dp.at[0:4 * C1, DP_UP1[0]:DP_UP1[1]].set(p["w_up1"])
    wsk1 = jnp.zeros((C1, 9 * CIN_PAD), jnp.float32)               # pad cin 3 -> 8
    for k in range(9):
        wsk1 = wsk1.at[:, k * CIN_PAD:k * CIN_PAD + CIN].set(
            p["w_skip1"][:, k * CIN:(k + 1) * CIN])
    dp = dp.at[0:C1, DP_SKIP1[0]:DP_SKIP1[1]].set(wsk1)
    dp = dp.at[0:C1, DP_FUSE1[0]:DP_FUSE1[1]].set(p["w_fuse1"])
    dp = dp.at[0:COUT, DP_HEAD[0]:DP_HEAD[0] + C1].set(p["w_head"])
    dp = dp.at[0:C2, DP_BIAS + 0:DP_BIAS + 1].set(p["b_dec2"])
    dp = dp.at[0:C2, DP_BIAS + 1:DP_BIAS + 2].set(p["b_skip2"])
    dp = dp.at[0:C2, DP_BIAS + 2:DP_BIAS + 3].set(p["b_fuse2"])
    dp = dp.at[0:C1, DP_BIAS + 3:DP_BIAS + 4].set(p["b_up1"])
    dp = dp.at[0:C1, DP_BIAS + 4:DP_BIAS + 5].set(p["b_skip1"])
    dp = dp.at[0:C1, DP_BIAS + 5:DP_BIAS + 6].set(p["b_fuse1"])
    dp = dp.at[0:COUT, DP_BIAS + 6:DP_BIAS + 7].set(p["b_head"])

    s2_np, s3_np, mask_np = _build_constants()
    return {
        "enc_pack": ep,                                        # f32 (32, 184)
        "dec_pack": dp.astype(jnp.bfloat16),                   # bf16 (64, 640)
        "s2": jnp.asarray(s2_np).astype(jnp.bfloat16),         # bf16 (128, 256)
        "s3": jnp.asarray(s3_np).astype(jnp.bfloat16),         # bf16 (800, 896)
        "mask3": jnp.asarray(mask_np),                         # f32 (1, 896)
    }


# ----------------------------------------------------------------------------
# Forward pass (mirrors TESTUNETR.forward: encoder -> print -> decoder).
# ----------------------------------------------------------------------------
def testunetr_forward(packed, x_nchw):
    # ---- tiny one-time input layout prep ------------------------------------
    x_nhwc = jnp.transpose(x_nchw, (0, 2, 3, 1))
    xpatch = (x_nhwc.reshape(B, H1, PATCH, W1, PATCH, CIN)
              .transpose(0, 1, 3, 2, 4, 5)
              .reshape(NTOK, KPE).T)                                  # (KPE, NTOK)

    x_chw = jnp.transpose(x_nchw, (1, 0, 2, 3))                       # (CIN,B,H,W)
    x_flat = jnp.pad(x_chw, ((0, 0), (0, 0), (1, 1), (1, 1))).reshape(CIN, ND3)
    xg = jnp.pad(x_flat, ((0, CIN_PAD - CIN),
                          (XGFM + M3, XGW - XGFM - M3 - ND3)))        # (8, XGW)

    # mirrors the PyTorch module's print (trace-time only)
    print(f"encoder_features : 4, ({B}, {H1 * W1}, {EMBED})")

    out_flat = pl.pallas_call(
        _unetr_kernel,
        out_shape=jax.ShapeDtypeStruct((COUT_PAD, W3WIN), jnp.float32),
        in_specs=[pl.BlockSpec(memory_space=pltpu.MemorySpace.VMEM)
                  for _ in range(7)],
        out_specs=pl.BlockSpec(memory_space=pltpu.MemorySpace.VMEM),
    )(xpatch, xg, packed["enc_pack"], packed["dec_pack"],
      packed["s2"], packed["s3"], packed["mask3"])

    out = (out_flat[:COUT, :ND3].reshape(COUT, B, HP3, WP3)
           [:, :, 1:1 + H3, 1:1 + W3])
    return jnp.transpose(out, (1, 0, 2, 3))                           # NCHW


# ----------------------------------------------------------------------------
# Plain-JAX f32 reference (NHWC, same synthetic weight layouts).
# ----------------------------------------------------------------------------
def _ref_forward(params, x_nchw):
    x = jnp.transpose(x_nchw, (0, 2, 3, 1))
    xp = (x.reshape(B, H1, PATCH, W1, PATCH, CIN)
          .transpose(0, 1, 3, 2, 4, 5).reshape(NTOK, KPE))
    tok = xp @ params["w_pe"].T + params["b_pe"][:, 0]
    feats = []
    for i in range(4):
        tok = jax.nn.gelu(tok @ params["w_enc"][i].T + params["b_enc"][i][:, 0])
        feats.append(tok)
    f_mid, f_last = feats[1], feats[3]

    def tok_map(t):
        return t.reshape(B, H1, W1, EMBED)

    def deconv2x2(m, w, b, relu=False):
        bm, h, wd, cin = m.shape
        cout = b.shape[0]
        y = m.reshape(-1, cin) @ w.T + jnp.tile(b[:, 0], 4)
        if relu:
            y = jnp.maximum(y, 0.0)
        y = y.reshape(bm, h, wd, 2, 2, cout)
        return y.transpose(0, 1, 3, 2, 4, 5).reshape(bm, 2 * h, 2 * wd, cout)

    def conv3x3(m, w, b, relu=True):
        bm, h, wd, cin = m.shape
        cout = w.shape[0]
        mp = jnp.pad(m, ((0, 0), (1, 1), (1, 1), (0, 0)))
        acc = jnp.zeros((bm, h, wd, cout), jnp.float32)
        for k in range(9):
            dy, dx = divmod(k, 3)
            acc = acc + mp[:, dy:dy + h, dx:dx + wd, :] @ w[:, k * cin:(k + 1) * cin].T
        acc = acc + b[:, 0]
        return jnp.maximum(acc, 0.0) if relu else acc

    dec2 = deconv2x2(tok_map(f_last), params["w_dec2"], params["b_dec2"])
    enc2 = deconv2x2(tok_map(f_mid), params["w_skip2"], params["b_skip2"], relu=True)
    f2 = conv3x3(jnp.concatenate([dec2, enc2], -1), params["w_fuse2"], params["b_fuse2"])
    dec1 = deconv2x2(f2, params["w_up1"], params["b_up1"])
    enc1 = conv3x3(x, params["w_skip1"], params["b_skip1"])
    f1 = conv3x3(jnp.concatenate([dec1, enc1], -1), params["w_fuse1"], params["b_fuse1"])
    out = f1 @ params["w_head"].T + params["b_head"][:, 0]
    return jnp.transpose(out, (0, 3, 1, 2))


# ----------------------------------------------------------------------------
if __name__ == "__main__":
    key = jax.random.PRNGKey(0)
    k_x, k_p = jax.random.split(key)
    x = jax.random.normal(k_x, (B, CIN, H, W), jnp.float32)
    params = init_params(k_p)
    packed = pack_params(params)

    fwd = jax.jit(testunetr_forward)
    y = jax.block_until_ready(fwd(packed, x))

    assert y.shape == (B, COUT, H, W), y.shape
    assert y.dtype == jnp.float32
    assert bool(jnp.all(jnp.isfinite(y)))

    # Cross-check against a plain-JAX f32 reference.  Tolerances account for
    # the bf16 MXU operand path through the stacked decoder matmuls; a layout
    # or indexing bug would blow far past both bounds.
    y_ref = _ref_forward(params, x)
    abs_err = float(jnp.max(jnp.abs(y - y_ref)))
    rel_err = float(jnp.linalg.norm(y - y_ref) / (jnp.linalg.norm(y_ref) + 1e-8))
    assert abs_err < 2.5e-1 and rel_err < 5e-2, (abs_err, rel_err)

    print("KERNEL_OK")
</pallas_src>

<mosaic_0001>
module attributes {stable_mosaic.version = 11 : i64} {
  func.func @_unetr_kernel(%arg0: memref<48x32xf32, #tpu.memory_space<vmem>>, %arg1: memref<8x944xf32, #tpu.memory_space<vmem>>, %arg2: memref<32x184xf32, #tpu.memory_space<vmem>>, %arg3: memref<64x640xbf16, #tpu.memory_space<vmem>>, %arg4: memref<128x256xbf16, #tpu.memory_space<vmem>>, %arg5: memref<800x896xbf16, #tpu.memory_space<vmem>>, %arg6: memref<1x896xf32, #tpu.memory_space<vmem>>, %arg7: memref<8x768xf32, #tpu.memory_space<vmem>>) attributes {dimension_semantics = [], scalar_prefetch = 0 : i64, scratch_operands = 0 : i64, tpu.core_type = #tpu.core_type<tc>} {
    %c0 = arith.constant 0 : index
    %c0_0 = arith.constant 0 : index
    %0 = vector.load %arg2[%c0, %c0_0] : memref<32x184xf32, #tpu.memory_space<vmem>>, vector<32x184xf32>
    %1 = vector.extract_strided_slice %0 {offsets = [0, 0], sizes = [32, 48], strides = [1, 1]} : vector<32x184xf32> to vector<32x48xf32>
    %c0_1 = arith.constant 0 : index
    %c0_2 = arith.constant 0 : index
    %2 = vector.load %arg0[%c0_1, %c0_2] : memref<48x32xf32, #tpu.memory_space<vmem>>, vector<48x32xf32>
    %cst = arith.constant dense<0.000000e+00> : vector<32x32xf32>
    %3 = tpu.matmul %1, %2, %cst {dimension_numbers = #tpu.dot_dimension_numbers<[1], [0], [0], [1], [0, 0, 1, 1], [], []>} : vector<32x48xf32>, vector<48x32xf32>, vector<32x32xf32> -> vector<32x32xf32>
    %4 = vector.extract_strided_slice %0 {offsets = [0, 48], sizes = [32, 1], strides = [1, 1]} : vector<32x184xf32> to vector<32x1xf32>
    %5 = vector.broadcast %4 : vector<32x1xf32> to vector<32x32xf32>
    %6 = arith.addf %3, %5 : vector<32x32xf32>
    %7 = vector.extract_strided_slice %0 {offsets = [0, 49], sizes = [32, 32], strides = [1, 1]} : vector<32x184xf32> to vector<32x32xf32>
    %8 = vector.extract_strided_slice %0 {offsets = [0, 81], sizes = [32, 1], strides = [1, 1]} : vector<32x184xf32> to vector<32x1xf32>
    %cst_3 = arith.constant dense<0.000000e+00> : vector<32x32xf32>
    %9 = tpu.matmul %7, %6, %cst_3 {dimension_numbers = #tpu.dot_dimension_numbers<[1], [0], [0], [1], [0, 0, 1, 1], [], []>} : vector<32x32xf32>, vector<32x32xf32>, vector<32x32xf32> -> vector<32x32xf32>
    %10 = vector.broadcast %8 : vector<32x1xf32> to vector<32x32xf32>
    %11 = arith.addf %9, %10 : vector<32x32xf32>
    %12 = arith.mulf %11, %11 : vector<32x32xf32>
    %13 = arith.mulf %11, %12 : vector<32x32xf32>
    %cst_4 = arith.constant 4.471500e-02 : f32
    %14 = vector.broadcast %cst_4 : f32 to vector<32x32xf32>
    %15 = arith.mulf %14, %13 : vector<32x32xf32>
    %16 = arith.addf %11, %15 : vector<32x32xf32>
    %cst_5 = arith.constant 0.797884583 : f32
    %17 = vector.broadcast %cst_5 : f32 to vector<32x32xf32>
    %18 = arith.mulf %17, %16 : vector<32x32xf32>
    %19 = math.tanh %18 : vector<32x32xf32>
    %cst_6 = arith.constant 1.000000e+00 : f32
    %20 = vector.broadcast %cst_6 : f32 to vector<32x32xf32>
    %21 = arith.addf %20, %19 : vector<32x32xf32>
    %cst_7 = arith.constant 5.000000e-01 : f32
    %22 = vector.broadcast %cst_7 : f32 to vector<32x32xf32>
    %23 = arith.mulf %22, %21 : vector<32x32xf32>
    %24 = arith.mulf %11, %23 : vector<32x32xf32>
    %25 = vector.extract_strided_slice %0 {offsets = [0, 82], sizes = [32, 32], strides = [1, 1]} : vector<32x184xf32> to vector<32x32xf32>
    %26 = vector.extract_strided_slice %0 {offsets = [0, 114], sizes = [32, 1], strides = [1, 1]} : vector<32x184xf32> to vector<32x1xf32>
    %cst_8 = arith.constant dense<0.000000e+00> : vector<32x32xf32>
    %27 = tpu.matmul %25, %24, %cst_8 {dimension_numbers = #tpu.dot_dimension_numbers<[1], [0], [0], [1], [0, 0, 1, 1], [], []>} : vector<32x32xf32>, vector<32x32xf32>, vector<32x32xf32> -> vector<32x32xf32>
    %28 = vector.broadcast %26 : vector<32x1xf32> to vector<32x32xf32>
    %29 = arith.addf %27, %28 : vector<32x32xf32>
    %30 = arith.mulf %29, %29 : vector<32x32xf32>
    %31 = arith.mulf %29, %30 : vector<32x32xf32>
    %cst_9 = arith.constant 4.471500e-02 : f32
    %32 = vector.broadcast %cst_9 : f32 to vector<32x32xf32>
    %33 = arith.mulf %32, %31 : vector<32x32xf32>
    %34 = arith.addf %29, %33 : vector<32x32xf32>
    %cst_10 = arith.constant 0.797884583 : f32
    %35 = vector.broadcast %cst_10 : f32 to vector<32x32xf32>
    %36 = arith.mulf %35, %34 : vector<32x32xf32>
    %37 = math.tanh %36 : vector<32x32xf32>
    %cst_11 = arith.constant 1.000000e+00 : f32
    %38 = vector.broadcast %cst_11 : f32 to vector<32x32xf32>
    %39 = arith.addf %38, %37 : vector<32x32xf32>
    %cst_12 = arith.constant 5.000000e-01 : f32
    %40 = vector.broadcast %cst_12 : f32 to vector<32x32xf32>
    %41 = arith.mulf %40, %39 : vector<32x32xf32>
    %42 = arith.mulf %29, %41 : vector<32x32xf32>
    %43 = vector.extract_strided_slice %0 {offsets = [0, 115], sizes = [32, 32], strides = [1, 1]} : vector<32x184xf32> to vector<32x32xf32>
    %44 = vector.extract_strided_slice %0 {offsets = [0, 147], sizes = [32, 1], strides = [1, 1]} : vector<32x184xf32> to vector<32x1xf32>
    %cst_13 = arith.constant dense<0.000000e+00> : vector<32x32xf32>
    %45 = tpu.matmul %43, %42, %cst_13 {dimension_numbers = #tpu.dot_dimension_numbers<[1], [0], [0], [1], [0, 0, 1, 1], [], []>} : vector<32x32xf32>, vector<32x32xf32>, vector<32x32xf32> -> vector<32x32xf32>
    %46 = vector.broadcast %44 : vector<32x1xf32> to vector<32x32xf32>
    %47 = arith.addf %45, %46 : vector<32x32xf32>
    %48 = arith.mulf %47, %47 : vector<32x32xf32>
    %49 = arith.mulf %47, %48 : vector<32x32xf32>
    %cst_14 = arith.constant 4.471500e-02 : f32
    %50 = vector.broadcast %cst_14 : f32 to vector<32x32xf32>
    %51 = arith.mulf %50, %49 : vector<32x32xf32>
    %52 = arith.addf %47, %51 : vector<32x32xf32>
    %cst_15 = arith.constant 0.797884583 : f32
    %53 = vector.broadcast %cst_15 : f32 to vector<32x32xf32>
    %54 = arith.mulf %53, %52 : vector<32x32xf32>
    %55 = math.tanh %54 : vector<32x32xf32>
    %cst_16 = arith.constant 1.000000e+00 : f32
    %56 = vector.broadcast %cst_16 : f32 to vector<32x32xf32>
    %57 = arith.addf %56, %55 : vector<32x32xf32>
    %cst_17 = arith.constant 5.000000e-01 : f32
    %58 = vector.broadcast %cst_17 : f32 to vector<32x32xf32>
    %59 = arith.mulf %58, %57 : vector<32x32xf32>
    %60 = arith.mulf %47, %59 : vector<32x32xf32>
    %61 = vector.extract_strided_slice %0 {offsets = [0, 148], sizes = [32, 32], strides = [1, 1]} : vector<32x184xf32> to vector<32x32xf32>
    %62 = vector.extract_strided_slice %0 {offsets = [0, 180], sizes = [32, 1], strides = [1, 1]} : vector<32x184xf32> to vector<32x1xf32>
    %cst_18 = arith.constant dense<0.000000e+00> : vector<32x32xf32>
    %63 = tpu.matmul %61, %60, %cst_18 {dimension_numbers = #tpu.dot_dimension_numbers<[1], [0], [0], [1], [0, 0, 1, 1], [], []>} : vector<32x32xf32>, vector<32x32xf32>, vector<32x32xf32> -> vector<32x32xf32>
    %64 = vector.broadcast %62 : vector<32x1xf32> to vector<32x32xf32>
    %65 = arith.addf %63, %64 : vector<32x32xf32>
    %66 = arith.mulf %65, %65 : vector<32x32xf32>
    %67 = arith.mulf %65, %66 : vector<32x32xf32>
    %cst_19 = arith.constant 4.471500e-02 : f32
    %68 = vector.broadcast %cst_19 : f32 to vector<32x32xf32>
    %69 = arith.mulf %68, %67 : vector<32x32xf32>
    %70 = arith.addf %65, %69 : vector<32x32xf32>
    %cst_20 = arith.constant 0.797884583 : f32
    %71 = vector.broadcast %cst_20 : f32 to vector<32x32xf32>
    %72 = arith.mulf %71, %70 : vector<32x32xf32>
    %73 = math.tanh %72 : vector<32x32xf32>
    %cst_21 = arith.constant 1.000000e+00 : f32
    %74 = vector.broadcast %cst_21 : f32 to vector<32x32xf32>
    %75 = arith.addf %74, %73 : vector<32x32xf32>
    %cst_22 = arith.constant 5.000000e-01 : f32
    %76 = vector.broadcast %cst_22 : f32 to vector<32x32xf32>
    %77 = arith.mulf %76, %75 : vector<32x32xf32>
    %78 = arith.mulf %65, %77 : vector<32x32xf32>
    %79 = arith.truncf %42 : vector<32x32xf32> to vector<32x32xbf16>
    %80 = arith.truncf %78 : vector<32x32xf32> to vector<32x32xbf16>
    %c0_23 = arith.constant 0 : index
    %c0_24 = arith.constant 0 : index
    %81 = vector.load %arg3[%c0_23, %c0_24] : memref<64x640xbf16, #tpu.memory_space<vmem>>, vector<64x640xbf16>
    %82 = vector.extract_strided_slice %81 {offsets = [0, 0], sizes = [64, 32], strides = [1, 1]} : vector<64x640xbf16> to vector<64x32xbf16>
    %83 = vector.extract_strided_slice %81 {offsets = [0, 32], sizes = [64, 32], strides = [1, 1]} : vector<64x640xbf16> to vector<64x32xbf16>
    %84 = vector.extract_strided_slice %81 {offsets = [0, 64], sizes = [16, 288], strides = [1, 1]} : vector<64x640xbf16> to vector<16x288xbf16>
    %85 = vector.extract_strided_slice %81 {offsets = [0, 352], sizes = [32, 16], strides = [1, 1]} : vector<64x640xbf16> to vector<32x16xbf16>
    %86 = vector.extract_strided_slice %81 {offsets = [0, 368], sizes = [8, 72], strides = [1, 1]} : vector<64x640xbf16> to vector<8x72xbf16>
    %87 = vector.extract_strided_slice %81 {offsets = [0, 440], sizes = [8, 144], strides = [1, 1]} : vector<64x640xbf16> to vector<8x144xbf16>
    %88 = vector.extract_strided_slice %81 {offsets = [0, 584], sizes = [8, 8], strides = [1, 1]} : vector<64x640xbf16> to vector<8x8xbf16>
    %89 = vector.extract_strided_slice %81 {offsets = [0, 592], sizes = [64, 7], strides = [1, 1]} : vector<64x640xbf16> to vector<64x7xbf16>
    %90 = arith.extf %89 : vector<64x7xbf16> to vector<64x7xf32>
    %91 = vector.extract_strided_slice %90 {offsets = [0, 0], sizes = [16, 1], strides = [1, 1]} : vector<64x7xf32> to vector<16x1xf32>
    %92 = vector.extract_strided_slice %90 {offsets = [0, 1], sizes = [16, 1], strides = [1, 1]} : vector<64x7xf32> to vector<16x1xf32>
    %93 = vector.extract_strided_slice %90 {offsets = [0, 2], sizes = [16, 1], strides = [1, 1]} : vector<64x7xf32> to vector<16x1xf32>
    %94 = vector.extract_strided_slice %90 {offsets = [0, 3], sizes = [8, 1], strides = [1, 1]} : vector<64x7xf32> to vector<8x1xf32>
    %95 = vector.extract_strided_slice %90 {offsets = [0, 4], sizes = [8, 1], strides = [1, 1]} : vector<64x7xf32> to vector<8x1xf32>
    %96 = vector.extract_strided_slice %90 {offsets = [0, 5], sizes = [8, 1], strides = [1, 1]} : vector<64x7xf32> to vector<8x1xf32>
    %97 = vector.extract_strided_slice %90 {offsets = [0, 6], sizes = [8, 1], strides = [1, 1]} : vector<64x7xf32> to vector<8x1xf32>
    %98 = vector.extract_strided_slice %82 {offsets = [0, 0], sizes = [16, 32], strides = [1, 1]} : vector<64x32xbf16> to vector<16x32xbf16>
    %cst_25 = arith.constant dense<0.000000e+00> : vector<16x32xf32>
    %99 = tpu.matmul %98, %80, %cst_25 {dimension_numbers = #tpu.dot_dimension_numbers<[1], [0], [0], [1], [0, 0, 1, 1], [], []>} : vector<16x32xbf16>, vector<32x32xbf16>, vector<16x32xf32> -> vector<16x32xf32>
    %100 = vector.broadcast %91 : vector<16x1xf32> to vector<16x32xf32>
    %101 = arith.addf %99, %100 : vector<16x32xf32>
    %102 = arith.truncf %101 : vector<16x32xf32> to vector<16x32xbf16>
    %c0_26 = arith.constant 0 : index
    %c0_27 = arith.constant 0 : index
    %103 = vector.load %arg4[%c0_26, %c0_27] : memref<128x256xbf16, #tpu.memory_space<vmem>>, vector<32x256xbf16>
    %cst_28 = arith.constant dense<0.000000e+00> : vector<16x256xf32>
    %104 = tpu.matmul %102, %103, %cst_28 {dimension_numbers = #tpu.dot_dimension_numbers<[1], [0], [0], [1], [0, 0, 1, 1], [], []>} : vector<16x32xbf16>, vector<32x256xbf16>, vector<16x256xf32> -> vector<16x256xf32>
    %105 = vector.extract_strided_slice %82 {offsets = [16, 0], sizes = [16, 32], strides = [1, 1]} : vector<64x32xbf16> to vector<16x32xbf16>
    %cst_29 = arith.constant dense<0.000000e+00> : vector<16x32xf32>
    %106 = tpu.matmul %105, %80, %cst_29 {dimension_numbers = #tpu.dot_dimension_numbers<[1], [0], [0], [1], [0, 0, 1, 1], [], []>} : vector<16x32xbf16>, vector<32x32xbf16>, vector<16x32xf32> -> vector<16x32xf32>
    %107 = vector.broadcast %91 : vector<16x1xf32> to vector<16x32xf32>
    %108 = arith.addf %106, %107 : vector<16x32xf32>
    %109 = arith.truncf %108 : vector<16x32xf32> to vector<16x32xbf16>
    %c32 = arith.constant 32 : index
    %c0_30 = arith.constant 0 : index
    %110 = vector.load %arg4[%c32, %c0_30] : memref<128x256xbf16, #tpu.memory_space<vmem>>, vector<32x256xbf16>
    %cst_31 = arith.constant dense<0.000000e+00> : vector<16x256xf32>
    %111 = tpu.matmul %109, %110, %cst_31 {dimension_numbers = #tpu.dot_dimension_numbers<[1], [0], [0], [1], [0, 0, 1, 1], [], []>} : vector<16x32xbf16>, vector<32x256xbf16>, vector<16x256xf32> -> vector<16x256xf32>
    %112 = vector.extract_strided_slice %82 {offsets = [32, 0], sizes = [16, 32], strides = [1, 1]} : vector<64x32xbf16> to vector<16x32xbf16>
    %cst_32 = arith.constant dense<0.000000e+00> : vector<16x32xf32>
    %113 = tpu.matmul %112, %80, %cst_32 {dimension_numbers = #tpu.dot_dimension_numbers<[1], [0], [0], [1], [0, 0, 1, 1], [], []>} : vector<16x32xbf16>, vector<32x32xbf16>, vector<16x32xf32> -> vector<16x32xf32>
    %114 = vector.broadcast %91 : vector<16x1xf32> to vector<16x32xf32>
    %115 = arith.addf %113, %114 : vector<16x32xf32>
    %116 = arith.truncf %115 : vector<16x32xf32> to vector<16x32xbf16>
    %c64 = arith.constant 64 : index
    %c0_33 = arith.constant 0 : index
    %117 = vector.load %arg4[%c64, %c0_33] : memref<128x256xbf16, #tpu.memory_space<vmem>>, vector<32x256xbf16>
    %cst_34 = arith.constant dense<0.000000e+00> : vector<16x256xf32>
    %118 = tpu.matmul %116, %117, %cst_34 {dimension_numbers = #tpu.dot_dimension_numbers<[1], [0], [0], [1], [0, 0, 1, 1], [], []>} : vector<16x32xbf16>, vector<32x256xbf16>, vector<16x256xf32> -> vector<16x256xf32>
    %119 = vector.extract_strided_slice %82 {offsets = [48, 0], sizes = [16, 32], strides = [1, 1]} : vector<64x32xbf16> to vector<16x32xbf16>
    %cst_35 = arith.constant dense<0.000000e+00> : vector<16x32xf32>
    %120 = tpu.matmul %119, %80, %cst_35 {dimension_numbers = #tpu.dot_dimension_numbers<[1], [0], [0], [1], [0, 0, 1, 1], [], []>} : vector<16x32xbf16>, vector<32x32xbf16>, vector<16x32xf32> -> vector<16x32xf32>
    %121 = vector.broadcast %91 : vector<16x1xf32> to vector<16x32xf32>
    %122 = arith.addf %120, %121 : vector<16x32xf32>
    %123 = arith.truncf %122 : vector<16x32xf32> to vector<16x32xbf16>
    %c96 = arith.constant 96 : index
    %c0_36 = arith.constant 0 : index
    %124 = vector.load %arg4[%c96, %c0_36] : memref<128x256xbf16, #tpu.memory_space<vmem>>, vector<32x256xbf16>
    %cst_37 = arith.constant dense<0.000000e+00> : vector<16x256xf32>
    %125 = tpu.matmul %123, %124, %cst_37 {dimension_numbers = #tpu.dot_dimension_numbers<[1], [0], [0], [1], [0, 0, 1, 1], [], []>} : vector<16x32xbf16>, vector<32x256xbf16>, vector<16x256xf32> -> vector<16x256xf32>
    %126 = arith.addf %104, %111 : vector<16x256xf32>
    %127 = arith.addf %118, %125 : vector<16x256xf32>
    %128 = arith.addf %126, %127 : vector<16x256xf32>
    %129 = vector.extract_strided_slice %83 {offsets = [0, 0], sizes = [16, 32], strides = [1, 1]} : vector<64x32xbf16> to vector<16x32xbf16>
    %cst_38 = arith.constant dense<0.000000e+00> : vector<16x32xf32>
    %130 = tpu.matmul %129, %79, %cst_38 {dimension_numbers = #tpu.dot_dimension_numbers<[1], [0], [0], [1], [0, 0, 1, 1], [], []>} : vector<16x32xbf16>, vector<32x32xbf16>, vector<16x32xf32> -> vector<16x32xf32>
    %131 = vector.broadcast %92 : vector<16x1xf32> to vector<16x32xf32>
    %132 = arith.addf %130, %131 : vector<16x32xf32>
    %cst_39 = arith.constant 0.000000e+00 : f32
    %133 = vector.broadcast %cst_39 : f32 to vector<16x32xf32>
    %134 = arith.maximumf %132, %133 : vector<16x32xf32>
    %135 = arith.truncf %134 : vector<16x32xf32> to vector<16x32xbf16>
    %c0_40 = arith.constant 0 : index
    %c0_41 = arith.constant 0 : index
    %136 = vector.load %arg4[%c0_40, %c0_41] : memref<128x256xbf16, #tpu.memory_space<vmem>>, vector<32x256xbf16>
    %cst_42 = arith.constant dense<0.000000e+00> : vector<16x256xf32>
    %137 = tpu.matmul %135, %136, %cst_42 {dimension_numbers = #tpu.dot_dimension_numbers<[1], [0], [0], [1], [0, 0, 1, 1], [], []>} : vector<16x32xbf16>, vector<32x256xbf16>, vector<16x256xf32> -> vector<16x256xf32>
    %138 = vector.extract_strided_slice %83 {offsets = [16, 0], sizes = [16, 32], strides = [1, 1]} : vector<64x32xbf16> to vector<16x32xbf16>
    %cst_43 = arith.constant dense<0.000000e+00> : vector<16x32xf32>
    %139 = tpu.matmul %138, %79, %cst_43 {dimension_numbers = #tpu.dot_dimension_numbers<[1], [0], [0], [1], [0, 0, 1, 1], [], []>} : vector<16x32xbf16>, vector<32x32xbf16>, vector<16x32xf32> -> vector<16x32xf32>
    %140 = vector.broadcast %92 : vector<16x1xf32> to vector<16x32xf32>
    %141 = arith.addf %139, %140 : vector<16x32xf32>
    %cst_44 = arith.constant 0.000000e+00 : f32
    %142 = vector.broadcast %cst_44 : f32 to vector<16x32xf32>
    %143 = arith.maximumf %141, %142 : vector<16x32xf32>
    %144 = arith.truncf %143 : vector<16x32xf32> to vector<16x32xbf16>
    %c32_45 = arith.constant 32 : index
    %c0_46 = arith.constant 0 : index
    %145 = vector.load %arg4[%c32_45, %c0_46] : memref<128x256xbf16, #tpu.memory_space<vmem>>, vector<32x256xbf16>
    %cst_47 = arith.constant dense<0.000000e+00> : vector<16x256xf32>
    %146 = tpu.matmul %144, %145, %cst_47 {dimension_numbers = #tpu.dot_dimension_numbers<[1], [0], [0], [1], [0, 0, 1, 1], [], []>} : vector<16x32xbf16>, vector<32x256xbf16>, vector<16x256xf32> -> vector<16x256xf32>
    %147 = vector.extract_strided_slice %83 {offsets = [32, 0], sizes = [16, 32], strides = [1, 1]} : vector<64x32xbf16> to vector<16x32xbf16>
    %cst_48 = arith.constant dense<0.000000e+00> : vector<16x32xf32>
    %148 = tpu.matmul %147, %79, %cst_48 {dimension_numbers = #tpu.dot_dimension_numbers<[1], [0], [0], [1], [0, 0, 1, 1], [], []>} : vector<16x32xbf16>, vector<32x32xbf16>, vector<16x32xf32> -> vector<16x32xf32>
    %149 = vector.broadcast %92 : vector<16x1xf32> to vector<16x32xf32>
    %150 = arith.addf %148, %149 : vector<16x32xf32>
    %cst_49 = arith.constant 0.000000e+00 : f32
    %151 = vector.broadcast %cst_49 : f32 to vector<16x32xf32>
    %152 = arith.maximumf %150, %151 : vector<16x32xf32>
    %153 = arith.truncf %152 : vector<16x32xf32> to vector<16x32xbf16>
    %c64_50 = arith.constant 64 : index
    %c0_51 = arith.constant 0 : index
    %154 = vector.load %arg4[%c64_50, %c0_51] : memref<128x256xbf16, #tpu.memory_space<vmem>>, vector<32x256xbf16>
    %cst_52 = arith.constant dense<0.000000e+00> : vector<16x256xf32>
    %155 = tpu.matmul %153, %154, %cst_52 {dimension_numbers = #tpu.dot_dimension_numbers<[1], [0], [0], [1], [0, 0, 1, 1], [], []>} : vector<16x32xbf16>, vector<32x256xbf16>, vector<16x256xf32> -> vector<16x256xf32>
    %156 = vector.extract_strided_slice %83 {offsets = [48, 0], sizes = [16, 32], strides = [1, 1]} : vector<64x32xbf16> to vector<16x32xbf16>
    %cst_53 = arith.constant dense<0.000000e+00> : vector<16x32xf32>
    %157 = tpu.matmul %156, %79, %cst_53 {dimension_numbers = #tpu.dot_dimension_numbers<[1], [0], [0], [1], [0, 0, 1, 1], [], []>} : vector<16x32xbf16>, vector<32x32xbf16>, vector<16x32xf32> -> vector<16x32xf32>
    %158 = vector.broadcast %92 : vector<16x1xf32> to vector<16x32xf32>
    %159 = arith.addf %157, %158 : vector<16x32xf32>
    %cst_54 = arith.constant 0.000000e+00 : f32
    %160 = vector.broadcast %cst_54 : f32 to vector<16x32xf32>
    %161 = arith.maximumf %159, %160 : vector<16x32xf32>
    %162 = arith.truncf %161 : vector<16x32xf32> to vector<16x32xbf16>
    %c96_55 = arith.constant 96 : index
    %c0_56 = arith.constant 0 : index
    %163 = vector.load %arg4[%c96_55, %c0_56] : memref<128x256xbf16, #tpu.memory_space<vmem>>, vector<32x256xbf16>
    %cst_57 = arith.constant dense<0.000000e+00> : vector<16x256xf32>
    %164 = tpu.matmul %162, %163, %cst_57 {dimension_numbers = #tpu.dot_dimension_numbers<[1], [0], [0], [1], [0, 0, 1, 1], [], []>} : vector<16x32xbf16>, vector<32x256xbf16>, vector<16x256xf32> -> vector<16x256xf32>
    %165 = arith.addf %137, %146 : vector<16x256xf32>
    %166 = arith.addf %155, %164 : vector<16x256xf32>
    %167 = arith.addf %165, %166 : vector<16x256xf32>
    %168 = tpu.concatenate %128, %167 in 0 : vector<16x256xf32>, vector<16x256xf32> -> vector<32x256xf32>
    %169 = vector.extract_strided_slice %168 {offsets = [0, 5], sizes = [32, 200], strides = [1, 1]} : vector<32x256xf32> to vector<32x200xf32>
    %170 = vector.extract_strided_slice %168 {offsets = [0, 6], sizes = [32, 200], strides = [1, 1]} : vector<32x256xf32> to vector<32x200xf32>
    %171 = vector.extract_strided_slice %168 {offsets = [0, 7], sizes = [32, 200], strides = [1, 1]} : vector<32x256xf32> to vector<32x200xf32>
    %172 = vector.extract_strided_slice %168 {offsets = [0, 15], sizes = [32, 200], strides = [1, 1]} : vector<32x256xf32> to vector<32x200xf32>
    %173 = vector.extract_strided_slice %168 {offsets = [0, 16], sizes = [32, 200], strides = [1, 1]} : vector<32x256xf32> to vector<32x200xf32>
    %174 = vector.extract_strided_slice %168 {offsets = [0, 17], sizes = [32, 200], strides = [1, 1]} : vector<32x256xf32> to vector<32x200xf32>
    %175 = vector.extract_strided_slice %168 {offsets = [0, 25], sizes = [32, 200], strides = [1, 1]} : vector<32x256xf32> to vector<32x200xf32>
    %176 = vector.extract_strided_slice %168 {offsets = [0, 26], sizes = [32, 200], strides = [1, 1]} : vector<32x256xf32> to vector<32x200xf32>
    %177 = vector.extract_strided_slice %168 {offsets = [0, 27], sizes = [32, 200], strides = [1, 1]} : vector<32x256xf32> to vector<32x200xf32>
    %178 = tpu.concatenate %169, %170, %171, %172, %173, %174, %175, %176, %177 in 0 : vector<32x200xf32>, vector<32x200xf32>, vector<32x200xf32>, vector<32x200xf32>, vector<32x200xf32>, vector<32x200xf32>, vector<32x200xf32>, vector<32x200xf32>, vector<32x200xf32> -> vector<288x200xf32>
    %179 = arith.truncf %178 : vector<288x200xf32> to vector<288x200xbf16>
    %cst_58 = arith.constant dense<0.000000e+00> : vector<16x200xf32>
    %180 = tpu.matmul %84, %179, %cst_58 {dimension_numbers = #tpu.dot_dimension_numbers<[1], [0], [0], [1], [0, 0, 1, 1], [], []>} : vector<16x288xbf16>, vector<288x200xbf16>, vector<16x200xf32> -> vector<16x200xf32>
    %181 = vector.broadcast %93 : vector<16x1xf32> to vector<16x200xf32>
    %182 = arith.addf %180, %181 : vector<16x200xf32>
    %cst_59 = arith.constant 0.000000e+00 : f32
    %183 = vector.broadcast %cst_59 : f32 to vector<16x200xf32>
    %184 = arith.maximumf %182, %183 : vector<16x200xf32>
    %185 = arith.truncf %184 : vector<16x200xf32> to vector<16x200xbf16>
    %186 = vector.extract_strided_slice %85 {offsets = [0, 0], sizes = [8, 16], strides = [1, 1]} : vector<32x16xbf16> to vector<8x16xbf16>
    %cst_60 = arith.constant dense<0.000000e+00> : vector<8x200xf32>
    %187 = tpu.matmul %186, %185, %cst_60 {dimension_numbers = #tpu.dot_dimension_numbers<[1], [0], [0], [1], [0, 0, 1, 1], [], []>} : vector<8x16xbf16>, vector<16x200xbf16>, vector<8x200xf32> -> vector<8x200xf32>
    %188 = vector.broadcast %94 : vector<8x1xf32> to vector<8x200xf32>
    %189 = arith.addf %187, %188 : vector<8x200xf32>
    %190 = arith.truncf %189 : vector<8x200xf32> to vector<8x200xbf16>
    %c0_61 = arith.constant 0 : index
    %c0_62 = arith.constant 0 : index
    %191 = vector.load %arg5[%c0_61, %c0_62] : memref<800x896xbf16, #tpu.memory_space<vmem>>, vector<200x896xbf16>
    %cst_63 = arith.constant dense<0.000000e+00> : vector<8x896xf32>
    %192 = tpu.matmul %190, %191, %cst_63 {dimension_numbers = #tpu.dot_dimension_numbers<[1], [0], [0], [1], [0, 0, 1, 1], [], []>} : vector<8x200xbf16>, vector<200x896xbf16>, vector<8x896xf32> -> vector<8x896xf32>
    %193 = vector.extract_strided_slice %85 {offsets = [8, 0], sizes = [8, 16], strides = [1, 1]} : vector<32x16xbf16> to vector<8x16xbf16>
    %cst_64 = arith.constant dense<0.000000e+00> : vector<8x200xf32>
    %194 = tpu.matmul %193, %185, %cst_64 {dimension_numbers = #tpu.dot_dimension_numbers<[1], [0], [0], [1], [0, 0, 1, 1], [], []>} : vector<8x16xbf16>, vector<16x200xbf16>, vector<8x200xf32> -> vector<8x200xf32>
    %195 = vector.broadcast %94 : vector<8x1xf32> to vector<8x200xf32>
    %196 = arith.addf %194, %195 : vector<8x200xf32>
    %197 = arith.truncf %196 : vector<8x200xf32> to vector<8x200xbf16>
    %c200 = arith.constant 200 : index
    %c0_65 = arith.constant 0 : index
    %198 = vector.load %arg5[%c200, %c0_65] : memref<800x896xbf16, #tpu.memory_space<vmem>>, vector<200x896xbf16>
    %cst_66 = arith.constant dense<0.000000e+00> : vector<8x896xf32>
    %199 = tpu.matmul %197, %198, %cst_66 {dimension_numbers = #tpu.dot_dimension_numbers<[1], [0], [0], [1], [0, 0, 1, 1], [], []>} : vector<8x200xbf16>, vector<200x896xbf16>, vector<8x896xf32> -> vector<8x896xf32>
    %200 = vector.extract_strided_slice %85 {offsets = [16, 0], sizes = [8, 16], strides = [1, 1]} : vector<32x16xbf16> to vector<8x16xbf16>
    %cst_67 = arith.constant dense<0.000000e+00> : vector<8x200xf32>
    %201 = tpu.matmul %200, %185, %cst_67 {dimension_numbers = #tpu.dot_dimension_numbers<[1], [0], [0], [1], [0, 0, 1, 1], [], []>} : vector<8x16xbf16>, vector<16x200xbf16>, vector<8x200xf32> -> vector<8x200xf32>
    %202 = vector.broadcast %94 : vector<8x1xf32> to vector<8x200xf32>
    %203 = arith.addf %201, %202 : vector<8x200xf32>
    %204 = arith.truncf %203 : vector<8x200xf32> to vector<8x200xbf16>
    %c400 = arith.constant 400 : index
    %c0_68 = arith.constant 0 : index
    %205 = vector.load %arg5[%c400, %c0_68] : memref<800x896xbf16, #tpu.memory_space<vmem>>, vector<200x896xbf16>
    %cst_69 = arith.constant dense<0.000000e+00> : vector<8x896xf32>
    %206 = tpu.matmul %204, %205, %cst_69 {dimension_numbers = #tpu.dot_dimension_numbers<[1], [0], [0], [1], [0, 0, 1, 1], [], []>} : vector<8x200xbf16>, vector<200x896xbf16>, vector<8x896xf32> -> vector<8x896xf32>
    %207 = vector.extract_strided_slice %85 {offsets = [24, 0], sizes = [8, 16], strides = [1, 1]} : vector<32x16xbf16> to vector<8x16xbf16>
    %cst_70 = arith.constant dense<0.000000e+00> : vector<8x200xf32>
    %208 = tpu.matmul %207, %185, %cst_70 {dimension_numbers = #tpu.dot_dimension_numbers<[1], [0], [0], [1], [0, 0, 1, 1], [], []>} : vector<8x16xbf16>, vector<16x200xbf16>, vector<8x200xf32> -> vector<8x200xf32>
    %209 = vector.broadcast %94 : vector<8x1xf32> to vector<8x200xf32>
    %210 = arith.addf %208, %209 : vector<8x200xf32>
    %211 = arith.truncf %210 : vector<8x200xf32> to vector<8x200xbf16>
    %c600 = arith.constant 600 : index
    %c0_71 = arith.constant 0 : index
    %212 = vector.load %arg5[%c600, %c0_71] : memref<800x896xbf16, #tpu.memory_space<vmem>>, vector<200x896xbf16>
    %cst_72 = arith.constant dense<0.000000e+00> : vector<8x896xf32>
    %213 = tpu.matmul %211, %212, %cst_72 {dimension_numbers = #tpu.dot_dimension_numbers<[1], [0], [0], [1], [0, 0, 1, 1], [], []>} : vector<8x200xbf16>, vector<200x896xbf16>, vector<8x896xf32> -> vector<8x896xf32>
    %214 = arith.addf %192, %199 : vector<8x896xf32>
    %215 = arith.addf %206, %213 : vector<8x896xf32>
    %216 = arith.addf %214, %215 : vector<8x896xf32>
    %c0_73 = arith.constant 0 : index
    %c0_74 = arith.constant 0 : index
    %217 = vector.load %arg1[%c0_73, %c0_74] : memref<8x944xf32, #tpu.memory_space<vmem>>, vector<8x944xf32>
    %218 = vector.extract_strided_slice %217 {offsets = [0, 5], sizes = [8, 896], strides = [1, 1]} : vector<8x944xf32> to vector<8x896xf32>
    %219 = vector.extract_strided_slice %217 {offsets = [0, 6], sizes = [8, 896], strides = [1, 1]} : vector<8x944xf32> to vector<8x896xf32>
    %220 = vector.extract_strided_slice %217 {offsets = [0, 7], sizes = [8, 896], strides = [1, 1]} : vector<8x944xf32> to vector<8x896xf32>
    %221 = vector.extract_strided_slice %217 {offsets = [0, 23], sizes = [8, 896], strides = [1, 1]} : vector<8x944xf32> to vector<8x896xf32>
    %222 = vector.extract_strided_slice %217 {offsets = [0, 24], sizes = [8, 896], strides = [1, 1]} : vector<8x944xf32> to vector<8x896xf32>
    %223 = vector.extract_strided_slice %217 {offsets = [0, 25], sizes = [8, 896], strides = [1, 1]} : vector<8x944xf32> to vector<8x896xf32>
    %224 = vector.extract_strided_slice %217 {offsets = [0, 41], sizes = [8, 896], strides = [1, 1]} : vector<8x944xf32> to vector<8x896xf32>
    %225 = vector.extract_strided_slice %217 {offsets = [0, 42], sizes = [8, 896], strides = [1, 1]} : vector<8x944xf32> to vector<8x896xf32>
    %226 = vector.extract_strided_slice %217 {offsets = [0, 43], sizes = [8, 896], strides = [1, 1]} : vector<8x944xf32> to vector<8x896xf32>
    %227 = tpu.concatenate %218, %219, %220, %221, %222, %223, %224, %225, %226 in 0 : vector<8x896xf32>, vector<8x896xf32>, vector<8x896xf32>, vector<8x896xf32>, vector<8x896xf32>, vector<8x896xf32>, vector<8x896xf32>, vector<8x896xf32>, vector<8x896xf32> -> vector<72x896xf32>
    %228 = arith.truncf %227 : vector<72x896xf32> to vector<72x896xbf16>
    %cst_75 = arith.constant dense<0.000000e+00> : vector<8x896xf32>
    %229 = tpu.matmul %86, %228, %cst_75 {dimension_numbers = #tpu.dot_dimension_numbers<[1], [0], [0], [1], [0, 0, 1, 1], [], []>} : vector<8x72xbf16>, vector<72x896xbf16>, vector<8x896xf32> -> vector<8x896xf32>
    %230 = vector.broadcast %95 : vector<8x1xf32> to vector<8x896xf32>
    %231 = arith.addf %229, %230 : vector<8x896xf32>
    %cst_76 = arith.constant 0.000000e+00 : f32
    %232 = vector.broadcast %cst_76 : f32 to vector<8x896xf32>
    %233 = arith.maximumf %231, %232 : vector<8x896xf32>
    %c0_77 = arith.constant 0 : index
    %c0_78 = arith.constant 0 : index
    %234 = vector.load %arg6[%c0_77, %c0_78] : memref<1x896xf32, #tpu.memory_space<vmem>>, vector<1x896xf32>
    %235 = vector.broadcast %234 : vector<1x896xf32> to vector<8x896xf32>
    %236 = arith.mulf %233, %235 : vector<8x896xf32>
    %237 = tpu.concatenate %216, %236 in 0 : vector<8x896xf32>, vector<8x896xf32> -> vector<16x896xf32>
    %238 = vector.extract_strided_slice %237 {offsets = [0, 5], sizes = [16, 768], strides = [1, 1]} : vector<16x896xf32> to vector<16x768xf32>
    %239 = vector.extract_strided_slice %237 {offsets = [0, 6], sizes = [16, 768], strides = [1, 1]} : vector<16x896xf32> to vector<16x768xf32>
    %240 = vector.extract_strided_slice %237 {offsets = [0, 7], sizes = [16, 768], strides = [1, 1]} : vector<16x896xf32> to vector<16x768xf32>
    %241 = vector.extract_strided_slice %237 {offsets = [0, 23], sizes = [16, 768], strides = [1, 1]} : vector<16x896xf32> to vector<16x768xf32>
    %242 = vector.extract_strided_slice %237 {offsets = [0, 24], sizes = [16, 768], strides = [1, 1]} : vector<16x896xf32> to vector<16x768xf32>
    %243 = vector.extract_strided_slice %237 {offsets = [0, 25], sizes = [16, 768], strides = [1, 1]} : vector<16x896xf32> to vector<16x768xf32>
    %244 = vector.extract_strided_slice %237 {offsets = [0, 41], sizes = [16, 768], strides = [1, 1]} : vector<16x896xf32> to vector<16x768xf32>
    %245 = vector.extract_strided_slice %237 {offsets = [0, 42], sizes = [16, 768], strides = [1, 1]} : vector<16x896xf32> to vector<16x768xf32>
    %246 = vector.extract_strided_slice %237 {offsets = [0, 43], sizes = [16, 768], strides = [1, 1]} : vector<16x896xf32> to vector<16x768xf32>
    %247 = tpu.concatenate %238, %239, %240, %241, %242, %243, %244, %245, %246 in 0 : vector<16x768xf32>, vector<16x768xf32>, vector<16x768xf32>, vector<16x768xf32>, vector<16x768xf32>, vector<16x768xf32>, vector<16x768xf32>, vector<16x768xf32>, vector<16x768xf32> -> vector<144x768xf32>
    %248 = arith.truncf %247 : vector<144x768xf32> to vector<144x768xbf16>
    %cst_79 = arith.constant dense<0.000000e+00> : vector<8x768xf32>
    %249 = tpu.matmul %87, %248, %cst_79 {dimension_numbers = #tpu.dot_dimension_numbers<[1], [0], [0], [1], [0, 0, 1, 1], [], []>} : vector<8x144xbf16>, vector<144x768xbf16>, vector<8x768xf32> -> vector<8x768xf32>
    %250 = vector.broadcast %96 : vector<8x1xf32> to vector<8x768xf32>
    %251 = arith.addf %249, %250 : vector<8x768xf32>
    %cst_80 = arith.constant 0.000000e+00 : f32
    %252 = vector.broadcast %cst_80 : f32 to vector<8x768xf32>
    %253 = arith.maximumf %251, %252 : vector<8x768xf32>
    %254 = arith.truncf %253 : vector<8x768xf32> to vector<8x768xbf16>
    %cst_81 = arith.constant dense<0.000000e+00> : vector<8x768xf32>
    %255 = tpu.matmul %88, %254, %cst_81 {dimension_numbers = #tpu.dot_dimension_numbers<[1], [0], [0], [1], [0, 0, 1, 1], [], []>} : vector<8x8xbf16>, vector<8x768xbf16>, vector<8x768xf32> -> vector<8x768xf32>
    %256 = vector.broadcast %97 : vector<8x1xf32> to vector<8x768xf32>
    %257 = arith.addf %255, %256 : vector<8x768xf32>
    %c0_82 = arith.constant 0 : index
    %c0_83 = arith.constant 0 : index
    %258 = vector.load %arg7[%c0_82, %c0_83] : memref<8x768xf32, #tpu.memory_space<vmem>>, vector<8x768xf32>
    tpu.vector_store %arg7[%c0_82, %c0_83], %257 {strides = array<i32>} : memref<8x768xf32, #tpu.memory_space<vmem>>, vector<8x768xf32>,
    return
  }
}

</mosaic_0001>

<llo_original>
// kernel: testunetr_forward.1
$region0: #{testunetr_forward.1}
  #allocation0 [shape = 'u32[]', space=smem, size = 0x4, offset = 0x4, fixed_abs, tag = 'smem constant byte address 0x4 - core index']
  #allocation1 [shape = 'u32[144,128]{1,0:T(1,128)}', space=vmem, size = 0x12000, scoped, tag = 'internal scratch']
  %s0 = inlined_call_operand.vmem [shape: f32[48,32], index: 0, kind: input, shape index: {}]
  %s1 = inlined_call_operand.vmem [shape: f32[8,944], index: 1, kind: input, shape index: {}]
  %s2 = inlined_call_operand.hbm [shape: f32[32,184], index: 2, kind: input, shape index: {}]
  %s3 = inlined_call_operand.hbm [shape: bf16[64,640], index: 3, kind: input, shape index: {}]
  %s4 = inlined_call_operand.hbm [shape: bf16[128,256], index: 4, kind: input, shape index: {}]
  %s5 = inlined_call_operand.hbm [shape: bf16[800,896], index: 5, kind: input, shape index: {}]
  %s6 = inlined_call_operand.hbm [shape: f32[1,896], index: 6, kind: input, shape index: {}]
  %s7 = inlined_call_operand.vmem [shape: f32[8,768], index: 7, kind: output, shape index: {}]
  %s8 = sld [smem:[#allocation0]]
  $region58: #{testunetr_forward.1} parent=0
    _
  %s10 = ssub.s32 1, %s8
  %s11 = scalar_select 0, %s10, %s8
  $region1: #{testunetr_forward.1} parent=0
    #allocation2 [shape = 'u8[32768]{0}', space=vmem, size = 0x8000, scoped, tag = 'input window, operand 2, single buffered']
    #allocation3 [shape = 's32[1]{0}', space=sflag, size = 0x4, scoped, tag = 'scoped memory for testunetr_forward.1']
    #allocation4 [shape = 'u8[81920]{0}', space=vmem, size = 0x14000, scoped, tag = 'input window, operand 3, single buffered']
    #allocation5 [shape = 's32[1]{0}', space=sflag, size = 0x4, scoped, tag = 'scoped memory for testunetr_forward.1']
    #allocation6 [shape = 'u8[65536]{0}', space=vmem, size = 0x10000, scoped, tag = 'input window, operand 4, single buffered']
    #allocation7 [shape = 'u8[1433600]{0}', space=vmem, size = 0x15e000, scoped, tag = 'input window, operand 5, single buffered']
    #allocation8 [shape = 's32[1]{0}', space=sflag, size = 0x4, scoped, tag = 'scoped memory for testunetr_forward.1']
    #allocation9 [shape = 'u8[3584]{0}', space=vmem, size = 0x1000, scoped, tag = 'input window, operand 6, single buffered']
    %12 = vsyncpa [#allocation3], 0
    %13 = vsyncpa [#allocation5], 0
    %14 = vsyncpa [#allocation8], 0
    // Predicated region
    $region2: #{testunetr_forward.1} parent=1 // pred_check
      _
    $region3: #{testunetr_forward.1} parent=1 // pred_check_branch
      %16 = sbr.rel (0) target = $region5
    $region4: #{testunetr_forward.1} parent=1 // pred_region
      _
    $region5: #{testunetr_forward.1} parent=1 // pred_fallthru
      _
    // Predicated region
    $region6: #{testunetr_forward.1} parent=1 // pred_check
      _
    $region7: #{testunetr_forward.1} parent=1 // pred_check_branch
      %18 = sbr.rel (0) target = $region9
    $region8: #{testunetr_forward.1} parent=1 // pred_region
      _
    $region9: #{testunetr_forward.1} parent=1 // pred_fallthru
      _
    // Predicated region
    $region10: #{testunetr_forward.1} parent=1 // pred_check
      _
    $region11: #{testunetr_forward.1} parent=1 // pred_check_branch
      %20 = sbr.rel (0) target = $region13
    $region12: #{testunetr_forward.1} parent=1 // pred_region
      %s22 = ssub.s32 1024, 1024
      %23 = vsyncadd [#allocation3], %s22
      %s24 = sshll.u32 [#allocation2], 4
      %s25 = int_to_ptr.vmem [resolvable:$true] %s24
      %30 = dma.hbm_to_vmem [thread:$0]  %s2, 1024, %s25, [#allocation3], 256, 256, 16
    $region13: #{testunetr_forward.1} parent=1 // pred_fallthru
      _
    // Predicated region
    $region14: #{testunetr_forward.1} parent=1 // pred_check
      _
    $region15: #{testunetr_forward.1} parent=1 // pred_check_branch
      %32 = sbr.rel (0) target = $region17
    $region16: #{testunetr_forward.1} parent=1 // pred_region
      %s34 = ssub.s32 2560, 2560
      %35 = vsyncadd [#allocation5], %s34
      %s36 = sshll.u32 [#allocation4], 4
      %s37 = int_to_ptr.vmem [resolvable:$true] %s36
      %42 = dma.hbm_to_vmem [thread:$0]  %s3, 2560, %s37, [#allocation5], 320, 320, 20
    $region17: #{testunetr_forward.1} parent=1 // pred_fallthru
      _
    // Predicated region
    $region18: #{testunetr_forward.1} parent=1 // pred_check
      _
    $region19: #{testunetr_forward.1} parent=1 // pred_check_branch
      %44 = sbr.rel (0) target = $region21
    $region20: #{testunetr_forward.1} parent=1 // pred_region
      %s46 = ssub.s32 2048, 2048
      %47 = vsyncadd [#allocation5], %s46
      %s48 = sshll.u32 [#allocation6], 4
      %s49 = int_to_ptr.vmem [resolvable:$true] %s48
      %54 = dma.hbm_to_vmem [thread:$0]  %s4, 2048, %s49, [#allocation5], 128, 128, 8
    $region21: #{testunetr_forward.1} parent=1 // pred_fallthru
      _
    // Predicated region
    $region22: #{testunetr_forward.1} parent=1 // pred_check
      _
    $region23: #{testunetr_forward.1} parent=1 // pred_check_branch
      %56 = sbr.rel (0) target = $region25
    $region24: #{testunetr_forward.1} parent=1 // pred_region
      %s58 = ssub.s32 44800, 44800
      %59 = vsyncadd [#allocation8], %s58
      %s60 = sshll.u32 [#allocation7], 4
      %s61 = int_to_ptr.vmem [resolvable:$true] %s60
      %66 = dma.hbm_to_vmem [thread:$0]  %s5, 44800, %s61, [#allocation8], 448, 448, 28
    $region25: #{testunetr_forward.1} parent=1 // pred_fallthru
      _
    // Predicated region
    $region26: #{testunetr_forward.1} parent=1 // pred_check
      _
    $region27: #{testunetr_forward.1} parent=1 // pred_check_branch
      %68 = sbr.rel (0) target = $region29
    $region28: #{testunetr_forward.1} parent=1 // pred_region
      %s70 = ssub.s32 112, 112
      %71 = vsyncadd [#allocation8], %s70
      %s73 = sshll.u32 [#allocation9], 4
      %s74 = int_to_ptr.vmem [resolvable:$true] %s73
      %76 = dma.hbm_to_vmem [thread:$0]  %s6, 112, %s74, [#allocation8]
    $region29: #{testunetr_forward.1} parent=1 // pred_fallthru
      _
    // Predicated region
    $region30: #{testunetr_forward.1} parent=1 // pred_check
      _
    $region31: #{testunetr_forward.1} parent=1 // pred_check_branch
      %78 = sbr.rel (0) target = $region33
    $region32: #{testunetr_forward.1} parent=1 // pred_region
      %79 = dma.done [#allocation3], 1024
    $region33: #{testunetr_forward.1} parent=1 // pred_fallthru
      _
    // Predicated region
    $region34: #{testunetr_forward.1} parent=1 // pred_check
      _
    $region35: #{testunetr_forward.1} parent=1 // pred_check_branch
      %81 = sbr.rel (0) target = $region37
    $region36: #{testunetr_forward.1} parent=1 // pred_region
      %82 = dma.done [#allocation5], 2560
    $region37: #{testunetr_forward.1} parent=1 // pred_fallthru
      _
    // Predicated region
    $region38: #{testunetr_forward.1} parent=1 // pred_check
      _
    $region39: #{testunetr_forward.1} parent=1 // pred_check_branch
      %84 = sbr.rel (0) target = $region41
    $region40: #{testunetr_forward.1} parent=1 // pred_region
      %85 = dma.done [#allocation5], 2048
    $region41: #{testunetr_forward.1} parent=1 // pred_fallthru
      _
    // Predicated region
    $region42: #{testunetr_forward.1} parent=1 // pred_check
      _
    $region43: #{testunetr_forward.1} parent=1 // pred_check_branch
      %87 = sbr.rel (0) target = $region45
    $region44: #{testunetr_forward.1} parent=1 // pred_region
      %88 = dma.done [#allocation8], 44800
    $region45: #{testunetr_forward.1} parent=1 // pred_fallthru
      _
    // Predicated region
    $region46: #{testunetr_forward.1} parent=1 // pred_check
      _
    $region47: #{testunetr_forward.1} parent=1 // pred_check_branch
      %90 = sbr.rel (0) target = $region49
    $region48: #{testunetr_forward.1} parent=1 // pred_region
      %91 = dma.done [#allocation8], 112
    $region49: #{testunetr_forward.1} parent=1 // pred_fallthru
      _
    %v93 = vld [vmem:[#allocation2] sm:$0xff]
    %v94 = vld [vmem:[#allocation2 + $0x8] sm:$0xff]
    %v95 = vld [vmem:[#allocation2 + $0x10] sm:$0xff]
    %v96 = vld [vmem:[#allocation2 + $0x18] sm:$0xff]
    %v97 = vld [vmem:[#allocation2 + $0x20] sm:$0xff]
    %v98 = vld [vmem:[#allocation2 + $0x28] sm:$0xff]
    %v99 = vld [vmem:[#allocation2 + $0x30] sm:$0xff]
    %v100 = vld [vmem:[#allocation2 + $0x38] sm:$0xff]
    %v101 = vld [vmem:[%s0] sm:$0xff]
    %v102 = vld [vmem:[%s0 + $0x8] sm:$0xff]
    %v103 = vld [vmem:[%s0 + $0x10] sm:$0xff]
    %v104 = vld [vmem:[%s0 + $0x18] sm:$0xff]
    %v105 = vld [vmem:[%s0 + $0x20] sm:$0xff]
    %v106 = vld [vmem:[%s0 + $0x28] sm:$0xff]
    %108 = vset.pattern.permute.xlu0 48
    %109 = vperm.xlu0 %108, %v93
    %v110 = vpop.permute.xlu0 %109
    %113 = vset.pattern.permute.xlu0 48
    %114 = vperm.xlu0 %113, %v95
    %v115 = vpop.permute.xlu0 %114
    %118 = vset.pattern.permute.xlu0 48
    %119 = vperm.xlu0 %118, %v97
    %v120 = vpop.permute.xlu0 %119
    %123 = vset.pattern.permute.xlu0 48
    %124 = vperm.xlu0 %123, %v99
    %v125 = vpop.permute.xlu0 %124
    %vm127 = vcmask 392192
    %v128 = vsel %vm127, %v93, 0
    %v130 = vsel %vm127, %v95, 0
    %v132 = vsel %vm127, %v97, 0
    %v134 = vsel %vm127, %v99, 0
    %136 = vmatprep.subr.mxu0 0.0
    %137 = vmatpush1.msra.mxu0 %v101
    %138 = vmatprep.subr.mxu0 0.0
    %139 = vmatpush1.msra.mxu0 %v102
    %140 = vmatprep.subr.mxu0 0.0
    %141 = vmatpush1.msra.mxu0 %v103
    %142 = vmatprep.subr.mxu0 0.0
    %143 = vmatpush1.msra.mxu0 %v104
    %144 = vmatprep.subr.mxu0 0.0
    %145 = vmatpush1.msra.mxu0 %v105
    %146 = vmatprep.subr.mxu0 0.0
    %147 = vmatpush1.msra.mxu0 %v106
    %148 = vmatprep.subr.mxu0 0.0
    %149 = vmatpush1.msra.mxu0 0.0
    %150 = vmatprep.subr.mxu0 0.0
    %151 = vmatpush1.msra.mxu0 0.0
    %152 = vmatprep.subr.mxu0 0.0
    %153 = vmatpush1.msra.mxu0 0.0
    %154 = vmatprep.subr.mxu0 0.0
    %155 = vmatpush1.msra.mxu0 0.0
    %156 = vmatprep.subr.mxu0 0.0
    %157 = vmatpush1.msra.mxu0 0.0
    %158 = vmatprep.subr.mxu0 0.0
    %159 = vmatpush1.msra.mxu0 0.0
    %160 = vmatprep.subr.mxu0 0.0
    %161 = vmatpush1.msra.mxu0 0.0
    %162 = vmatprep.subr.mxu0 0.0
    %163 = vmatpush1.msra.mxu0 0.0
    %164 = vmatprep.subr.mxu0 0.0
    %165 = vmatpush1.msra.mxu0 0.0
    %166 = vmatprep.subr.mxu0 0.0
    %167 = vmatpush1.msra.mxu0 0.0
    %168 = vmatprep.subr.mxu0 0.0
    %169 = vmatpush1.msra.mxu0 0.0
    %170 = vmatprep.subr.mxu0 0.0
    %171 = vmatpush1.msra.mxu0 0.0
    %172 = vmatprep.subr.mxu0 0.0
    %173 = vmatpush1.msra.mxu0 0.0
    %174 = vmatprep.subr.mxu0 0.0
    %175 = vmatpush1.msra.mxu0 0.0
    %176 = vmatprep.subr.mxu0 0.0
    %177 = vmatpush1.msra.mxu0 0.0
    %178 = vmatprep.subr.mxu0 0.0
    %179 = vmatpush1.msra.mxu0 0.0
    %180 = vmatprep.subr.mxu0 0.0
    %181 = vmatpush1.msra.mxu0 0.0
    %182 = vmatprep.subr.mxu0 0.0
    %183 = vmatpush1.msra.mxu0 0.0
    %184 = vmatprep.subr.mxu0 0.0
    %185 = vmatpush1.msra.mxu0 0.0
    %186 = vmatprep.subr.mxu0 0.0
    %187 = vmatpush1.msra.mxu0 0.0
    %188 = vmatprep.subr.mxu0 0.0
    %189 = vmatpush1.msra.mxu0 0.0
    %190 = vmatprep.subr.mxu0 0.0
    %191 = vmatpush1.msra.mxu0 0.0
    %192 = vmatprep.subr.mxu0 0.0
    %193 = vmatpush1.msra.mxu0 0.0
    %194 = vmatprep.subr.mxu0 0.0
    %195 = vmatpush1.msra.mxu0 0.0
    %196 = vmatprep.subr.mxu0 0.0
    %197 = vmatpush1.msra.mxu0 0.0
    %198 = vmatprep.subr.mxu0 0.0
    %199 = vmatpush1.msra.mxu0 0.0
    %200 = vmatprep.mubr.f32.mxu0 0.0
    %201 = vmatmul.mubr.f32.gmra.mrb[0].mxu0 %v128
    %v202 = vpop.f32.mrb[0].mxu0
    %v203 = vadd.f32 %v110, %v202
    %v204 = vpop.f32.mrb[0].mxu0
    %205 = vmatprep.mubr.f32.mxu0 0.0
    %206 = vmatmul.mubr.f32.gmra.mrb[0].mxu0 %v130
    %v207 = vpop.f32.mrb[0].mxu0
    %v208 = vadd.f32 %v115, %v207
    %v209 = vpop.f32.mrb[0].mxu0
    %210 = vmatprep.mubr.f32.mxu0 0.0
    %211 = vmatmul.mubr.f32.gmra.mrb[0].mxu0 %v132
    %v212 = vpop.f32.mrb[0].mxu0
    %v213 = vadd.f32 %v120, %v212
    %v214 = vpop.f32.mrb[0].mxu0
    %215 = vmatprep.mubr.f32.mxu0 0.0
    %216 = vmatmul.mubr.f32.gmra.mrb[0].mxu0 %v134
    %v217 = vpop.f32.mrb[0].mxu0
    %v218 = vadd.f32 %v125, %v217
    %v219 = vpop.f32.mrb[0].mxu0
    %220 = vdwg.mxu0
    %221 = vset.pattern.permute.xlu0 81
    %222 = vperm.xlu0 %221, %v93
    %v223 = vpop.permute.xlu0 %222
    %225 = vset.pattern.permute.xlu0 81
    %226 = vperm.xlu0 %225, %v95
    %v227 = vpop.permute.xlu0 %226
    %229 = vset.pattern.permute.xlu0 81
    %230 = vperm.xlu0 %229, %v97
    %v231 = vpop.permute.xlu0 %230
    %233 = vset.pattern.permute.xlu0 81
    %234 = vperm.xlu0 %233, %v99
    %v235 = vpop.permute.xlu0 %234
    %237 = vrot.lane.b32.xlu0 %v93, 79
    %v238 = vpop.permute.xlu0 %237
    %239 = vrot.lane.b32.xlu0 %v95, 79
    %v240 = vpop.permute.xlu0 %239
    %241 = vrot.lane.b32.xlu0 %v97, 79
    %v242 = vpop.permute.xlu0 %241
    %243 = vrot.lane.b32.xlu0 %v99, 79
    %v244 = vpop.permute.xlu0 %243
    %vm245 = vcmask 261120
    %v246 = vsel %vm245, %v238, 0
    %v248 = vsel %vm245, %v240, 0
    %v250 = vsel %vm245, %v242, 0
    %v252 = vsel %vm245, %v244, 0
    %254 = vmatprep.subr.mxu0 0.0
    %255 = vmatpush1.msra.mxu0 %v203
    %256 = vmatprep.subr.mxu0 0.0
    %257 = vmatpush1.msra.mxu0 %v208
    %258 = vmatprep.subr.mxu0 0.0
    %259 = vmatpush1.msra.mxu0 %v213
    %260 = vmatprep.subr.mxu0 0.0
    %261 = vmatpush1.msra.mxu0 %v218
    %262 = vmatprep.subr.mxu0 0.0
    %263 = vmatpush1.msra.mxu0 0.0
    %264 = vmatprep.subr.mxu0 0.0
    %265 = vmatpush1.msra.mxu0 0.0
    %266 = vmatprep.subr.mxu0 0.0
    %267 = vmatpush1.msra.mxu0 0.0
    %268 = vmatprep.subr.mxu0 0.0
    %269 = vmatpush1.msra.mxu0 0.0
    %270 = vmatprep.subr.mxu0 0.0
    %271 = vmatpush1.msra.mxu0 0.0
    %272 = vmatprep.subr.mxu0 0.0
    %273 = vmatpush1.msra.mxu0 0.0
    %274 = vmatprep.subr.mxu0 0.0
    %275 = vmatpush1.msra.mxu0 0.0
    %276 = vmatprep.subr.mxu0 0.0
    %277 = vmatpush1.msra.mxu0 0.0
    %278 = vmatprep.subr.mxu0 0.0
    %279 = vmatpush1.msra.mxu0 0.0
    %280 = vmatprep.subr.mxu0 0.0
    %281 = vmatpush1.msra.mxu0 0.0
    %282 = vmatprep.subr.mxu0 0.0
    %283 = vmatpush1.msra.mxu0 0.0
    %284 = vmatprep.subr.mxu0 0.0
    %285 = vmatpush1.msra.mxu0 0.0
    %286 = vmatprep.subr.mxu0 0.0
    %287 = vmatpush1.msra.mxu0 0.0
    %288 = vmatprep.subr.mxu0 0.0
    %289 = vmatpush1.msra.mxu0 0.0
    %290 = vmatprep.subr.mxu0 0.0
    %291 = vmatpush1.msra.mxu0 0.0
    %292 = vmatprep.subr.mxu0 0.0
    %293 = vmatpush1.msra.mxu0 0.0
    %294 = vmatprep.subr.mxu0 0.0
    %295 = vmatpush1.msra.mxu0 0.0
    %296 = vmatprep.subr.mxu0 0.0
    %297 = vmatpush1.msra.mxu0 0.0
    %298 = vmatprep.subr.mxu0 0.0
    %299 = vmatpush1.msra.mxu0 0.0
    %300 = vmatprep.subr.mxu0 0.0
    %301 = vmatpush1.msra.mxu0 0.0
    %302 = vmatprep.subr.mxu0 0.0
    %303 = vmatpush1.msra.mxu0 0.0
    %304 = vmatprep.subr.mxu0 0.0
    %305 = vmatpush1.msra.mxu0 0.0
    %306 = vmatprep.subr.mxu0 0.0
    %307 = vmatpush1.msra.mxu0 0.0
    %308 = vmatprep.subr.mxu0 0.0
    %309 = vmatpush1.msra.mxu0 0.0
    %310 = vmatprep.subr.mxu0 0.0
    %311 = vmatpush1.msra.mxu0 0.0
    %312 = vmatprep.subr.mxu0 0.0
    %313 = vmatpush1.msra.mxu0 0.0
    %314 = vmatprep.subr.mxu0 0.0
    %315 = vmatpush1.msra.mxu0 0.0
    %316 = vmatprep.subr.mxu0 0.0
    %317 = vmatpush1.msra.mxu0 0.0
    %318 = vmatprep.mubr.f32.mxu0 0.0
    %319 = vmatmul.mubr.f32.gmra.mrb[0].mxu0 %v246
    %v320 = vpop.f32.mrb[0].mxu0
    %v321 = vadd.f32 %v223, %v320
    %v322 = vpop.f32.mrb[0].mxu0
    %323 = vmatprep.mubr.f32.mxu0 0.0
    %324 = vmatmul.mubr.f32.gmra.mrb[0].mxu0 %v248
    %v325 = vpop.f32.mrb[0].mxu0
    %v326 = vadd.f32 %v227, %v325
    %v327 = vpop.f32.mrb[0].mxu0
    %328 = vmatprep.mubr.f32.mxu0 0.0
    %329 = vmatmul.mubr.f32.gmra.mrb[0].mxu0 %v250
    %v330 = vpop.f32.mrb[0].mxu0
    %v331 = vadd.f32 %v231, %v330
    %v332 = vpop.f32.mrb[0].mxu0
    %333 = vmatprep.mubr.f32.mxu0 0.0
    %334 = vmatmul.mubr.f32.gmra.mrb[0].mxu0 %v252
    %v335 = vpop.f32.mrb[0].mxu0
    %v336 = vadd.f32 %v235, %v335
    %v337 = vpop.f32.mrb[0].mxu0
    %338 = vdwg.mxu0
    %v339 = vmul.f32 %v321, %v321
    %v340 = vmul.f32 %v326, %v326
    %v341 = vmul.f32 %v331, %v331
    %v342 = vmul.f32 %v336, %v336
    %v343 = vmul.f32 %v321, %v339
    %v344 = vmul.f32 %v326, %v340
    %v345 = vmul.f32 %v331, %v341
    %v346 = vmul.f32 %v336, %v342
    %v347 = vmul.f32 %v343, 0.044715
    %v348 = vmul.f32 %v344, 0.044715
    %v349 = vmul.f32 %v345, 0.044715
    %v350 = vmul.f32 %v346, 0.044715
    %v351 = vadd.f32 %v321, %v347
    %v352 = vadd.f32 %v326, %v348
    %v353 = vadd.f32 %v331, %v349
    %v354 = vadd.f32 %v336, %v350
    %v355 = vmul.f32 %v351, 0.7978846
    %v356 = vmul.f32 %v352, 0.7978846
    %v357 = vmul.f32 %v353, 0.7978846
    %v358 = vmul.f32 %v354, 0.7978846
    %v359 = vtanh.pop %v355
    %v360 = vtanh.pop %v356
    %v361 = vtanh.pop %v357
    %v362 = vtanh.pop %v358
    %v363 = vadd.f32 %v359, 1.0
    %v364 = vadd.f32 %v360, 1.0
    %v365 = vadd.f32 %v361, 1.0
    %v366 = vadd.f32 %v362, 1.0
    %v367 = vmul.f32 %v363, 0.5
    %v368 = vmul.f32 %v364, 0.5
    %v369 = vmul.f32 %v365, 0.5
    %v370 = vmul.f32 %v366, 0.5
    %v371 = vmul.f32 %v321, %v367
    %v372 = vmul.f32 %v326, %v368
    %v373 = vmul.f32 %v331, %v369
    %v374 = vmul.f32 %v336, %v370
    %375 = vset.pattern.permute.xlu0 114
    %376 = vperm.xlu0 %375, %v93
    %v377 = vpop.permute.xlu0 %376
    %379 = vset.pattern.permute.xlu0 114
    %380 = vperm.xlu0 %379, %v95
    %v381 = vpop.permute.xlu0 %380
    %383 = vset.pattern.permute.xlu0 114
    %384 = vperm.xlu0 %383, %v97
    %v385 = vpop.permute.xlu0 %384
    %387 = vset.pattern.permute.xlu0 114
    %388 = vperm.xlu0 %387, %v99
    %v389 = vpop.permute.xlu0 %388
    %391 = vrot.lane.b32.xlu0 %v93, 46
    %v392 = vpop.permute.xlu0 %391
    %393 = vrot.lane.b32.xlu0 %v95, 46
    %v394 = vpop.permute.xlu0 %393
    %395 = vrot.lane.b32.xlu0 %v97, 46
    %v396 = vpop.permute.xlu0 %395
    %397 = vrot.lane.b32.xlu0 %v99, 46
    %v398 = vpop.permute.xlu0 %397
    %v399 = vsel %vm245, %v392, 0
    %v401 = vsel %vm245, %v394, 0
    %v403 = vsel %vm245, %v396, 0
    %v405 = vsel %vm245, %v398, 0
    %407 = vmatprep.subr.mxu0 0.0
    %408 = vmatpush1.msra.mxu0 %v371
    %409 = vmatprep.subr.mxu0 0.0
    %410 = vmatpush1.msra.mxu0 %v372
    %411 = vmatprep.subr.mxu0 0.0
    %412 = vmatpush1.msra.mxu0 %v373
    %413 = vmatprep.subr.mxu0 0.0
    %414 = vmatpush1.msra.mxu0 %v374
    %415 = vmatprep.subr.mxu0 0.0
    %416 = vmatpush1.msra.mxu0 0.0
    %417 = vmatprep.subr.mxu0 0.0
    %418 = vmatpush1.msra.mxu0 0.0
    %419 = vmatprep.subr.mxu0 0.0
    %420 = vmatpush1.msra.mxu0 0.0
    %421 = vmatprep.subr.mxu0 0.0
    %422 = vmatpush1.msra.mxu0 0.0
    %423 = vmatprep.subr.mxu0 0.0
    %424 = vmatpush1.msra.mxu0 0.0
    %425 = vmatprep.subr.mxu0 0.0
    %426 = vmatpush1.msra.mxu0 0.0
    %427 = vmatprep.subr.mxu0 0.0
    %428 = vmatpush1.msra.mxu0 0.0
    %429 = vmatprep.subr.mxu0 0.0
    %430 = vmatpush1.msra.mxu0 0.0
    %431 = vmatprep.subr.mxu0 0.0
    %432 = vmatpush1.msra.mxu0 0.0
    %433 = vmatprep.subr.mxu0 0.0
    %434 = vmatpush1.msra.mxu0 0.0
    %435 = vmatprep.subr.mxu0 0.0
    %436 = vmatpush1.msra.mxu0 0.0
    %437 = vmatprep.subr.mxu0 0.0
    %438 = vmatpush1.msra.mxu0 0.0
    %439 = vmatprep.subr.mxu0 0.0
    %440 = vmatpush1.msra.mxu0 0.0
    %441 = vmatprep.subr.mxu0 0.0
    %442 = vmatpush1.msra.mxu0 0.0
    %443 = vmatprep.subr.mxu0 0.0
    %444 = vmatpush1.msra.mxu0 0.0
    %445 = vmatprep.subr.mxu0 0.0
    %446 = vmatpush1.msra.mxu0 0.0
    %447 = vmatprep.subr.mxu0 0.0
    %448 = vmatpush1.msra.mxu0 0.0
    %449 = vmatprep.subr.mxu0 0.0
    %450 = vmatpush1.msra.mxu0 0.0
    %451 = vmatprep.subr.mxu0 0.0
    %452 = vmatpush1.msra.mxu0 0.0
    %453 = vmatprep.subr.mxu0 0.0
    %454 = vmatpush1.msra.mxu0 0.0
    %455 = vmatprep.subr.mxu0 0.0
    %456 = vmatpush1.msra.mxu0 0.0
    %457 = vmatprep.subr.mxu0 0.0
    %458 = vmatpush1.msra.mxu0 0.0
    %459 = vmatprep.subr.mxu0 0.0
    %460 = vmatpush1.msra.mxu0 0.0
    %461 = vmatprep.subr.mxu0 0.0
    %462 = vmatpush1.msra.mxu0 0.0
    %463 = vmatprep.subr.mxu0 0.0
    %464 = vmatpush1.msra.mxu0 0.0
    %465 = vmatprep.subr.mxu0 0.0
    %466 = vmatpush1.msra.mxu0 0.0
    %467 = vmatprep.subr.mxu0 0.0
    %468 = vmatpush1.msra.mxu0 0.0
    %469 = vmatprep.subr.mxu0 0.0
    %470 = vmatpush1.msra.mxu0 0.0
    %471 = vmatprep.mubr.f32.mxu0 0.0
    %472 = vmatmul.mubr.f32.gmra.mrb[0].mxu0 %v399
    %v473 = vpop.f32.mrb[0].mxu0
    %v474 = vadd.f32 %v377, %v473
    %v475 = vpop.f32.mrb[0].mxu0
    %476 = vmatprep.mubr.f32.mxu0 0.0
    %477 = vmatmul.mubr.f32.gmra.mrb[0].mxu0 %v401
    %v478 = vpop.f32.mrb[0].mxu0
    %v479 = vadd.f32 %v381, %v478
    %v480 = vpop.f32.mrb[0].mxu0
    %481 = vmatprep.mubr.f32.mxu0 0.0
    %482 = vmatmul.mubr.f32.gmra.mrb[0].mxu0 %v403
    %v483 = vpop.f32.mrb[0].mxu0
    %v484 = vadd.f32 %v385, %v483
    %v485 = vpop.f32.mrb[0].mxu0
    %486 = vmatprep.mubr.f32.mxu0 0.0
    %487 = vmatmul.mubr.f32.gmra.mrb[0].mxu0 %v405
    %v488 = vpop.f32.mrb[0].mxu0
    %v489 = vadd.f32 %v389, %v488
    %v490 = vpop.f32.mrb[0].mxu0
    %491 = vdwg.mxu0
    %v492 = vmul.f32 %v474, %v474
    %v493 = vmul.f32 %v479, %v479
    %v494 = vmul.f32 %v484, %v484
    %v495 = vmul.f32 %v489, %v489
    %v496 = vmul.f32 %v474, %v492
    %v497 = vmul.f32 %v479, %v493
    %v498 = vmul.f32 %v484, %v494
    %v499 = vmul.f32 %v489, %v495
    %v500 = vmul.f32 %v496, 0.044715
    %v501 = vmul.f32 %v497, 0.044715
    %v502 = vmul.f32 %v498, 0.044715
    %v503 = vmul.f32 %v499, 0.044715
    %v504 = vadd.f32 %v474, %v500
    %v505 = vadd.f32 %v479, %v501
    %v506 = vadd.f32 %v484, %v502
    %v507 = vadd.f32 %v489, %v503
    %v508 = vmul.f32 %v504, 0.7978846
    %v509 = vmul.f32 %v505, 0.7978846
    %v510 = vmul.f32 %v506, 0.7978846
    %v511 = vmul.f32 %v507, 0.7978846
    %v512 = vtanh.pop %v508
    %v513 = vtanh.pop %v509
    %v514 = vtanh.pop %v510
    %v515 = vtanh.pop %v511
    %v516 = vadd.f32 %v512, 1.0
    %v517 = vadd.f32 %v513, 1.0
    %v518 = vadd.f32 %v514, 1.0
    %v519 = vadd.f32 %v515, 1.0
    %v520 = vmul.f32 %v516, 0.5
    %v521 = vmul.f32 %v517, 0.5
    %v522 = vmul.f32 %v518, 0.5
    %v523 = vmul.f32 %v519, 0.5
    %v524 = vmul.f32 %v474, %v520
    %v525 = vmul.f32 %v479, %v521
    %v526 = vmul.f32 %v484, %v522
    %v527 = vmul.f32 %v489, %v523
    %529 = vset.pattern.permute.xlu0 19
    %530 = vperm.xlu0 %529, %v94
    %v531 = vpop.permute.xlu0 %530
    %534 = vset.pattern.permute.xlu0 19
    %535 = vperm.xlu0 %534, %v96
    %v536 = vpop.permute.xlu0 %535
    %539 = vset.pattern.permute.xlu0 19
    %540 = vperm.xlu0 %539, %v98
    %v541 = vpop.permute.xlu0 %540
    %544 = vset.pattern.permute.xlu0 19
    %545 = vperm.xlu0 %544, %v100
    %v546 = vpop.permute.xlu0 %545
    %548 = vrot.lane.b32.xlu0 %v93, 13
    %v549 = vpop.permute.xlu0 %548
    %550 = vrot.lane.b32.xlu0 %v94, 13
    %v551 = vpop.permute.xlu0 %550
    %552 = vrot.lane.b32.xlu0 %v95, 13
    %v553 = vpop.permute.xlu0 %552
    %554 = vrot.lane.b32.xlu0 %v96, 13
    %v555 = vpop.permute.xlu0 %554
    %556 = vrot.lane.b32.xlu0 %v97, 13
    %v557 = vpop.permute.xlu0 %556
    %558 = vrot.lane.b32.xlu0 %v98, 13
    %v559 = vpop.permute.xlu0 %558
    %560 = vrot.lane.b32.xlu0 %v99, 13
    %v561 = vpop.permute.xlu0 %560
    %562 = vrot.lane.b32.xlu0 %v100, 13
    %v563 = vpop.permute.xlu0 %562
    %vm564 = vcmask 105472
    %v565 = vsel %vm564, %v549, %v551
    %v566 = vsel %vm564, %v553, %v555
    %v567 = vsel %vm564, %v557, %v559
    %v568 = vsel %vm564, %v561, %v563
    %v569 = vsel %vm245, %v565, 0
    %v571 = vsel %vm245, %v566, 0
    %v573 = vsel %vm245, %v567, 0
    %v575 = vsel %vm245, %v568, 0
    %577 = vmatprep.subr.mxu0 0.0
    %578 = vmatpush1.msra.mxu0 %v524
    %579 = vmatprep.subr.mxu0 0.0
    %580 = vmatpush1.msra.mxu0 %v525
    %581 = vmatprep.subr.mxu0 0.0
    %582 = vmatpush1.msra.mxu0 %v526
    %583 = vmatprep.subr.mxu0 0.0
    %584 = vmatpush1.msra.mxu0 %v527
    %585 = vmatprep.subr.mxu0 0.0
    %586 = vmatpush1.msra.mxu0 0.0
    %587 = vmatprep.subr.mxu0 0.0
    %588 = vmatpush1.msra.mxu0 0.0
    %589 = vmatprep.subr.mxu0 0.0
    %590 = vmatpush1.msra.mxu0 0.0
    %591 = vmatprep.subr.mxu0 0.0
    %592 = vmatpush1.msra.mxu0 0.0
    %593 = vmatprep.subr.mxu0 0.0
    %594 = vmatpush1.msra.mxu0 0.0
    %595 = vmatprep.subr.mxu0 0.0
    %596 = vmatpush1.msra.mxu0 0.0
    %597 = vmatprep.subr.mxu0 0.0
    %598 = vmatpush1.msra.mxu0 0.0
    %599 = vmatprep.subr.mxu0 0.0
    %600 = vmatpush1.msra.mxu0 0.0
    %601 = vmatprep.subr.mxu0 0.0
    %602 = vmatpush1.msra.mxu0 0.0
    %603 = vmatprep.subr.mxu0 0.0
    %604 = vmatpush1.msra.mxu0 0.0
    %605 = vmatprep.subr.mxu0 0.0
    %606 = vmatpush1.msra.mxu0 0.0
    %607 = vmatprep.subr.mxu0 0.0
    %608 = vmatpush1.msra.mxu0 0.0
    %609 = vmatprep.subr.mxu0 0.0
    %610 = vmatpush1.msra.mxu0 0.0
    %611 = vmatprep.subr.mxu0 0.0
    %612 = vmatpush1.msra.mxu0 0.0
    %613 = vmatprep.subr.mxu0 0.0
    %614 = vmatpush1.msra.mxu0 0.0
    %615 = vmatprep.subr.mxu0 0.0
    %616 = vmatpush1.msra.mxu0 0.0
    %617 = vmatprep.subr.mxu0 0.0
    %618 = vmatpush1.msra.mxu0 0.0
    %619 = vmatprep.subr.mxu0 0.0
    %620 = vmatpush1.msra.mxu0 0.0
    %621 = vmatprep.subr.mxu0 0.0
    %622 = vmatpush1.msra.mxu0 0.0
    %623 = vmatprep.subr.mxu0 0.0
    %624 = vmatpush1.msra.mxu0 0.0
    %625 = vmatprep.subr.mxu0 0.0
    %626 = vmatpush1.msra.mxu0 0.0
    %627 = vmatprep.subr.mxu0 0.0
    %628 = vmatpush1.msra.mxu0 0.0
    %629 = vmatprep.subr.mxu0 0.0
    %630 = vmatpush1.msra.mxu0 0.0
    %631 = vmatprep.subr.mxu0 0.0
    %632 = vmatpush1.msra.mxu0 0.0
    %633 = vmatprep.subr.mxu0 0.0
    %634 = vmatpush1.msra.mxu0 0.0
    %635 = vmatprep.subr.mxu0 0.0
    %636 = vmatpush1.msra.mxu0 0.0
    %637 = vmatprep.subr.mxu0 0.0
    %638 = vmatpush1.msra.mxu0 0.0
    %639 = vmatprep.subr.mxu0 0.0
    %640 = vmatpush1.msra.mxu0 0.0
    %641 = vmatprep.mubr.f32.mxu0 0.0
    %642 = vmatmul.mubr.f32.gmra.mrb[0].mxu0 %v569
    %v643 = vpop.f32.mrb[0].mxu0
    %v644 = vadd.f32 %v531, %v643
    %v645 = vpop.f32.mrb[0].mxu0
    %646 = vmatprep.mubr.f32.mxu0 0.0
    %647 = vmatmul.mubr.f32.gmra.mrb[0].mxu0 %v571
    %v648 = vpop.f32.mrb[0].mxu0
    %v649 = vadd.f32 %v536, %v648
    %v650 = vpop.f32.mrb[0].mxu0
    %651 = vmatprep.mubr.f32.mxu0 0.0
    %652 = vmatmul.mubr.f32.gmra.mrb[0].mxu0 %v573
    %v653 = vpop.f32.mrb[0].mxu0
    %v654 = vadd.f32 %v541, %v653
    %v655 = vpop.f32.mrb[0].mxu0
    %656 = vmatprep.mubr.f32.mxu0 0.0
    %657 = vmatmul.mubr.f32.gmra.mrb[0].mxu0 %v575
    %v658 = vpop.f32.mrb[0].mxu0
    %v659 = vadd.f32 %v546, %v658
    %v660 = vpop.f32.mrb[0].mxu0
    %661 = vdwg.mxu0
    %v662 = vmul.f32 %v644, %v644
    %v663 = vmul.f32 %v649, %v649
    %v664 = vmul.f32 %v654, %v654
    %v665 = vmul.f32 %v659, %v659
    %v666 = vmul.f32 %v644, %v662
    %v667 = vmul.f32 %v649, %v663
    %v668 = vmul.f32 %v654, %v664
    %v669 = vmul.f32 %v659, %v665
    %v670 = vmul.f32 %v666, 0.044715
    %v671 = vmul.f32 %v667, 0.044715
    %v672 = vmul.f32 %v668, 0.044715
    %v673 = vmul.f32 %v669, 0.044715
    %v674 = vadd.f32 %v644, %v670
    %v675 = vadd.f32 %v649, %v671
    %v676 = vadd.f32 %v654, %v672
    %v677 = vadd.f32 %v659, %v673
    %v678 = vmul.f32 %v674, 0.7978846
    %v679 = vmul.f32 %v675, 0.7978846
    %v680 = vmul.f32 %v676, 0.7978846
    %v681 = vmul.f32 %v677, 0.7978846
    %v682 = vtanh.pop %v678
    %v683 = vtanh.pop %v679
    %v684 = vtanh.pop %v680
    %v685 = vtanh.pop %v681
    %v686 = vadd.f32 %v682, 1.0
    %v687 = vadd.f32 %v683, 1.0
    %v688 = vadd.f32 %v684, 1.0
    %v689 = vadd.f32 %v685, 1.0
    %v690 = vmul.f32 %v686, 0.5
    %v691 = vmul.f32 %v687, 0.5
    %v692 = vmul.f32 %v688, 0.5
    %v693 = vmul.f32 %v689, 0.5
    %v694 = vmul.f32 %v644, %v690
    %v695 = vmul.f32 %v649, %v691
    %v696 = vmul.f32 %v654, %v692
    %v697 = vmul.f32 %v659, %v693
    %698 = vset.pattern.permute.xlu0 52
    %699 = vperm.xlu0 %698, %v94
    %v700 = vpop.permute.xlu0 %699
    %702 = vset.pattern.permute.xlu0 52
    %703 = vperm.xlu0 %702, %v96
    %v704 = vpop.permute.xlu0 %703
    %706 = vset.pattern.permute.xlu0 52
    %707 = vperm.xlu0 %706, %v98
    %v708 = vpop.permute.xlu0 %707
    %710 = vset.pattern.permute.xlu0 52
    %711 = vperm.xlu0 %710, %v100
    %v712 = vpop.permute.xlu0 %711
    %714 = vrot.lane.b32.xlu0 %v94, 108
    %v715 = vpop.permute.xlu0 %714
    %716 = vrot.lane.b32.xlu0 %v96, 108
    %v717 = vpop.permute.xlu0 %716
    %718 = vrot.lane.b32.xlu0 %v98, 108
    %v719 = vpop.permute.xlu0 %718
    %720 = vrot.lane.b32.xlu0 %v100, 108
    %v721 = vpop.permute.xlu0 %720
    %v722 = vsel %vm245, %v715, 0
    %v724 = vsel %vm245, %v717, 0
    %v726 = vsel %vm245, %v719, 0
    %v728 = vsel %vm245, %v721, 0
    %730 = vmatprep.subr.mxu0 0.0
    %731 = vmatpush1.msra.mxu0 %v694
    %732 = vmatprep.subr.mxu0 0.0
    %733 = vmatpush1.msra.mxu0 %v695
    %734 = vmatprep.subr.mxu0 0.0
    %735 = vmatpush1.msra.mxu0 %v696
    %736 = vmatprep.subr.mxu0 0.0
    %737 = vmatpush1.msra.mxu0 %v697
    %738 = vmatprep.subr.mxu0 0.0
    %739 = vmatpush1.msra.mxu0 0.0
    %740 = vmatprep.subr.mxu0 0.0
    %741 = vmatpush1.msra.mxu0 0.0
    %742 = vmatprep.subr.mxu0 0.0
    %743 = vmatpush1.msra.mxu0 0.0
    %744 = vmatprep.subr.mxu0 0.0
    %745 = vmatpush1.msra.mxu0 0.0
    %746 = vmatprep.subr.mxu0 0.0
    %747 = vmatpush1.msra.mxu0 0.0
    %748 = vmatprep.subr.mxu0 0.0
    %749 = vmatpush1.msra.mxu0 0.0
    %750 = vmatprep.subr.mxu0 0.0
    %751 = vmatpush1.msra.mxu0 0.0
    %752 = vmatprep.subr.mxu0 0.0
    %753 = vmatpush1.msra.mxu0 0.0
    %754 = vmatprep.subr.mxu0 0.0
    %755 = vmatpush1.msra.mxu0 0.0
    %756 = vmatprep.subr.mxu0 0.0
    %757 = vmatpush1.msra.mxu0 0.0
    %758 = vmatprep.subr.mxu0 0.0
    %759 = vmatpush1.msra.mxu0 0.0
    %760 = vmatprep.subr.mxu0 0.0
    %761 = vmatpush1.msra.mxu0 0.0
    %762 = vmatprep.subr.mxu0 0.0
    %763 = vmatpush1.msra.mxu0 0.0
    %764 = vmatprep.subr.mxu0 0.0
    %765 = vmatpush1.msra.mxu0 0.0
    %766 = vmatprep.subr.mxu0 0.0
    %767 = vmatpush1.msra.mxu0 0.0
    %768 = vmatprep.subr.mxu0 0.0
    %769 = vmatpush1.msra.mxu0 0.0
    %770 = vmatprep.subr.mxu0 0.0
    %771 = vmatpush1.msra.mxu0 0.0
    %772 = vmatprep.subr.mxu0 0.0
    %773 = vmatpush1.msra.mxu0 0.0
    %774 = vmatprep.subr.mxu0 0.0
    %775 = vmatpush1.msra.mxu0 0.0
    %776 = vmatprep.subr.mxu0 0.0
    %777 = vmatpush1.msra.mxu0 0.0
    %778 = vmatprep.subr.mxu0 0.0
    %779 = vmatpush1.msra.mxu0 0.0
    %780 = vmatprep.subr.mxu0 0.0
    %781 = vmatpush1.msra.mxu0 0.0
    %782 = vmatprep.subr.mxu0 0.0
    %783 = vmatpush1.msra.mxu0 0.0
    %784 = vmatprep.subr.mxu0 0.0
    %785 = vmatpush1.msra.mxu0 0.0
    %786 = vmatprep.subr.mxu0 0.0
    %787 = vmatpush1.msra.mxu0 0.0
    %788 = vmatprep.subr.mxu0 0.0
    %789 = vmatpush1.msra.mxu0 0.0
    %790 = vmatprep.subr.mxu0 0.0
    %791 = vmatpush1.msra.mxu0 0.0
    %792 = vmatprep.subr.mxu0 0.0
    %793 = vmatpush1.msra.mxu0 0.0
    %794 = vmatprep.mubr.f32.mxu0 0.0
    %795 = vmatmul.mubr.f32.gmra.mrb[0].mxu0 %v722
    %v796 = vpop.f32.mrb[0].mxu0
    %v797 = vadd.f32 %v700, %v796
    %v798 = vpop.f32.mrb[0].mxu0
    %799 = vmatprep.mubr.f32.mxu0 0.0
    %800 = vmatmul.mubr.f32.gmra.mrb[0].mxu0 %v724
    %v801 = vpop.f32.mrb[0].mxu0
    %v802 = vadd.f32 %v704, %v801
    %v803 = vpop.f32.mrb[0].mxu0
    %804 = vmatprep.mubr.f32.mxu0 0.0
    %805 = vmatmul.mubr.f32.gmra.mrb[0].mxu0 %v726
    %v806 = vpop.f32.mrb[0].mxu0
    %v807 = vadd.f32 %v708, %v806
    %v808 = vpop.f32.mrb[0].mxu0
    %809 = vmatprep.mubr.f32.mxu0 0.0
    %810 = vmatmul.mubr.f32.gmra.mrb[0].mxu0 %v728
    %v811 = vpop.f32.mrb[0].mxu0
    %v812 = vadd.f32 %v712, %v811
    %v813 = vpop.f32.mrb[0].mxu0
    %814 = vdwg.mxu0
    %v815 = vmul.f32 %v797, %v797
    %v816 = vmul.f32 %v802, %v802
    %v817 = vmul.f32 %v807, %v807
    %v818 = vmul.f32 %v812, %v812
    %v819 = vmul.f32 %v797, %v815
    %v820 = vmul.f32 %v802, %v816
    %v821 = vmul.f32 %v807, %v817
    %v822 = vmul.f32 %v812, %v818
    %v823 = vmul.f32 %v819, 0.044715
    %v824 = vmul.f32 %v820, 0.044715
    %v825 = vmul.f32 %v821, 0.044715
    %v826 = vmul.f32 %v822, 0.044715
    %v827 = vadd.f32 %v797, %v823
    %v828 = vadd.f32 %v802, %v824
    %v829 = vadd.f32 %v807, %v825
    %v830 = vadd.f32 %v812, %v826
    %v831 = vmul.f32 %v827, 0.7978846
    %v832 = vmul.f32 %v828, 0.7978846
    %v833 = vmul.f32 %v829, 0.7978846
    %v834 = vmul.f32 %v830, 0.7978846
    %v835 = vtanh.pop %v831
    %v836 = vtanh.pop %v832
    %v837 = vtanh.pop %v833
    %v838 = vtanh.pop %v834
    %v839 = vadd.f32 %v835, 1.0
    %v840 = vadd.f32 %v836, 1.0
    %v841 = vadd.f32 %v837, 1.0
    %v842 = vadd.f32 %v838, 1.0
    %v843 = vmul.f32 %v839, 0.5
    %v844 = vmul.f32 %v840, 0.5
    %v845 = vmul.f32 %v841, 0.5
    %v846 = vmul.f32 %v842, 0.5
    %v847 = vmul.f32 %v797, %v843
    %v848 = vmul.f32 %v802, %v844
    %v849 = vmul.f32 %v807, %v845
    %v850 = vmul.f32 %v812, %v846
    %v851 = vpack.c.bf16 %v525, %v524
    %v852 = vpack.c.bf16 %v527, %v526
    %v853 = vpack.c.bf16 %v848, %v847
    %v854 = vpack.c.bf16 %v850, %v849
    %v855 = vld [vmem:[#allocation4] sm:$0xff]
    %v856 = vld [vmem:[#allocation4 + $0x8] sm:$0xff]
    %v857 = vld [vmem:[#allocation4 + $0x10] sm:$0xf]
    %v858 = vld [vmem:[#allocation4 + $0x14] sm:$0xff]
    %v859 = vld [vmem:[#allocation4 + $0x1c] sm:$0xff]
    %v860 = vld [vmem:[#allocation4 + $0x24] sm:$0xf]
    %v861 = vld [vmem:[#allocation4 + $0x28] sm:$0xff]
    %v862 = vld [vmem:[#allocation4 + $0x30] sm:$0xff]
    %v863 = vld [vmem:[#allocation4 + $0x3c] sm:$0xff]
    %v864 = vld [vmem:[#allocation4 + $0x44] sm:$0xff]
    %v865 = vld [vmem:[#allocation4 + $0x50] sm:$0xff]
    %v866 = vld [vmem:[#allocation4 + $0x64] sm:$0xff]
    %v867 = vld [vmem:[#allocation4 + $0x78] sm:$0xff]
    %v868 = vld [vmem:[#allocation4 + $0x8c] sm:$0xff]
    %v869 = vunpack.c.l.bf16 %v857
    %v870 = vunpack.c.l.bf16 %v860
    %872 = vset.pattern.permute.xlu0 80
    %873 = vperm.xlu0 %872, %v869
    %v874 = vpop.permute.xlu0 %873
    %877 = vset.pattern.permute.xlu0 80
    %878 = vperm.xlu0 %877, %v870
    %v879 = vpop.permute.xlu0 %878
    %v883 = vunpack.c.l.b16 %v855
    %v884 = vunpack.c.l.b16 %v858
    %v885 = vpack.c.b16 %v884, %v883
    %v887 = vsel %vm245, %v885, 0
    %889 = vmatprep.subr.bf16.mxu0 0
    %890 = vmatpush1.bf16.msra.mxu0 %v853
    %891 = vmatprep.subr.bf16.mxu0 0
    %892 = vmatpush1.bf16.msra.mxu0 %v854
    %893 = vmatprep.subr.bf16.mxu0 0
    %894 = vmatpush1.bf16.msra.mxu0 0
    %895 = vmatprep.subr.bf16.mxu0 0
    %896 = vmatpush1.bf16.msra.mxu0 0
    %897 = vmatprep.subr.bf16.mxu0 0
    %898 = vmatpush1.bf16.msra.mxu0 0
    %899 = vmatprep.subr.bf16.mxu0 0
    %900 = vmatpush1.bf16.msra.mxu0 0
    %901 = vmatprep.subr.bf16.mxu0 0
    %902 = vmatpush1.bf16.msra.mxu0 0
    %903 = vmatprep.subr.bf16.mxu0 0
    %904 = vmatpush1.bf16.msra.mxu0 0
    %905 = vmatprep.subr.bf16.mxu0 0
    %906 = vmatpush1.bf16.msra.mxu0 0
    %907 = vmatprep.subr.bf16.mxu0 0
    %908 = vmatpush1.bf16.msra.mxu0 0
    %909 = vmatprep.subr.bf16.mxu0 0
    %910 = vmatpush1.bf16.msra.mxu0 0
    %911 = vmatprep.subr.bf16.mxu0 0
    %912 = vmatpush1.bf16.msra.mxu0 0
    %913 = vmatprep.subr.bf16.mxu0 0
    %914 = vmatpush1.bf16.msra.mxu0 0
    %915 = vmatprep.subr.bf16.mxu0 0
    %916 = vmatpush1.bf16.msra.mxu0 0
    %917 = vmatprep.subr.bf16.mxu0 0
    %918 = vmatpush1.bf16.msra.mxu0 0
    %919 = vmatprep.subr.bf16.mxu0 0
    %920 = vmatpush1.bf16.msra.mxu0 0
    %921 = vmatprep.mubr.bf16.mxu0 0
    %922 = vmatmul.mubr.bf16.gmra.mrb[0].mxu0 %v887
    %v923 = vpop.f32.mrb[0].mxu0
    %v924 = vadd.f32 %v874, %v923
    %v925 = vpop.f32.mrb[0].mxu0
    %v926 = vpop.f32.mrb[0].mxu0
    %v927 = vadd.f32 %v879, %v926
    %v928 = vpop.f32.mrb[0].mxu0
    %929 = vdwg.mxu0
    %v930 = vpack.c.bf16 %v927, %v924
    %v931 = vld [vmem:[#allocation6] sm:$0xff]
    %v932 = vld [vmem:[#allocation6 + $0x8] sm:$0xff]
    %v933 = vld [vmem:[#allocation6 + $0x10] sm:$0xff]
    %v934 = vld [vmem:[#allocation6 + $0x18] sm:$0xff]
    %v937 = vunpack.c.l.b16 %v861
    %v938 = vunpack.c.l.b16 %v863
    %v939 = vpack.c.b16 %v938, %v937
    %v941 = vsel %vm245, %v939, 0
    %943 = vmatprep.subr.bf16.mxu0 0
    %944 = vmatpush1.bf16.msra.mxu0 %v853
    %945 = vmatprep.subr.bf16.mxu0 0
    %946 = vmatpush1.bf16.msra.mxu0 %v854
    %947 = vmatprep.subr.bf16.mxu0 0
    %948 = vmatpush1.bf16.msra.mxu0 0
    %949 = vmatprep.subr.bf16.mxu0 0
    %950 = vmatpush1.bf16.msra.mxu0 0
    %951 = vmatprep.subr.bf16.mxu0 0
    %952 = vmatpush1.bf16.msra.mxu0 0
    %953 = vmatprep.subr.bf16.mxu0 0
    %954 = vmatpush1.bf16.msra.mxu0 0
    %955 = vmatprep.subr.bf16.mxu0 0
    %956 = vmatpush1.bf16.msra.mxu0 0
    %957 = vmatprep.subr.bf16.mxu0 0
    %958 = vmatpush1.bf16.msra.mxu0 0
    %959 = vmatprep.subr.bf16.mxu0 0
    %960 = vmatpush1.bf16.msra.mxu0 0
    %961 = vmatprep.subr.bf16.mxu0 0
    %962 = vmatpush1.bf16.msra.mxu0 0
    %963 = vmatprep.subr.bf16.mxu0 0
    %964 = vmatpush1.bf16.msra.mxu0 0
    %965 = vmatprep.subr.bf16.mxu0 0
    %966 = vmatpush1.bf16.msra.mxu0 0
    %967 = vmatprep.subr.bf16.mxu0 0
    %968 = vmatpush1.bf16.msra.mxu0 0
    %969 = vmatprep.subr.bf16.mxu0 0
    %970 = vmatpush1.bf16.msra.mxu0 0
    %971 = vmatprep.subr.bf16.mxu0 0
    %972 = vmatpush1.bf16.msra.mxu0 0
    %973 = vmatprep.subr.bf16.mxu0 0
    %974 = vmatpush1.bf16.msra.mxu0 0
    %975 = vmatprep.mubr.bf16.mxu0 0
    %976 = vmatmul.mubr.bf16.gmra.mrb[0].mxu0 %v941
    %v977 = vpop.f32.mrb[0].mxu0
    %v978 = vadd.f32 %v874, %v977
    %v979 = vpop.f32.mrb[0].mxu0
    %v980 = vpop.f32.mrb[0].mxu0
    %v981 = vadd.f32 %v879, %v980
    %v982 = vpop.f32.mrb[0].mxu0
    %983 = vdwg.mxu0
    %v984 = vpack.c.bf16 %v981, %v978
    %v985 = vld [vmem:[#allocation6 + $0x20] sm:$0xff]
    %v986 = vld [vmem:[#allocation6 + $0x28] sm:$0xff]
    %v987 = vld [vmem:[#allocation6 + $0x30] sm:$0xff]
    %v988 = vld [vmem:[#allocation6 + $0x38] sm:$0xff]
    %v993 = vunpack.c.l.b16 %v985
    %v994 = vunpack.c.h.b16 %v985
    %v995 = vunpack.c.l.b16 %v986
    %v996 = vunpack.c.h.b16 %v986
    %v997 = vunpack.c.l.b16 %v987
    %v998 = vunpack.c.h.b16 %v987
    %v999 = vunpack.c.l.b16 %v988
    %v1000 = vunpack.c.h.b16 %v988
    %v1001 = vpack.c.b16 %v995, %v993
    %v1002 = vpack.c.b16 %v996, %v994
    %v1003 = vpack.c.b16 %v999, %v997
    %v1004 = vpack.c.b16 %v1000, %v998
    %v1010 = vsel %vm245, %v984, 0
    %1012 = vmatprep.subr.bf16.mxu0 %v1002
    %1013 = vmatpush1.bf16.msra.mxu0 %v1001
    %1014 = vmatprep.subr.bf16.mxu0 %v1004
    %1015 = vmatpush1.bf16.msra.mxu0 %v1003
    %1016 = vmatprep.subr.bf16.mxu0 0
    %1017 = vmatpush1.bf16.msra.mxu0 0
    %1018 = vmatprep.subr.bf16.mxu0 0
    %1019 = vmatpush1.bf16.msra.mxu0 0
    %1020 = vmatprep.subr.bf16.mxu0 0
    %1021 = vmatpush1.bf16.msra.mxu0 0
    %1022 = vmatprep.subr.bf16.mxu0 0
    %1023 = vmatpush1.bf16.msra.mxu0 0
    %1024 = vmatprep.subr.bf16.mxu0 0
    %1025 = vmatpush1.bf16.msra.mxu0 0
    %1026 = vmatprep.subr.bf16.mxu0 0
    %1027 = vmatpush1.bf16.msra.mxu0 0
    %1028 = vmatprep.subr.bf16.mxu0 0
    %1029 = vmatpush1.bf16.msra.mxu0 0
    %1030 = vmatprep.subr.bf16.mxu0 0
    %1031 = vmatpush1.bf16.msra.mxu0 0
    %1032 = vmatprep.subr.bf16.mxu0 0
    %1033 = vmatpush1.bf16.msra.mxu0 0
    %1034 = vmatprep.subr.bf16.mxu0 0
    %1035 = vmatpush1.bf16.msra.mxu0 0
    %1036 = vmatprep.subr.bf16.mxu0 0
    %1037 = vmatpush1.bf16.msra.mxu0 0
    %1038 = vmatprep.subr.bf16.mxu0 0
    %1039 = vmatpush1.bf16.msra.mxu0 0
    %1040 = vmatprep.subr.bf16.mxu0 0
    %1041 = vmatpush1.bf16.msra.mxu0 0
    %1042 = vmatprep.subr.bf16.mxu0 0
    %1043 = vmatpush1.bf16.msra.mxu0 0
    %1044 = vmatprep.mubr.bf16.mxu0 0
    %1045 = vmatmul.mubr.bf16.gmra.mrb[0].mxu0 %v1010
    %v1046 = vpop.f32.mrb[0].mxu0
    %v1047 = vadd.f32 0.0, %v1046
    %v1048 = vpop.f32.mrb[0].mxu0
    %v1049 = vadd.f32 0.0, %v1048
    %v1050 = vpop.f32.mrb[0].mxu0
    %v1051 = vadd.f32 0.0, %v1050
    %v1052 = vpop.f32.mrb[0].mxu0
    %v1053 = vadd.f32 0.0, %v1052
    %1054 = vdwg.mxu0
    %v1057 = vunpack.c.l.b16 %v865
    %v1058 = vunpack.c.l.b16 %v866
    %v1059 = vpack.c.b16 %v1058, %v1057
    %v1061 = vsel %vm245, %v1059, 0
    %1063 = vmatprep.subr.bf16.mxu0 0
    %1064 = vmatpush1.bf16.msra.mxu0 %v853
    %1065 = vmatprep.subr.bf16.mxu0 0
    %1066 = vmatpush1.bf16.msra.mxu0 %v854
    %1067 = vmatprep.subr.bf16.mxu0 0
    %1068 = vmatpush1.bf16.msra.mxu0 0
    %1069 = vmatprep.subr.bf16.mxu0 0
    %1070 = vmatpush1.bf16.msra.mxu0 0
    %1071 = vmatprep.subr.bf16.mxu0 0
    %1072 = vmatpush1.bf16.msra.mxu0 0
    %1073 = vmatprep.subr.bf16.mxu0 0
    %1074 = vmatpush1.bf16.msra.mxu0 0
    %1075 = vmatprep.subr.bf16.mxu0 0
    %1076 = vmatpush1.bf16.msra.mxu0 0
    %1077 = vmatprep.subr.bf16.mxu0 0
    %1078 = vmatpush1.bf16.msra.mxu0 0
    %1079 = vmatprep.subr.bf16.mxu0 0
    %1080 = vmatpush1.bf16.msra.mxu0 0
    %1081 = vmatprep.subr.bf16.mxu0 0
    %1082 = vmatpush1.bf16.msra.mxu0 0
    %1083 = vmatprep.subr.bf16.mxu0 0
    %1084 = vmatpush1.bf16.msra.mxu0 0
    %1085 = vmatprep.subr.bf16.mxu0 0
    %1086 = vmatpush1.bf16.msra.mxu0 0
    %1087 = vmatprep.subr.bf16.mxu0 0
    %1088 = vmatpush1.bf16.msra.mxu0 0
    %1089 = vmatprep.subr.bf16.mxu0 0
    %1090 = vmatpush1.bf16.msra.mxu0 0
    %1091 = vmatprep.subr.bf16.mxu0 0
    %1092 = vmatpush1.bf16.msra.mxu0 0
    %1093 = vmatprep.subr.bf16.mxu0 0
    %1094 = vmatpush1.bf16.msra.mxu0 0
    %1095 = vmatprep.mubr.bf16.mxu0 0
    %1096 = vmatmul.mubr.bf16.gmra.mrb[0].mxu0 %v1061
    %v1097 = vpop.f32.mrb[0].mxu0
    %v1098 = vadd.f32 %v874, %v1097
    %v1099 = vpop.f32.mrb[0].mxu0
    %v1100 = vpop.f32.mrb[0].mxu0
    %v1101 = vadd.f32 %v879, %v1100
    %v1102 = vpop.f32.mrb[0].mxu0
    %1103 = vdwg.mxu0
    %v1104 = vpack.c.bf16 %v1101, %v1098
    %v1105 = vld [vmem:[#allocation6 + $0x40] sm:$0xff]
    %v1106 = vld [vmem:[#allocation6 + $0x48] sm:$0xff]
    %v1107 = vld [vmem:[#allocation6 + $0x50] sm:$0xff]
    %v1108 = vld [vmem:[#allocation6 + $0x58] sm:$0xff]
    %v1111 = vunpack.c.l.b16 %v867
    %v1112 = vunpack.c.l.b16 %v868
    %v1113 = vpack.c.b16 %v1112, %v1111
    %v1115 = vsel %vm245, %v1113, 0
    %1117 = vmatprep.subr.bf16.mxu0 0
    %1118 = vmatpush1.bf16.msra.mxu0 %v853
    %1119 = vmatprep.subr.bf16.mxu0 0
    %1120 = vmatpush1.bf16.msra.mxu0 %v854
    %1121 = vmatprep.subr.bf16.mxu0 0
    %1122 = vmatpush1.bf16.msra.mxu0 0
    %1123 = vmatprep.subr.bf16.mxu0 0
    %1124 = vmatpush1.bf16.msra.mxu0 0
    %1125 = vmatprep.subr.bf16.mxu0 0
    %1126 = vmatpush1.bf16.msra.mxu0 0
    %1127 = vmatprep.subr.bf16.mxu0 0
    %1128 = vmatpush1.bf16.msra.mxu0 0
    %1129 = vmatprep.subr.bf16.mxu0 0
    %1130 = vmatpush1.bf16.msra.mxu0 0
    %1131 = vmatprep.subr.bf16.mxu0 0
    %1132 = vmatpush1.bf16.msra.mxu0 0
    %1133 = vmatprep.subr.bf16.mxu0 0
    %1134 = vmatpush1.bf16.msra.mxu0 0
    %1135 = vmatprep.subr.bf16.mxu0 0
    %1136 = vmatpush1.bf16.msra.mxu0 0
    %1137 = vmatprep.subr.bf16.mxu0 0
    %1138 = vmatpush1.bf16.msra.mxu0 0
    %1139 = vmatprep.subr.bf16.mxu0 0
    %1140 = vmatpush1.bf16.msra.mxu0 0
    %1141 = vmatprep.subr.bf16.mxu0 0
    %1142 = vmatpush1.bf16.msra.mxu0 0
    %1143 = vmatprep.subr.bf16.mxu0 0
    %1144 = vmatpush1.bf16.msra.mxu0 0
    %1145 = vmatprep.subr.bf16.mxu0 0
    %1146 = vmatpush1.bf16.msra.mxu0 0
    %1147 = vmatprep.subr.bf16.mxu0 0
    %1148 = vmatpush1.bf16.msra.mxu0 0
    %1149 = vmatprep.mubr.bf16.mxu0 0
    %1150 = vmatmul.mubr.bf16.gmra.mrb[0].mxu0 %v1115
    %v1151 = vpop.f32.mrb[0].mxu0
    %v1152 = vadd.f32 %v874, %v1151
    %v1153 = vpop.f32.mrb[0].mxu0
    %v1154 = vpop.f32.mrb[0].mxu0
    %v1155 = vadd.f32 %v879, %v1154
    %v1156 = vpop.f32.mrb[0].mxu0
    %1157 = vdwg.mxu0
    %v1158 = vpack.c.bf16 %v1155, %v1152
    %v1159 = vld [vmem:[#allocation6 + $0x60] sm:$0xff]
    %v1160 = vld [vmem:[#allocation6 + $0x68] sm:$0xff]
    %v1161 = vld [vmem:[#allocation6 + $0x70] sm:$0xff]
    %v1162 = vld [vmem:[#allocation6 + $0x78] sm:$0xff]
    %v1167 = vunpack.c.l.b16 %v1159
    %v1168 = vunpack.c.h.b16 %v1159
    %v1169 = vunpack.c.l.b16 %v1160
    %v1170 = vunpack.c.h.b16 %v1160
    %v1171 = vunpack.c.l.b16 %v1161
    %v1172 = vunpack.c.h.b16 %v1161
    %v1173 = vunpack.c.l.b16 %v1162
    %v1174 = vunpack.c.h.b16 %v1162
    %v1175 = vpack.c.b16 %v1169, %v1167
    %v1176 = vpack.c.b16 %v1170, %v1168
    %v1177 = vpack.c.b16 %v1173, %v1171
    %v1178 = vpack.c.b16 %v1174, %v1172
    %v1184 = vsel %vm245, %v1158, 0
    %1186 = vmatprep.subr.bf16.mxu0 %v1176
    %1187 = vmatpush1.bf16.msra.mxu0 %v1175
    %1188 = vmatprep.subr.bf16.mxu0 %v1178
    %1189 = vmatpush1.bf16.msra.mxu0 %v1177
    %1190 = vmatprep.subr.bf16.mxu0 0
    %1191 = vmatpush1.bf16.msra.mxu0 0
    %1192 = vmatprep.subr.bf16.mxu0 0
    %1193 = vmatpush1.bf16.msra.mxu0 0
    %1194 = vmatprep.subr.bf16.mxu0 0
    %1195 = vmatpush1.bf16.msra.mxu0 0
    %1196 = vmatprep.subr.bf16.mxu0 0
    %1197 = vmatpush1.bf16.msra.mxu0 0
    %1198 = vmatprep.subr.bf16.mxu0 0
    %1199 = vmatpush1.bf16.msra.mxu0 0
    %1200 = vmatprep.subr.bf16.mxu0 0
    %1201 = vmatpush1.bf16.msra.mxu0 0
    %1202 = vmatprep.subr.bf16.mxu0 0
    %1203 = vmatpush1.bf16.msra.mxu0 0
    %1204 = vmatprep.subr.bf16.mxu0 0
    %1205 = vmatpush1.bf16.msra.mxu0 0
    %1206 = vmatprep.subr.bf16.mxu0 0
    %1207 = vmatpush1.bf16.msra.mxu0 0
    %1208 = vmatprep.subr.bf16.mxu0 0
    %1209 = vmatpush1.bf16.msra.mxu0 0
    %1210 = vmatprep.subr.bf16.mxu0 0
    %1211 = vmatpush1.bf16.msra.mxu0 0
    %1212 = vmatprep.subr.bf16.mxu0 0
    %1213 = vmatpush1.bf16.msra.mxu0 0
    %1214 = vmatprep.subr.bf16.mxu0 0
    %1215 = vmatpush1.bf16.msra.mxu0 0
    %1216 = vmatprep.subr.bf16.mxu0 0
    %1217 = vmatpush1.bf16.msra.mxu0 0
    %1218 = vmatprep.mubr.bf16.mxu0 0
    %1219 = vmatmul.mubr.bf16.gmra.mrb[0].mxu0 %v1184
    %v1220 = vpop.f32.mrb[0].mxu0
    %v1221 = vadd.f32 0.0, %v1220
    %v1222 = vpop.f32.mrb[0].mxu0
    %v1223 = vadd.f32 0.0, %v1222
    %v1224 = vpop.f32.mrb[0].mxu0
    %v1225 = vadd.f32 0.0, %v1224
    %v1226 = vpop.f32.mrb[0].mxu0
    %v1227 = vadd.f32 0.0, %v1226
    %1228 = vdwg.mxu0
    %v1233 = vunpack.c.l.b16 %v931
    %v1234 = vunpack.c.h.b16 %v931
    %v1235 = vunpack.c.l.b16 %v932
    %v1236 = vunpack.c.h.b16 %v932
    %v1237 = vunpack.c.l.b16 %v933
    %v1238 = vunpack.c.h.b16 %v933
    %v1239 = vunpack.c.l.b16 %v934
    %v1240 = vunpack.c.h.b16 %v934
    %v1241 = vpack.c.b16 %v1235, %v1233
    %v1242 = vpack.c.b16 %v1236, %v1234
    %v1243 = vpack.c.b16 %v1239, %v1237
    %v1244 = vpack.c.b16 %v1240, %v1238
    %v1250 = vsel %vm245, %v930, 0
    %1252 = vmatprep.subr.bf16.mxu0 %v1242
    %1253 = vmatpush1.bf16.msra.mxu0 %v1241
    %1254 = vmatprep.subr.bf16.mxu0 %v1244
    %1255 = vmatpush1.bf16.msra.mxu0 %v1243
    %1256 = vmatprep.subr.bf16.mxu0 0
    %1257 = vmatpush1.bf16.msra.mxu0 0
    %1258 = vmatprep.subr.bf16.mxu0 0
    %1259 = vmatpush1.bf16.msra.mxu0 0
    %1260 = vmatprep.subr.bf16.mxu0 0
    %1261 = vmatpush1.bf16.msra.mxu0 0
    %1262 = vmatprep.subr.bf16.mxu0 0
    %1263 = vmatpush1.bf16.msra.mxu0 0
    %1264 = vmatprep.subr.bf16.mxu0 0
    %1265 = vmatpush1.bf16.msra.mxu0 0
    %1266 = vmatprep.subr.bf16.mxu0 0
    %1267 = vmatpush1.bf16.msra.mxu0 0
    %1268 = vmatprep.subr.bf16.mxu0 0
    %1269 = vmatpush1.bf16.msra.mxu0 0
    %1270 = vmatprep.subr.bf16.mxu0 0
    %1271 = vmatpush1.bf16.msra.mxu0 0
    %1272 = vmatprep.subr.bf16.mxu0 0
    %1273 = vmatpush1.bf16.msra.mxu0 0
    %1274 = vmatprep.subr.bf16.mxu0 0
    %1275 = vmatpush1.bf16.msra.mxu0 0
    %1276 = vmatprep.subr.bf16.mxu0 0
    %1277 = vmatpush1.bf16.msra.mxu0 0
    %1278 = vmatprep.subr.bf16.mxu0 0
    %1279 = vmatpush1.bf16.msra.mxu0 0
    %1280 = vmatprep.subr.bf16.mxu0 0
    %1281 = vmatpush1.bf16.msra.mxu0 0
    %1282 = vmatprep.subr.bf16.mxu0 0
    %1283 = vmatpush1.bf16.msra.mxu0 0
    %1284 = vmatprep.mubr.bf16.mxu0 0
    %1285 = vmatmul.mubr.bf16.gmra.mrb[0].mxu0 %v1250
    %v1286 = vpop.f32.mrb[0].mxu0
    %v1287 = vadd.f32 %v1047, %v1286
    %v1288 = vpop.f32.mrb[0].mxu0
    %v1289 = vadd.f32 %v1049, %v1288
    %v1290 = vpop.f32.mrb[0].mxu0
    %v1291 = vadd.f32 %v1051, %v1290
    %v1292 = vpop.f32.mrb[0].mxu0
    %v1293 = vadd.f32 %v1053, %v1292
    %1294 = vdwg.mxu0
    %v1299 = vunpack.c.l.b16 %v1105
    %v1300 = vunpack.c.h.b16 %v1105
    %v1301 = vunpack.c.l.b16 %v1106
    %v1302 = vunpack.c.h.b16 %v1106
    %v1303 = vunpack.c.l.b16 %v1107
    %v1304 = vunpack.c.h.b16 %v1107
    %v1305 = vunpack.c.l.b16 %v1108
    %v1306 = vunpack.c.h.b16 %v1108
    %v1307 = vpack.c.b16 %v1301, %v1299
    %v1308 = vpack.c.b16 %v1302, %v1300
    %v1309 = vpack.c.b16 %v1305, %v1303
    %v1310 = vpack.c.b16 %v1306, %v1304
    %v1316 = vsel %vm245, %v1104, 0
    %1318 = vmatprep.subr.bf16.mxu0 %v1308
    %1319 = vmatpush1.bf16.msra.mxu0 %v1307
    %1320 = vmatprep.subr.bf16.mxu0 %v1310
    %1321 = vmatpush1.bf16.msra.mxu0 %v1309
    %1322 = vmatprep.subr.bf16.mxu0 0
    %1323 = vmatpush1.bf16.msra.mxu0 0
    %1324 = vmatprep.subr.bf16.mxu0 0
    %1325 = vmatpush1.bf16.msra.mxu0 0
    %1326 = vmatprep.subr.bf16.mxu0 0
    %1327 = vmatpush1.bf16.msra.mxu0 0
    %1328 = vmatprep.subr.bf16.mxu0 0
    %1329 = vmatpush1.bf16.msra.mxu0 0
    %1330 = vmatprep.subr.bf16.mxu0 0
    %1331 = vmatpush1.bf16.msra.mxu0 0
    %1332 = vmatprep.subr.bf16.mxu0 0
    %1333 = vmatpush1.bf16.msra.mxu0 0
    %1334 = vmatprep.subr.bf16.mxu0 0
    %1335 = vmatpush1.bf16.msra.mxu0 0
    %1336 = vmatprep.subr.bf16.mxu0 0
    %1337 = vmatpush1.bf16.msra.mxu0 0
    %1338 = vmatprep.subr.bf16.mxu0 0
    %1339 = vmatpush1.bf16.msra.mxu0 0
    %1340 = vmatprep.subr.bf16.mxu0 0
    %1341 = vmatpush1.bf16.msra.mxu0 0
    %1342 = vmatprep.subr.bf16.mxu0 0
    %1343 = vmatpush1.bf16.msra.mxu0 0
    %1344 = vmatprep.subr.bf16.mxu0 0
    %1345 = vmatpush1.bf16.msra.mxu0 0
    %1346 = vmatprep.subr.bf16.mxu0 0
    %1347 = vmatpush1.bf16.msra.mxu0 0
    %1348 = vmatprep.subr.bf16.mxu0 0
    %1349 = vmatpush1.bf16.msra.mxu0 0
    %1350 = vmatprep.mubr.bf16.mxu0 0
    %1351 = vmatmul.mubr.bf16.gmra.mrb[0].mxu0 %v1316
    %v1352 = vpop.f32.mrb[0].mxu0
    %v1353 = vadd.f32 %v1221, %v1352
    %v1354 = vpop.f32.mrb[0].mxu0
    %v1355 = vadd.f32 %v1223, %v1354
    %v1356 = vpop.f32.mrb[0].mxu0
    %v1357 = vadd.f32 %v1225, %v1356
    %v1358 = vpop.f32.mrb[0].mxu0
    %v1359 = vadd.f32 %v1227, %v1358
    %1360 = vdwg.mxu0
    %v1361 = vadd.f32 %v1287, %v1353
    %v1362 = vadd.f32 %v1289, %v1355
    %v1363 = vadd.f32 %v1291, %v1357
    %v1364 = vadd.f32 %v1293, %v1359
    %1365 = vset.pattern.permute.xlu0 81
    %1366 = vperm.xlu0 %1365, %v869
    %v1367 = vpop.permute.xlu0 %1366
    %1369 = vset.pattern.permute.xlu0 81
    %1370 = vperm.xlu0 %1369, %v870
    %v1371 = vpop.permute.xlu0 %1370
    %1373 = vrot.lane.b32.xlu0 %v885, 96
    %v1374 = vpop.permute.xlu0 %1373
    %v1376 = vsel %vm245, %v1374, 0
    %1378 = vmatprep.subr.bf16.mxu0 0
    %1379 = vmatpush1.bf16.msra.mxu0 %v851
    %1380 = vmatprep.subr.bf16.mxu0 0
    %1381 = vmatpush1.bf16.msra.mxu0 %v852
    %1382 = vmatprep.subr.bf16.mxu0 0
    %1383 = vmatpush1.bf16.msra.mxu0 0
    %1384 = vmatprep.subr.bf16.mxu0 0
    %1385 = vmatpush1.bf16.msra.mxu0 0
    %1386 = vmatprep.subr.bf16.mxu0 0
    %1387 = vmatpush1.bf16.msra.mxu0 0
    %1388 = vmatprep.subr.bf16.mxu0 0
    %1389 = vmatpush1.bf16.msra.mxu0 0
    %1390 = vmatprep.subr.bf16.mxu0 0
    %1391 = vmatpush1.bf16.msra.mxu0 0
    %1392 = vmatprep.subr.bf16.mxu0 0
    %1393 = vmatpush1.bf16.msra.mxu0 0
    %1394 = vmatprep.subr.bf16.mxu0 0
    %1395 = vmatpush1.bf16.msra.mxu0 0
    %1396 = vmatprep.subr.bf16.mxu0 0
    %1397 = vmatpush1.bf16.msra.mxu0 0
    %1398 = vmatprep.subr.bf16.mxu0 0
    %1399 = vmatpush1.bf16.msra.mxu0 0
    %1400 = vmatprep.subr.bf16.mxu0 0
    %1401 = vmatpush1.bf16.msra.mxu0 0
    %1402 = vmatprep.subr.bf16.mxu0 0
    %1403 = vmatpush1.bf16.msra.mxu0 0
    %1404 = vmatprep.subr.bf16.mxu0 0
    %1405 = vmatpush1.bf16.msra.mxu0 0
    %1406 = vmatprep.subr.bf16.mxu0 0
    %1407 = vmatpush1.bf16.msra.mxu0 0
    %1408 = vmatprep.subr.bf16.mxu0 0
    %1409 = vmatpush1.bf16.msra.mxu0 0
    %1410 = vmatprep.mubr.bf16.mxu0 0
    %1411 = vmatmul.mubr.bf16.gmra.mrb[0].mxu0 %v1376
    %v1412 = vpop.f32.mrb[0].mxu0
    %v1413 = vadd.f32 %v1367, %v1412
    %v1414 = vpop.f32.mrb[0].mxu0
    %v1415 = vpop.f32.mrb[0].mxu0
    %v1416 = vadd.f32 %v1371, %v1415
    %v1417 = vpop.f32.mrb[0].mxu0
    %1418 = vdwg.mxu0
    %v1419 = vmax.f32 %v1413, 0.0
    %v1420 = vmax.f32 %v1416, 0.0
    %v1421 = vpack.c.bf16 %v1420, %v1419
    %1422 = vrot.lane.b32.xlu0 %v939, 96
    %v1423 = vpop.permute.xlu0 %1422
    %v1425 = vsel %vm245, %v1423, 0
    %1427 = vmatprep.subr.bf16.mxu0 0
    %1428 = vmatpush1.bf16.msra.mxu0 %v851
    %1429 = vmatprep.subr.bf16.mxu0 0
    %1430 = vmatpush1.bf16.msra.mxu0 %v852
    %1431 = vmatprep.subr.bf16.mxu0 0
    %1432 = vmatpush1.bf16.msra.mxu0 0
    %1433 = vmatprep.subr.bf16.mxu0 0
    %1434 = vmatpush1.bf16.msra.mxu0 0
    %1435 = vmatprep.subr.bf16.mxu0 0
    %1436 = vmatpush1.bf16.msra.mxu0 0
    %1437 = vmatprep.subr.bf16.mxu0 0
    %1438 = vmatpush1.bf16.msra.mxu0 0
    %1439 = vmatprep.subr.bf16.mxu0 0
    %1440 = vmatpush1.bf16.msra.mxu0 0
    %1441 = vmatprep.subr.bf16.mxu0 0
    %1442 = vmatpush1.bf16.msra.mxu0 0
    %1443 = vmatprep.subr.bf16.mxu0 0
    %1444 = vmatpush1.bf16.msra.mxu0 0
    %1445 = vmatprep.subr.bf16.mxu0 0
    %1446 = vmatpush1.bf16.msra.mxu0 0
    %1447 = vmatprep.subr.bf16.mxu0 0
    %1448 = vmatpush1.bf16.msra.mxu0 0
    %1449 = vmatprep.subr.bf16.mxu0 0
    %1450 = vmatpush1.bf16.msra.mxu0 0
    %1451 = vmatprep.subr.bf16.mxu0 0
    %1452 = vmatpush1.bf16.msra.mxu0 0
    %1453 = vmatprep.subr.bf16.mxu0 0
    %1454 = vmatpush1.bf16.msra.mxu0 0
    %1455 = vmatprep.subr.bf16.mxu0 0
    %1456 = vmatpush1.bf16.msra.mxu0 0
    %1457 = vmatprep.subr.bf16.mxu0 0
    %1458 = vmatpush1.bf16.msra.mxu0 0
    %1459 = vmatprep.mubr.bf16.mxu0 0
    %1460 = vmatmul.mubr.bf16.gmra.mrb[0].mxu0 %v1425
    %v1461 = vpop.f32.mrb[0].mxu0
    %v1462 = vadd.f32 %v1367, %v1461
    %v1463 = vpop.f32.mrb[0].mxu0
    %v1464 = vpop.f32.mrb[0].mxu0
    %v1465 = vadd.f32 %v1371, %v1464
    %v1466 = vpop.f32.mrb[0].mxu0
    %1467 = vdwg.mxu0
    %v1468 = vmax.f32 %v1462, 0.0
    %v1469 = vmax.f32 %v1465, 0.0
    %v1470 = vpack.c.bf16 %v1469, %v1468
    %v1472 = vsel %vm245, %v1470, 0
    %1474 = vmatprep.subr.bf16.mxu0 %v1002
    %1475 = vmatpush1.bf16.msra.mxu0 %v1001
    %1476 = vmatprep.subr.bf16.mxu0 %v1004
    %1477 = vmatpush1.bf16.msra.mxu0 %v1003
    %1478 = vmatprep.subr.bf16.mxu0 0
    %1479 = vmatpush1.bf16.msra.mxu0 0
    %1480 = vmatprep.subr.bf16.mxu0 0
    %1481 = vmatpush1.bf16.msra.mxu0 0
    %1482 = vmatprep.subr.bf16.mxu0 0
    %1483 = vmatpush1.bf16.msra.mxu0 0
    %1484 = vmatprep.subr.bf16.mxu0 0
    %1485 = vmatpush1.bf16.msra.mxu0 0
    %1486 = vmatprep.subr.bf16.mxu0 0
    %1487 = vmatpush1.bf16.msra.mxu0 0
    %1488 = vmatprep.subr.bf16.mxu0 0
    %1489 = vmatpush1.bf16.msra.mxu0 0
    %1490 = vmatprep.subr.bf16.mxu0 0
    %1491 = vmatpush1.bf16.msra.mxu0 0
    %1492 = vmatprep.subr.bf16.mxu0 0
    %1493 = vmatpush1.bf16.msra.mxu0 0
    %1494 = vmatprep.subr.bf16.mxu0 0
    %1495 = vmatpush1.bf16.msra.mxu0 0
    %1496 = vmatprep.subr.bf16.mxu0 0
    %1497 = vmatpush1.bf16.msra.mxu0 0
    %1498 = vmatprep.subr.bf16.mxu0 0
    %1499 = vmatpush1.bf16.msra.mxu0 0
    %1500 = vmatprep.subr.bf16.mxu0 0
    %1501 = vmatpush1.bf16.msra.mxu0 0
    %1502 = vmatprep.subr.bf16.mxu0 0
    %1503 = vmatpush1.bf16.msra.mxu0 0
    %1504 = vmatprep.subr.bf16.mxu0 0
    %1505 = vmatpush1.bf16.msra.mxu0 0
    %1506 = vmatprep.mubr.bf16.mxu0 0
    %1507 = vmatmul.mubr.bf16.gmra.mrb[0].mxu0 %v1472
    %v1508 = vpop.f32.mrb[0].mxu0
    %v1509 = vadd.f32 0.0, %v1508
    %v1510 = vpop.f32.mrb[0].mxu0
    %v1511 = vadd.f32 0.0, %v1510
    %v1512 = vpop.f32.mrb[0].mxu0
    %v1513 = vadd.f32 0.0, %v1512
    %v1514 = vpop.f32.mrb[0].mxu0
    %v1515 = vadd.f32 0.0, %v1514
    %1516 = vdwg.mxu0
    %1517 = vrot.lane.b32.xlu0 %v1059, 96
    %v1518 = vpop.permute.xlu0 %1517
    %v1520 = vsel %vm245, %v1518, 0
    %1522 = vmatprep.subr.bf16.mxu0 0
    %1523 = vmatpush1.bf16.msra.mxu0 %v851
    %1524 = vmatprep.subr.bf16.mxu0 0
    %1525 = vmatpush1.bf16.msra.mxu0 %v852
    %1526 = vmatprep.subr.bf16.mxu0 0
    %1527 = vmatpush1.bf16.msra.mxu0 0
    %1528 = vmatprep.subr.bf16.mxu0 0
    %1529 = vmatpush1.bf16.msra.mxu0 0
    %1530 = vmatprep.subr.bf16.mxu0 0
    %1531 = vmatpush1.bf16.msra.mxu0 0
    %1532 = vmatprep.subr.bf16.mxu0 0
    %1533 = vmatpush1.bf16.msra.mxu0 0
    %1534 = vmatprep.subr.bf16.mxu0 0
    %1535 = vmatpush1.bf16.msra.mxu0 0
    %1536 = vmatprep.subr.bf16.mxu0 0
    %1537 = vmatpush1.bf16.msra.mxu0 0
    %1538 = vmatprep.subr.bf16.mxu0 0
    %1539 = vmatpush1.bf16.msra.mxu0 0
    %1540 = vmatprep.subr.bf16.mxu0 0
    %1541 = vmatpush1.bf16.msra.mxu0 0
    %1542 = vmatprep.subr.bf16.mxu0 0
    %1543 = vmatpush1.bf16.msra.mxu0 0
    %1544 = vmatprep.subr.bf16.mxu0 0
    %1545 = vmatpush1.bf16.msra.mxu0 0
    %1546 = vmatprep.subr.bf16.mxu0 0
    %1547 = vmatpush1.bf16.msra.mxu0 0
    %1548 = vmatprep.subr.bf16.mxu0 0
    %1549 = vmatpush1.bf16.msra.mxu0 0
    %1550 = vmatprep.subr.bf16.mxu0 0
    %1551 = vmatpush1.bf16.msra.mxu0 0
    %1552 = vmatprep.subr.bf16.mxu0 0
    %1553 = vmatpush1.bf16.msra.mxu0 0
    %1554 = vmatprep.mubr.bf16.mxu0 0
    %1555 = vmatmul.mubr.bf16.gmra.mrb[0].mxu0 %v1520
    %v1556 = vpop.f32.mrb[0].mxu0
    %v1557 = vadd.f32 %v1367, %v1556
    %v1558 = vpop.f32.mrb[0].mxu0
    %v1559 = vpop.f32.mrb[0].mxu0
    %v1560 = vadd.f32 %v1371, %v1559
    %v1561 = vpop.f32.mrb[0].mxu0
    %1562 = vdwg.mxu0
    %v1563 = vmax.f32 %v1557, 0.0
    %v1564 = vmax.f32 %v1560, 0.0
    %v1565 = vpack.c.bf16 %v1564, %v1563
    %1566 = vrot.lane.b32.xlu0 %v1113, 96
    %v1567 = vpop.permute.xlu0 %1566
    %v1569 = vsel %vm245, %v1567, 0
    %1571 = vmatprep.subr.bf16.mxu0 0
    %1572 = vmatpush1.bf16.msra.mxu0 %v851
    %1573 = vmatprep.subr.bf16.mxu0 0
    %1574 = vmatpush1.bf16.msra.mxu0 %v852
    %1575 = vmatprep.subr.bf16.mxu0 0
    %1576 = vmatpush1.bf16.msra.mxu0 0
    %1577 = vmatprep.subr.bf16.mxu0 0
    %1578 = vmatpush1.bf16.msra.mxu0 0
    %1579 = vmatprep.subr.bf16.mxu0 0
    %1580 = vmatpush1.bf16.msra.mxu0 0
    %1581 = vmatprep.subr.bf16.mxu0 0
    %1582 = vmatpush1.bf16.msra.mxu0 0
    %1583 = vmatprep.subr.bf16.mxu0 0
    %1584 = vmatpush1.bf16.msra.mxu0 0
    %1585 = vmatprep.subr.bf16.mxu0 0
    %1586 = vmatpush1.bf16.msra.mxu0 0
    %1587 = vmatprep.subr.bf16.mxu0 0
    %1588 = vmatpush1.bf16.msra.mxu0 0
    %1589 = vmatprep.subr.bf16.mxu0 0
    %1590 = vmatpush1.bf16.msra.mxu0 0
    %1591 = vmatprep.subr.bf16.mxu0 0
    %1592 = vmatpush1.bf16.msra.mxu0 0
    %1593 = vmatprep.subr.bf16.mxu0 0
    %1594 = vmatpush1.bf16.msra.mxu0 0
    %1595 = vmatprep.subr.bf16.mxu0 0
    %1596 = vmatpush1.bf16.msra.mxu0 0
    %1597 = vmatprep.subr.bf16.mxu0 0
    %1598 = vmatpush1.bf16.msra.mxu0 0
    %1599 = vmatprep.subr.bf16.mxu0 0
    %1600 = vmatpush1.bf16.msra.mxu0 0
    %1601 = vmatprep.subr.bf16.mxu0 0
    %1602 = vmatpush1.bf16.msra.mxu0 0
    %1603 = vmatprep.mubr.bf16.mxu0 0
    %1604 = vmatmul.mubr.bf16.gmra.mrb[0].mxu0 %v1569
    %v1605 = vpop.f32.mrb[0].mxu0
    %v1606 = vadd.f32 %v1367, %v1605
    %v1607 = vpop.f32.mrb[0].mxu0
    %v1608 = vpop.f32.mrb[0].mxu0
    %v1609 = vadd.f32 %v1371, %v1608
    %v1610 = vpop.f32.mrb[0].mxu0
    %1611 = vdwg.mxu0
    %v1612 = vmax.f32 %v1606, 0.0
    %v1613 = vmax.f32 %v1609, 0.0
    %v1614 = vpack.c.bf16 %v1613, %v1612
    %v1616 = vsel %vm245, %v1614, 0
    %1618 = vmatprep.subr.bf16.mxu0 %v1176
    %1619 = vmatpush1.bf16.msra.mxu0 %v1175
    %1620 = vmatprep.subr.bf16.mxu0 %v1178
    %1621 = vmatpush1.bf16.msra.mxu0 %v1177
    %1622 = vmatprep.subr.bf16.mxu0 0
    %1623 = vmatpush1.bf16.msra.mxu0 0
    %1624 = vmatprep.subr.bf16.mxu0 0
    %1625 = vmatpush1.bf16.msra.mxu0 0
    %1626 = vmatprep.subr.bf16.mxu0 0
    %1627 = vmatpush1.bf16.msra.mxu0 0
    %1628 = vmatprep.subr.bf16.mxu0 0
    %1629 = vmatpush1.bf16.msra.mxu0 0
    %1630 = vmatprep.subr.bf16.mxu0 0
    %1631 = vmatpush1.bf16.msra.mxu0 0
    %1632 = vmatprep.subr.bf16.mxu0 0
    %1633 = vmatpush1.bf16.msra.mxu0 0
    %1634 = vmatprep.subr.bf16.mxu0 0
    %1635 = vmatpush1.bf16.msra.mxu0 0
    %1636 = vmatprep.subr.bf16.mxu0 0
    %1637 = vmatpush1.bf16.msra.mxu0 0
    %1638 = vmatprep.subr.bf16.mxu0 0
    %1639 = vmatpush1.bf16.msra.mxu0 0
    %1640 = vmatprep.subr.bf16.mxu0 0
    %1641 = vmatpush1.bf16.msra.mxu0 0
    %1642 = vmatprep.subr.bf16.mxu0 0
    %1643 = vmatpush1.bf16.msra.mxu0 0
    %1644 = vmatprep.subr.bf16.mxu0 0
    %1645 = vmatpush1.bf16.msra.mxu0 0
    %1646 = vmatprep.subr.bf16.mxu0 0
    %1647 = vmatpush1.bf16.msra.mxu0 0
    %1648 = vmatprep.subr.bf16.mxu0 0
    %1649 = vmatpush1.bf16.msra.mxu0 0
    %1650 = vmatprep.mubr.bf16.mxu0 0
    %1651 = vmatmul.mubr.bf16.gmra.mrb[0].mxu0 %v1616
    %v1652 = vpop.f32.mrb[0].mxu0
    %v1653 = vadd.f32 0.0, %v1652
    %v1654 = vpop.f32.mrb[0].mxu0
    %v1655 = vadd.f32 0.0, %v1654
    %v1656 = vpop.f32.mrb[0].mxu0
    %v1657 = vadd.f32 0.0, %v1656
    %v1658 = vpop.f32.mrb[0].mxu0
    %v1659 = vadd.f32 0.0, %v1658
    %1660 = vdwg.mxu0
    %v1662 = vsel %vm245, %v1421, 0
    %1664 = vmatprep.subr.bf16.mxu0 %v1242
    %1665 = vmatpush1.bf16.msra.mxu0 %v1241
    %1666 = vmatprep.subr.bf16.mxu0 %v1244
    %1667 = vmatpush1.bf16.msra.mxu0 %v1243
    %1668 = vmatprep.subr.bf16.mxu0 0
    %1669 = vmatpush1.bf16.msra.mxu0 0
    %1670 = vmatprep.subr.bf16.mxu0 0
    %1671 = vmatpush1.bf16.msra.mxu0 0
    %1672 = vmatprep.subr.bf16.mxu0 0
    %1673 = vmatpush1.bf16.msra.mxu0 0
    %1674 = vmatprep.subr.bf16.mxu0 0
    %1675 = vmatpush1.bf16.msra.mxu0 0
    %1676 = vmatprep.subr.bf16.mxu0 0
    %1677 = vmatpush1.bf16.msra.mxu0 0
    %1678 = vmatprep.subr.bf16.mxu0 0
    %1679 = vmatpush1.bf16.msra.mxu0 0
    %1680 = vmatprep.subr.bf16.mxu0 0
    %1681 = vmatpush1.bf16.msra.mxu0 0
    %1682 = vmatprep.subr.bf16.mxu0 0
    %1683 = vmatpush1.bf16.msra.mxu0 0
    %1684 = vmatprep.subr.bf16.mxu0 0
    %1685 = vmatpush1.bf16.msra.mxu0 0
    %1686 = vmatprep.subr.bf16.mxu0 0
    %1687 = vmatpush1.bf16.msra.mxu0 0
    %1688 = vmatprep.subr.bf16.mxu0 0
    %1689 = vmatpush1.bf16.msra.mxu0 0
    %1690 = vmatprep.subr.bf16.mxu0 0
    %1691 = vmatpush1.bf16.msra.mxu0 0
    %1692 = vmatprep.subr.bf16.mxu0 0
    %1693 = vmatpush1.bf16.msra.mxu0 0
    %1694 = vmatprep.subr.bf16.mxu0 0
    %1695 = vmatpush1.bf16.msra.mxu0 0
    %1696 = vmatprep.mubr.bf16.mxu0 0
    %1697 = vmatmul.mubr.bf16.gmra.mrb[0].mxu0 %v1662
    %v1698 = vpop.f32.mrb[0].mxu0
    %v1699 = vadd.f32 %v1509, %v1698
    %v1700 = vpop.f32.mrb[0].mxu0
    %v1701 = vadd.f32 %v1511, %v1700
    %v1702 = vpop.f32.mrb[0].mxu0
    %v1703 = vadd.f32 %v1513, %v1702
    %v1704 = vpop.f32.mrb[0].mxu0
    %v1705 = vadd.f32 %v1515, %v1704
    %1706 = vdwg.mxu0
    %v1708 = vsel %vm245, %v1565, 0
    %1710 = vmatprep.subr.bf16.mxu0 %v1308
    %1711 = vmatpush1.bf16.msra.mxu0 %v1307
    %1712 = vmatprep.subr.bf16.mxu0 %v1310
    %1713 = vmatpush1.bf16.msra.mxu0 %v1309
    %1714 = vmatprep.subr.bf16.mxu0 0
    %1715 = vmatpush1.bf16.msra.mxu0 0
    %1716 = vmatprep.subr.bf16.mxu0 0
    %1717 = vmatpush1.bf16.msra.mxu0 0
    %1718 = vmatprep.subr.bf16.mxu0 0
    %1719 = vmatpush1.bf16.msra.mxu0 0
    %1720 = vmatprep.subr.bf16.mxu0 0
    %1721 = vmatpush1.bf16.msra.mxu0 0
    %1722 = vmatprep.subr.bf16.mxu0 0
    %1723 = vmatpush1.bf16.msra.mxu0 0
    %1724 = vmatprep.subr.bf16.mxu0 0
    %1725 = vmatpush1.bf16.msra.mxu0 0
    %1726 = vmatprep.subr.bf16.mxu0 0
    %1727 = vmatpush1.bf16.msra.mxu0 0
    %1728 = vmatprep.subr.bf16.mxu0 0
    %1729 = vmatpush1.bf16.msra.mxu0 0
    %1730 = vmatprep.subr.bf16.mxu0 0
    %1731 = vmatpush1.bf16.msra.mxu0 0
    %1732 = vmatprep.subr.bf16.mxu0 0
    %1733 = vmatpush1.bf16.msra.mxu0 0
    %1734 = vmatprep.subr.bf16.mxu0 0
    %1735 = vmatpush1.bf16.msra.mxu0 0
    %1736 = vmatprep.subr.bf16.mxu0 0
    %1737 = vmatpush1.bf16.msra.mxu0 0
    %1738 = vmatprep.subr.bf16.mxu0 0
    %1739 = vmatpush1.bf16.msra.mxu0 0
    %1740 = vmatprep.subr.bf16.mxu0 0
    %1741 = vmatpush1.bf16.msra.mxu0 0
    %1742 = vmatprep.mubr.bf16.mxu0 0
    %1743 = vmatmul.mubr.bf16.gmra.mrb[0].mxu0 %v1708
    %v1744 = vpop.f32.mrb[0].mxu0
    %v1745 = vadd.f32 %v1653, %v1744
    %v1746 = vpop.f32.mrb[0].mxu0
    %v1747 = vadd.f32 %v1655, %v1746
    %v1748 = vpop.f32.mrb[0].mxu0
    %v1749 = vadd.f32 %v1657, %v1748
    %v1750 = vpop.f32.mrb[0].mxu0
    %v1751 = vadd.f32 %v1659, %v1750
    %1752 = vdwg.mxu0
    %v1753 = vadd.f32 %v1699, %v1745
    %v1754 = vadd.f32 %v1701, %v1747
    %v1755 = vadd.f32 %v1703, %v1749
    %v1756 = vadd.f32 %v1705, %v1751
    %1765 = vrot.lane.b32.xlu0 %v1361, 127
    %v1766 = vpop.permute.xlu0 %1765
    %1767 = vrot.lane.b32.xlu0 %v1362, 127
    %v1768 = vpop.permute.xlu0 %1767
    %1769 = vrot.lane.b32.xlu0 %v1363, 127
    %v1770 = vpop.permute.xlu0 %1769
    %1771 = vrot.lane.b32.xlu0 %v1364, 127
    %v1772 = vpop.permute.xlu0 %1771
    %1773 = vrot.lane.b32.xlu0 %v1753, 127
    %v1774 = vpop.permute.xlu0 %1773
    %1775 = vrot.lane.b32.xlu0 %v1754, 127
    %v1776 = vpop.permute.xlu0 %1775
    %1777 = vrot.lane.b32.xlu0 %v1755, 127
    %v1778 = vpop.permute.xlu0 %1777
    %1779 = vrot.lane.b32.xlu0 %v1756, 127
    %v1780 = vpop.permute.xlu0 %1779
    %vm1781 = vcmask 1039360
    %v1782 = vsel %vm1781, %v1766, %v1768
    %v1783 = vsel %vm1781, %v1770, %v1772
    %v1784 = vsel %vm1781, %v1774, %v1776
    %v1785 = vsel %vm1781, %v1778, %v1780
    %1794 = vrot.lane.b32.xlu0 %v1361, 126
    %v1795 = vpop.permute.xlu0 %1794
    %1796 = vrot.lane.b32.xlu0 %v1362, 126
    %v1797 = vpop.permute.xlu0 %1796
    %1798 = vrot.lane.b32.xlu0 %v1363, 126
    %v1799 = vpop.permute.xlu0 %1798
    %1800 = vrot.lane.b32.xlu0 %v1364, 126
    %v1801 = vpop.permute.xlu0 %1800
    %1802 = vrot.lane.b32.xlu0 %v1753, 126
    %v1803 = vpop.permute.xlu0 %1802
    %1804 = vrot.lane.b32.xlu0 %v1754, 126
    %v1805 = vpop.permute.xlu0 %1804
    %1806 = vrot.lane.b32.xlu0 %v1755, 126
    %v1807 = vpop.permute.xlu0 %1806
    %1808 = vrot.lane.b32.xlu0 %v1756, 126
    %v1809 = vpop.permute.xlu0 %1808
    %vm1810 = vcmask 1031168
    %v1811 = vsel %vm1810, %v1795, %v1797
    %v1812 = vsel %vm1810, %v1799, %v1801
    %v1813 = vsel %vm1810, %v1803, %v1805
    %v1814 = vsel %vm1810, %v1807, %v1809
    %1823 = vrot.lane.b32.xlu0 %v1361, 118
    %v1824 = vpop.permute.xlu0 %1823
    %1825 = vrot.lane.b32.xlu0 %v1362, 118
    %v1826 = vpop.permute.xlu0 %1825
    %1827 = vrot.lane.b32.xlu0 %v1363, 118
    %v1828 = vpop.permute.xlu0 %1827
    %1829 = vrot.lane.b32.xlu0 %v1364, 118
    %v1830 = vpop.permute.xlu0 %1829
    %1831 = vrot.lane.b32.xlu0 %v1753, 118
    %v1832 = vpop.permute.xlu0 %1831
    %1833 = vrot.lane.b32.xlu0 %v1754, 118
    %v1834 = vpop.permute.xlu0 %1833
    %1835 = vrot.lane.b32.xlu0 %v1755, 118
    %v1836 = vpop.permute.xlu0 %1835
    %1837 = vrot.lane.b32.xlu0 %v1756, 118
    %v1838 = vpop.permute.xlu0 %1837
    %vm1839 = vcmask 965632
    %v1840 = vsel %vm1839, %v1824, %v1826
    %v1841 = vsel %vm1839, %v1828, %v1830
    %v1842 = vsel %vm1839, %v1832, %v1834
    %v1843 = vsel %vm1839, %v1836, %v1838
    %1852 = vrot.lane.b32.xlu0 %v1361, 117
    %v1853 = vpop.permute.xlu0 %1852
    %1854 = vrot.lane.b32.xlu0 %v1362, 117
    %v1855 = vpop.permute.xlu0 %1854
    %1856 = vrot.lane.b32.xlu0 %v1363, 117
    %v1857 = vpop.permute.xlu0 %1856
    %1858 = vrot.lane.b32.xlu0 %v1364, 117
    %v1859 = vpop.permute.xlu0 %1858
    %1860 = vrot.lane.b32.xlu0 %v1753, 117
    %v1861 = vpop.permute.xlu0 %1860
    %1862 = vrot.lane.b32.xlu0 %v1754, 117
    %v1863 = vpop.permute.xlu0 %1862
    %1864 = vrot.lane.b32.xlu0 %v1755, 117
    %v1865 = vpop.permute.xlu0 %1864
    %1866 = vrot.lane.b32.xlu0 %v1756, 117
    %v1867 = vpop.permute.xlu0 %1866
    %vm1868 = vcmask 957440
    %v1869 = vsel %vm1868, %v1853, %v1855
    %v1870 = vsel %vm1868, %v1857, %v1859
    %v1871 = vsel %vm1868, %v1861, %v1863
    %v1872 = vsel %vm1868, %v1865, %v1867
    %1881 = vrot.lane.b32.xlu0 %v1361, 116
    %v1882 = vpop.permute.xlu0 %1881
    %1883 = vrot.lane.b32.xlu0 %v1362, 116
    %v1884 = vpop.permute.xlu0 %1883
    %1885 = vrot.lane.b32.xlu0 %v1363, 116
    %v1886 = vpop.permute.xlu0 %1885
    %1887 = vrot.lane.b32.xlu0 %v1364, 116
    %v1888 = vpop.permute.xlu0 %1887
    %1889 = vrot.lane.b32.xlu0 %v1753, 116
    %v1890 = vpop.permute.xlu0 %1889
    %1891 = vrot.lane.b32.xlu0 %v1754, 116
    %v1892 = vpop.permute.xlu0 %1891
    %1893 = vrot.lane.b32.xlu0 %v1755, 116
    %v1894 = vpop.permute.xlu0 %1893
    %1895 = vrot.lane.b32.xlu0 %v1756, 116
    %v1896 = vpop.permute.xlu0 %1895
    %vm1897 = vcmask 949248
    %v1898 = vsel %vm1897, %v1882, %v1884
    %v1899 = vsel %vm1897, %v1886, %v1888
    %v1900 = vsel %vm1897, %v1890, %v1892
    %v1901 = vsel %vm1897, %v1894, %v1896
    %1910 = vrot.lane.b32.xlu0 %v1361, 108
    %v1911 = vpop.permute.xlu0 %1910
    %1912 = vrot.lane.b32.xlu0 %v1362, 108
    %v1913 = vpop.permute.xlu0 %1912
    %1914 = vrot.lane.b32.xlu0 %v1363, 108
    %v1915 = vpop.permute.xlu0 %1914
    %1916 = vrot.lane.b32.xlu0 %v1364, 108
    %v1917 = vpop.permute.xlu0 %1916
    %1918 = vrot.lane.b32.xlu0 %v1753, 108
    %v1919 = vpop.permute.xlu0 %1918
    %1920 = vrot.lane.b32.xlu0 %v1754, 108
    %v1921 = vpop.permute.xlu0 %1920
    %1922 = vrot.lane.b32.xlu0 %v1755, 108
    %v1923 = vpop.permute.xlu0 %1922
    %1924 = vrot.lane.b32.xlu0 %v1756, 108
    %v1925 = vpop.permute.xlu0 %1924
    %vm1926 = vcmask 883712
    %v1927 = vsel %vm1926, %v1911, %v1913
    %v1928 = vsel %vm1926, %v1915, %v1917
    %v1929 = vsel %vm1926, %v1919, %v1921
    %v1930 = vsel %vm1926, %v1923, %v1925
    %1939 = vrot.lane.b32.xlu0 %v1361, 107
    %v1940 = vpop.permute.xlu0 %1939
    %1941 = vrot.lane.b32.xlu0 %v1362, 107
    %v1942 = vpop.permute.xlu0 %1941
    %1943 = vrot.lane.b32.xlu0 %v1363, 107
    %v1944 = vpop.permute.xlu0 %1943
    %1945 = vrot.lane.b32.xlu0 %v1364, 107
    %v1946 = vpop.permute.xlu0 %1945
    %1947 = vrot.lane.b32.xlu0 %v1753, 107
    %v1948 = vpop.permute.xlu0 %1947
    %1949 = vrot.lane.b32.xlu0 %v1754, 107
    %v1950 = vpop.permute.xlu0 %1949
    %1951 = vrot.lane.b32.xlu0 %v1755, 107
    %v1952 = vpop.permute.xlu0 %1951
    %1953 = vrot.lane.b32.xlu0 %v1756, 107
    %v1954 = vpop.permute.xlu0 %1953
    %vm1955 = vcmask 875520
    %v1956 = vsel %vm1955, %v1940, %v1942
    %v1957 = vsel %vm1955, %v1944, %v1946
    %v1958 = vsel %vm1955, %v1948, %v1950
    %v1959 = vsel %vm1955, %v1952, %v1954
    %1968 = vrot.lane.b32.xlu0 %v1361, 106
    %v1969 = vpop.permute.xlu0 %1968
    %1970 = vrot.lane.b32.xlu0 %v1362, 106
    %v1971 = vpop.permute.xlu0 %1970
    %1972 = vrot.lane.b32.xlu0 %v1363, 106
    %v1973 = vpop.permute.xlu0 %1972
    %1974 = vrot.lane.b32.xlu0 %v1364, 106
    %v1975 = vpop.permute.xlu0 %1974
    %1976 = vrot.lane.b32.xlu0 %v1753, 106
    %v1977 = vpop.permute.xlu0 %1976
    %1978 = vrot.lane.b32.xlu0 %v1754, 106
    %v1979 = vpop.permute.xlu0 %1978
    %1980 = vrot.lane.b32.xlu0 %v1755, 106
    %v1981 = vpop.permute.xlu0 %1980
    %1982 = vrot.lane.b32.xlu0 %v1756, 106
    %v1983 = vpop.permute.xlu0 %1982
    %vm1984 = vcmask 867328
    %v1985 = vsel %vm1984, %v1969, %v1971
    %v1986 = vsel %vm1984, %v1973, %v1975
    %v1987 = vsel %vm1984, %v1977, %v1979
    %v1988 = vsel %vm1984, %v1981, %v1983
    %v1997 = vpack.c.bf16 %v1363, %v1361
    %v1998 = vpack.c.bf16 %v1364, %v1362
    %v1999 = vpack.c.bf16 %v1755, %v1753
    %v2000 = vpack.c.bf16 %v1756, %v1754
    %v2001 = vpack.c.bf16 %v1783, %v1782
    %v2002 = vpack.c.bf16 %v1772, %v1768
    %v2003 = vpack.c.bf16 %v1785, %v1784
    %v2004 = vpack.c.bf16 %v1780, %v1776
    %v2005 = vpack.c.bf16 %v1812, %v1811
    %v2006 = vpack.c.bf16 %v1801, %v1797
    %v2007 = vpack.c.bf16 %v1814, %v1813
    %v2008 = vpack.c.bf16 %v1809, %v1805
    %v2009 = vpack.c.bf16 %v1841, %v1840
    %v2010 = vpack.c.bf16 %v1830, %v1826
    %v2011 = vpack.c.bf16 %v1843, %v1842
    %v2012 = vpack.c.bf16 %v1838, %v1834
    %v2013 = vpack.c.bf16 %v1870, %v1869
    %v2014 = vpack.c.bf16 %v1859, %v1855
    %v2015 = vpack.c.bf16 %v1872, %v1871
    %v2016 = vpack.c.bf16 %v1867, %v1863
    %v2017 = vpack.c.bf16 %v1899, %v1898
    %v2018 = vpack.c.bf16 %v1888, %v1884
    %v2019 = vpack.c.bf16 %v1901, %v1900
    %v2020 = vpack.c.bf16 %v1896, %v1892
    %v2021 = vpack.c.bf16 %v1928, %v1927
    %v2022 = vpack.c.bf16 %v1917, %v1913
    %v2023 = vpack.c.bf16 %v1930, %v1929
    %v2024 = vpack.c.bf16 %v1925, %v1921
    %v2025 = vpack.c.bf16 %v1957, %v1956
    %v2026 = vpack.c.bf16 %v1946, %v1942
    %v2027 = vpack.c.bf16 %v1959, %v1958
    %v2028 = vpack.c.bf16 %v1954, %v1950
    %v2029 = vpack.c.bf16 %v1986, %v1985
    %v2030 = vpack.c.bf16 %v1975, %v1971
    %v2031 = vpack.c.bf16 %v1988, %v1987
    %v2032 = vpack.c.bf16 %v1983, %v1979
    %2033 = vset.pattern.permute.xlu0 82
    %2034 = vperm.xlu0 %2033, %v869
    %v2035 = vpop.permute.xlu0 %2034
    %2037 = vset.pattern.permute.xlu0 82
    %2038 = vperm.xlu0 %2037, %v870
    %v2039 = vpop.permute.xlu0 %2038
    %v2043 = vunpack.c.h.b16 %v855
    %v2044 = vunpack.c.l.b16 %v856
    %v2045 = vunpack.c.h.b16 %v858
    %v2046 = vunpack.c.l.b16 %v859
    %v2047 = vpack.c.b16 %v2045, %v2043
    %v2048 = vpack.c.b16 %v2046, %v2044
    %2049 = vrot.lane.b32.xlu0 %v885, 64
    %v2050 = vpop.permute.xlu0 %2049
    %2051 = vrot.lane.b32.xlu0 %v2047, 64
    %v2052 = vpop.permute.xlu0 %2051
    %2053 = vrot.lane.b32.xlu0 %v2048, 64
    %v2054 = vpop.permute.xlu0 %2053
    %vm2055 = vcmask 523264
    %v2056 = vsel %vm2055, %v2050, %v2052
    %v2057 = vsel %vm2055, %v2052, %v2054
    %2096 = vrot.lane.b32.xlu0 %v1997, 123
    %v2097 = vpop.permute.xlu0 %2096
    %2098 = vrot.lane.b32.xlu0 %v1998, 123
    %v2099 = vpop.permute.xlu0 %2098
    %2100 = vrot.lane.b32.xlu0 %v1999, 123
    %v2101 = vpop.permute.xlu0 %2100
    %2102 = vrot.lane.b32.xlu0 %v2000, 123
    %v2103 = vpop.permute.xlu0 %2102
    %2104 = vrot.lane.b32.xlu0 %v2001, 123
    %v2105 = vpop.permute.xlu0 %2104
    %2106 = vrot.lane.b32.xlu0 %v2002, 123
    %v2107 = vpop.permute.xlu0 %2106
    %2108 = vrot.lane.b32.xlu0 %v2003, 123
    %v2109 = vpop.permute.xlu0 %2108
    %2110 = vrot.lane.b32.xlu0 %v2004, 123
    %v2111 = vpop.permute.xlu0 %2110
    %2112 = vrot.lane.b32.xlu0 %v2005, 123
    %v2113 = vpop.permute.xlu0 %2112
    %2114 = vrot.lane.b32.xlu0 %v2006, 123
    %v2115 = vpop.permute.xlu0 %2114
    %2116 = vrot.lane.b32.xlu0 %v2007, 123
    %v2117 = vpop.permute.xlu0 %2116
    %2118 = vrot.lane.b32.xlu0 %v2008, 123
    %v2119 = vpop.permute.xlu0 %2118
    %2120 = vrot.lane.b32.xlu0 %v2009, 123
    %v2121 = vpop.permute.xlu0 %2120
    %2122 = vrot.lane.b32.xlu0 %v2010, 123
    %v2123 = vpop.permute.xlu0 %2122
    %2124 = vrot.lane.b32.xlu0 %v2011, 123
    %v2125 = vpop.permute.xlu0 %2124
    %2126 = vrot.lane.b32.xlu0 %v2012, 123
    %v2127 = vpop.permute.xlu0 %2126
    %2128 = vrot.lane.b32.xlu0 %v2013, 123
    %v2129 = vpop.permute.xlu0 %2128
    %2130 = vrot.lane.b32.xlu0 %v2014, 123
    %v2131 = vpop.permute.xlu0 %2130
    %2132 = vrot.lane.b32.xlu0 %v2015, 123
    %v2133 = vpop.permute.xlu0 %2132
    %2134 = vrot.lane.b32.xlu0 %v2016, 123
    %v2135 = vpop.permute.xlu0 %2134
    %2136 = vrot.lane.b32.xlu0 %v2017, 123
    %v2137 = vpop.permute.xlu0 %2136
    %2138 = vrot.lane.b32.xlu0 %v2018, 123
    %v2139 = vpop.permute.xlu0 %2138
    %2140 = vrot.lane.b32.xlu0 %v2019, 123
    %v2141 = vpop.permute.xlu0 %2140
    %2142 = vrot.lane.b32.xlu0 %v2020, 123
    %v2143 = vpop.permute.xlu0 %2142
    %2144 = vrot.lane.b32.xlu0 %v2021, 123
    %v2145 = vpop.permute.xlu0 %2144
    %2146 = vrot.lane.b32.xlu0 %v2022, 123
    %v2147 = vpop.permute.xlu0 %2146
    %2148 = vrot.lane.b32.xlu0 %v2023, 123
    %v2149 = vpop.permute.xlu0 %2148
    %2150 = vrot.lane.b32.xlu0 %v2024, 123
    %v2151 = vpop.permute.xlu0 %2150
    %2152 = vrot.lane.b32.xlu0 %v2025, 123
    %v2153 = vpop.permute.xlu0 %2152
    %2154 = vrot.lane.b32.xlu0 %v2026, 123
    %v2155 = vpop.permute.xlu0 %2154
    %2156 = vrot.lane.b32.xlu0 %v2027, 123
    %v2157 = vpop.permute.xlu0 %2156
    %2158 = vrot.lane.b32.xlu0 %v2028, 123
    %v2159 = vpop.permute.xlu0 %2158
    %2160 = vrot.lane.b32.xlu0 %v2029, 123
    %v2161 = vpop.permute.xlu0 %2160
    %2162 = vrot.lane.b32.xlu0 %v2030, 123
    %v2163 = vpop.permute.xlu0 %2162
    %2164 = vrot.lane.b32.xlu0 %v2031, 123
    %v2165 = vpop.permute.xlu0 %2164
    %2166 = vrot.lane.b32.xlu0 %v2032, 123
    %v2167 = vpop.permute.xlu0 %2166
    %vm2168 = vcmask 1006592
    %v2169 = vsel %vm2168, %v2097, %v2099
    %v2170 = vsel %vm2168, %v2101, %v2103
    %v2171 = vsel %vm2168, %v2105, %v2107
    %v2172 = vsel %vm2168, %v2109, %v2111
    %v2173 = vsel %vm2168, %v2113, %v2115
    %v2174 = vsel %vm2168, %v2117, %v2119
    %v2175 = vsel %vm2168, %v2121, %v2123
    %v2176 = vsel %vm2168, %v2125, %v2127
    %v2177 = vsel %vm2168, %v2129, %v2131
    %v2178 = vsel %vm2168, %v2133, %v2135
    %v2179 = vsel %vm2168, %v2137, %v2139
    %v2180 = vsel %vm2168, %v2141, %v2143
    %v2181 = vsel %vm2168, %v2145, %v2147
    %v2182 = vsel %vm2168, %v2149, %v2151
    %v2183 = vsel %vm2168, %v2153, %v2155
    %v2184 = vsel %vm2168, %v2157, %v2159
    %v2185 = vsel %vm2168, %v2161, %v2163
    %v2186 = vsel %vm2168, %v2165, %v2167
    %v2224 = vsel %vm245, %v2054, 0
    %2226 = vmatprep.subr.bf16.mxu0 %v2099
    %2227 = vmatpush1.bf16.msra.mxu0 %v2169
    %2228 = vmatprep.subr.bf16.mxu0 %v2103
    %2229 = vmatpush1.bf16.msra.mxu0 %v2170
    %2230 = vmatprep.subr.bf16.mxu0 %v2107
    %2231 = vmatpush1.bf16.msra.mxu0 %v2171
    %2232 = vmatprep.subr.bf16.mxu0 %v2111
    %2233 = vmatpush1.bf16.msra.mxu0 %v2172
    %2234 = vmatprep.subr.bf16.mxu0 %v2115
    %2235 = vmatpush1.bf16.msra.mxu0 %v2173
    %2236 = vmatprep.subr.bf16.mxu0 %v2119
    %2237 = vmatpush1.bf16.msra.mxu0 %v2174
    %2238 = vmatprep.subr.bf16.mxu0 %v2123
    %2239 = vmatpush1.bf16.msra.mxu0 %v2175
    %2240 = vmatprep.subr.bf16.mxu0 %v2127
    %2241 = vmatpush1.bf16.msra.mxu0 %v2176
    %2242 = vmatprep.subr.bf16.mxu0 %v2131
    %2243 = vmatpush1.bf16.msra.mxu0 %v2177
    %2244 = vmatprep.subr.bf16.mxu0 %v2135
    %2245 = vmatpush1.bf16.msra.mxu0 %v2178
    %2246 = vmatprep.subr.bf16.mxu0 %v2139
    %2247 = vmatpush1.bf16.msra.mxu0 %v2179
    %2248 = vmatprep.subr.bf16.mxu0 %v2143
    %2249 = vmatpush1.bf16.msra.mxu0 %v2180
    %2250 = vmatprep.subr.bf16.mxu0 %v2147
    %2251 = vmatpush1.bf16.msra.mxu0 %v2181
    %2252 = vmatprep.subr.bf16.mxu0 %v2151
    %2253 = vmatpush1.bf16.msra.mxu0 %v2182
    %2254 = vmatprep.subr.bf16.mxu0 %v2155
    %2255 = vmatpush1.bf16.msra.mxu0 %v2183
    %2256 = vmatprep.subr.bf16.mxu0 %v2159
    %2257 = vmatpush1.bf16.msra.mxu0 %v2184
    %2258 = vmatprep.mubr.bf16.mxu0 %v2057
    %2259 = vmatmul.mubr.bf16.gmra.mrb[0].mxu0 %v2056
    %v2260 = vpop.f32.mrb[0].mxu0
    %v2261 = vadd.f32 %v2035, %v2260
    %v2262 = vpop.f32.mrb[0].mxu0
    %v2263 = vadd.f32 %v2035, %v2262
    %v2264 = vpop.f32.mrb[0].mxu0
    %v2265 = vadd.f32 %v2039, %v2264
    %v2266 = vpop.f32.mrb[0].mxu0
    %v2267 = vadd.f32 %v2039, %v2266
    %2268 = vdwg.mxu0
    %2269 = vmatprep.subr.bf16.mxu0 %v2163
    %2270 = vmatpush1.bf16.msra.mxu0 %v2185
    %2271 = vmatprep.subr.bf16.mxu0 %v2167
    %2272 = vmatpush1.bf16.msra.mxu0 %v2186
    %2273 = vmatprep.subr.bf16.mxu0 0
    %2274 = vmatpush1.bf16.msra.mxu0 0
    %2275 = vmatprep.subr.bf16.mxu0 0
    %2276 = vmatpush1.bf16.msra.mxu0 0
    %2277 = vmatprep.subr.bf16.mxu0 0
    %2278 = vmatpush1.bf16.msra.mxu0 0
    %2279 = vmatprep.subr.bf16.mxu0 0
    %2280 = vmatpush1.bf16.msra.mxu0 0
    %2281 = vmatprep.subr.bf16.mxu0 0
    %2282 = vmatpush1.bf16.msra.mxu0 0
    %2283 = vmatprep.subr.bf16.mxu0 0
    %2284 = vmatpush1.bf16.msra.mxu0 0
    %2285 = vmatprep.subr.bf16.mxu0 0
    %2286 = vmatpush1.bf16.msra.mxu0 0
    %2287 = vmatprep.subr.bf16.mxu0 0
    %2288 = vmatpush1.bf16.msra.mxu0 0
    %2289 = vmatprep.subr.bf16.mxu0 0
    %2290 = vmatpush1.bf16.msra.mxu0 0
    %2291 = vmatprep.subr.bf16.mxu0 0
    %2292 = vmatpush1.bf16.msra.mxu0 0
    %2293 = vmatprep.subr.bf16.mxu0 0
    %2294 = vmatpush1.bf16.msra.mxu0 0
    %2295 = vmatprep.subr.bf16.mxu0 0
    %2296 = vmatpush1.bf16.msra.mxu0 0
    %2297 = vmatprep.subr.bf16.mxu0 0
    %2298 = vmatpush1.bf16.msra.mxu0 0
    %2299 = vmatprep.subr.bf16.mxu0 0
    %2300 = vmatpush1.bf16.msra.mxu0 0
    %2301 = vmatprep.mubr.bf16.mxu0 0
    %2302 = vmatmul.mubr.bf16.gmra.mrb[0].mxu0 %v2224
    %v2303 = vpop.f32.mrb[0].mxu0
    %v2304 = vadd.f32 %v2261, %v2303
    %v2305 = vpop.f32.mrb[0].mxu0
    %v2306 = vadd.f32 %v2263, %v2305
    %v2307 = vpop.f32.mrb[0].mxu0
    %v2308 = vadd.f32 %v2265, %v2307
    %v2309 = vpop.f32.mrb[0].mxu0
    %v2310 = vadd.f32 %v2267, %v2309
    %2311 = vdwg.mxu0
    %v2312 = vmax.f32 %v2304, 0.0
    %v2313 = vmax.f32 %v2306, 0.0
    %v2314 = vmax.f32 %v2308, 0.0
    %v2315 = vmax.f32 %v2310, 0.0
    %v2316 = vpack.c.bf16 %v2314, %v2312
    %v2317 = vpack.c.bf16 %v2315, %v2313
    %2318 = vset.pattern.permute.xlu0 83
    %2319 = vperm.xlu0 %2318, %v869
    %v2320 = vpop.permute.xlu0 %2319
    %v2322 = vpack.c.b16 %v2044, %v2044
    %2323 = vrot.lane.b32.xlu0 %v2322, 32
    %v2324 = vpop.permute.xlu0 %2323
    %vm2325 = vcmask 130048
    %v2327 = vsel %vm2325, %v2324, 0
    %2329 = vmatprep.subr.bf16.mxu0 %v2317
    %2330 = vmatpush1.bf16.msra.mxu0 %v2316
    %2331 = vmatprep.subr.bf16.mxu0 0
    %2332 = vmatpush1.bf16.msra.mxu0 0
    %2333 = vmatprep.subr.bf16.mxu0 0
    %2334 = vmatpush1.bf16.msra.mxu0 0
    %2335 = vmatprep.subr.bf16.mxu0 0
    %2336 = vmatpush1.bf16.msra.mxu0 0
    %2337 = vmatprep.subr.bf16.mxu0 0
    %2338 = vmatpush1.bf16.msra.mxu0 0
    %2339 = vmatprep.subr.bf16.mxu0 0
    %2340 = vmatpush1.bf16.msra.mxu0 0
    %2341 = vmatprep.subr.bf16.mxu0 0
    %2342 = vmatpush1.bf16.msra.mxu0 0
    %2343 = vmatprep.subr.bf16.mxu0 0
    %2344 = vmatpush1.bf16.msra.mxu0 0
    %2345 = vmatprep.subr.bf16.mxu0 0
    %2346 = vmatpush1.bf16.msra.mxu0 0
    %2347 = vmatprep.subr.bf16.mxu0 0
    %2348 = vmatpush1.bf16.msra.mxu0 0
    %2349 = vmatprep.subr.bf16.mxu0 0
    %2350 = vmatpush1.bf16.msra.mxu0 0
    %2351 = vmatprep.subr.bf16.mxu0 0
    %2352 = vmatpush1.bf16.msra.mxu0 0
    %2353 = vmatprep.subr.bf16.mxu0 0
    %2354 = vmatpush1.bf16.msra.mxu0 0
    %2355 = vmatprep.subr.bf16.mxu0 0
    %2356 = vmatpush1.bf16.msra.mxu0 0
    %2357 = vmatprep.subr.bf16.mxu0 0
    %2358 = vmatpush1.bf16.msra.mxu0 0
    %2359 = vmatprep.subr.bf16.mxu0 0
    %2360 = vmatpush1.bf16.msra.mxu0 0
    %2361 = vmatprep.mubr.bf16.mxu0 0
    %2362 = vmatmul.mubr.bf16.gmra.mrb[0].mxu0 %v2327
    %v2363 = vpop.f32.mrb[0].mxu0
    %v2364 = vadd.f32 %v2320, %v2363
    %v2365 = vpop.f32.mrb[0].mxu0
    %v2366 = vadd.f32 %v2320, %v2365
    %v2367 = vpop.f32.mrb[0].mxu0
    %v2368 = vpop.f32.mrb[0].mxu0
    %2369 = vdwg.mxu0
    %v2370 = vpack.c.bf16 %v2364, %v2364
    %v2371 = vpack.c.bf16 %v2366, %v2366
    %v2372 = vld [vmem:[#allocation7] sm:$0xff]
    %v2373 = vld [vmem:[#allocation7 + $0x8] sm:$0xff]
    %v2374 = vld [vmem:[#allocation7 + $0x10] sm:$0xff]
    %v2375 = vld [vmem:[#allocation7 + $0x18] sm:$0xf]
    %v2376 = vld [vmem:[#allocation7 + $0x1c] sm:$0xff]
    %v2377 = vld [vmem:[#allocation7 + $0x24] sm:$0xff]
    %v2378 = vld [vmem:[#allocation7 + $0x2c] sm:$0xff]
    %v2379 = vld [vmem:[#allocation7 + $0x34] sm:$0xf]
    %v2380 = vld [vmem:[#allocation7 + $0x38] sm:$0xff]
    %v2381 = vld [vmem:[#allocation7 + $0x40] sm:$0xff]
    %v2382 = vld [vmem:[#allocation7 + $0x48] sm:$0xff]
    %v2383 = vld [vmem:[#allocation7 + $0x50] sm:$0xf]
    %v2384 = vld [vmem:[#allocation7 + $0x54] sm:$0xff]
    %v2385 = vld [vmem:[#allocation7 + $0x5c] sm:$0xff]
    %v2386 = vld [vmem:[#allocation7 + $0x64] sm:$0xff]
    %v2387 = vld [vmem:[#allocation7 + $0x6c] sm:$0xf]
    %v2388 = vld [vmem:[#allocation7 + $0x70] sm:$0xff]
    %v2389 = vld [vmem:[#allocation7 + $0x78] sm:$0xff]
    %v2390 = vld [vmem:[#allocation7 + $0x80] sm:$0xff]
    %v2391 = vld [vmem:[#allocation7 + $0x88] sm:$0xf]
    %v2392 = vld [vmem:[#allocation7 + $0x8c] sm:$0xff]
    %v2393 = vld [vmem:[#allocation7 + $0x94] sm:$0xff]
    %v2394 = vld [vmem:[#allocation7 + $0x9c] sm:$0xff]
    %v2395 = vld [vmem:[#allocation7 + $0xa4] sm:$0xf]
    %v2396 = vld [vmem:[#allocation7 + $0xa8] sm:$0xff]
    %v2397 = vld [vmem:[#allocation7 + $0xb0] sm:$0xff]
    %v2398 = vld [vmem:[#allocation7 + $0xb8] sm:$0xff]
    %v2399 = vld [vmem:[#allocation7 + $0xc0] sm:$0xf]
    %v2400 = vld [vmem:[#allocation7 + $0xc4] sm:$0xff]
    %v2401 = vld [vmem:[#allocation7 + $0xcc] sm:$0xff]
    %v2402 = vld [vmem:[#allocation7 + $0xd4] sm:$0xff]
    %v2403 = vld [vmem:[#allocation7 + $0xdc] sm:$0xf]
    %v2404 = vld [vmem:[#allocation7 + $0xe0] sm:$0xff]
    %v2405 = vld [vmem:[#allocation7 + $0xe8] sm:$0xff]
    %v2406 = vld [vmem:[#allocation7 + $0xf0] sm:$0xff]
    %v2407 = vld [vmem:[#allocation7 + $0xf8] sm:$0xf]
    %v2408 = vld [vmem:[#allocation7 + $0xfc] sm:$0xff]
    %v2409 = vld [vmem:[#allocation7 + $0x104] sm:$0xff]
    %v2410 = vld [vmem:[#allocation7 + $0x10c] sm:$0xff]
    %v2411 = vld [vmem:[#allocation7 + $0x114] sm:$0xf]
    %v2412 = vld [vmem:[#allocation7 + $0x118] sm:$0xff]
    %v2413 = vld [vmem:[#allocation7 + $0x120] sm:$0xff]
    %v2414 = vld [vmem:[#allocation7 + $0x128] sm:$0xff]
    %v2415 = vld [vmem:[#allocation7 + $0x130] sm:$0xf]
    %v2416 = vld [vmem:[#allocation7 + $0x134] sm:$0xff]
    %v2417 = vld [vmem:[#allocation7 + $0x13c] sm:$0xff]
    %v2418 = vld [vmem:[#allocation7 + $0x144] sm:$0xff]
    %v2419 = vld [vmem:[#allocation7 + $0x14c] sm:$0xf]
    %v2420 = vld [vmem:[#allocation7 + $0x150] sm:$0xff]
    %v2421 = vld [vmem:[#allocation7 + $0x158] sm:$0xff]
    %v2422 = vld [vmem:[#allocation7 + $0x160] sm:$0xff]
    %v2423 = vld [vmem:[#allocation7 + $0x168] sm:$0xf]
    %v2424 = vld [vmem:[#allocation7 + $0x16c] sm:$0xff]
    %v2425 = vld [vmem:[#allocation7 + $0x174] sm:$0xff]
    %v2426 = vld [vmem:[#allocation7 + $0x17c] sm:$0xff]
    %v2427 = vld [vmem:[#allocation7 + $0x184] sm:$0xf]
    %v2428 = vld [vmem:[#allocation7 + $0x188] sm:$0xff]
    %v2429 = vld [vmem:[#allocation7 + $0x190] sm:$0xff]
    %v2430 = vld [vmem:[#allocation7 + $0x198] sm:$0xff]
    %v2431 = vld [vmem:[#allocation7 + $0x1a0] sm:$0xf]
    %v2432 = vld [vmem:[#allocation7 + $0x1a4] sm:$0xff]
    %v2433 = vld [vmem:[#allocation7 + $0x1ac] sm:$0xff]
    %v2434 = vld [vmem:[#allocation7 + $0x1b4] sm:$0xff]
    %v2435 = vld [vmem:[#allocation7 + $0x1bc] sm:$0xf]
    %v2436 = vld [vmem:[#allocation7 + $0x1c0] sm:$0xff]
    %v2437 = vld [vmem:[#allocation7 + $0x1c8] sm:$0xff]
    %v2438 = vld [vmem:[#allocation7 + $0x1d0] sm:$0xff]
    %v2439 = vld [vmem:[#allocation7 + $0x1d8] sm:$0xf]
    %v2440 = vld [vmem:[#allocation7 + $0x1dc] sm:$0xff]
    %v2441 = vld [vmem:[#allocation7 + $0x1e4] sm:$0xff]
    %v2442 = vld [vmem:[#allocation7 + $0x1ec] sm:$0xff]
    %v2443 = vld [vmem:[#allocation7 + $0x1f4] sm:$0xf]
    %v2444 = vld [vmem:[#allocation7 + $0x1f8] sm:$0xff]
    %v2445 = vld [vmem:[#allocation7 + $0x200] sm:$0xff]
    %v2446 = vld [vmem:[#allocation7 + $0x208] sm:$0xff]
    %v2447 = vld [vmem:[#allocation7 + $0x210] sm:$0xf]
    %v2448 = vld [vmem:[#allocation7 + $0x214] sm:$0xff]
    %v2449 = vld [vmem:[#allocation7 + $0x21c] sm:$0xff]
    %v2450 = vld [vmem:[#allocation7 + $0x224] sm:$0xff]
    %v2451 = vld [vmem:[#allocation7 + $0x22c] sm:$0xf]
    %v2452 = vld [vmem:[#allocation7 + $0x230] sm:$0xff]
    %v2453 = vld [vmem:[#allocation7 + $0x238] sm:$0xff]
    %v2454 = vld [vmem:[#allocation7 + $0x240] sm:$0xff]
    %v2455 = vld [vmem:[#allocation7 + $0x248] sm:$0xf]
    %v2456 = vld [vmem:[#allocation7 + $0x24c] sm:$0xff]
    %v2457 = vld [vmem:[#allocation7 + $0x254] sm:$0xff]
    %v2458 = vld [vmem:[#allocation7 + $0x25c] sm:$0xff]
    %v2459 = vld [vmem:[#allocation7 + $0x264] sm:$0xf]
    %v2460 = vld [vmem:[#allocation7 + $0x268] sm:$0xff]
    %v2461 = vld [vmem:[#allocation7 + $0x270] sm:$0xff]
    %v2462 = vld [vmem:[#allocation7 + $0x278] sm:$0xff]
    %v2463 = vld [vmem:[#allocation7 + $0x280] sm:$0xf]
    %v2464 = vld [vmem:[#allocation7 + $0x284] sm:$0xff]
    %v2465 = vld [vmem:[#allocation7 + $0x28c] sm:$0xff]
    %v2466 = vld [vmem:[#allocation7 + $0x294] sm:$0xff]
    %v2467 = vld [vmem:[#allocation7 + $0x29c] sm:$0xf]
    %v2468 = vld [vmem:[#allocation7 + $0x2a0] sm:$0xff]
    %v2469 = vld [vmem:[#allocation7 + $0x2a8] sm:$0xff]
    %v2470 = vld [vmem:[#allocation7 + $0x2b0] sm:$0xff]
    %v2471 = vld [vmem:[#allocation7 + $0x2b8] sm:$0xf]
    %v2472 = vpack.c.b16 %v2046, %v2046
    %2473 = vrot.lane.b32.xlu0 %v2472, 32
    %v2474 = vpop.permute.xlu0 %2473
    %v2476 = vsel %vm2325, %v2474, 0
    %2478 = vmatprep.subr.bf16.mxu0 %v2317
    %2479 = vmatpush1.bf16.msra.mxu0 %v2316
    %2480 = vmatprep.subr.bf16.mxu0 0
    %2481 = vmatpush1.bf16.msra.mxu0 0
    %2482 = vmatprep.subr.bf16.mxu0 0
    %2483 = vmatpush1.bf16.msra.mxu0 0
    %2484 = vmatprep.subr.bf16.mxu0 0
    %2485 = vmatpush1.bf16.msra.mxu0 0
    %2486 = vmatprep.subr.bf16.mxu0 0
    %2487 = vmatpush1.bf16.msra.mxu0 0
    %2488 = vmatprep.subr.bf16.mxu0 0
    %2489 = vmatpush1.bf16.msra.mxu0 0
    %2490 = vmatprep.subr.bf16.mxu0 0
    %2491 = vmatpush1.bf16.msra.mxu0 0
    %2492 = vmatprep.subr.bf16.mxu0 0
    %2493 = vmatpush1.bf16.msra.mxu0 0
    %2494 = vmatprep.subr.bf16.mxu0 0
    %2495 = vmatpush1.bf16.msra.mxu0 0
    %2496 = vmatprep.subr.bf16.mxu0 0
    %2497 = vmatpush1.bf16.msra.mxu0 0
    %2498 = vmatprep.subr.bf16.mxu0 0
    %2499 = vmatpush1.bf16.msra.mxu0 0
    %2500 = vmatprep.subr.bf16.mxu0 0
    %2501 = vmatpush1.bf16.msra.mxu0 0
    %2502 = vmatprep.subr.bf16.mxu0 0
    %2503 = vmatpush1.bf16.msra.mxu0 0
    %2504 = vmatprep.subr.bf16.mxu0 0
    %2505 = vmatpush1.bf16.msra.mxu0 0
    %2506 = vmatprep.subr.bf16.mxu0 0
    %2507 = vmatpush1.bf16.msra.mxu0 0
    %2508 = vmatprep.subr.bf16.mxu0 0
    %2509 = vmatpush1.bf16.msra.mxu0 0
    %2510 = vmatprep.mubr.bf16.mxu0 0
    %2511 = vmatmul.mubr.bf16.gmra.mrb[0].mxu0 %v2476
    %v2512 = vpop.f32.mrb[0].mxu0
    %v2513 = vadd.f32 %v2320, %v2512
    %v2514 = vpop.f32.mrb[0].mxu0
    %v2515 = vadd.f32 %v2320, %v2514
    %v2516 = vpop.f32.mrb[0].mxu0
    %v2517 = vpop.f32.mrb[0].mxu0
    %2518 = vdwg.mxu0
    %v2519 = vpack.c.bf16 %v2513, %v2513
    %v2520 = vpack.c.bf16 %v2515, %v2515
    %v2521 = vld [vmem:[#allocation7 + $0x2bc] sm:$0xff]
    %v2522 = vld [vmem:[#allocation7 + $0x2c4] sm:$0xff]
    %v2523 = vld [vmem:[#allocation7 + $0x2cc] sm:$0xff]
    %v2524 = vld [vmem:[#allocation7 + $0x2d4] sm:$0xf]
    %v2525 = vld [vmem:[#allocation7 + $0x2d8] sm:$0xff]
    %v2526 = vld [vmem:[#allocation7 + $0x2e0] sm:$0xff]
    %v2527 = vld [vmem:[#allocation7 + $0x2e8] sm:$0xff]
    %v2528 = vld [vmem:[#allocation7 + $0x2f0] sm:$0xf]
    %v2529 = vld [vmem:[#allocation7 + $0x2f4] sm:$0xff]
    %v2530 = vld [vmem:[#allocation7 + $0x2fc] sm:$0xff]
    %v2531 = vld [vmem:[#allocation7 + $0x304] sm:$0xff]
    %v2532 = vld [vmem:[#allocation7 + $0x30c] sm:$0xf]
    %v2533 = vld [vmem:[#allocation7 + $0x310] sm:$0xff]
    %v2534 = vld [vmem:[#allocation7 + $0x318] sm:$0xff]
    %v2535 = vld [vmem:[#allocation7 + $0x320] sm:$0xff]
    %v2536 = vld [vmem:[#allocation7 + $0x328] sm:$0xf]
    %v2537 = vld [vmem:[#allocation7 + $0x32c] sm:$0xff]
    %v2538 = vld [vmem:[#allocation7 + $0x334] sm:$0xff]
    %v2539 = vld [vmem:[#allocation7 + $0x33c] sm:$0xff]
    %v2540 = vld [vmem:[#allocation7 + $0x344] sm:$0xf]
    %v2541 = vld [vmem:[#allocation7 + $0x348] sm:$0xff]
    %v2542 = vld [vmem:[#allocation7 + $0x350] sm:$0xff]
    %v2543 = vld [vmem:[#allocation7 + $0x358] sm:$0xff]
    %v2544 = vld [vmem:[#allocation7 + $0x360] sm:$0xf]
    %v2545 = vld [vmem:[#allocation7 + $0x364] sm:$0xff]
    %v2546 = vld [vmem:[#allocation7 + $0x36c] sm:$0xff]
    %v2547 = vld [vmem:[#allocation7 + $0x374] sm:$0xff]
    %v2548 = vld [vmem:[#allocation7 + $0x37c] sm:$0xf]
    %v2549 = vld [vmem:[#allocation7 + $0x380] sm:$0xff]
    %v2550 = vld [vmem:[#allocation7 + $0x388] sm:$0xff]
    %v2551 = vld [vmem:[#allocation7 + $0x390] sm:$0xff]
    %v2552 = vld [vmem:[#allocation7 + $0x398] sm:$0xf]
    %v2553 = vld [vmem:[#allocation7 + $0x39c] sm:$0xff]
    %v2554 = vld [vmem:[#allocation7 + $0x3a4] sm:$0xff]
    %v2555 = vld [vmem:[#allocation7 + $0x3ac] sm:$0xff]
    %v2556 = vld [vmem:[#allocation7 + $0x3b4] sm:$0xf]
    %v2557 = vld [vmem:[#allocation7 + $0x3b8] sm:$0xff]
    %v2558 = vld [vmem:[#allocation7 + $0x3c0] sm:$0xff]
    %v2559 = vld [vmem:[#allocation7 + $0x3c8] sm:$0xff]
    %v2560 = vld [vmem:[#allocation7 + $0x3d0] sm:$0xf]
    %v2561 = vld [vmem:[#allocation7 + $0x3d4] sm:$0xff]
    %v2562 = vld [vmem:[#allocation7 + $0x3dc] sm:$0xff]
    %v2563 = vld [vmem:[#allocation7 + $0x3e4] sm:$0xff]
    %v2564 = vld [vmem:[#allocation7 + $0x3ec] sm:$0xf]
    %v2565 = vld [vmem:[#allocation7 + $0x3f0] sm:$0xff]
    %v2566 = vld [vmem:[#allocation7 + $0x3f8] sm:$0xff]
    %v2567 = vld [vmem:[#allocation7 + $0x400] sm:$0xff]
    %v2568 = vld [vmem:[#allocation7 + $0x408] sm:$0xf]
    %v2569 = vld [vmem:[#allocation7 + $0x40c] sm:$0xff]
    %v2570 = vld [vmem:[#allocation7 + $0x414] sm:$0xff]
    %v2571 = vld [vmem:[#allocation7 + $0x41c] sm:$0xff]
    %v2572 = vld [vmem:[#allocation7 + $0x424] sm:$0xf]
    %v2573 = vld [vmem:[#allocation7 + $0x428] sm:$0xff]
    %v2574 = vld [vmem:[#allocation7 + $0x430] sm:$0xff]
    %v2575 = vld [vmem:[#allocation7 + $0x438] sm:$0xff]
    %v2576 = vld [vmem:[#allocation7 + $0x440] sm:$0xf]
    %v2577 = vld [vmem:[#allocation7 + $0x444] sm:$0xff]
    %v2578 = vld [vmem:[#allocation7 + $0x44c] sm:$0xff]
    %v2579 = vld [vmem:[#allocation7 + $0x454] sm:$0xff]
    %v2580 = vld [vmem:[#allocation7 + $0x45c] sm:$0xf]
    %v2581 = vld [vmem:[#allocation7 + $0x460] sm:$0xff]
    %v2582 = vld [vmem:[#allocation7 + $0x468] sm:$0xff]
    %v2583 = vld [vmem:[#allocation7 + $0x470] sm:$0xff]
    %v2584 = vld [vmem:[#allocation7 + $0x478] sm:$0xf]
    %v2585 = vld [vmem:[#allocation7 + $0x47c] sm:$0xff]
    %v2586 = vld [vmem:[#allocation7 + $0x484] sm:$0xff]
    %v2587 = vld [vmem:[#allocation7 + $0x48c] sm:$0xff]
    %v2588 = vld [vmem:[#allocation7 + $0x494] sm:$0xf]
    %v2589 = vld [vmem:[#allocation7 + $0x498] sm:$0xff]
    %v2590 = vld [vmem:[#allocation7 + $0x4a0] sm:$0xff]
    %v2591 = vld [vmem:[#allocation7 + $0x4a8] sm:$0xff]
    %v2592 = vld [vmem:[#allocation7 + $0x4b0] sm:$0xf]
    %v2593 = vld [vmem:[#allocation7 + $0x4b4] sm:$0xff]
    %v2594 = vld [vmem:[#allocation7 + $0x4bc] sm:$0xff]
    %v2595 = vld [vmem:[#allocation7 + $0x4c4] sm:$0xff]
    %v2596 = vld [vmem:[#allocation7 + $0x4cc] sm:$0xf]
    %v2597 = vld [vmem:[#allocation7 + $0x4d0] sm:$0xff]
    %v2598 = vld [vmem:[#allocation7 + $0x4d8] sm:$0xff]
    %v2599 = vld [vmem:[#allocation7 + $0x4e0] sm:$0xff]
    %v2600 = vld [vmem:[#allocation7 + $0x4e8] sm:$0xf]
    %v2601 = vld [vmem:[#allocation7 + $0x4ec] sm:$0xff]
    %v2602 = vld [vmem:[#allocation7 + $0x4f4] sm:$0xff]
    %v2603 = vld [vmem:[#allocation7 + $0x4fc] sm:$0xff]
    %v2604 = vld [vmem:[#allocation7 + $0x504] sm:$0xf]
    %v2605 = vld [vmem:[#allocation7 + $0x508] sm:$0xff]
    %v2606 = vld [vmem:[#allocation7 + $0x510] sm:$0xff]
    %v2607 = vld [vmem:[#allocation7 + $0x518] sm:$0xff]
    %v2608 = vld [vmem:[#allocation7 + $0x520] sm:$0xf]
    %v2609 = vld [vmem:[#allocation7 + $0x524] sm:$0xff]
    %v2610 = vld [vmem:[#allocation7 + $0x52c] sm:$0xff]
    %v2611 = vld [vmem:[#allocation7 + $0x534] sm:$0xff]
    %v2612 = vld [vmem:[#allocation7 + $0x53c] sm:$0xf]
    %v2613 = vld [vmem:[#allocation7 + $0x540] sm:$0xff]
    %v2614 = vld [vmem:[#allocation7 + $0x548] sm:$0xff]
    %v2615 = vld [vmem:[#allocation7 + $0x550] sm:$0xff]
    %v2616 = vld [vmem:[#allocation7 + $0x558] sm:$0xf]
    %v2617 = vld [vmem:[#allocation7 + $0x55c] sm:$0xff]
    %v2618 = vld [vmem:[#allocation7 + $0x564] sm:$0xff]
    %v2619 = vld [vmem:[#allocation7 + $0x56c] sm:$0xff]
    %v2620 = vld [vmem:[#allocation7 + $0x574] sm:$0xf]
    %v2721 = vunpack.c.l.b16 %v2521
    %v2722 = vunpack.c.h.b16 %v2521
    %v2723 = vunpack.c.l.b16 %v2522
    %v2724 = vunpack.c.h.b16 %v2522
    %v2725 = vunpack.c.l.b16 %v2523
    %v2726 = vunpack.c.h.b16 %v2523
    %v2727 = vunpack.c.l.b16 %v2524
    %v2728 = vunpack.c.l.b16 %v2525
    %v2729 = vunpack.c.h.b16 %v2525
    %v2730 = vunpack.c.l.b16 %v2526
    %v2731 = vunpack.c.h.b16 %v2526
    %v2732 = vunpack.c.l.b16 %v2527
    %v2733 = vunpack.c.h.b16 %v2527
    %v2734 = vunpack.c.l.b16 %v2528
    %v2735 = vunpack.c.l.b16 %v2529
    %v2736 = vunpack.c.h.b16 %v2529
    %v2737 = vunpack.c.l.b16 %v2530
    %v2738 = vunpack.c.h.b16 %v2530
    %v2739 = vunpack.c.l.b16 %v2531
    %v2740 = vunpack.c.h.b16 %v2531
    %v2741 = vunpack.c.l.b16 %v2532
    %v2742 = vunpack.c.l.b16 %v2533
    %v2743 = vunpack.c.h.b16 %v2533
    %v2744 = vunpack.c.l.b16 %v2534
    %v2745 = vunpack.c.h.b16 %v2534
    %v2746 = vunpack.c.l.b16 %v2535
    %v2747 = vunpack.c.h.b16 %v2535
    %v2748 = vunpack.c.l.b16 %v2536
    %v2749 = vunpack.c.l.b16 %v2537
    %v2750 = vunpack.c.h.b16 %v2537
    %v2751 = vunpack.c.l.b16 %v2538
    %v2752 = vunpack.c.h.b16 %v2538
    %v2753 = vunpack.c.l.b16 %v2539
    %v2754 = vunpack.c.h.b16 %v2539
    %v2755 = vunpack.c.l.b16 %v2540
    %v2756 = vunpack.c.l.b16 %v2541
    %v2757 = vunpack.c.h.b16 %v2541
    %v2758 = vunpack.c.l.b16 %v2542
    %v2759 = vunpack.c.h.b16 %v2542
    %v2760 = vunpack.c.l.b16 %v2543
    %v2761 = vunpack.c.h.b16 %v2543
    %v2762 = vunpack.c.l.b16 %v2544
    %v2763 = vunpack.c.l.b16 %v2545
    %v2764 = vunpack.c.h.b16 %v2545
    %v2765 = vunpack.c.l.b16 %v2546
    %v2766 = vunpack.c.h.b16 %v2546
    %v2767 = vunpack.c.l.b16 %v2547
    %v2768 = vunpack.c.h.b16 %v2547
    %v2769 = vunpack.c.l.b16 %v2548
    %v2770 = vunpack.c.l.b16 %v2549
    %v2771 = vunpack.c.h.b16 %v2549
    %v2772 = vunpack.c.l.b16 %v2550
    %v2773 = vunpack.c.h.b16 %v2550
    %v2774 = vunpack.c.l.b16 %v2551
    %v2775 = vunpack.c.h.b16 %v2551
    %v2776 = vunpack.c.l.b16 %v2552
    %v2777 = vunpack.c.l.b16 %v2553
    %v2778 = vunpack.c.h.b16 %v2553
    %v2779 = vunpack.c.l.b16 %v2554
    %v2780 = vunpack.c.h.b16 %v2554
    %v2781 = vunpack.c.l.b16 %v2555
    %v2782 = vunpack.c.h.b16 %v2555
    %v2783 = vunpack.c.l.b16 %v2556
    %v2784 = vunpack.c.l.b16 %v2557
    %v2785 = vunpack.c.h.b16 %v2557
    %v2786 = vunpack.c.l.b16 %v2558
    %v2787 = vunpack.c.h.b16 %v2558
    %v2788 = vunpack.c.l.b16 %v2559
    %v2789 = vunpack.c.h.b16 %v2559
    %v2790 = vunpack.c.l.b16 %v2560
    %v2791 = vunpack.c.l.b16 %v2561
    %v2792 = vunpack.c.h.b16 %v2561
    %v2793 = vunpack.c.l.b16 %v2562
    %v2794 = vunpack.c.h.b16 %v2562
    %v2795 = vunpack.c.l.b16 %v2563
    %v2796 = vunpack.c.h.b16 %v2563
    %v2797 = vunpack.c.l.b16 %v2564
    %v2798 = vunpack.c.l.b16 %v2565
    %v2799 = vunpack.c.h.b16 %v2565
    %v2800 = vunpack.c.l.b16 %v2566
    %v2801 = vunpack.c.h.b16 %v2566
    %v2802 = vunpack.c.l.b16 %v2567
    %v2803 = vunpack.c.h.b16 %v2567
    %v2804 = vunpack.c.l.b16 %v2568
    %v2805 = vunpack.c.l.b16 %v2569
    %v2806 = vunpack.c.h.b16 %v2569
    %v2807 = vunpack.c.l.b16 %v2570
    %v2808 = vunpack.c.h.b16 %v2570
    %v2809 = vunpack.c.l.b16 %v2571
    %v2810 = vunpack.c.h.b16 %v2571
    %v2811 = vunpack.c.l.b16 %v2572
    %v2812 = vunpack.c.l.b16 %v2573
    %v2813 = vunpack.c.h.b16 %v2573
    %v2814 = vunpack.c.l.b16 %v2574
    %v2815 = vunpack.c.h.b16 %v2574
    %v2816 = vunpack.c.l.b16 %v2575
    %v2817 = vunpack.c.h.b16 %v2575
    %v2818 = vunpack.c.l.b16 %v2576
    %v2819 = vunpack.c.l.b16 %v2577
    %v2820 = vunpack.c.h.b16 %v2577
    %v2821 = vunpack.c.l.b16 %v2578
    %v2822 = vunpack.c.h.b16 %v2578
    %v2823 = vunpack.c.l.b16 %v2579
    %v2824 = vunpack.c.h.b16 %v2579
    %v2825 = vunpack.c.l.b16 %v2580
    %v2826 = vunpack.c.l.b16 %v2581
    %v2827 = vunpack.c.h.b16 %v2581
    %v2828 = vunpack.c.l.b16 %v2582
    %v2829 = vunpack.c.h.b16 %v2582
    %v2830 = vunpack.c.l.b16 %v2583
    %v2831 = vunpack.c.h.b16 %v2583
    %v2832 = vunpack.c.l.b16 %v2584
    %v2833 = vunpack.c.l.b16 %v2585
    %v2834 = vunpack.c.h.b16 %v2585
    %v2835 = vunpack.c.l.b16 %v2586
    %v2836 = vunpack.c.h.b16 %v2586
    %v2837 = vunpack.c.l.b16 %v2587
    %v2838 = vunpack.c.h.b16 %v2587
    %v2839 = vunpack.c.l.b16 %v2588
    %v2840 = vunpack.c.l.b16 %v2589
    %v2841 = vunpack.c.h.b16 %v2589
    %v2842 = vunpack.c.l.b16 %v2590
    %v2843 = vunpack.c.h.b16 %v2590
    %v2844 = vunpack.c.l.b16 %v2591
    %v2845 = vunpack.c.h.b16 %v2591
    %v2846 = vunpack.c.l.b16 %v2592
    %v2847 = vunpack.c.l.b16 %v2593
    %v2848 = vunpack.c.h.b16 %v2593
    %v2849 = vunpack.c.l.b16 %v2594
    %v2850 = vunpack.c.h.b16 %v2594
    %v2851 = vunpack.c.l.b16 %v2595
    %v2852 = vunpack.c.h.b16 %v2595
    %v2853 = vunpack.c.l.b16 %v2596
    %v2854 = vunpack.c.l.b16 %v2597
    %v2855 = vunpack.c.h.b16 %v2597
    %v2856 = vunpack.c.l.b16 %v2598
    %v2857 = vunpack.c.h.b16 %v2598
    %v2858 = vunpack.c.l.b16 %v2599
    %v2859 = vunpack.c.h.b16 %v2599
    %v2860 = vunpack.c.l.b16 %v2600
    %v2861 = vunpack.c.l.b16 %v2601
    %v2862 = vunpack.c.h.b16 %v2601
    %v2863 = vunpack.c.l.b16 %v2602
    %v2864 = vunpack.c.h.b16 %v2602
    %v2865 = vunpack.c.l.b16 %v2603
    %v2866 = vunpack.c.h.b16 %v2603
    %v2867 = vunpack.c.l.b16 %v2604
    %v2868 = vunpack.c.l.b16 %v2605
    %v2869 = vunpack.c.h.b16 %v2605
    %v2870 = vunpack.c.l.b16 %v2606
    %v2871 = vunpack.c.h.b16 %v2606
    %v2872 = vunpack.c.l.b16 %v2607
    %v2873 = vunpack.c.h.b16 %v2607
    %v2874 = vunpack.c.l.b16 %v2608
    %v2875 = vunpack.c.l.b16 %v2609
    %v2876 = vunpack.c.h.b16 %v2609
    %v2877 = vunpack.c.l.b16 %v2610
    %v2878 = vunpack.c.h.b16 %v2610
    %v2879 = vunpack.c.l.b16 %v2611
    %v2880 = vunpack.c.h.b16 %v2611
    %v2881 = vunpack.c.l.b16 %v2612
    %v2882 = vunpack.c.l.b16 %v2613
    %v2883 = vunpack.c.h.b16 %v2613
    %v2884 = vunpack.c.l.b16 %v2614
    %v2885 = vunpack.c.h.b16 %v2614
    %v2886 = vunpack.c.l.b16 %v2615
    %v2887 = vunpack.c.h.b16 %v2615
    %v2888 = vunpack.c.l.b16 %v2616
    %v2889 = vunpack.c.l.b16 %v2617
    %v2890 = vunpack.c.h.b16 %v2617
    %v2891 = vunpack.c.l.b16 %v2618
    %v2892 = vunpack.c.h.b16 %v2618
    %v2893 = vunpack.c.l.b16 %v2619
    %v2894 = vunpack.c.h.b16 %v2619
    %v2895 = vunpack.c.l.b16 %v2620
    %v2896 = vpack.c.b16 %v2728, %v2721
    %v2897 = vpack.c.b16 %v2729, %v2722
    %v2898 = vpack.c.b16 %v2730, %v2723
    %v2899 = vpack.c.b16 %v2731, %v2724
    %v2900 = vpack.c.b16 %v2732, %v2725
    %v2901 = vpack.c.b16 %v2733, %v2726
    %v2902 = vpack.c.b16 %v2734, %v2727
    %v2903 = vpack.c.b16 %v2742, %v2735
    %v2904 = vpack.c.b16 %v2743, %v2736
    %v2905 = vpack.c.b16 %v2744, %v2737
    %v2906 = vpack.c.b16 %v2745, %v2738
    %v2907 = vpack.c.b16 %v2746, %v2739
    %v2908 = vpack.c.b16 %v2747, %v2740
    %v2909 = vpack.c.b16 %v2748, %v2741
    %v2910 = vpack.c.b16 %v2756, %v2749
    %v2911 = vpack.c.b16 %v2757, %v2750
    %v2912 = vpack.c.b16 %v2758, %v2751
    %v2913 = vpack.c.b16 %v2759, %v2752
    %v2914 = vpack.c.b16 %v2760, %v2753
    %v2915 = vpack.c.b16 %v2761, %v2754
    %v2916 = vpack.c.b16 %v2762, %v2755
    %v2917 = vpack.c.b16 %v2770, %v2763
    %v2918 = vpack.c.b16 %v2771, %v2764
    %v2919 = vpack.c.b16 %v2772, %v2765
    %v2920 = vpack.c.b16 %v2773, %v2766
    %v2921 = vpack.c.b16 %v2774, %v2767
    %v2922 = vpack.c.b16 %v2775, %v2768
    %v2923 = vpack.c.b16 %v2776, %v2769
    %v2924 = vpack.c.b16 %v2784, %v2777
    %v2925 = vpack.c.b16 %v2785, %v2778
    %v2926 = vpack.c.b16 %v2786, %v2779
    %v2927 = vpack.c.b16 %v2787, %v2780
    %v2928 = vpack.c.b16 %v2788, %v2781
    %v2929 = vpack.c.b16 %v2789, %v2782
    %v2930 = vpack.c.b16 %v2790, %v2783
    %v2931 = vpack.c.b16 %v2798, %v2791
    %v2932 = vpack.c.b16 %v2799, %v2792
    %v2933 = vpack.c.b16 %v2800, %v2793
    %v2934 = vpack.c.b16 %v2801, %v2794
    %v2935 = vpack.c.b16 %v2802, %v2795
    %v2936 = vpack.c.b16 %v2803, %v2796
    %v2937 = vpack.c.b16 %v2804, %v2797
    %v2938 = vpack.c.b16 %v2812, %v2805
    %v2939 = vpack.c.b16 %v2813, %v2806
    %v2940 = vpack.c.b16 %v2814, %v2807
    %v2941 = vpack.c.b16 %v2815, %v2808
    %v2942 = vpack.c.b16 %v2816, %v2809
    %v2943 = vpack.c.b16 %v2817, %v2810
    %v2944 = vpack.c.b16 %v2818, %v2811
    %v2945 = vpack.c.b16 %v2826, %v2819
    %v2946 = vpack.c.b16 %v2827, %v2820
    %v2947 = vpack.c.b16 %v2828, %v2821
    %v2948 = vpack.c.b16 %v2829, %v2822
    %v2949 = vpack.c.b16 %v2830, %v2823
    %v2950 = vpack.c.b16 %v2831, %v2824
    %v2951 = vpack.c.b16 %v2832, %v2825
    %v2952 = vpack.c.b16 %v2840, %v2833
    %v2953 = vpack.c.b16 %v2841, %v2834
    %v2954 = vpack.c.b16 %v2842, %v2835
    %v2955 = vpack.c.b16 %v2843, %v2836
    %v2956 = vpack.c.b16 %v2844, %v2837
    %v2957 = vpack.c.b16 %v2845, %v2838
    %v2958 = vpack.c.b16 %v2846, %v2839
    %v2959 = vpack.c.b16 %v2854, %v2847
    %v2960 = vpack.c.b16 %v2855, %v2848
    %v2961 = vpack.c.b16 %v2856, %v2849
    %v2962 = vpack.c.b16 %v2857, %v2850
    %v2963 = vpack.c.b16 %v2858, %v2851
    %v2964 = vpack.c.b16 %v2859, %v2852
    %v2965 = vpack.c.b16 %v2860, %v2853
    %v2966 = vpack.c.b16 %v2868, %v2861
    %v2967 = vpack.c.b16 %v2869, %v2862
    %v2968 = vpack.c.b16 %v2870, %v2863
    %v2969 = vpack.c.b16 %v2871, %v2864
    %v2970 = vpack.c.b16 %v2872, %v2865
    %v2971 = vpack.c.b16 %v2873, %v2866
    %v2972 = vpack.c.b16 %v2874, %v2867
    %v2973 = vpack.c.b16 %v2882, %v2875
    %v2974 = vpack.c.b16 %v2883, %v2876
    %v2975 = vpack.c.b16 %v2884, %v2877
    %v2976 = vpack.c.b16 %v2885, %v2878
    %v2977 = vpack.c.b16 %v2886, %v2879
    %v2978 = vpack.c.b16 %v2887, %v2880
    %v2979 = vpack.c.b16 %v2888, %v2881
    %v2980 = vpack.c.b16 %v2889, %v2889
    %v2981 = vpack.c.b16 %v2890, %v2890
    %v2982 = vpack.c.b16 %v2891, %v2891
    %v2983 = vpack.c.b16 %v2892, %v2892
    %v2984 = vpack.c.b16 %v2893, %v2893
    %v2985 = vpack.c.b16 %v2894, %v2894
    %v2986 = vpack.c.b16 %v2895, %v2895
    %vm3071 = vcmask 588800
    %v3073 = vsel %vm3071, %v2520, 0
    %vm3075 = vcmask 1043456
    %v3077 = vsel %vm3075, %v2980, 0
    %v3080 = vsel %vm3075, %v2981, 0
    %v3083 = vsel %vm3075, %v2982, 0
    %v3086 = vsel %vm3075, %v2983, 0
    %v3089 = vsel %vm3075, %v2984, 0
    %v3092 = vsel %vm3075, %v2985, 0
    %v3095 = vsel %vm3075, %v2986, 0
    %3097 = vmatprep.subr.bf16.mxu0 %v2897
    %3098 = vmatpush1.bf16.msra.mxu0 %v2896
    %3099 = vmatprep.subr.bf16.mxu0 %v2904
    %3100 = vmatpush1.bf16.msra.mxu0 %v2903
    %3101 = vmatprep.subr.bf16.mxu0 %v2911
    %3102 = vmatpush1.bf16.msra.mxu0 %v2910
    %3103 = vmatprep.subr.bf16.mxu0 %v2918
    %3104 = vmatpush1.bf16.msra.mxu0 %v2917
    %3105 = vmatprep.subr.bf16.mxu0 %v2925
    %3106 = vmatpush1.bf16.msra.mxu0 %v2924
    %3107 = vmatprep.subr.bf16.mxu0 %v2932
    %3108 = vmatpush1.bf16.msra.mxu0 %v2931
    %3109 = vmatprep.subr.bf16.mxu0 %v2939
    %3110 = vmatpush1.bf16.msra.mxu0 %v2938
    %3111 = vmatprep.subr.bf16.mxu0 %v2946
    %3112 = vmatpush1.bf16.msra.mxu0 %v2945
    %3113 = vmatprep.subr.bf16.mxu0 %v2953
    %3114 = vmatpush1.bf16.msra.mxu0 %v2952
    %3115 = vmatprep.subr.bf16.mxu0 %v2960
    %3116 = vmatpush1.bf16.msra.mxu0 %v2959
    %3117 = vmatprep.subr.bf16.mxu0 %v2967
    %3118 = vmatpush1.bf16.msra.mxu0 %v2966
    %3119 = vmatprep.subr.bf16.mxu0 %v2974
    %3120 = vmatpush1.bf16.msra.mxu0 %v2973
    %3121 = vmatprep.subr.bf16.mxu0 %v3080
    %3122 = vmatpush1.bf16.msra.mxu0 %v3077
    %3123 = vmatprep.subr.bf16.mxu0 0
    %3124 = vmatpush1.bf16.msra.mxu0 0
    %3125 = vmatprep.subr.bf16.mxu0 0
    %3126 = vmatpush1.bf16.msra.mxu0 0
    %3127 = vmatprep.subr.bf16.mxu0 0
    %3128 = vmatpush1.bf16.msra.mxu0 0
    %3129 = vmatprep.mubr.bf16.mxu0 %v3073
    %3130 = vmatmul.mubr.bf16.gmra.mrb[0].mxu0 %v2519
    %v3131 = vpop.f32.mrb[0].mxu0
    %v3132 = vadd.f32 0.0, %v3131
    %v3133 = vpop.f32.mrb[0].mxu0
    %v3134 = vadd.f32 0.0, %v3133
    %v3135 = vpop.f32.mrb[0].mxu0
    %v3136 = vpop.f32.mrb[0].mxu0
    %3137 = vdwg.mxu0
    %3138 = vmatprep.subr.bf16.mxu0 %v2899
    %3139 = vmatpush1.bf16.msra.mxu0 %v2898
    %3140 = vmatprep.subr.bf16.mxu0 %v2906
    %3141 = vmatpush1.bf16.msra.mxu0 %v2905
    %3142 = vmatprep.subr.bf16.mxu0 %v2913
    %3143 = vmatpush1.bf16.msra.mxu0 %v2912
    %3144 = vmatprep.subr.bf16.mxu0 %v2920
    %3145 = vmatpush1.bf16.msra.mxu0 %v2919
    %3146 = vmatprep.subr.bf16.mxu0 %v2927
    %3147 = vmatpush1.bf16.msra.mxu0 %v2926
    %3148 = vmatprep.subr.bf16.mxu0 %v2934
    %3149 = vmatpush1.bf16.msra.mxu0 %v2933
    %3150 = vmatprep.subr.bf16.mxu0 %v2941
    %3151 = vmatpush1.bf16.msra.mxu0 %v2940
    %3152 = vmatprep.subr.bf16.mxu0 %v2948
    %3153 = vmatpush1.bf16.msra.mxu0 %v2947
    %3154 = vmatprep.subr.bf16.mxu0 %v2955
    %3155 = vmatpush1.bf16.msra.mxu0 %v2954
    %3156 = vmatprep.subr.bf16.mxu0 %v2962
    %3157 = vmatpush1.bf16.msra.mxu0 %v2961
    %3158 = vmatprep.subr.bf16.mxu0 %v2969
    %3159 = vmatpush1.bf16.msra.mxu0 %v2968
    %3160 = vmatprep.subr.bf16.mxu0 %v2976
    %3161 = vmatpush1.bf16.msra.mxu0 %v2975
    %3162 = vmatprep.subr.bf16.mxu0 %v3086
    %3163 = vmatpush1.bf16.msra.mxu0 %v3083
    %3164 = vmatprep.subr.bf16.mxu0 0
    %3165 = vmatpush1.bf16.msra.mxu0 0
    %3166 = vmatprep.subr.bf16.mxu0 0
    %3167 = vmatpush1.bf16.msra.mxu0 0
    %3168 = vmatprep.subr.bf16.mxu0 0
    %3169 = vmatpush1.bf16.msra.mxu0 0
    %3170 = vmatprep.mubr.bf16.mxu0 %v3073
    %3171 = vmatmul.mubr.bf16.gmra.mrb[0].mxu0 %v2519
    %v3172 = vpop.f32.mrb[0].mxu0
    %v3173 = vadd.f32 0.0, %v3172
    %v3174 = vpop.f32.mrb[0].mxu0
    %v3175 = vadd.f32 0.0, %v3174
    %v3176 = vpop.f32.mrb[0].mxu0
    %v3177 = vpop.f32.mrb[0].mxu0
    %3178 = vdwg.mxu0
    %3179 = vmatprep.subr.bf16.mxu0 %v2901
    %3180 = vmatpush1.bf16.msra.mxu0 %v2900
    %3181 = vmatprep.subr.bf16.mxu0 %v2908
    %3182 = vmatpush1.bf16.msra.mxu0 %v2907
    %3183 = vmatprep.subr.bf16.mxu0 %v2915
    %3184 = vmatpush1.bf16.msra.mxu0 %v2914
    %3185 = vmatprep.subr.bf16.mxu0 %v2922
    %3186 = vmatpush1.bf16.msra.mxu0 %v2921
    %3187 = vmatprep.subr.bf16.mxu0 %v2929
    %3188 = vmatpush1.bf16.msra.mxu0 %v2928
    %3189 = vmatprep.subr.bf16.mxu0 %v2936
    %3190 = vmatpush1.bf16.msra.mxu0 %v2935
    %3191 = vmatprep.subr.bf16.mxu0 %v2943
    %3192 = vmatpush1.bf16.msra.mxu0 %v2942
    %3193 = vmatprep.subr.bf16.mxu0 %v2950
    %3194 = vmatpush1.bf16.msra.mxu0 %v2949
    %3195 = vmatprep.subr.bf16.mxu0 %v2957
    %3196 = vmatpush1.bf16.msra.mxu0 %v2956
    %3197 = vmatprep.subr.bf16.mxu0 %v2964
    %3198 = vmatpush1.bf16.msra.mxu0 %v2963
    %3199 = vmatprep.subr.bf16.mxu0 %v2971
    %3200 = vmatpush1.bf16.msra.mxu0 %v2970
    %3201 = vmatprep.subr.bf16.mxu0 %v2978
    %3202 = vmatpush1.bf16.msra.mxu0 %v2977
    %3203 = vmatprep.subr.bf16.mxu0 %v3092
    %3204 = vmatpush1.bf16.msra.mxu0 %v3089
    %3205 = vmatprep.subr.bf16.mxu0 0
    %3206 = vmatpush1.bf16.msra.mxu0 0
    %3207 = vmatprep.subr.bf16.mxu0 0
    %3208 = vmatpush1.bf16.msra.mxu0 0
    %3209 = vmatprep.subr.bf16.mxu0 0
    %3210 = vmatpush1.bf16.msra.mxu0 0
    %3211 = vmatprep.mubr.bf16.mxu0 %v3073
    %3212 = vmatmul.mubr.bf16.gmra.mrb[0].mxu0 %v2519
    %v3213 = vpop.f32.mrb[0].mxu0
    %v3214 = vadd.f32 0.0, %v3213
    %v3215 = vpop.f32.mrb[0].mxu0
    %v3216 = vadd.f32 0.0, %v3215
    %v3217 = vpop.f32.mrb[0].mxu0
    %v3218 = vpop.f32.mrb[0].mxu0
    %3219 = vdwg.mxu0
    %3220 = vmatprep.subr.bf16.mxu0 0
    %3221 = vmatpush1.bf16.msra.mxu0 %v2902
    %3222 = vmatprep.subr.bf16.mxu0 0
    %3223 = vmatpush1.bf16.msra.mxu0 %v2909
    %3224 = vmatprep.subr.bf16.mxu0 0
    %3225 = vmatpush1.bf16.msra.mxu0 %v2916
    %3226 = vmatprep.subr.bf16.mxu0 0
    %3227 = vmatpush1.bf16.msra.mxu0 %v2923
    %3228 = vmatprep.subr.bf16.mxu0 0
    %3229 = vmatpush1.bf16.msra.mxu0 %v2930
    %3230 = vmatprep.subr.bf16.mxu0 0
    %3231 = vmatpush1.bf16.msra.mxu0 %v2937
    %3232 = vmatprep.subr.bf16.mxu0 0
    %3233 = vmatpush1.bf16.msra.mxu0 %v2944
    %3234 = vmatprep.subr.bf16.mxu0 0
    %3235 = vmatpush1.bf16.msra.mxu0 %v2951
    %3236 = vmatprep.subr.bf16.mxu0 0
    %3237 = vmatpush1.bf16.msra.mxu0 %v2958
    %3238 = vmatprep.subr.bf16.mxu0 0
    %3239 = vmatpush1.bf16.msra.mxu0 %v2965
    %3240 = vmatprep.subr.bf16.mxu0 0
    %3241 = vmatpush1.bf16.msra.mxu0 %v2972
    %3242 = vmatprep.subr.bf16.mxu0 0
    %3243 = vmatpush1.bf16.msra.mxu0 %v2979
    %3244 = vmatprep.subr.bf16.mxu0 0
    %3245 = vmatpush1.bf16.msra.mxu0 %v3095
    %3246 = vmatprep.subr.bf16.mxu0 0
    %3247 = vmatpush1.bf16.msra.mxu0 0
    %3248 = vmatprep.subr.bf16.mxu0 0
    %3249 = vmatpush1.bf16.msra.mxu0 0
    %3250 = vmatprep.subr.bf16.mxu0 0
    %3251 = vmatpush1.bf16.msra.mxu0 0
    %3252 = vmatprep.mubr.bf16.mxu0 %v3073
    %3253 = vmatmul.mubr.bf16.gmra.mrb[0].mxu0 %v2519
    %v3254 = vpop.f32.mrb[0].mxu0
    %v3255 = vadd.f32 0.0, %v3254
    %v3256 = vpop.f32.mrb[0].mxu0
    %v3257 = vpop.f32.mrb[0].mxu0
    %v3258 = vpop.f32.mrb[0].mxu0
    %3259 = vdwg.mxu0
    %v3261 = vunpack.c.l.b16 %v862
    %v3262 = vpack.c.b16 %v3261, %v3261
    %3263 = vrot.lane.b32.xlu0 %v3262, 32
    %v3264 = vpop.permute.xlu0 %3263
    %v3266 = vsel %vm2325, %v3264, 0
    %3268 = vmatprep.subr.bf16.mxu0 %v2317
    %3269 = vmatpush1.bf16.msra.mxu0 %v2316
    %3270 = vmatprep.subr.bf16.mxu0 0
    %3271 = vmatpush1.bf16.msra.mxu0 0
    %3272 = vmatprep.subr.bf16.mxu0 0
    %3273 = vmatpush1.bf16.msra.mxu0 0
    %3274 = vmatprep.subr.bf16.mxu0 0
    %3275 = vmatpush1.bf16.msra.mxu0 0
    %3276 = vmatprep.subr.bf16.mxu0 0
    %3277 = vmatpush1.bf16.msra.mxu0 0
    %3278 = vmatprep.subr.bf16.mxu0 0
    %3279 = vmatpush1.bf16.msra.mxu0 0
    %3280 = vmatprep.subr.bf16.mxu0 0
    %3281 = vmatpush1.bf16.msra.mxu0 0
    %3282 = vmatprep.subr.bf16.mxu0 0
    %3283 = vmatpush1.bf16.msra.mxu0 0
    %3284 = vmatprep.subr.bf16.mxu0 0
    %3285 = vmatpush1.bf16.msra.mxu0 0
    %3286 = vmatprep.subr.bf16.mxu0 0
    %3287 = vmatpush1.bf16.msra.mxu0 0
    %3288 = vmatprep.subr.bf16.mxu0 0
    %3289 = vmatpush1.bf16.msra.mxu0 0
    %3290 = vmatprep.subr.bf16.mxu0 0
    %3291 = vmatpush1.bf16.msra.mxu0 0
    %3292 = vmatprep.subr.bf16.mxu0 0
    %3293 = vmatpush1.bf16.msra.mxu0 0
    %3294 = vmatprep.subr.bf16.mxu0 0
    %3295 = vmatpush1.bf16.msra.mxu0 0
    %3296 = vmatprep.subr.bf16.mxu0 0
    %3297 = vmatpush1.bf16.msra.mxu0 0
    %3298 = vmatprep.subr.bf16.mxu0 0
    %3299 = vmatpush1.bf16.msra.mxu0 0
    %3300 = vmatprep.mubr.bf16.mxu0 0
    %3301 = vmatmul.mubr.bf16.gmra.mrb[0].mxu0 %v3266
    %v3302 = vpop.f32.mrb[0].mxu0
    %v3303 = vadd.f32 %v2320, %v3302
    %v3304 = vpop.f32.mrb[0].mxu0
    %v3305 = vadd.f32 %v2320, %v3304
    %v3306 = vpop.f32.mrb[0].mxu0
    %v3307 = vpop.f32.mrb[0].mxu0
    %3308 = vdwg.mxu0
    %v3309 = vpack.c.bf16 %v3303, %v3303
    %v3310 = vpack.c.bf16 %v3305, %v3305
    %v3311 = vld [vmem:[#allocation7 + $0x578] sm:$0xff]
    %v3312 = vld [vmem:[#allocation7 + $0x580] sm:$0xff]
    %v3313 = vld [vmem:[#allocation7 + $0x588] sm:$0xff]
    %v3314 = vld [vmem:[#allocation7 + $0x590] sm:$0xf]
    %v3315 = vld [vmem:[#allocation7 + $0x594] sm:$0xff]
    %v3316 = vld [vmem:[#allocation7 + $0x59c] sm:$0xff]
    %v3317 = vld [vmem:[#allocation7 + $0x5a4] sm:$0xff]
    %v3318 = vld [vmem:[#allocation7 + $0x5ac] sm:$0xf]
    %v3319 = vld [vmem:[#allocation7 + $0x5b0] sm:$0xff]
    %v3320 = vld [vmem:[#allocation7 + $0x5b8] sm:$0xff]
    %v3321 = vld [vmem:[#allocation7 + $0x5c0] sm:$0xff]
    %v3322 = vld [vmem:[#allocation7 + $0x5c8] sm:$0xf]
    %v3323 = vld [vmem:[#allocation7 + $0x5cc] sm:$0xff]
    %v3324 = vld [vmem:[#allocation7 + $0x5d4] sm:$0xff]
    %v3325 = vld [vmem:[#allocation7 + $0x5dc] sm:$0xff]
    %v3326 = vld [vmem:[#allocation7 + $0x5e4] sm:$0xf]
    %v3327 = vld [vmem:[#allocation7 + $0x5e8] sm:$0xff]
    %v3328 = vld [vmem:[#allocation7 + $0x5f0] sm:$0xff]
    %v3329 = vld [vmem:[#allocation7 + $0x5f8] sm:$0xff]
    %v3330 = vld [vmem:[#allocation7 + $0x600] sm:$0xf]
    %v3331 = vld [vmem:[#allocation7 + $0x604] sm:$0xff]
    %v3332 = vld [vmem:[#allocation7 + $0x60c] sm:$0xff]
    %v3333 = vld [vmem:[#allocation7 + $0x614] sm:$0xff]
    %v3334 = vld [vmem:[#allocation7 + $0x61c] sm:$0xf]
    %v3335 = vld [vmem:[#allocation7 + $0x620] sm:$0xff]
    %v3336 = vld [vmem:[#allocation7 + $0x628] sm:$0xff]
    %v3337 = vld [vmem:[#allocation7 + $0x630] sm:$0xff]
    %v3338 = vld [vmem:[#allocation7 + $0x638] sm:$0xf]
    %v3339 = vld [vmem:[#allocation7 + $0x63c] sm:$0xff]
    %v3340 = vld [vmem:[#allocation7 + $0x644] sm:$0xff]
    %v3341 = vld [vmem:[#allocation7 + $0x64c] sm:$0xff]
    %v3342 = vld [vmem:[#allocation7 + $0x654] sm:$0xf]
    %v3343 = vld [vmem:[#allocation7 + $0x658] sm:$0xff]
    %v3344 = vld [vmem:[#allocation7 + $0x660] sm:$0xff]
    %v3345 = vld [vmem:[#allocation7 + $0x668] sm:$0xff]
    %v3346 = vld [vmem:[#allocation7 + $0x670] sm:$0xf]
    %v3347 = vld [vmem:[#allocation7 + $0x674] sm:$0xff]
    %v3348 = vld [vmem:[#allocation7 + $0x67c] sm:$0xff]
    %v3349 = vld [vmem:[#allocation7 + $0x684] sm:$0xff]
    %v3350 = vld [vmem:[#allocation7 + $0x68c] sm:$0xf]
    %v3351 = vld [vmem:[#allocation7 + $0x690] sm:$0xff]
    %v3352 = vld [vmem:[#allocation7 + $0x698] sm:$0xff]
    %v3353 = vld [vmem:[#allocation7 + $0x6a0] sm:$0xff]
    %v3354 = vld [vmem:[#allocation7 + $0x6a8] sm:$0xf]
    %v3355 = vld [vmem:[#allocation7 + $0x6ac] sm:$0xff]
    %v3356 = vld [vmem:[#allocation7 + $0x6b4] sm:$0xff]
    %v3357 = vld [vmem:[#allocation7 + $0x6bc] sm:$0xff]
    %v3358 = vld [vmem:[#allocation7 + $0x6c4] sm:$0xf]
    %v3359 = vld [vmem:[#allocation7 + $0x6c8] sm:$0xff]
    %v3360 = vld [vmem:[#allocation7 + $0x6d0] sm:$0xff]
    %v3361 = vld [vmem:[#allocation7 + $0x6d8] sm:$0xff]
    %v3362 = vld [vmem:[#allocation7 + $0x6e0] sm:$0xf]
    %v3363 = vld [vmem:[#allocation7 + $0x6e4] sm:$0xff]
    %v3364 = vld [vmem:[#allocation7 + $0x6ec] sm:$0xff]
    %v3365 = vld [vmem:[#allocation7 + $0x6f4] sm:$0xff]
    %v3366 = vld [vmem:[#allocation7 + $0x6fc] sm:$0xf]
    %v3367 = vld [vmem:[#allocation7 + $0x700] sm:$0xff]
    %v3368 = vld [vmem:[#allocation7 + $0x708] sm:$0xff]
    %v3369 = vld [vmem:[#allocation7 + $0x710] sm:$0xff]
    %v3370 = vld [vmem:[#allocation7 + $0x718] sm:$0xf]
    %v3371 = vld [vmem:[#allocation7 + $0x71c] sm:$0xff]
    %v3372 = vld [vmem:[#allocation7 + $0x724] sm:$0xff]
    %v3373 = vld [vmem:[#allocation7 + $0x72c] sm:$0xff]
    %v3374 = vld [vmem:[#allocation7 + $0x734] sm:$0xf]
    %v3375 = vld [vmem:[#allocation7 + $0x738] sm:$0xff]
    %v3376 = vld [vmem:[#allocation7 + $0x740] sm:$0xff]
    %v3377 = vld [vmem:[#allocation7 + $0x748] sm:$0xff]
    %v3378 = vld [vmem:[#allocation7 + $0x750] sm:$0xf]
    %v3379 = vld [vmem:[#allocation7 + $0x754] sm:$0xff]
    %v3380 = vld [vmem:[#allocation7 + $0x75c] sm:$0xff]
    %v3381 = vld [vmem:[#allocation7 + $0x764] sm:$0xff]
    %v3382 = vld [vmem:[#allocation7 + $0x76c] sm:$0xf]
    %v3383 = vld [vmem:[#allocation7 + $0x770] sm:$0xff]
    %v3384 = vld [vmem:[#allocation7 + $0x778] sm:$0xff]
    %v3385 = vld [vmem:[#allocation7 + $0x780] sm:$0xff]
    %v3386 = vld [vmem:[#allocation7 + $0x788] sm:$0xf]
    %v3387 = vld [vmem:[#allocation7 + $0x78c] sm:$0xff]
    %v3388 = vld [vmem:[#allocation7 + $0x794] sm:$0xff]
    %v3389 = vld [vmem:[#allocation7 + $0x79c] sm:$0xff]
    %v3390 = vld [vmem:[#allocation7 + $0x7a4] sm:$0xf]
    %v3391 = vld [vmem:[#allocation7 + $0x7a8] sm:$0xff]
    %v3392 = vld [vmem:[#allocation7 + $0x7b0] sm:$0xff]
    %v3393 = vld [vmem:[#allocation7 + $0x7b8] sm:$0xff]
    %v3394 = vld [vmem:[#allocation7 + $0x7c0] sm:$0xf]
    %v3395 = vld [vmem:[#allocation7 + $0x7c4] sm:$0xff]
    %v3396 = vld [vmem:[#allocation7 + $0x7cc] sm:$0xff]
    %v3397 = vld [vmem:[#allocation7 + $0x7d4] sm:$0xff]
    %v3398 = vld [vmem:[#allocation7 + $0x7dc] sm:$0xf]
    %v3399 = vld [vmem:[#allocation7 + $0x7e0] sm:$0xff]
    %v3400 = vld [vmem:[#allocation7 + $0x7e8] sm:$0xff]
    %v3401 = vld [vmem:[#allocation7 + $0x7f0] sm:$0xff]
    %v3402 = vld [vmem:[#allocation7 + $0x7f8] sm:$0xf]
    %v3403 = vld [vmem:[#allocation7 + $0x7fc] sm:$0xff]
    %v3404 = vld [vmem:[#allocation7 + $0x804] sm:$0xff]
    %v3405 = vld [vmem:[#allocation7 + $0x80c] sm:$0xff]
    %v3406 = vld [vmem:[#allocation7 + $0x814] sm:$0xf]
    %v3407 = vld [vmem:[#allocation7 + $0x818] sm:$0xff]
    %v3408 = vld [vmem:[#allocation7 + $0x820] sm:$0xff]
    %v3409 = vld [vmem:[#allocation7 + $0x828] sm:$0xff]
    %v3410 = vld [vmem:[#allocation7 + $0x830] sm:$0xf]
    %v3412 = vunpack.c.l.b16 %v864
    %v3413 = vpack.c.b16 %v3412, %v3412
    %3414 = vrot.lane.b32.xlu0 %v3413, 32
    %v3415 = vpop.permute.xlu0 %3414
    %v3417 = vsel %vm2325, %v3415, 0
    %3419 = vmatprep.subr.bf16.mxu0 %v2317
    %3420 = vmatpush1.bf16.msra.mxu0 %v2316
    %3421 = vmatprep.subr.bf16.mxu0 0
    %3422 = vmatpush1.bf16.msra.mxu0 0
    %3423 = vmatprep.subr.bf16.mxu0 0
    %3424 = vmatpush1.bf16.msra.mxu0 0
    %3425 = vmatprep.subr.bf16.mxu0 0
    %3426 = vmatpush1.bf16.msra.mxu0 0
    %3427 = vmatprep.subr.bf16.mxu0 0
    %3428 = vmatpush1.bf16.msra.mxu0 0
    %3429 = vmatprep.subr.bf16.mxu0 0
    %3430 = vmatpush1.bf16.msra.mxu0 0
    %3431 = vmatprep.subr.bf16.mxu0 0
    %3432 = vmatpush1.bf16.msra.mxu0 0
    %3433 = vmatprep.subr.bf16.mxu0 0
    %3434 = vmatpush1.bf16.msra.mxu0 0
    %3435 = vmatprep.subr.bf16.mxu0 0
    %3436 = vmatpush1.bf16.msra.mxu0 0
    %3437 = vmatprep.subr.bf16.mxu0 0
    %3438 = vmatpush1.bf16.msra.mxu0 0
    %3439 = vmatprep.subr.bf16.mxu0 0
    %3440 = vmatpush1.bf16.msra.mxu0 0
    %3441 = vmatprep.subr.bf16.mxu0 0
    %3442 = vmatpush1.bf16.msra.mxu0 0
    %3443 = vmatprep.subr.bf16.mxu0 0
    %3444 = vmatpush1.bf16.msra.mxu0 0
    %3445 = vmatprep.subr.bf16.mxu0 0
    %3446 = vmatpush1.bf16.msra.mxu0 0
    %3447 = vmatprep.subr.bf16.mxu0 0
    %3448 = vmatpush1.bf16.msra.mxu0 0
    %3449 = vmatprep.subr.bf16.mxu0 0
    %3450 = vmatpush1.bf16.msra.mxu0 0
    %3451 = vmatprep.mubr.bf16.mxu0 0
    %3452 = vmatmul.mubr.bf16.gmra.mrb[0].mxu0 %v3417
    %v3453 = vpop.f32.mrb[0].mxu0
    %v3454 = vadd.f32 %v2320, %v3453
    %v3455 = vpop.f32.mrb[0].mxu0
    %v3456 = vadd.f32 %v2320, %v3455
    %v3457 = vpop.f32.mrb[0].mxu0
    %v3458 = vpop.f32.mrb[0].mxu0
    %3459 = vdwg.mxu0
    %v3460 = vpack.c.bf16 %v3454, %v3454
    %v3461 = vpack.c.bf16 %v3456, %v3456
    %v3462 = vld [vmem:[#allocation7 + $0x834] sm:$0xff]
    %v3463 = vld [vmem:[#allocation7 + $0x83c] sm:$0xff]
    %v3464 = vld [vmem:[#allocation7 + $0x844] sm:$0xff]
    %v3465 = vld [vmem:[#allocation7 + $0x84c] sm:$0xf]
    %v3466 = vld [vmem:[#allocation7 + $0x850] sm:$0xff]
    %v3467 = vld [vmem:[#allocation7 + $0x858] sm:$0xff]
    %v3468 = vld [vmem:[#allocation7 + $0x860] sm:$0xff]
    %v3469 = vld [vmem:[#allocation7 + $0x868] sm:$0xf]
    %v3470 = vld [vmem:[#allocation7 + $0x86c] sm:$0xff]
    %v3471 = vld [vmem:[#allocation7 + $0x874] sm:$0xff]
    %v3472 = vld [vmem:[#allocation7 + $0x87c] sm:$0xff]
    %v3473 = vld [vmem:[#allocation7 + $0x884] sm:$0xf]
    %v3474 = vld [vmem:[#allocation7 + $0x888] sm:$0xff]
    %v3475 = vld [vmem:[#allocation7 + $0x890] sm:$0xff]
    %v3476 = vld [vmem:[#allocation7 + $0x898] sm:$0xff]
    %v3477 = vld [vmem:[#allocation7 + $0x8a0] sm:$0xf]
    %v3478 = vld [vmem:[#allocation7 + $0x8a4] sm:$0xff]
    %v3479 = vld [vmem:[#allocation7 + $0x8ac] sm:$0xff]
    %v3480 = vld [vmem:[#allocation7 + $0x8b4] sm:$0xff]
    %v3481 = vld [vmem:[#allocation7 + $0x8bc] sm:$0xf]
    %v3482 = vld [vmem:[#allocation7 + $0x8c0] sm:$0xff]
    %v3483 = vld [vmem:[#allocation7 + $0x8c8] sm:$0xff]
    %v3484 = vld [vmem:[#allocation7 + $0x8d0] sm:$0xff]
    %v3485 = vld [vmem:[#allocation7 + $0x8d8] sm:$0xf]
    %v3486 = vld [vmem:[#allocation7 + $0x8dc] sm:$0xff]
    %v3487 = vld [vmem:[#allocation7 + $0x8e4] sm:$0xff]
    %v3488 = vld [vmem:[#allocation7 + $0x8ec] sm:$0xff]
    %v3489 = vld [vmem:[#allocation7 + $0x8f4] sm:$0xf]
    %v3490 = vld [vmem:[#allocation7 + $0x8f8] sm:$0xff]
    %v3491 = vld [vmem:[#allocation7 + $0x900] sm:$0xff]
    %v3492 = vld [vmem:[#allocation7 + $0x908] sm:$0xff]
    %v3493 = vld [vmem:[#allocation7 + $0x910] sm:$0xf]
    %v3494 = vld [vmem:[#allocation7 + $0x914] sm:$0xff]
    %v3495 = vld [vmem:[#allocation7 + $0x91c] sm:$0xff]
    %v3496 = vld [vmem:[#allocation7 + $0x924] sm:$0xff]
    %v3497 = vld [vmem:[#allocation7 + $0x92c] sm:$0xf]
    %v3498 = vld [vmem:[#allocation7 + $0x930] sm:$0xff]
    %v3499 = vld [vmem:[#allocation7 + $0x938] sm:$0xff]
    %v3500 = vld [vmem:[#allocation7 + $0x940] sm:$0xff]
    %v3501 = vld [vmem:[#allocation7 + $0x948] sm:$0xf]
    %v3502 = vld [vmem:[#allocation7 + $0x94c] sm:$0xff]
    %v3503 = vld [vmem:[#allocation7 + $0x954] sm:$0xff]
    %v3504 = vld [vmem:[#allocation7 + $0x95c] sm:$0xff]
    %v3505 = vld [vmem:[#allocation7 + $0x964] sm:$0xf]
    %v3506 = vld [vmem:[#allocation7 + $0x968] sm:$0xff]
    %v3507 = vld [vmem:[#allocation7 + $0x970] sm:$0xff]
    %v3508 = vld [vmem:[#allocation7 + $0x978] sm:$0xff]
    %v3509 = vld [vmem:[#allocation7 + $0x980] sm:$0xf]
    %v3510 = vld [vmem:[#allocation7 + $0x984] sm:$0xff]
    %v3511 = vld [vmem:[#allocation7 + $0x98c] sm:$0xff]
    %v3512 = vld [vmem:[#allocation7 + $0x994] sm:$0xff]
    %v3513 = vld [vmem:[#allocation7 + $0x99c] sm:$0xf]
    %v3514 = vld [vmem:[#allocation7 + $0x9a0] sm:$0xff]
    %v3515 = vld [vmem:[#allocation7 + $0x9a8] sm:$0xff]
    %v3516 = vld [vmem:[#allocation7 + $0x9b0] sm:$0xff]
    %v3517 = vld [vmem:[#allocation7 + $0x9b8] sm:$0xf]
    %v3518 = vld [vmem:[#allocation7 + $0x9bc] sm:$0xff]
    %v3519 = vld [vmem:[#allocation7 + $0x9c4] sm:$0xff]
    %v3520 = vld [vmem:[#allocation7 + $0x9cc] sm:$0xff]
    %v3521 = vld [vmem:[#allocation7 + $0x9d4] sm:$0xf]
    %v3522 = vld [vmem:[#allocation7 + $0x9d8] sm:$0xff]
    %v3523 = vld [vmem:[#allocation7 + $0x9e0] sm:$0xff]
    %v3524 = vld [vmem:[#allocation7 + $0x9e8] sm:$0xff]
    %v3525 = vld [vmem:[#allocation7 + $0x9f0] sm:$0xf]
    %v3526 = vld [vmem:[#allocation7 + $0x9f4] sm:$0xff]
    %v3527 = vld [vmem:[#allocation7 + $0x9fc] sm:$0xff]
    %v3528 = vld [vmem:[#allocation7 + $0xa04] sm:$0xff]
    %v3529 = vld [vmem:[#allocation7 + $0xa0c] sm:$0xf]
    %v3530 = vld [vmem:[#allocation7 + $0xa10] sm:$0xff]
    %v3531 = vld [vmem:[#allocation7 + $0xa18] sm:$0xff]
    %v3532 = vld [vmem:[#allocation7 + $0xa20] sm:$0xff]
    %v3533 = vld [vmem:[#allocation7 + $0xa28] sm:$0xf]
    %v3534 = vld [vmem:[#allocation7 + $0xa2c] sm:$0xff]
    %v3535 = vld [vmem:[#allocation7 + $0xa34] sm:$0xff]
    %v3536 = vld [vmem:[#allocation7 + $0xa3c] sm:$0xff]
    %v3537 = vld [vmem:[#allocation7 + $0xa44] sm:$0xf]
    %v3538 = vld [vmem:[#allocation7 + $0xa48] sm:$0xff]
    %v3539 = vld [vmem:[#allocation7 + $0xa50] sm:$0xff]
    %v3540 = vld [vmem:[#allocation7 + $0xa58] sm:$0xff]
    %v3541 = vld [vmem:[#allocation7 + $0xa60] sm:$0xf]
    %v3542 = vld [vmem:[#allocation7 + $0xa64] sm:$0xff]
    %v3543 = vld [vmem:[#allocation7 + $0xa6c] sm:$0xff]
    %v3544 = vld [vmem:[#allocation7 + $0xa74] sm:$0xff]
    %v3545 = vld [vmem:[#allocation7 + $0xa7c] sm:$0xf]
    %v3546 = vld [vmem:[#allocation7 + $0xa80] sm:$0xff]
    %v3547 = vld [vmem:[#allocation7 + $0xa88] sm:$0xff]
    %v3548 = vld [vmem:[#allocation7 + $0xa90] sm:$0xff]
    %v3549 = vld [vmem:[#allocation7 + $0xa98] sm:$0xf]
    %v3550 = vld [vmem:[#allocation7 + $0xa9c] sm:$0xff]
    %v3551 = vld [vmem:[#allocation7 + $0xaa4] sm:$0xff]
    %v3552 = vld [vmem:[#allocation7 + $0xaac] sm:$0xff]
    %v3553 = vld [vmem:[#allocation7 + $0xab4] sm:$0xf]
    %v3554 = vld [vmem:[#allocation7 + $0xab8] sm:$0xff]
    %v3555 = vld [vmem:[#allocation7 + $0xac0] sm:$0xff]
    %v3556 = vld [vmem:[#allocation7 + $0xac8] sm:$0xff]
    %v3557 = vld [vmem:[#allocation7 + $0xad0] sm:$0xf]
    %v3558 = vld [vmem:[#allocation7 + $0xad4] sm:$0xff]
    %v3559 = vld [vmem:[#allocation7 + $0xadc] sm:$0xff]
    %v3560 = vld [vmem:[#allocation7 + $0xae4] sm:$0xff]
    %v3561 = vld [vmem:[#allocation7 + $0xaec] sm:$0xf]
    %v3662 = vunpack.c.l.b16 %v3462
    %v3663 = vunpack.c.h.b16 %v3462
    %v3664 = vunpack.c.l.b16 %v3463
    %v3665 = vunpack.c.h.b16 %v3463
    %v3666 = vunpack.c.l.b16 %v3464
    %v3667 = vunpack.c.h.b16 %v3464
    %v3668 = vunpack.c.l.b16 %v3465
    %v3669 = vunpack.c.l.b16 %v3466
    %v3670 = vunpack.c.h.b16 %v3466
    %v3671 = vunpack.c.l.b16 %v3467
    %v3672 = vunpack.c.h.b16 %v3467
    %v3673 = vunpack.c.l.b16 %v3468
    %v3674 = vunpack.c.h.b16 %v3468
    %v3675 = vunpack.c.l.b16 %v3469
    %v3676 = vunpack.c.l.b16 %v3470
    %v3677 = vunpack.c.h.b16 %v3470
    %v3678 = vunpack.c.l.b16 %v3471
    %v3679 = vunpack.c.h.b16 %v3471
    %v3680 = vunpack.c.l.b16 %v3472
    %v3681 = vunpack.c.h.b16 %v3472
    %v3682 = vunpack.c.l.b16 %v3473
    %v3683 = vunpack.c.l.b16 %v3474
    %v3684 = vunpack.c.h.b16 %v3474
    %v3685 = vunpack.c.l.b16 %v3475
    %v3686 = vunpack.c.h.b16 %v3475
    %v3687 = vunpack.c.l.b16 %v3476
    %v3688 = vunpack.c.h.b16 %v3476
    %v3689 = vunpack.c.l.b16 %v3477
    %v3690 = vunpack.c.l.b16 %v3478
    %v3691 = vunpack.c.h.b16 %v3478
    %v3692 = vunpack.c.l.b16 %v3479
    %v3693 = vunpack.c.h.b16 %v3479
    %v3694 = vunpack.c.l.b16 %v3480
    %v3695 = vunpack.c.h.b16 %v3480
    %v3696 = vunpack.c.l.b16 %v3481
    %v3697 = vunpack.c.l.b16 %v3482
    %v3698 = vunpack.c.h.b16 %v3482
    %v3699 = vunpack.c.l.b16 %v3483
    %v3700 = vunpack.c.h.b16 %v3483
    %v3701 = vunpack.c.l.b16 %v3484
    %v3702 = vunpack.c.h.b16 %v3484
    %v3703 = vunpack.c.l.b16 %v3485
    %v3704 = vunpack.c.l.b16 %v3486
    %v3705 = vunpack.c.h.b16 %v3486
    %v3706 = vunpack.c.l.b16 %v3487
    %v3707 = vunpack.c.h.b16 %v3487
    %v3708 = vunpack.c.l.b16 %v3488
    %v3709 = vunpack.c.h.b16 %v3488
    %v3710 = vunpack.c.l.b16 %v3489
    %v3711 = vunpack.c.l.b16 %v3490
    %v3712 = vunpack.c.h.b16 %v3490
    %v3713 = vunpack.c.l.b16 %v3491
    %v3714 = vunpack.c.h.b16 %v3491
    %v3715 = vunpack.c.l.b16 %v3492
    %v3716 = vunpack.c.h.b16 %v3492
    %v3717 = vunpack.c.l.b16 %v3493
    %v3718 = vunpack.c.l.b16 %v3494
    %v3719 = vunpack.c.h.b16 %v3494
    %v3720 = vunpack.c.l.b16 %v3495
    %v3721 = vunpack.c.h.b16 %v3495
    %v3722 = vunpack.c.l.b16 %v3496
    %v3723 = vunpack.c.h.b16 %v3496
    %v3724 = vunpack.c.l.b16 %v3497
    %v3725 = vunpack.c.l.b16 %v3498
    %v3726 = vunpack.c.h.b16 %v3498
    %v3727 = vunpack.c.l.b16 %v3499
    %v3728 = vunpack.c.h.b16 %v3499
    %v3729 = vunpack.c.l.b16 %v3500
    %v3730 = vunpack.c.h.b16 %v3500
    %v3731 = vunpack.c.l.b16 %v3501
    %v3732 = vunpack.c.l.b16 %v3502
    %v3733 = vunpack.c.h.b16 %v3502
    %v3734 = vunpack.c.l.b16 %v3503
    %v3735 = vunpack.c.h.b16 %v3503
    %v3736 = vunpack.c.l.b16 %v3504
    %v3737 = vunpack.c.h.b16 %v3504
    %v3738 = vunpack.c.l.b16 %v3505
    %v3739 = vunpack.c.l.b16 %v3506
    %v3740 = vunpack.c.h.b16 %v3506
    %v3741 = vunpack.c.l.b16 %v3507
    %v3742 = vunpack.c.h.b16 %v3507
    %v3743 = vunpack.c.l.b16 %v3508
    %v3744 = vunpack.c.h.b16 %v3508
    %v3745 = vunpack.c.l.b16 %v3509
    %v3746 = vunpack.c.l.b16 %v3510
    %v3747 = vunpack.c.h.b16 %v3510
    %v3748 = vunpack.c.l.b16 %v3511
    %v3749 = vunpack.c.h.b16 %v3511
    %v3750 = vunpack.c.l.b16 %v3512
    %v3751 = vunpack.c.h.b16 %v3512
    %v3752 = vunpack.c.l.b16 %v3513
    %v3753 = vunpack.c.l.b16 %v3514
    %v3754 = vunpack.c.h.b16 %v3514
    %v3755 = vunpack.c.l.b16 %v3515
    %v3756 = vunpack.c.h.b16 %v3515
    %v3757 = vunpack.c.l.b16 %v3516
    %v3758 = vunpack.c.h.b16 %v3516
    %v3759 = vunpack.c.l.b16 %v3517
    %v3760 = vunpack.c.l.b16 %v3518
    %v3761 = vunpack.c.h.b16 %v3518
    %v3762 = vunpack.c.l.b16 %v3519
    %v3763 = vunpack.c.h.b16 %v3519
    %v3764 = vunpack.c.l.b16 %v3520
    %v3765 = vunpack.c.h.b16 %v3520
    %v3766 = vunpack.c.l.b16 %v3521
    %v3767 = vunpack.c.l.b16 %v3522
    %v3768 = vunpack.c.h.b16 %v3522
    %v3769 = vunpack.c.l.b16 %v3523
    %v3770 = vunpack.c.h.b16 %v3523
    %v3771 = vunpack.c.l.b16 %v3524
    %v3772 = vunpack.c.h.b16 %v3524
    %v3773 = vunpack.c.l.b16 %v3525
    %v3774 = vunpack.c.l.b16 %v3526
    %v3775 = vunpack.c.h.b16 %v3526
    %v3776 = vunpack.c.l.b16 %v3527
    %v3777 = vunpack.c.h.b16 %v3527
    %v3778 = vunpack.c.l.b16 %v3528
    %v3779 = vunpack.c.h.b16 %v3528
    %v3780 = vunpack.c.l.b16 %v3529
    %v3781 = vunpack.c.l.b16 %v3530
    %v3782 = vunpack.c.h.b16 %v3530
    %v3783 = vunpack.c.l.b16 %v3531
    %v3784 = vunpack.c.h.b16 %v3531
    %v3785 = vunpack.c.l.b16 %v3532
    %v3786 = vunpack.c.h.b16 %v3532
    %v3787 = vunpack.c.l.b16 %v3533
    %v3788 = vunpack.c.l.b16 %v3534
    %v3789 = vunpack.c.h.b16 %v3534
    %v3790 = vunpack.c.l.b16 %v3535
    %v3791 = vunpack.c.h.b16 %v3535
    %v3792 = vunpack.c.l.b16 %v3536
    %v3793 = vunpack.c.h.b16 %v3536
    %v3794 = vunpack.c.l.b16 %v3537
    %v3795 = vunpack.c.l.b16 %v3538
    %v3796 = vunpack.c.h.b16 %v3538
    %v3797 = vunpack.c.l.b16 %v3539
    %v3798 = vunpack.c.h.b16 %v3539
    %v3799 = vunpack.c.l.b16 %v3540
    %v3800 = vunpack.c.h.b16 %v3540
    %v3801 = vunpack.c.l.b16 %v3541
    %v3802 = vunpack.c.l.b16 %v3542
    %v3803 = vunpack.c.h.b16 %v3542
    %v3804 = vunpack.c.l.b16 %v3543
    %v3805 = vunpack.c.h.b16 %v3543
    %v3806 = vunpack.c.l.b16 %v3544
    %v3807 = vunpack.c.h.b16 %v3544
    %v3808 = vunpack.c.l.b16 %v3545
    %v3809 = vunpack.c.l.b16 %v3546
    %v3810 = vunpack.c.h.b16 %v3546
    %v3811 = vunpack.c.l.b16 %v3547
    %v3812 = vunpack.c.h.b16 %v3547
    %v3813 = vunpack.c.l.b16 %v3548
    %v3814 = vunpack.c.h.b16 %v3548
    %v3815 = vunpack.c.l.b16 %v3549
    %v3816 = vunpack.c.l.b16 %v3550
    %v3817 = vunpack.c.h.b16 %v3550
    %v3818 = vunpack.c.l.b16 %v3551
    %v3819 = vunpack.c.h.b16 %v3551
    %v3820 = vunpack.c.l.b16 %v3552
    %v3821 = vunpack.c.h.b16 %v3552
    %v3822 = vunpack.c.l.b16 %v3553
    %v3823 = vunpack.c.l.b16 %v3554
    %v3824 = vunpack.c.h.b16 %v3554
    %v3825 = vunpack.c.l.b16 %v3555
    %v3826 = vunpack.c.h.b16 %v3555
    %v3827 = vunpack.c.l.b16 %v3556
    %v3828 = vunpack.c.h.b16 %v3556
    %v3829 = vunpack.c.l.b16 %v3557
    %v3830 = vunpack.c.l.b16 %v3558
    %v3831 = vunpack.c.h.b16 %v3558
    %v3832 = vunpack.c.l.b16 %v3559
    %v3833 = vunpack.c.h.b16 %v3559
    %v3834 = vunpack.c.l.b16 %v3560
    %v3835 = vunpack.c.h.b16 %v3560
    %v3836 = vunpack.c.l.b16 %v3561
    %v3837 = vpack.c.b16 %v3669, %v3662
    %v3838 = vpack.c.b16 %v3670, %v3663
    %v3839 = vpack.c.b16 %v3671, %v3664
    %v3840 = vpack.c.b16 %v3672, %v3665
    %v3841 = vpack.c.b16 %v3673, %v3666
    %v3842 = vpack.c.b16 %v3674, %v3667
    %v3843 = vpack.c.b16 %v3675, %v3668
    %v3844 = vpack.c.b16 %v3683, %v3676
    %v3845 = vpack.c.b16 %v3684, %v3677
    %v3846 = vpack.c.b16 %v3685, %v3678
    %v3847 = vpack.c.b16 %v3686, %v3679
    %v3848 = vpack.c.b16 %v3687, %v3680
    %v3849 = vpack.c.b16 %v3688, %v3681
    %v3850 = vpack.c.b16 %v3689, %v3682
    %v3851 = vpack.c.b16 %v3697, %v3690
    %v3852 = vpack.c.b16 %v3698, %v3691
    %v3853 = vpack.c.b16 %v3699, %v3692
    %v3854 = vpack.c.b16 %v3700, %v3693
    %v3855 = vpack.c.b16 %v3701, %v3694
    %v3856 = vpack.c.b16 %v3702, %v3695
    %v3857 = vpack.c.b16 %v3703, %v3696
    %v3858 = vpack.c.b16 %v3711, %v3704
    %v3859 = vpack.c.b16 %v3712, %v3705
    %v3860 = vpack.c.b16 %v3713, %v3706
    %v3861 = vpack.c.b16 %v3714, %v3707
    %v3862 = vpack.c.b16 %v3715, %v3708
    %v3863 = vpack.c.b16 %v3716, %v3709
    %v3864 = vpack.c.b16 %v3717, %v3710
    %v3865 = vpack.c.b16 %v3725, %v3718
    %v3866 = vpack.c.b16 %v3726, %v3719
    %v3867 = vpack.c.b16 %v3727, %v3720
    %v3868 = vpack.c.b16 %v3728, %v3721
    %v3869 = vpack.c.b16 %v3729, %v3722
    %v3870 = vpack.c.b16 %v3730, %v3723
    %v3871 = vpack.c.b16 %v3731, %v3724
    %v3872 = vpack.c.b16 %v3739, %v3732
    %v3873 = vpack.c.b16 %v3740, %v3733
    %v3874 = vpack.c.b16 %v3741, %v3734
    %v3875 = vpack.c.b16 %v3742, %v3735
    %v3876 = vpack.c.b16 %v3743, %v3736
    %v3877 = vpack.c.b16 %v3744, %v3737
    %v3878 = vpack.c.b16 %v3745, %v3738
    %v3879 = vpack.c.b16 %v3753, %v3746
    %v3880 = vpack.c.b16 %v3754, %v3747
    %v3881 = vpack.c.b16 %v3755, %v3748
    %v3882 = vpack.c.b16 %v3756, %v3749
    %v3883 = vpack.c.b16 %v3757, %v3750
    %v3884 = vpack.c.b16 %v3758, %v3751
    %v3885 = vpack.c.b16 %v3759, %v3752
    %v3886 = vpack.c.b16 %v3767, %v3760
    %v3887 = vpack.c.b16 %v3768, %v3761
    %v3888 = vpack.c.b16 %v3769, %v3762
    %v3889 = vpack.c.b16 %v3770, %v3763
    %v3890 = vpack.c.b16 %v3771, %v3764
    %v3891 = vpack.c.b16 %v3772, %v3765
    %v3892 = vpack.c.b16 %v3773, %v3766
    %v3893 = vpack.c.b16 %v3781, %v3774
    %v3894 = vpack.c.b16 %v3782, %v3775
    %v3895 = vpack.c.b16 %v3783, %v3776
    %v3896 = vpack.c.b16 %v3784, %v3777
    %v3897 = vpack.c.b16 %v3785, %v3778
    %v3898 = vpack.c.b16 %v3786, %v3779
    %v3899 = vpack.c.b16 %v3787, %v3780
    %v3900 = vpack.c.b16 %v3795, %v3788
    %v3901 = vpack.c.b16 %v3796, %v3789
    %v3902 = vpack.c.b16 %v3797, %v3790
    %v3903 = vpack.c.b16 %v3798, %v3791
    %v3904 = vpack.c.b16 %v3799, %v3792
    %v3905 = vpack.c.b16 %v3800, %v3793
    %v3906 = vpack.c.b16 %v3801, %v3794
    %v3907 = vpack.c.b16 %v3809, %v3802
    %v3908 = vpack.c.b16 %v3810, %v3803
    %v3909 = vpack.c.b16 %v3811, %v3804
    %v3910 = vpack.c.b16 %v3812, %v3805
    %v3911 = vpack.c.b16 %v3813, %v3806
    %v3912 = vpack.c.b16 %v3814, %v3807
    %v3913 = vpack.c.b16 %v3815, %v3808
    %v3914 = vpack.c.b16 %v3823, %v3816
    %v3915 = vpack.c.b16 %v3824, %v3817
    %v3916 = vpack.c.b16 %v3825, %v3818
    %v3917 = vpack.c.b16 %v3826, %v3819
    %v3918 = vpack.c.b16 %v3827, %v3820
    %v3919 = vpack.c.b16 %v3828, %v3821
    %v3920 = vpack.c.b16 %v3829, %v3822
    %v3921 = vpack.c.b16 %v3830, %v3830
    %v3922 = vpack.c.b16 %v3831, %v3831
    %v3923 = vpack.c.b16 %v3832, %v3832
    %v3924 = vpack.c.b16 %v3833, %v3833
    %v3925 = vpack.c.b16 %v3834, %v3834
    %v3926 = vpack.c.b16 %v3835, %v3835
    %v3927 = vpack.c.b16 %v3836, %v3836
    %v4013 = vsel %vm3071, %v3461, 0
    %v4016 = vsel %vm3075, %v3921, 0
    %v4019 = vsel %vm3075, %v3922, 0
    %v4022 = vsel %vm3075, %v3923, 0
    %v4025 = vsel %vm3075, %v3924, 0
    %v4028 = vsel %vm3075, %v3925, 0
    %v4031 = vsel %vm3075, %v3926, 0
    %v4034 = vsel %vm3075, %v3927, 0
    %4036 = vmatprep.subr.bf16.mxu0 %v3838
    %4037 = vmatpush1.bf16.msra.mxu0 %v3837
    %4038 = vmatprep.subr.bf16.mxu0 %v3845
    %4039 = vmatpush1.bf16.msra.mxu0 %v3844
    %4040 = vmatprep.subr.bf16.mxu0 %v3852
    %4041 = vmatpush1.bf16.msra.mxu0 %v3851
    %4042 = vmatprep.subr.bf16.mxu0 %v3859
    %4043 = vmatpush1.bf16.msra.mxu0 %v3858
    %4044 = vmatprep.subr.bf16.mxu0 %v3866
    %4045 = vmatpush1.bf16.msra.mxu0 %v3865
    %4046 = vmatprep.subr.bf16.mxu0 %v3873
    %4047 = vmatpush1.bf16.msra.mxu0 %v3872
    %4048 = vmatprep.subr.bf16.mxu0 %v3880
    %4049 = vmatpush1.bf16.msra.mxu0 %v3879
    %4050 = vmatprep.subr.bf16.mxu0 %v3887
    %4051 = vmatpush1.bf16.msra.mxu0 %v3886
    %4052 = vmatprep.subr.bf16.mxu0 %v3894
    %4053 = vmatpush1.bf16.msra.mxu0 %v3893
    %4054 = vmatprep.subr.bf16.mxu0 %v3901
    %4055 = vmatpush1.bf16.msra.mxu0 %v3900
    %4056 = vmatprep.subr.bf16.mxu0 %v3908
    %4057 = vmatpush1.bf16.msra.mxu0 %v3907
    %4058 = vmatprep.subr.bf16.mxu0 %v3915
    %4059 = vmatpush1.bf16.msra.mxu0 %v3914
    %4060 = vmatprep.subr.bf16.mxu0 %v4019
    %4061 = vmatpush1.bf16.msra.mxu0 %v4016
    %4062 = vmatprep.subr.bf16.mxu0 0
    %4063 = vmatpush1.bf16.msra.mxu0 0
    %4064 = vmatprep.subr.bf16.mxu0 0
    %4065 = vmatpush1.bf16.msra.mxu0 0
    %4066 = vmatprep.subr.bf16.mxu0 0
    %4067 = vmatpush1.bf16.msra.mxu0 0
    %4068 = vmatprep.mubr.bf16.mxu0 %v4013
    %4069 = vmatmul.mubr.bf16.gmra.mrb[0].mxu0 %v3460
    %v4070 = vpop.f32.mrb[0].mxu0
    %v4071 = vadd.f32 0.0, %v4070
    %v4072 = vpop.f32.mrb[0].mxu0
    %v4073 = vadd.f32 0.0, %v4072
    %v4074 = vpop.f32.mrb[0].mxu0
    %v4075 = vpop.f32.mrb[0].mxu0
    %4076 = vdwg.mxu0
    %4077 = vmatprep.subr.bf16.mxu0 %v3840
    %4078 = vmatpush1.bf16.msra.mxu0 %v3839
    %4079 = vmatprep.subr.bf16.mxu0 %v3847
    %4080 = vmatpush1.bf16.msra.mxu0 %v3846
    %4081 = vmatprep.subr.bf16.mxu0 %v3854
    %4082 = vmatpush1.bf16.msra.mxu0 %v3853
    %4083 = vmatprep.subr.bf16.mxu0 %v3861
    %4084 = vmatpush1.bf16.msra.mxu0 %v3860
    %4085 = vmatprep.subr.bf16.mxu0 %v3868
    %4086 = vmatpush1.bf16.msra.mxu0 %v3867
    %4087 = vmatprep.subr.bf16.mxu0 %v3875
    %4088 = vmatpush1.bf16.msra.mxu0 %v3874
    %4089 = vmatprep.subr.bf16.mxu0 %v3882
    %4090 = vmatpush1.bf16.msra.mxu0 %v3881
    %4091 = vmatprep.subr.bf16.mxu0 %v3889
    %4092 = vmatpush1.bf16.msra.mxu0 %v3888
    %4093 = vmatprep.subr.bf16.mxu0 %v3896
    %4094 = vmatpush1.bf16.msra.mxu0 %v3895
    %4095 = vmatprep.subr.bf16.mxu0 %v3903
    %4096 = vmatpush1.bf16.msra.mxu0 %v3902
    %4097 = vmatprep.subr.bf16.mxu0 %v3910
    %4098 = vmatpush1.bf16.msra.mxu0 %v3909
    %4099 = vmatprep.subr.bf16.mxu0 %v3917
    %4100 = vmatpush1.bf16.msra.mxu0 %v3916
    %4101 = vmatprep.subr.bf16.mxu0 %v4025
    %4102 = vmatpush1.bf16.msra.mxu0 %v4022
    %4103 = vmatprep.subr.bf16.mxu0 0
    %4104 = vmatpush1.bf16.msra.mxu0 0
    %4105 = vmatprep.subr.bf16.mxu0 0
    %4106 = vmatpush1.bf16.msra.mxu0 0
    %4107 = vmatprep.subr.bf16.mxu0 0
    %4108 = vmatpush1.bf16.msra.mxu0 0
    %4109 = vmatprep.mubr.bf16.mxu0 %v4013
    %4110 = vmatmul.mubr.bf16.gmra.mrb[0].mxu0 %v3460
    %v4111 = vpop.f32.mrb[0].mxu0
    %v4112 = vadd.f32 0.0, %v4111
    %v4113 = vpop.f32.mrb[0].mxu0
    %v4114 = vadd.f32 0.0, %v4113
    %v4115 = vpop.f32.mrb[0].mxu0
    %v4116 = vpop.f32.mrb[0].mxu0
    %4117 = vdwg.mxu0
    %4118 = vmatprep.subr.bf16.mxu0 %v3842
    %4119 = vmatpush1.bf16.msra.mxu0 %v3841
    %4120 = vmatprep.subr.bf16.mxu0 %v3849
    %4121 = vmatpush1.bf16.msra.mxu0 %v3848
    %4122 = vmatprep.subr.bf16.mxu0 %v3856
    %4123 = vmatpush1.bf16.msra.mxu0 %v3855
    %4124 = vmatprep.subr.bf16.mxu0 %v3863
    %4125 = vmatpush1.bf16.msra.mxu0 %v3862
    %4126 = vmatprep.subr.bf16.mxu0 %v3870
    %4127 = vmatpush1.bf16.msra.mxu0 %v3869
    %4128 = vmatprep.subr.bf16.mxu0 %v3877
    %4129 = vmatpush1.bf16.msra.mxu0 %v3876
    %4130 = vmatprep.subr.bf16.mxu0 %v3884
    %4131 = vmatpush1.bf16.msra.mxu0 %v3883
    %4132 = vmatprep.subr.bf16.mxu0 %v3891
    %4133 = vmatpush1.bf16.msra.mxu0 %v3890
    %4134 = vmatprep.subr.bf16.mxu0 %v3898
    %4135 = vmatpush1.bf16.msra.mxu0 %v3897
    %4136 = vmatprep.subr.bf16.mxu0 %v3905
    %4137 = vmatpush1.bf16.msra.mxu0 %v3904
    %4138 = vmatprep.subr.bf16.mxu0 %v3912
    %4139 = vmatpush1.bf16.msra.mxu0 %v3911
    %4140 = vmatprep.subr.bf16.mxu0 %v3919
    %4141 = vmatpush1.bf16.msra.mxu0 %v3918
    %4142 = vmatprep.subr.bf16.mxu0 %v4031
    %4143 = vmatpush1.bf16.msra.mxu0 %v4028
    %4144 = vmatprep.subr.bf16.mxu0 0
    %4145 = vmatpush1.bf16.msra.mxu0 0
    %4146 = vmatprep.subr.bf16.mxu0 0
    %4147 = vmatpush1.bf16.msra.mxu0 0
    %4148 = vmatprep.subr.bf16.mxu0 0
    %4149 = vmatpush1.bf16.msra.mxu0 0
    %4150 = vmatprep.mubr.bf16.mxu0 %v4013
    %4151 = vmatmul.mubr.bf16.gmra.mrb[0].mxu0 %v3460
    %v4152 = vpop.f32.mrb[0].mxu0
    %v4153 = vadd.f32 0.0, %v4152
    %v4154 = vpop.f32.mrb[0].mxu0
    %v4155 = vadd.f32 0.0, %v4154
    %v4156 = vpop.f32.mrb[0].mxu0
    %v4157 = vpop.f32.mrb[0].mxu0
    %4158 = vdwg.mxu0
    %4159 = vmatprep.subr.bf16.mxu0 0
    %4160 = vmatpush1.bf16.msra.mxu0 %v3843
    %4161 = vmatprep.subr.bf16.mxu0 0
    %4162 = vmatpush1.bf16.msra.mxu0 %v3850
    %4163 = vmatprep.subr.bf16.mxu0 0
    %4164 = vmatpush1.bf16.msra.mxu0 %v3857
    %4165 = vmatprep.subr.bf16.mxu0 0
    %4166 = vmatpush1.bf16.msra.mxu0 %v3864
    %4167 = vmatprep.subr.bf16.mxu0 0
    %4168 = vmatpush1.bf16.msra.mxu0 %v3871
    %4169 = vmatprep.subr.bf16.mxu0 0
    %4170 = vmatpush1.bf16.msra.mxu0 %v3878
    %4171 = vmatprep.subr.bf16.mxu0 0
    %4172 = vmatpush1.bf16.msra.mxu0 %v3885
    %4173 = vmatprep.subr.bf16.mxu0 0
    %4174 = vmatpush1.bf16.msra.mxu0 %v3892
    %4175 = vmatprep.subr.bf16.mxu0 0
    %4176 = vmatpush1.bf16.msra.mxu0 %v3899
    %4177 = vmatprep.subr.bf16.mxu0 0
    %4178 = vmatpush1.bf16.msra.mxu0 %v3906
    %4179 = vmatprep.subr.bf16.mxu0 0
    %4180 = vmatpush1.bf16.msra.mxu0 %v3913
    %4181 = vmatprep.subr.bf16.mxu0 0
    %4182 = vmatpush1.bf16.msra.mxu0 %v3920
    %4183 = vmatprep.subr.bf16.mxu0 0
    %4184 = vmatpush1.bf16.msra.mxu0 %v4034
    %4185 = vmatprep.subr.bf16.mxu0 0
    %4186 = vmatpush1.bf16.msra.mxu0 0
    %4187 = vmatprep.subr.bf16.mxu0 0
    %4188 = vmatpush1.bf16.msra.mxu0 0
    %4189 = vmatprep.subr.bf16.mxu0 0
    %4190 = vmatpush1.bf16.msra.mxu0 0
    %4191 = vmatprep.mubr.bf16.mxu0 %v4013
    %4192 = vmatmul.mubr.bf16.gmra.mrb[0].mxu0 %v3460
    %v4193 = vpop.f32.mrb[0].mxu0
    %v4194 = vadd.f32 0.0, %v4193
    %v4195 = vpop.f32.mrb[0].mxu0
    %v4196 = vpop.f32.mrb[0].mxu0
    %v4197 = vpop.f32.mrb[0].mxu0
    %4198 = vdwg.mxu0
    %v4299 = vunpack.c.l.b16 %v2372
    %v4300 = vunpack.c.h.b16 %v2372
    %v4301 = vunpack.c.l.b16 %v2373
    %v4302 = vunpack.c.h.b16 %v2373
    %v4303 = vunpack.c.l.b16 %v2374
    %v4304 = vunpack.c.h.b16 %v2374
    %v4305 = vunpack.c.l.b16 %v2375
    %v4306 = vunpack.c.l.b16 %v2376
    %v4307 = vunpack.c.h.b16 %v2376
    %v4308 = vunpack.c.l.b16 %v2377
    %v4309 = vunpack.c.h.b16 %v2377
    %v4310 = vunpack.c.l.b16 %v2378
    %v4311 = vunpack.c.h.b16 %v2378
    %v4312 = vunpack.c.l.b16 %v2379
    %v4313 = vunpack.c.l.b16 %v2380
    %v4314 = vunpack.c.h.b16 %v2380
    %v4315 = vunpack.c.l.b16 %v2381
    %v4316 = vunpack.c.h.b16 %v2381
    %v4317 = vunpack.c.l.b16 %v2382
    %v4318 = vunpack.c.h.b16 %v2382
    %v4319 = vunpack.c.l.b16 %v2383
    %v4320 = vunpack.c.l.b16 %v2384
    %v4321 = vunpack.c.h.b16 %v2384
    %v4322 = vunpack.c.l.b16 %v2385
    %v4323 = vunpack.c.h.b16 %v2385
    %v4324 = vunpack.c.l.b16 %v2386
    %v4325 = vunpack.c.h.b16 %v2386
    %v4326 = vunpack.c.l.b16 %v2387
    %v4327 = vunpack.c.l.b16 %v2388
    %v4328 = vunpack.c.h.b16 %v2388
    %v4329 = vunpack.c.l.b16 %v2389
    %v4330 = vunpack.c.h.b16 %v2389
    %v4331 = vunpack.c.l.b16 %v2390
    %v4332 = vunpack.c.h.b16 %v2390
    %v4333 = vunpack.c.l.b16 %v2391
    %v4334 = vunpack.c.l.b16 %v2392
    %v4335 = vunpack.c.h.b16 %v2392
    %v4336 = vunpack.c.l.b16 %v2393
    %v4337 = vunpack.c.h.b16 %v2393
    %v4338 = vunpack.c.l.b16 %v2394
    %v4339 = vunpack.c.h.b16 %v2394
    %v4340 = vunpack.c.l.b16 %v2395
    %v4341 = vunpack.c.l.b16 %v2396
    %v4342 = vunpack.c.h.b16 %v2396
    %v4343 = vunpack.c.l.b16 %v2397
    %v4344 = vunpack.c.h.b16 %v2397
    %v4345 = vunpack.c.l.b16 %v2398
    %v4346 = vunpack.c.h.b16 %v2398
    %v4347 = vunpack.c.l.b16 %v2399
    %v4348 = vunpack.c.l.b16 %v2400
    %v4349 = vunpack.c.h.b16 %v2400
    %v4350 = vunpack.c.l.b16 %v2401
    %v4351 = vunpack.c.h.b16 %v2401
    %v4352 = vunpack.c.l.b16 %v2402
    %v4353 = vunpack.c.h.b16 %v2402
    %v4354 = vunpack.c.l.b16 %v2403
    %v4355 = vunpack.c.l.b16 %v2404
    %v4356 = vunpack.c.h.b16 %v2404
    %v4357 = vunpack.c.l.b16 %v2405
    %v4358 = vunpack.c.h.b16 %v2405
    %v4359 = vunpack.c.l.b16 %v2406
    %v4360 = vunpack.c.h.b16 %v2406
    %v4361 = vunpack.c.l.b16 %v2407
    %v4362 = vunpack.c.l.b16 %v2408
    %v4363 = vunpack.c.h.b16 %v2408
    %v4364 = vunpack.c.l.b16 %v2409
    %v4365 = vunpack.c.h.b16 %v2409
    %v4366 = vunpack.c.l.b16 %v2410
    %v4367 = vunpack.c.h.b16 %v2410
    %v4368 = vunpack.c.l.b16 %v2411
    %v4369 = vunpack.c.l.b16 %v2412
    %v4370 = vunpack.c.h.b16 %v2412
    %v4371 = vunpack.c.l.b16 %v2413
    %v4372 = vunpack.c.h.b16 %v2413
    %v4373 = vunpack.c.l.b16 %v2414
    %v4374 = vunpack.c.h.b16 %v2414
    %v4375 = vunpack.c.l.b16 %v2415
    %v4376 = vunpack.c.l.b16 %v2416
    %v4377 = vunpack.c.h.b16 %v2416
    %v4378 = vunpack.c.l.b16 %v2417
    %v4379 = vunpack.c.h.b16 %v2417
    %v4380 = vunpack.c.l.b16 %v2418
    %v4381 = vunpack.c.h.b16 %v2418
    %v4382 = vunpack.c.l.b16 %v2419
    %v4383 = vunpack.c.l.b16 %v2420
    %v4384 = vunpack.c.h.b16 %v2420
    %v4385 = vunpack.c.l.b16 %v2421
    %v4386 = vunpack.c.h.b16 %v2421
    %v4387 = vunpack.c.l.b16 %v2422
    %v4388 = vunpack.c.h.b16 %v2422
    %v4389 = vunpack.c.l.b16 %v2423
    %v4390 = vunpack.c.l.b16 %v2424
    %v4391 = vunpack.c.h.b16 %v2424
    %v4392 = vunpack.c.l.b16 %v2425
    %v4393 = vunpack.c.h.b16 %v2425
    %v4394 = vunpack.c.l.b16 %v2426
    %v4395 = vunpack.c.h.b16 %v2426
    %v4396 = vunpack.c.l.b16 %v2427
    %v4397 = vunpack.c.l.b16 %v2428
    %v4398 = vunpack.c.h.b16 %v2428
    %v4399 = vunpack.c.l.b16 %v2429
    %v4400 = vunpack.c.h.b16 %v2429
    %v4401 = vunpack.c.l.b16 %v2430
    %v4402 = vunpack.c.h.b16 %v2430
    %v4403 = vunpack.c.l.b16 %v2431
    %v4404 = vunpack.c.l.b16 %v2432
    %v4405 = vunpack.c.h.b16 %v2432
    %v4406 = vunpack.c.l.b16 %v2433
    %v4407 = vunpack.c.h.b16 %v2433
    %v4408 = vunpack.c.l.b16 %v2434
    %v4409 = vunpack.c.h.b16 %v2434
    %v4410 = vunpack.c.l.b16 %v2435
    %v4411 = vunpack.c.l.b16 %v2436
    %v4412 = vunpack.c.h.b16 %v2436
    %v4413 = vunpack.c.l.b16 %v2437
    %v4414 = vunpack.c.h.b16 %v2437
    %v4415 = vunpack.c.l.b16 %v2438
    %v4416 = vunpack.c.h.b16 %v2438
    %v4417 = vunpack.c.l.b16 %v2439
    %v4418 = vunpack.c.l.b16 %v2440
    %v4419 = vunpack.c.h.b16 %v2440
    %v4420 = vunpack.c.l.b16 %v2441
    %v4421 = vunpack.c.h.b16 %v2441
    %v4422 = vunpack.c.l.b16 %v2442
    %v4423 = vunpack.c.h.b16 %v2442
    %v4424 = vunpack.c.l.b16 %v2443
    %v4425 = vunpack.c.l.b16 %v2444
    %v4426 = vunpack.c.h.b16 %v2444
    %v4427 = vunpack.c.l.b16 %v2445
    %v4428 = vunpack.c.h.b16 %v2445
    %v4429 = vunpack.c.l.b16 %v2446
    %v4430 = vunpack.c.h.b16 %v2446
    %v4431 = vunpack.c.l.b16 %v2447
    %v4432 = vunpack.c.l.b16 %v2448
    %v4433 = vunpack.c.h.b16 %v2448
    %v4434 = vunpack.c.l.b16 %v2449
    %v4435 = vunpack.c.h.b16 %v2449
    %v4436 = vunpack.c.l.b16 %v2450
    %v4437 = vunpack.c.h.b16 %v2450
    %v4438 = vunpack.c.l.b16 %v2451
    %v4439 = vunpack.c.l.b16 %v2452
    %v4440 = vunpack.c.h.b16 %v2452
    %v4441 = vunpack.c.l.b16 %v2453
    %v4442 = vunpack.c.h.b16 %v2453
    %v4443 = vunpack.c.l.b16 %v2454
    %v4444 = vunpack.c.h.b16 %v2454
    %v4445 = vunpack.c.l.b16 %v2455
    %v4446 = vunpack.c.l.b16 %v2456
    %v4447 = vunpack.c.h.b16 %v2456
    %v4448 = vunpack.c.l.b16 %v2457
    %v4449 = vunpack.c.h.b16 %v2457
    %v4450 = vunpack.c.l.b16 %v2458
    %v4451 = vunpack.c.h.b16 %v2458
    %v4452 = vunpack.c.l.b16 %v2459
    %v4453 = vunpack.c.l.b16 %v2460
    %v4454 = vunpack.c.h.b16 %v2460
    %v4455 = vunpack.c.l.b16 %v2461
    %v4456 = vunpack.c.h.b16 %v2461
    %v4457 = vunpack.c.l.b16 %v2462
    %v4458 = vunpack.c.h.b16 %v2462
    %v4459 = vunpack.c.l.b16 %v2463
    %v4460 = vunpack.c.l.b16 %v2464
    %v4461 = vunpack.c.h.b16 %v2464
    %v4462 = vunpack.c.l.b16 %v2465
    %v4463 = vunpack.c.h.b16 %v2465
    %v4464 = vunpack.c.l.b16 %v2466
    %v4465 = vunpack.c.h.b16 %v2466
    %v4466 = vunpack.c.l.b16 %v2467
    %v4467 = vunpack.c.l.b16 %v2468
    %v4468 = vunpack.c.h.b16 %v2468
    %v4469 = vunpack.c.l.b16 %v2469
    %v4470 = vunpack.c.h.b16 %v2469
    %v4471 = vunpack.c.l.b16 %v2470
    %v4472 = vunpack.c.h.b16 %v2470
    %v4473 = vunpack.c.l.b16 %v2471
    %v4474 = vpack.c.b16 %v4306, %v4299
    %v4475 = vpack.c.b16 %v4307, %v4300
    %v4476 = vpack.c.b16 %v4308, %v4301
    %v4477 = vpack.c.b16 %v4309, %v4302
    %v4478 = vpack.c.b16 %v4310, %v4303
    %v4479 = vpack.c.b16 %v4311, %v4304
    %v4480 = vpack.c.b16 %v4312, %v4305
    %v4481 = vpack.c.b16 %v4320, %v4313
    %v4482 = vpack.c.b16 %v4321, %v4314
    %v4483 = vpack.c.b16 %v4322, %v4315
    %v4484 = vpack.c.b16 %v4323, %v4316
    %v4485 = vpack.c.b16 %v4324, %v4317
    %v4486 = vpack.c.b16 %v4325, %v4318
    %v4487 = vpack.c.b16 %v4326, %v4319
    %v4488 = vpack.c.b16 %v4334, %v4327
    %v4489 = vpack.c.b16 %v4335, %v4328
    %v4490 = vpack.c.b16 %v4336, %v4329
    %v4491 = vpack.c.b16 %v4337, %v4330
    %v4492 = vpack.c.b16 %v4338, %v4331
    %v4493 = vpack.c.b16 %v4339, %v4332
    %v4494 = vpack.c.b16 %v4340, %v4333
    %v4495 = vpack.c.b16 %v4348, %v4341
    %v4496 = vpack.c.b16 %v4349, %v4342
    %v4497 = vpack.c.b16 %v4350, %v4343
    %v4498 = vpack.c.b16 %v4351, %v4344
    %v4499 = vpack.c.b16 %v4352, %v4345
    %v4500 = vpack.c.b16 %v4353, %v4346
    %v4501 = vpack.c.b16 %v4354, %v4347
    %v4502 = vpack.c.b16 %v4362, %v4355
    %v4503 = vpack.c.b16 %v4363, %v4356
    %v4504 = vpack.c.b16 %v4364, %v4357
    %v4505 = vpack.c.b16 %v4365, %v4358
    %v4506 = vpack.c.b16 %v4366, %v4359
    %v4507 = vpack.c.b16 %v4367, %v4360
    %v4508 = vpack.c.b16 %v4368, %v4361
    %v4509 = vpack.c.b16 %v4376, %v4369
    %v4510 = vpack.c.b16 %v4377, %v4370
    %v4511 = vpack.c.b16 %v4378, %v4371
    %v4512 = vpack.c.b16 %v4379, %v4372
    %v4513 = vpack.c.b16 %v4380, %v4373
    %v4514 = vpack.c.b16 %v4381, %v4374
    %v4515 = vpack.c.b16 %v4382, %v4375
    %v4516 = vpack.c.b16 %v4390, %v4383
    %v4517 = vpack.c.b16 %v4391, %v4384
    %v4518 = vpack.c.b16 %v4392, %v4385
    %v4519 = vpack.c.b16 %v4393, %v4386
    %v4520 = vpack.c.b16 %v4394, %v4387
    %v4521 = vpack.c.b16 %v4395, %v4388
    %v4522 = vpack.c.b16 %v4396, %v4389
    %v4523 = vpack.c.b16 %v4404, %v4397
    %v4524 = vpack.c.b16 %v4405, %v4398
    %v4525 = vpack.c.b16 %v4406, %v4399
    %v4526 = vpack.c.b16 %v4407, %v4400
    %v4527 = vpack.c.b16 %v4408, %v4401
    %v4528 = vpack.c.b16 %v4409, %v4402
    %v4529 = vpack.c.b16 %v4410, %v4403
    %v4530 = vpack.c.b16 %v4418, %v4411
    %v4531 = vpack.c.b16 %v4419, %v4412
    %v4532 = vpack.c.b16 %v4420, %v4413
    %v4533 = vpack.c.b16 %v4421, %v4414
    %v4534 = vpack.c.b16 %v4422, %v4415
    %v4535 = vpack.c.b16 %v4423, %v4416
    %v4536 = vpack.c.b16 %v4424, %v4417
    %v4537 = vpack.c.b16 %v4432, %v4425
    %v4538 = vpack.c.b16 %v4433, %v4426
    %v4539 = vpack.c.b16 %v4434, %v4427
    %v4540 = vpack.c.b16 %v4435, %v4428
    %v4541 = vpack.c.b16 %v4436, %v4429
    %v4542 = vpack.c.b16 %v4437, %v4430
    %v4543 = vpack.c.b16 %v4438, %v4431
    %v4544 = vpack.c.b16 %v4446, %v4439
    %v4545 = vpack.c.b16 %v4447, %v4440
    %v4546 = vpack.c.b16 %v4448, %v4441
    %v4547 = vpack.c.b16 %v4449, %v4442
    %v4548 = vpack.c.b16 %v4450, %v4443
    %v4549 = vpack.c.b16 %v4451, %v4444
    %v4550 = vpack.c.b16 %v4452, %v4445
    %v4551 = vpack.c.b16 %v4460, %v4453
    %v4552 = vpack.c.b16 %v4461, %v4454
    %v4553 = vpack.c.b16 %v4462, %v4455
    %v4554 = vpack.c.b16 %v4463, %v4456
    %v4555 = vpack.c.b16 %v4464, %v4457
    %v4556 = vpack.c.b16 %v4465, %v4458
    %v4557 = vpack.c.b16 %v4466, %v4459
    %v4558 = vpack.c.b16 %v4467, %v4467
    %v4559 = vpack.c.b16 %v4468, %v4468
    %v4560 = vpack.c.b16 %v4469, %v4469
    %v4561 = vpack.c.b16 %v4470, %v4470
    %v4562 = vpack.c.b16 %v4471, %v4471
    %v4563 = vpack.c.b16 %v4472, %v4472
    %v4564 = vpack.c.b16 %v4473, %v4473
    %v4650 = vsel %vm3071, %v2371, 0
    %v4653 = vsel %vm3075, %v4558, 0
    %v4656 = vsel %vm3075, %v4559, 0
    %v4659 = vsel %vm3075, %v4560, 0
    %v4662 = vsel %vm3075, %v4561, 0
    %v4665 = vsel %vm3075, %v4562, 0
    %v4668 = vsel %vm3075, %v4563, 0
    %v4671 = vsel %vm3075, %v4564, 0
    %4673 = vmatprep.subr.bf16.mxu0 %v4475
    %4674 = vmatpush1.bf16.msra.mxu0 %v4474
    %4675 = vmatprep.subr.bf16.mxu0 %v4482
    %4676 = vmatpush1.bf16.msra.mxu0 %v4481
    %4677 = vmatprep.subr.bf16.mxu0 %v4489
    %4678 = vmatpush1.bf16.msra.mxu0 %v4488
    %4679 = vmatprep.subr.bf16.mxu0 %v4496
    %4680 = vmatpush1.bf16.msra.mxu0 %v4495
    %4681 = vmatprep.subr.bf16.mxu0 %v4503
    %4682 = vmatpush1.bf16.msra.mxu0 %v4502
    %4683 = vmatprep.subr.bf16.mxu0 %v4510
    %4684 = vmatpush1.bf16.msra.mxu0 %v4509
    %4685 = vmatprep.subr.bf16.mxu0 %v4517
    %4686 = vmatpush1.bf16.msra.mxu0 %v4516
    %4687 = vmatprep.subr.bf16.mxu0 %v4524
    %4688 = vmatpush1.bf16.msra.mxu0 %v4523
    %4689 = vmatprep.subr.bf16.mxu0 %v4531
    %4690 = vmatpush1.bf16.msra.mxu0 %v4530
    %4691 = vmatprep.subr.bf16.mxu0 %v4538
    %4692 = vmatpush1.bf16.msra.mxu0 %v4537
    %4693 = vmatprep.subr.bf16.mxu0 %v4545
    %4694 = vmatpush1.bf16.msra.mxu0 %v4544
    %4695 = vmatprep.subr.bf16.mxu0 %v4552
    %4696 = vmatpush1.bf16.msra.mxu0 %v4551
    %4697 = vmatprep.subr.bf16.mxu0 %v4656
    %4698 = vmatpush1.bf16.msra.mxu0 %v4653
    %4699 = vmatprep.subr.bf16.mxu0 0
    %4700 = vmatpush1.bf16.msra.mxu0 0
    %4701 = vmatprep.subr.bf16.mxu0 0
    %4702 = vmatpush1.bf16.msra.mxu0 0
    %4703 = vmatprep.subr.bf16.mxu0 0
    %4704 = vmatpush1.bf16.msra.mxu0 0
    %4705 = vmatprep.mubr.bf16.mxu0 %v4650
    %4706 = vmatmul.mubr.bf16.gmra.mrb[0].mxu0 %v2370
    %v4707 = vpop.f32.mrb[0].mxu0
    %v4708 = vadd.f32 %v3132, %v4707
    %v4709 = vpop.f32.mrb[0].mxu0
    %v4710 = vadd.f32 %v3134, %v4709
    %v4711 = vpop.f32.mrb[0].mxu0
    %v4712 = vpop.f32.mrb[0].mxu0
    %4713 = vdwg.mxu0
    %4714 = vmatprep.subr.bf16.mxu0 %v4477
    %4715 = vmatpush1.bf16.msra.mxu0 %v4476
    %4716 = vmatprep.subr.bf16.mxu0 %v4484
    %4717 = vmatpush1.bf16.msra.mxu0 %v4483
    %4718 = vmatprep.subr.bf16.mxu0 %v4491
    %4719 = vmatpush1.bf16.msra.mxu0 %v4490
    %4720 = vmatprep.subr.bf16.mxu0 %v4498
    %4721 = vmatpush1.bf16.msra.mxu0 %v4497
    %4722 = vmatprep.subr.bf16.mxu0 %v4505
    %4723 = vmatpush1.bf16.msra.mxu0 %v4504
    %4724 = vmatprep.subr.bf16.mxu0 %v4512
    %4725 = vmatpush1.bf16.msra.mxu0 %v4511
    %4726 = vmatprep.subr.bf16.mxu0 %v4519
    %4727 = vmatpush1.bf16.msra.mxu0 %v4518
    %4728 = vmatprep.subr.bf16.mxu0 %v4526
    %4729 = vmatpush1.bf16.msra.mxu0 %v4525
    %4730 = vmatprep.subr.bf16.mxu0 %v4533
    %4731 = vmatpush1.bf16.msra.mxu0 %v4532
    %4732 = vmatprep.subr.bf16.mxu0 %v4540
    %4733 = vmatpush1.bf16.msra.mxu0 %v4539
    %4734 = vmatprep.subr.bf16.mxu0 %v4547
    %4735 = vmatpush1.bf16.msra.mxu0 %v4546
    %4736 = vmatprep.subr.bf16.mxu0 %v4554
    %4737 = vmatpush1.bf16.msra.mxu0 %v4553
    %4738 = vmatprep.subr.bf16.mxu0 %v4662
    %4739 = vmatpush1.bf16.msra.mxu0 %v4659
    %4740 = vmatprep.subr.bf16.mxu0 0
    %4741 = vmatpush1.bf16.msra.mxu0 0
    %4742 = vmatprep.subr.bf16.mxu0 0
    %4743 = vmatpush1.bf16.msra.mxu0 0
    %4744 = vmatprep.subr.bf16.mxu0 0
    %4745 = vmatpush1.bf16.msra.mxu0 0
    %4746 = vmatprep.mubr.bf16.mxu0 %v4650
    %4747 = vmatmul.mubr.bf16.gmra.mrb[0].mxu0 %v2370
    %v4748 = vpop.f32.mrb[0].mxu0
    %v4749 = vadd.f32 %v3173, %v4748
    %v4750 = vpop.f32.mrb[0].mxu0
    %v4751 = vadd.f32 %v3175, %v4750
    %v4752 = vpop.f32.mrb[0].mxu0
    %v4753 = vpop.f32.mrb[0].mxu0
    %4754 = vdwg.mxu0
    %4755 = vmatprep.subr.bf16.mxu0 %v4479
    %4756 = vmatpush1.bf16.msra.mxu0 %v4478
    %4757 = vmatprep.subr.bf16.mxu0 %v4486
    %4758 = vmatpush1.bf16.msra.mxu0 %v4485
    %4759 = vmatprep.subr.bf16.mxu0 %v4493
    %4760 = vmatpush1.bf16.msra.mxu0 %v4492
    %4761 = vmatprep.subr.bf16.mxu0 %v4500
    %4762 = vmatpush1.bf16.msra.mxu0 %v4499
    %4763 = vmatprep.subr.bf16.mxu0 %v4507
    %4764 = vmatpush1.bf16.msra.mxu0 %v4506
    %4765 = vmatprep.subr.bf16.mxu0 %v4514
    %4766 = vmatpush1.bf16.msra.mxu0 %v4513
    %4767 = vmatprep.subr.bf16.mxu0 %v4521
    %4768 = vmatpush1.bf16.msra.mxu0 %v4520
    %4769 = vmatprep.subr.bf16.mxu0 %v4528
    %4770 = vmatpush1.bf16.msra.mxu0 %v4527
    %4771 = vmatprep.subr.bf16.mxu0 %v4535
    %4772 = vmatpush1.bf16.msra.mxu0 %v4534
    %4773 = vmatprep.subr.bf16.mxu0 %v4542
    %4774 = vmatpush1.bf16.msra.mxu0 %v4541
    %4775 = vmatprep.subr.bf16.mxu0 %v4549
    %4776 = vmatpush1.bf16.msra.mxu0 %v4548
    %4777 = vmatprep.subr.bf16.mxu0 %v4556
    %4778 = vmatpush1.bf16.msra.mxu0 %v4555
    %4779 = vmatprep.subr.bf16.mxu0 %v4668
    %4780 = vmatpush1.bf16.msra.mxu0 %v4665
    %4781 = vmatprep.subr.bf16.mxu0 0
    %4782 = vmatpush1.bf16.msra.mxu0 0
    %4783 = vmatprep.subr.bf16.mxu0 0
    %4784 = vmatpush1.bf16.msra.mxu0 0
    %4785 = vmatprep.subr.bf16.mxu0 0
    %4786 = vmatpush1.bf16.msra.mxu0 0
    %4787 = vmatprep.mubr.bf16.mxu0 %v4650
    %4788 = vmatmul.mubr.bf16.gmra.mrb[0].mxu0 %v2370
    %v4789 = vpop.f32.mrb[0].mxu0
    %v4790 = vadd.f32 %v3214, %v4789
    %v4791 = vpop.f32.mrb[0].mxu0
    %v4792 = vadd.f32 %v3216, %v4791
    %v4793 = vpop.f32.mrb[0].mxu0
    %v4794 = vpop.f32.mrb[0].mxu0
    %4795 = vdwg.mxu0
    %4796 = vmatprep.subr.bf16.mxu0 0
    %4797 = vmatpush1.bf16.msra.mxu0 %v4480
    %4798 = vmatprep.subr.bf16.mxu0 0
    %4799 = vmatpush1.bf16.msra.mxu0 %v4487
    %4800 = vmatprep.subr.bf16.mxu0 0
    %4801 = vmatpush1.bf16.msra.mxu0 %v4494
    %4802 = vmatprep.subr.bf16.mxu0 0
    %4803 = vmatpush1.bf16.msra.mxu0 %v4501
    %4804 = vmatprep.subr.bf16.mxu0 0
    %4805 = vmatpush1.bf16.msra.mxu0 %v4508
    %4806 = vmatprep.subr.bf16.mxu0 0
    %4807 = vmatpush1.bf16.msra.mxu0 %v4515
    %4808 = vmatprep.subr.bf16.mxu0 0
    %4809 = vmatpush1.bf16.msra.mxu0 %v4522
    %4810 = vmatprep.subr.bf16.mxu0 0
    %4811 = vmatpush1.bf16.msra.mxu0 %v4529
    %4812 = vmatprep.subr.bf16.mxu0 0
    %4813 = vmatpush1.bf16.msra.mxu0 %v4536
    %4814 = vmatprep.subr.bf16.mxu0 0
    %4815 = vmatpush1.bf16.msra.mxu0 %v4543
    %4816 = vmatprep.subr.bf16.mxu0 0
    %4817 = vmatpush1.bf16.msra.mxu0 %v4550
    %4818 = vmatprep.subr.bf16.mxu0 0
    %4819 = vmatpush1.bf16.msra.mxu0 %v4557
    %4820 = vmatprep.subr.bf16.mxu0 0
    %4821 = vmatpush1.bf16.msra.mxu0 %v4671
    %4822 = vmatprep.subr.bf16.mxu0 0
    %4823 = vmatpush1.bf16.msra.mxu0 0
    %4824 = vmatprep.subr.bf16.mxu0 0
    %4825 = vmatpush1.bf16.msra.mxu0 0
    %4826 = vmatprep.subr.bf16.mxu0 0
    %4827 = vmatpush1.bf16.msra.mxu0 0
    %4828 = vmatprep.mubr.bf16.mxu0 %v4650
    %4829 = vmatmul.mubr.bf16.gmra.mrb[0].mxu0 %v2370
    %v4830 = vpop.f32.mrb[0].mxu0
    %v4831 = vadd.f32 %v3255, %v4830
    %v4832 = vpop.f32.mrb[0].mxu0
    %v4833 = vpop.f32.mrb[0].mxu0
    %v4834 = vpop.f32.mrb[0].mxu0
    %4835 = vdwg.mxu0
    %v4936 = vunpack.c.l.b16 %v3311
    %v4937 = vunpack.c.h.b16 %v3311
    %v4938 = vunpack.c.l.b16 %v3312
    %v4939 = vunpack.c.h.b16 %v3312
    %v4940 = vunpack.c.l.b16 %v3313
    %v4941 = vunpack.c.h.b16 %v3313
    %v4942 = vunpack.c.l.b16 %v3314
    %v4943 = vunpack.c.l.b16 %v3315
    %v4944 = vunpack.c.h.b16 %v3315
    %v4945 = vunpack.c.l.b16 %v3316
    %v4946 = vunpack.c.h.b16 %v3316
    %v4947 = vunpack.c.l.b16 %v3317
    %v4948 = vunpack.c.h.b16 %v3317
    %v4949 = vunpack.c.l.b16 %v3318
    %v4950 = vunpack.c.l.b16 %v3319
    %v4951 = vunpack.c.h.b16 %v3319
    %v4952 = vunpack.c.l.b16 %v3320
    %v4953 = vunpack.c.h.b16 %v3320
    %v4954 = vunpack.c.l.b16 %v3321
    %v4955 = vunpack.c.h.b16 %v3321
    %v4956 = vunpack.c.l.b16 %v3322
    %v4957 = vunpack.c.l.b16 %v3323
    %v4958 = vunpack.c.h.b16 %v3323
    %v4959 = vunpack.c.l.b16 %v3324
    %v4960 = vunpack.c.h.b16 %v3324
    %v4961 = vunpack.c.l.b16 %v3325
    %v4962 = vunpack.c.h.b16 %v3325
    %v4963 = vunpack.c.l.b16 %v3326
    %v4964 = vunpack.c.l.b16 %v3327
    %v4965 = vunpack.c.h.b16 %v3327
    %v4966 = vunpack.c.l.b16 %v3328
    %v4967 = vunpack.c.h.b16 %v3328
    %v4968 = vunpack.c.l.b16 %v3329
    %v4969 = vunpack.c.h.b16 %v3329
    %v4970 = vunpack.c.l.b16 %v3330
    %v4971 = vunpack.c.l.b16 %v3331
    %v4972 = vunpack.c.h.b16 %v3331
    %v4973 = vunpack.c.l.b16 %v3332
    %v4974 = vunpack.c.h.b16 %v3332
    %v4975 = vunpack.c.l.b16 %v3333
    %v4976 = vunpack.c.h.b16 %v3333
    %v4977 = vunpack.c.l.b16 %v3334
    %v4978 = vunpack.c.l.b16 %v3335
    %v4979 = vunpack.c.h.b16 %v3335
    %v4980 = vunpack.c.l.b16 %v3336
    %v4981 = vunpack.c.h.b16 %v3336
    %v4982 = vunpack.c.l.b16 %v3337
    %v4983 = vunpack.c.h.b16 %v3337
    %v4984 = vunpack.c.l.b16 %v3338
    %v4985 = vunpack.c.l.b16 %v3339
    %v4986 = vunpack.c.h.b16 %v3339
    %v4987 = vunpack.c.l.b16 %v3340
    %v4988 = vunpack.c.h.b16 %v3340
    %v4989 = vunpack.c.l.b16 %v3341
    %v4990 = vunpack.c.h.b16 %v3341
    %v4991 = vunpack.c.l.b16 %v3342
    %v4992 = vunpack.c.l.b16 %v3343
    %v4993 = vunpack.c.h.b16 %v3343
    %v4994 = vunpack.c.l.b16 %v3344
    %v4995 = vunpack.c.h.b16 %v3344
    %v4996 = vunpack.c.l.b16 %v3345
    %v4997 = vunpack.c.h.b16 %v3345
    %v4998 = vunpack.c.l.b16 %v3346
    %v4999 = vunpack.c.l.b16 %v3347
    %v5000 = vunpack.c.h.b16 %v3347
    %v5001 = vunpack.c.l.b16 %v3348
    %v5002 = vunpack.c.h.b16 %v3348
    %v5003 = vunpack.c.l.b16 %v3349
    %v5004 = vunpack.c.h.b16 %v3349
    %v5005 = vunpack.c.l.b16 %v3350
    %v5006 = vunpack.c.l.b16 %v3351
    %v5007 = vunpack.c.h.b16 %v3351
    %v5008 = vunpack.c.l.b16 %v3352
    %v5009 = vunpack.c.h.b16 %v3352
    %v5010 = vunpack.c.l.b16 %v3353
    %v5011 = vunpack.c.h.b16 %v3353
    %v5012 = vunpack.c.l.b16 %v3354
    %v5013 = vunpack.c.l.b16 %v3355
    %v5014 = vunpack.c.h.b16 %v3355
    %v5015 = vunpack.c.l.b16 %v3356
    %v5016 = vunpack.c.h.b16 %v3356
    %v5017 = vunpack.c.l.b16 %v3357
    %v5018 = vunpack.c.h.b16 %v3357
    %v5019 = vunpack.c.l.b16 %v3358
    %v5020 = vunpack.c.l.b16 %v3359
    %v5021 = vunpack.c.h.b16 %v3359
    %v5022 = vunpack.c.l.b16 %v3360
    %v5023 = vunpack.c.h.b16 %v3360
    %v5024 = vunpack.c.l.b16 %v3361
    %v5025 = vunpack.c.h.b16 %v3361
    %v5026 = vunpack.c.l.b16 %v3362
    %v5027 = vunpack.c.l.b16 %v3363
    %v5028 = vunpack.c.h.b16 %v3363
    %v5029 = vunpack.c.l.b16 %v3364
    %v5030 = vunpack.c.h.b16 %v3364
    %v5031 = vunpack.c.l.b16 %v3365
    %v5032 = vunpack.c.h.b16 %v3365
    %v5033 = vunpack.c.l.b16 %v3366
    %v5034 = vunpack.c.l.b16 %v3367
    %v5035 = vunpack.c.h.b16 %v3367
    %v5036 = vunpack.c.l.b16 %v3368
    %v5037 = vunpack.c.h.b16 %v3368
    %v5038 = vunpack.c.l.b16 %v3369
    %v5039 = vunpack.c.h.b16 %v3369
    %v5040 = vunpack.c.l.b16 %v3370
    %v5041 = vunpack.c.l.b16 %v3371
    %v5042 = vunpack.c.h.b16 %v3371
    %v5043 = vunpack.c.l.b16 %v3372
    %v5044 = vunpack.c.h.b16 %v3372
    %v5045 = vunpack.c.l.b16 %v3373
    %v5046 = vunpack.c.h.b16 %v3373
    %v5047 = vunpack.c.l.b16 %v3374
    %v5048 = vunpack.c.l.b16 %v3375
    %v5049 = vunpack.c.h.b16 %v3375
    %v5050 = vunpack.c.l.b16 %v3376
    %v5051 = vunpack.c.h.b16 %v3376
    %v5052 = vunpack.c.l.b16 %v3377
    %v5053 = vunpack.c.h.b16 %v3377
    %v5054 = vunpack.c.l.b16 %v3378
    %v5055 = vunpack.c.l.b16 %v3379
    %v5056 = vunpack.c.h.b16 %v3379
    %v5057 = vunpack.c.l.b16 %v3380
    %v5058 = vunpack.c.h.b16 %v3380
    %v5059 = vunpack.c.l.b16 %v3381
    %v5060 = vunpack.c.h.b16 %v3381
    %v5061 = vunpack.c.l.b16 %v3382
    %v5062 = vunpack.c.l.b16 %v3383
    %v5063 = vunpack.c.h.b16 %v3383
    %v5064 = vunpack.c.l.b16 %v3384
    %v5065 = vunpack.c.h.b16 %v3384
    %v5066 = vunpack.c.l.b16 %v3385
    %v5067 = vunpack.c.h.b16 %v3385
    %v5068 = vunpack.c.l.b16 %v3386
    %v5069 = vunpack.c.l.b16 %v3387
    %v5070 = vunpack.c.h.b16 %v3387
    %v5071 = vunpack.c.l.b16 %v3388
    %v5072 = vunpack.c.h.b16 %v3388
    %v5073 = vunpack.c.l.b16 %v3389
    %v5074 = vunpack.c.h.b16 %v3389
    %v5075 = vunpack.c.l.b16 %v3390
    %v5076 = vunpack.c.l.b16 %v3391
    %v5077 = vunpack.c.h.b16 %v3391
    %v5078 = vunpack.c.l.b16 %v3392
    %v5079 = vunpack.c.h.b16 %v3392
    %v5080 = vunpack.c.l.b16 %v3393
    %v5081 = vunpack.c.h.b16 %v3393
    %v5082 = vunpack.c.l.b16 %v3394
    %v5083 = vunpack.c.l.b16 %v3395
    %v5084 = vunpack.c.h.b16 %v3395
    %v5085 = vunpack.c.l.b16 %v3396
    %v5086 = vunpack.c.h.b16 %v3396
    %v5087 = vunpack.c.l.b16 %v3397
    %v5088 = vunpack.c.h.b16 %v3397
    %v5089 = vunpack.c.l.b16 %v3398
    %v5090 = vunpack.c.l.b16 %v3399
    %v5091 = vunpack.c.h.b16 %v3399
    %v5092 = vunpack.c.l.b16 %v3400
    %v5093 = vunpack.c.h.b16 %v3400
    %v5094 = vunpack.c.l.b16 %v3401
    %v5095 = vunpack.c.h.b16 %v3401
    %v5096 = vunpack.c.l.b16 %v3402
    %v5097 = vunpack.c.l.b16 %v3403
    %v5098 = vunpack.c.h.b16 %v3403
    %v5099 = vunpack.c.l.b16 %v3404
    %v5100 = vunpack.c.h.b16 %v3404
    %v5101 = vunpack.c.l.b16 %v3405
    %v5102 = vunpack.c.h.b16 %v3405
    %v5103 = vunpack.c.l.b16 %v3406
    %v5104 = vunpack.c.l.b16 %v3407
    %v5105 = vunpack.c.h.b16 %v3407
    %v5106 = vunpack.c.l.b16 %v3408
    %v5107 = vunpack.c.h.b16 %v3408
    %v5108 = vunpack.c.l.b16 %v3409
    %v5109 = vunpack.c.h.b16 %v3409
    %v5110 = vunpack.c.l.b16 %v3410
    %v5111 = vpack.c.b16 %v4943, %v4936
    %v5112 = vpack.c.b16 %v4944, %v4937
    %v5113 = vpack.c.b16 %v4945, %v4938
    %v5114 = vpack.c.b16 %v4946, %v4939
    %v5115 = vpack.c.b16 %v4947, %v4940
    %v5116 = vpack.c.b16 %v4948, %v4941
    %v5117 = vpack.c.b16 %v4949, %v4942
    %v5118 = vpack.c.b16 %v4957, %v4950
    %v5119 = vpack.c.b16 %v4958, %v4951
    %v5120 = vpack.c.b16 %v4959, %v4952
    %v5121 = vpack.c.b16 %v4960, %v4953
    %v5122 = vpack.c.b16 %v4961, %v4954
    %v5123 = vpack.c.b16 %v4962, %v4955
    %v5124 = vpack.c.b16 %v4963, %v4956
    %v5125 = vpack.c.b16 %v4971, %v4964
    %v5126 = vpack.c.b16 %v4972, %v4965
    %v5127 = vpack.c.b16 %v4973, %v4966
    %v5128 = vpack.c.b16 %v4974, %v4967
    %v5129 = vpack.c.b16 %v4975, %v4968
    %v5130 = vpack.c.b16 %v4976, %v4969
    %v5131 = vpack.c.b16 %v4977, %v4970
    %v5132 = vpack.c.b16 %v4985, %v4978
    %v5133 = vpack.c.b16 %v4986, %v4979
    %v5134 = vpack.c.b16 %v4987, %v4980
    %v5135 = vpack.c.b16 %v4988, %v4981
    %v5136 = vpack.c.b16 %v4989, %v4982
    %v5137 = vpack.c.b16 %v4990, %v4983
    %v5138 = vpack.c.b16 %v4991, %v4984
    %v5139 = vpack.c.b16 %v4999, %v4992
    %v5140 = vpack.c.b16 %v5000, %v4993
    %v5141 = vpack.c.b16 %v5001, %v4994
    %v5142 = vpack.c.b16 %v5002, %v4995
    %v5143 = vpack.c.b16 %v5003, %v4996
    %v5144 = vpack.c.b16 %v5004, %v4997
    %v5145 = vpack.c.b16 %v5005, %v4998
    %v5146 = vpack.c.b16 %v5013, %v5006
    %v5147 = vpack.c.b16 %v5014, %v5007
    %v5148 = vpack.c.b16 %v5015, %v5008
    %v5149 = vpack.c.b16 %v5016, %v5009
    %v5150 = vpack.c.b16 %v5017, %v5010
    %v5151 = vpack.c.b16 %v5018, %v5011
    %v5152 = vpack.c.b16 %v5019, %v5012
    %v5153 = vpack.c.b16 %v5027, %v5020
    %v5154 = vpack.c.b16 %v5028, %v5021
    %v5155 = vpack.c.b16 %v5029, %v5022
    %v5156 = vpack.c.b16 %v5030, %v5023
    %v5157 = vpack.c.b16 %v5031, %v5024
    %v5158 = vpack.c.b16 %v5032, %v5025
    %v5159 = vpack.c.b16 %v5033, %v5026
    %v5160 = vpack.c.b16 %v5041, %v5034
    %v5161 = vpack.c.b16 %v5042, %v5035
    %v5162 = vpack.c.b16 %v5043, %v5036
    %v5163 = vpack.c.b16 %v5044, %v5037
    %v5164 = vpack.c.b16 %v5045, %v5038
    %v5165 = vpack.c.b16 %v5046, %v5039
    %v5166 = vpack.c.b16 %v5047, %v5040
    %v5167 = vpack.c.b16 %v5055, %v5048
    %v5168 = vpack.c.b16 %v5056, %v5049
    %v5169 = vpack.c.b16 %v5057, %v5050
    %v5170 = vpack.c.b16 %v5058, %v5051
    %v5171 = vpack.c.b16 %v5059, %v5052
    %v5172 = vpack.c.b16 %v5060, %v5053
    %v5173 = vpack.c.b16 %v5061, %v5054
    %v5174 = vpack.c.b16 %v5069, %v5062
    %v5175 = vpack.c.b16 %v5070, %v5063
    %v5176 = vpack.c.b16 %v5071, %v5064
    %v5177 = vpack.c.b16 %v5072, %v5065
    %v5178 = vpack.c.b16 %v5073, %v5066
    %v5179 = vpack.c.b16 %v5074, %v5067
    %v5180 = vpack.c.b16 %v5075, %v5068
    %v5181 = vpack.c.b16 %v5083, %v5076
    %v5182 = vpack.c.b16 %v5084, %v5077
    %v5183 = vpack.c.b16 %v5085, %v5078
    %v5184 = vpack.c.b16 %v5086, %v5079
    %v5185 = vpack.c.b16 %v5087, %v5080
    %v5186 = vpack.c.b16 %v5088, %v5081
    %v5187 = vpack.c.b16 %v5089, %v5082
    %v5188 = vpack.c.b16 %v5097, %v5090
    %v5189 = vpack.c.b16 %v5098, %v5091
    %v5190 = vpack.c.b16 %v5099, %v5092
    %v5191 = vpack.c.b16 %v5100, %v5093
    %v5192 = vpack.c.b16 %v5101, %v5094
    %v5193 = vpack.c.b16 %v5102, %v5095
    %v5194 = vpack.c.b16 %v5103, %v5096
    %v5195 = vpack.c.b16 %v5104, %v5104
    %v5196 = vpack.c.b16 %v5105, %v5105
    %v5197 = vpack.c.b16 %v5106, %v5106
    %v5198 = vpack.c.b16 %v5107, %v5107
    %v5199 = vpack.c.b16 %v5108, %v5108
    %v5200 = vpack.c.b16 %v5109, %v5109
    %v5201 = vpack.c.b16 %v5110, %v5110
    %v5287 = vsel %vm3071, %v3310, 0
    %v5290 = vsel %vm3075, %v5195, 0
    %v5293 = vsel %vm3075, %v5196, 0
    %v5296 = vsel %vm3075, %v5197, 0
    %v5299 = vsel %vm3075, %v5198, 0
    %v5302 = vsel %vm3075, %v5199, 0
    %v5305 = vsel %vm3075, %v5200, 0
    %v5308 = vsel %vm3075, %v5201, 0
    %5310 = vmatprep.subr.bf16.mxu0 %v5112
    %5311 = vmatpush1.bf16.msra.mxu0 %v5111
    %5312 = vmatprep.subr.bf16.mxu0 %v5119
    %5313 = vmatpush1.bf16.msra.mxu0 %v5118
    %5314 = vmatprep.subr.bf16.mxu0 %v5126
    %5315 = vmatpush1.bf16.msra.mxu0 %v5125
    %5316 = vmatprep.subr.bf16.mxu0 %v5133
    %5317 = vmatpush1.bf16.msra.mxu0 %v5132
    %5318 = vmatprep.subr.bf16.mxu0 %v5140
    %5319 = vmatpush1.bf16.msra.mxu0 %v5139
    %5320 = vmatprep.subr.bf16.mxu0 %v5147
    %5321 = vmatpush1.bf16.msra.mxu0 %v5146
    %5322 = vmatprep.subr.bf16.mxu0 %v5154
    %5323 = vmatpush1.bf16.msra.mxu0 %v5153
    %5324 = vmatprep.subr.bf16.mxu0 %v5161
    %5325 = vmatpush1.bf16.msra.mxu0 %v5160
    %5326 = vmatprep.subr.bf16.mxu0 %v5168
    %5327 = vmatpush1.bf16.msra.mxu0 %v5167
    %5328 = vmatprep.subr.bf16.mxu0 %v5175
    %5329 = vmatpush1.bf16.msra.mxu0 %v5174
    %5330 = vmatprep.subr.bf16.mxu0 %v5182
    %5331 = vmatpush1.bf16.msra.mxu0 %v5181
    %5332 = vmatprep.subr.bf16.mxu0 %v5189
    %5333 = vmatpush1.bf16.msra.mxu0 %v5188
    %5334 = vmatprep.subr.bf16.mxu0 %v5293
    %5335 = vmatpush1.bf16.msra.mxu0 %v5290
    %5336 = vmatprep.subr.bf16.mxu0 0
    %5337 = vmatpush1.bf16.msra.mxu0 0
    %5338 = vmatprep.subr.bf16.mxu0 0
    %5339 = vmatpush1.bf16.msra.mxu0 0
    %5340 = vmatprep.subr.bf16.mxu0 0
    %5341 = vmatpush1.bf16.msra.mxu0 0
    %5342 = vmatprep.mubr.bf16.mxu0 %v5287
    %5343 = vmatmul.mubr.bf16.gmra.mrb[0].mxu0 %v3309
    %v5344 = vpop.f32.mrb[0].mxu0
    %v5345 = vadd.f32 %v4071, %v5344
    %v5346 = vpop.f32.mrb[0].mxu0
    %v5347 = vadd.f32 %v4073, %v5346
    %v5348 = vpop.f32.mrb[0].mxu0
    %v5349 = vpop.f32.mrb[0].mxu0
    %5350 = vdwg.mxu0
    %5351 = vmatprep.subr.bf16.mxu0 %v5114
    %5352 = vmatpush1.bf16.msra.mxu0 %v5113
    %5353 = vmatprep.subr.bf16.mxu0 %v5121
    %5354 = vmatpush1.bf16.msra.mxu0 %v5120
    %5355 = vmatprep.subr.bf16.mxu0 %v5128
    %5356 = vmatpush1.bf16.msra.mxu0 %v5127
    %5357 = vmatprep.subr.bf16.mxu0 %v5135
    %5358 = vmatpush1.bf16.msra.mxu0 %v5134
    %5359 = vmatprep.subr.bf16.mxu0 %v5142
    %5360 = vmatpush1.bf16.msra.mxu0 %v5141
    %5361 = vmatprep.subr.bf16.mxu0 %v5149
    %5362 = vmatpush1.bf16.msra.mxu0 %v5148
    %5363 = vmatprep.subr.bf16.mxu0 %v5156
    %5364 = vmatpush1.bf16.msra.mxu0 %v5155
    %5365 = vmatprep.subr.bf16.mxu0 %v5163
    %5366 = vmatpush1.bf16.msra.mxu0 %v5162
    %5367 = vmatprep.subr.bf16.mxu0 %v5170
    %5368 = vmatpush1.bf16.msra.mxu0 %v5169
    %5369 = vmatprep.subr.bf16.mxu0 %v5177
    %5370 = vmatpush1.bf16.msra.mxu0 %v5176
    %5371 = vmatprep.subr.bf16.mxu0 %v5184
    %5372 = vmatpush1.bf16.msra.mxu0 %v5183
    %5373 = vmatprep.subr.bf16.mxu0 %v5191
    %5374 = vmatpush1.bf16.msra.mxu0 %v5190
    %5375 = vmatprep.subr.bf16.mxu0 %v5299
    %5376 = vmatpush1.bf16.msra.mxu0 %v5296
    %5377 = vmatprep.subr.bf16.mxu0 0
    %5378 = vmatpush1.bf16.msra.mxu0 0
    %5379 = vmatprep.subr.bf16.mxu0 0
    %5380 = vmatpush1.bf16.msra.mxu0 0
    %5381 = vmatprep.subr.bf16.mxu0 0
    %5382 = vmatpush1.bf16.msra.mxu0 0
    %5383 = vmatprep.mubr.bf16.mxu0 %v5287
    %5384 = vmatmul.mubr.bf16.gmra.mrb[0].mxu0 %v3309
    %v5385 = vpop.f32.mrb[0].mxu0
    %v5386 = vadd.f32 %v4112, %v5385
    %v5387 = vpop.f32.mrb[0].mxu0
    %v5388 = vadd.f32 %v4114, %v5387
    %v5389 = vpop.f32.mrb[0].mxu0
    %v5390 = vpop.f32.mrb[0].mxu0
    %5391 = vdwg.mxu0
    %5392 = vmatprep.subr.bf16.mxu0 %v5116
    %5393 = vmatpush1.bf16.msra.mxu0 %v5115
    %5394 = vmatprep.subr.bf16.mxu0 %v5123
    %5395 = vmatpush1.bf16.msra.mxu0 %v5122
    %5396 = vmatprep.subr.bf16.mxu0 %v5130
    %5397 = vmatpush1.bf16.msra.mxu0 %v5129
    %5398 = vmatprep.subr.bf16.mxu0 %v5137
    %5399 = vmatpush1.bf16.msra.mxu0 %v5136
    %5400 = vmatprep.subr.bf16.mxu0 %v5144
    %5401 = vmatpush1.bf16.msra.mxu0 %v5143
    %5402 = vmatprep.subr.bf16.mxu0 %v5151
    %5403 = vmatpush1.bf16.msra.mxu0 %v5150
    %5404 = vmatprep.subr.bf16.mxu0 %v5158
    %5405 = vmatpush1.bf16.msra.mxu0 %v5157
    %5406 = vmatprep.subr.bf16.mxu0 %v5165
    %5407 = vmatpush1.bf16.msra.mxu0 %v5164
    %5408 = vmatprep.subr.bf16.mxu0 %v5172
    %5409 = vmatpush1.bf16.msra.mxu0 %v5171
    %5410 = vmatprep.subr.bf16.mxu0 %v5179
    %5411 = vmatpush1.bf16.msra.mxu0 %v5178
    %5412 = vmatprep.subr.bf16.mxu0 %v5186
    %5413 = vmatpush1.bf16.msra.mxu0 %v5185
    %5414 = vmatprep.subr.bf16.mxu0 %v5193
    %5415 = vmatpush1.bf16.msra.mxu0 %v5192
    %5416 = vmatprep.subr.bf16.mxu0 %v5305
    %5417 = vmatpush1.bf16.msra.mxu0 %v5302
    %5418 = vmatprep.subr.bf16.mxu0 0
    %5419 = vmatpush1.bf16.msra.mxu0 0
    %5420 = vmatprep.subr.bf16.mxu0 0
    %5421 = vmatpush1.bf16.msra.mxu0 0
    %5422 = vmatprep.subr.bf16.mxu0 0
    %5423 = vmatpush1.bf16.msra.mxu0 0
    %5424 = vmatprep.mubr.bf16.mxu0 %v5287
    %5425 = vmatmul.mubr.bf16.gmra.mrb[0].mxu0 %v3309
    %v5426 = vpop.f32.mrb[0].mxu0
    %v5427 = vadd.f32 %v4153, %v5426
    %v5428 = vpop.f32.mrb[0].mxu0
    %v5429 = vadd.f32 %v4155, %v5428
    %v5430 = vpop.f32.mrb[0].mxu0
    %v5431 = vpop.f32.mrb[0].mxu0
    %5432 = vdwg.mxu0
    %5433 = vmatprep.subr.bf16.mxu0 0
    %5434 = vmatpush1.bf16.msra.mxu0 %v5117
    %5435 = vmatprep.subr.bf16.mxu0 0
    %5436 = vmatpush1.bf16.msra.mxu0 %v5124
    %5437 = vmatprep.subr.bf16.mxu0 0
    %5438 = vmatpush1.bf16.msra.mxu0 %v5131
    %5439 = vmatprep.subr.bf16.mxu0 0
    %5440 = vmatpush1.bf16.msra.mxu0 %v5138
    %5441 = vmatprep.subr.bf16.mxu0 0
    %5442 = vmatpush1.bf16.msra.mxu0 %v5145
    %5443 = vmatprep.subr.bf16.mxu0 0
    %5444 = vmatpush1.bf16.msra.mxu0 %v5152
    %5445 = vmatprep.subr.bf16.mxu0 0
    %5446 = vmatpush1.bf16.msra.mxu0 %v5159
    %5447 = vmatprep.subr.bf16.mxu0 0
    %5448 = vmatpush1.bf16.msra.mxu0 %v5166
    %5449 = vmatprep.subr.bf16.mxu0 0
    %5450 = vmatpush1.bf16.msra.mxu0 %v5173
    %5451 = vmatprep.subr.bf16.mxu0 0
    %5452 = vmatpush1.bf16.msra.mxu0 %v5180
    %5453 = vmatprep.subr.bf16.mxu0 0
    %5454 = vmatpush1.bf16.msra.mxu0 %v5187
    %5455 = vmatprep.subr.bf16.mxu0 0
    %5456 = vmatpush1.bf16.msra.mxu0 %v5194
    %5457 = vmatprep.subr.bf16.mxu0 0
    %5458 = vmatpush1.bf16.msra.mxu0 %v5308
    %5459 = vmatprep.subr.bf16.mxu0 0
    %5460 = vmatpush1.bf16.msra.mxu0 0
    %5461 = vmatprep.subr.bf16.mxu0 0
    %5462 = vmatpush1.bf16.msra.mxu0 0
    %5463 = vmatprep.subr.bf16.mxu0 0
    %5464 = vmatpush1.bf16.msra.mxu0 0
    %5465 = vmatprep.mubr.bf16.mxu0 %v5287
    %5466 = vmatmul.mubr.bf16.gmra.mrb[0].mxu0 %v3309
    %v5467 = vpop.f32.mrb[0].mxu0
    %v5468 = vadd.f32 %v4194, %v5467
    %v5469 = vpop.f32.mrb[0].mxu0
    %v5470 = vpop.f32.mrb[0].mxu0
    %v5471 = vpop.f32.mrb[0].mxu0
    %5472 = vdwg.mxu0
    %v5473 = vadd.f32 %v4708, %v5345
    %v5474 = vadd.f32 %v4710, %v5347
    %v5475 = vadd.f32 %v4749, %v5386
    %v5476 = vadd.f32 %v4751, %v5388
    %v5477 = vadd.f32 %v4790, %v5427
    %v5478 = vadd.f32 %v4792, %v5429
    %v5479 = vadd.f32 %v4831, %v5468
    %v5480 = vld [vmem:[%s1] sm:$0xff]
    %v5481 = vld [vmem:[%s1 + $0x8] sm:$0xff]
    %v5482 = vld [vmem:[%s1 + $0x10] sm:$0xff]
    %v5483 = vld [vmem:[%s1 + $0x18] sm:$0xff]
    %v5484 = vld [vmem:[%s1 + $0x20] sm:$0xff]
    %v5485 = vld [vmem:[%s1 + $0x28] sm:$0xff]
    %v5486 = vld [vmem:[%s1 + $0x30] sm:$0xff]
    %v5487 = vld [vmem:[%s1 + $0x38] sm:$0xff]
    %5496 = vrot.lane.b32.xlu0 %v5480, 127
    %v5497 = vpop.permute.xlu0 %5496
    %5498 = vrot.lane.b32.xlu0 %v5481, 127
    %v5499 = vpop.permute.xlu0 %5498
    %5500 = vrot.lane.b32.xlu0 %v5482, 127
    %v5501 = vpop.permute.xlu0 %5500
    %5502 = vrot.lane.b32.xlu0 %v5483, 127
    %v5503 = vpop.permute.xlu0 %5502
    %5504 = vrot.lane.b32.xlu0 %v5484, 127
    %v5505 = vpop.permute.xlu0 %5504
    %5506 = vrot.lane.b32.xlu0 %v5485, 127
    %v5507 = vpop.permute.xlu0 %5506
    %5508 = vrot.lane.b32.xlu0 %v5486, 127
    %v5509 = vpop.permute.xlu0 %5508
    %5510 = vrot.lane.b32.xlu0 %v5487, 127
    %v5511 = vpop.permute.xlu0 %5510
    %v5512 = vsel %vm1781, %v5497, %v5499
    %v5513 = vsel %vm1781, %v5499, %v5501
    %v5514 = vsel %vm1781, %v5501, %v5503
    %v5515 = vsel %vm1781, %v5503, %v5505
    %v5516 = vsel %vm1781, %v5505, %v5507
    %v5517 = vsel %vm1781, %v5507, %v5509
    %v5518 = vsel %vm1781, %v5509, %v5511
    %5527 = vrot.lane.b32.xlu0 %v5480, 126
    %v5528 = vpop.permute.xlu0 %5527
    %5529 = vrot.lane.b32.xlu0 %v5481, 126
    %v5530 = vpop.permute.xlu0 %5529
    %5531 = vrot.lane.b32.xlu0 %v5482, 126
    %v5532 = vpop.permute.xlu0 %5531
    %5533 = vrot.lane.b32.xlu0 %v5483, 126
    %v5534 = vpop.permute.xlu0 %5533
    %5535 = vrot.lane.b32.xlu0 %v5484, 126
    %v5536 = vpop.permute.xlu0 %5535
    %5537 = vrot.lane.b32.xlu0 %v5485, 126
    %v5538 = vpop.permute.xlu0 %5537
    %5539 = vrot.lane.b32.xlu0 %v5486, 126
    %v5540 = vpop.permute.xlu0 %5539
    %5541 = vrot.lane.b32.xlu0 %v5487, 126
    %v5542 = vpop.permute.xlu0 %5541
    %v5543 = vsel %vm1810, %v5528, %v5530
    %v5544 = vsel %vm1810, %v5530, %v5532
    %v5545 = vsel %vm1810, %v5532, %v5534
    %v5546 = vsel %vm1810, %v5534, %v5536
    %v5547 = vsel %vm1810, %v5536, %v5538
    %v5548 = vsel %vm1810, %v5538, %v5540
    %v5549 = vsel %vm1810, %v5540, %v5542
    %5558 = vrot.lane.b32.xlu0 %v5480, 110
    %v5559 = vpop.permute.xlu0 %5558
    %5560 = vrot.lane.b32.xlu0 %v5481, 110
    %v5561 = vpop.permute.xlu0 %5560
    %5562 = vrot.lane.b32.xlu0 %v5482, 110
    %v5563 = vpop.permute.xlu0 %5562
    %5564 = vrot.lane.b32.xlu0 %v5483, 110
    %v5565 = vpop.permute.xlu0 %5564
    %5566 = vrot.lane.b32.xlu0 %v5484, 110
    %v5567 = vpop.permute.xlu0 %5566
    %5568 = vrot.lane.b32.xlu0 %v5485, 110
    %v5569 = vpop.permute.xlu0 %5568
    %5570 = vrot.lane.b32.xlu0 %v5486, 110
    %v5571 = vpop.permute.xlu0 %5570
    %5572 = vrot.lane.b32.xlu0 %v5487, 110
    %v5573 = vpop.permute.xlu0 %5572
    %vm5574 = vcmask 900096
    %v5575 = vsel %vm5574, %v5559, %v5561
    %v5576 = vsel %vm5574, %v5561, %v5563
    %v5577 = vsel %vm5574, %v5563, %v5565
    %v5578 = vsel %vm5574, %v5565, %v5567
    %v5579 = vsel %vm5574, %v5567, %v5569
    %v5580 = vsel %vm5574, %v5569, %v5571
    %v5581 = vsel %vm5574, %v5571, %v5573
    %5590 = vrot.lane.b32.xlu0 %v5480, 109
    %v5591 = vpop.permute.xlu0 %5590
    %5592 = vrot.lane.b32.xlu0 %v5481, 109
    %v5593 = vpop.permute.xlu0 %5592
    %5594 = vrot.lane.b32.xlu0 %v5482, 109
    %v5595 = vpop.permute.xlu0 %5594
    %5596 = vrot.lane.b32.xlu0 %v5483, 109
    %v5597 = vpop.permute.xlu0 %5596
    %5598 = vrot.lane.b32.xlu0 %v5484, 109
    %v5599 = vpop.permute.xlu0 %5598
    %5600 = vrot.lane.b32.xlu0 %v5485, 109
    %v5601 = vpop.permute.xlu0 %5600
    %5602 = vrot.lane.b32.xlu0 %v5486, 109
    %v5603 = vpop.permute.xlu0 %5602
    %5604 = vrot.lane.b32.xlu0 %v5487, 109
    %v5605 = vpop.permute.xlu0 %5604
    %vm5606 = vcmask 891904
    %v5607 = vsel %vm5606, %v5591, %v5593
    %v5608 = vsel %vm5606, %v5593, %v5595
    %v5609 = vsel %vm5606, %v5595, %v5597
    %v5610 = vsel %vm5606, %v5597, %v5599
    %v5611 = vsel %vm5606, %v5599, %v5601
    %v5612 = vsel %vm5606, %v5601, %v5603
    %v5613 = vsel %vm5606, %v5603, %v5605
    %5622 = vrot.lane.b32.xlu0 %v5480, 108
    %v5623 = vpop.permute.xlu0 %5622
    %5624 = vrot.lane.b32.xlu0 %v5481, 108
    %v5625 = vpop.permute.xlu0 %5624
    %5626 = vrot.lane.b32.xlu0 %v5482, 108
    %v5627 = vpop.permute.xlu0 %5626
    %5628 = vrot.lane.b32.xlu0 %v5483, 108
    %v5629 = vpop.permute.xlu0 %5628
    %5630 = vrot.lane.b32.xlu0 %v5484, 108
    %v5631 = vpop.permute.xlu0 %5630
    %5632 = vrot.lane.b32.xlu0 %v5485, 108
    %v5633 = vpop.permute.xlu0 %5632
    %5634 = vrot.lane.b32.xlu0 %v5486, 108
    %v5635 = vpop.permute.xlu0 %5634
    %5636 = vrot.lane.b32.xlu0 %v5487, 108
    %v5637 = vpop.permute.xlu0 %5636
    %v5638 = vsel %vm1926, %v5623, %v5625
    %v5639 = vsel %vm1926, %v5625, %v5627
    %v5640 = vsel %vm1926, %v5627, %v5629
    %v5641 = vsel %vm1926, %v5629, %v5631
    %v5642 = vsel %vm1926, %v5631, %v5633
    %v5643 = vsel %vm1926, %v5633, %v5635
    %v5644 = vsel %vm1926, %v5635, %v5637
    %5653 = vrot.lane.b32.xlu0 %v5480, 92
    %v5654 = vpop.permute.xlu0 %5653
    %5655 = vrot.lane.b32.xlu0 %v5481, 92
    %v5656 = vpop.permute.xlu0 %5655
    %5657 = vrot.lane.b32.xlu0 %v5482, 92
    %v5658 = vpop.permute.xlu0 %5657
    %5659 = vrot.lane.b32.xlu0 %v5483, 92
    %v5660 = vpop.permute.xlu0 %5659
    %5661 = vrot.lane.b32.xlu0 %v5484, 92
    %v5662 = vpop.permute.xlu0 %5661
    %5663 = vrot.lane.b32.xlu0 %v5485, 92
    %v5664 = vpop.permute.xlu0 %5663
    %5665 = vrot.lane.b32.xlu0 %v5486, 92
    %v5666 = vpop.permute.xlu0 %5665
    %5667 = vrot.lane.b32.xlu0 %v5487, 92
    %v5668 = vpop.permute.xlu0 %5667
    %vm5669 = vcmask 752640
    %v5670 = vsel %vm5669, %v5654, %v5656
    %v5671 = vsel %vm5669, %v5656, %v5658
    %v5672 = vsel %vm5669, %v5658, %v5660
    %v5673 = vsel %vm5669, %v5660, %v5662
    %v5674 = vsel %vm5669, %v5662, %v5664
    %v5675 = vsel %vm5669, %v5664, %v5666
    %v5676 = vsel %vm5669, %v5666, %v5668
    %5685 = vrot.lane.b32.xlu0 %v5480, 91
    %v5686 = vpop.permute.xlu0 %5685
    %5687 = vrot.lane.b32.xlu0 %v5481, 91
    %v5688 = vpop.permute.xlu0 %5687
    %5689 = vrot.lane.b32.xlu0 %v5482, 91
    %v5690 = vpop.permute.xlu0 %5689
    %5691 = vrot.lane.b32.xlu0 %v5483, 91
    %v5692 = vpop.permute.xlu0 %5691
    %5693 = vrot.lane.b32.xlu0 %v5484, 91
    %v5694 = vpop.permute.xlu0 %5693
    %5695 = vrot.lane.b32.xlu0 %v5485, 91
    %v5696 = vpop.permute.xlu0 %5695
    %5697 = vrot.lane.b32.xlu0 %v5486, 91
    %v5698 = vpop.permute.xlu0 %5697
    %5699 = vrot.lane.b32.xlu0 %v5487, 91
    %v5700 = vpop.permute.xlu0 %5699
    %vm5701 = vcmask 744448
    %v5702 = vsel %vm5701, %v5686, %v5688
    %v5703 = vsel %vm5701, %v5688, %v5690
    %v5704 = vsel %vm5701, %v5690, %v5692
    %v5705 = vsel %vm5701, %v5692, %v5694
    %v5706 = vsel %vm5701, %v5694, %v5696
    %v5707 = vsel %vm5701, %v5696, %v5698
    %v5708 = vsel %vm5701, %v5698, %v5700
    %5717 = vrot.lane.b32.xlu0 %v5480, 90
    %v5718 = vpop.permute.xlu0 %5717
    %5719 = vrot.lane.b32.xlu0 %v5481, 90
    %v5720 = vpop.permute.xlu0 %5719
    %5721 = vrot.lane.b32.xlu0 %v5482, 90
    %v5722 = vpop.permute.xlu0 %5721
    %5723 = vrot.lane.b32.xlu0 %v5483, 90
    %v5724 = vpop.permute.xlu0 %5723
    %5725 = vrot.lane.b32.xlu0 %v5484, 90
    %v5726 = vpop.permute.xlu0 %5725
    %5727 = vrot.lane.b32.xlu0 %v5485, 90
    %v5728 = vpop.permute.xlu0 %5727
    %5729 = vrot.lane.b32.xlu0 %v5486, 90
    %v5730 = vpop.permute.xlu0 %5729
    %5731 = vrot.lane.b32.xlu0 %v5487, 90
    %v5732 = vpop.permute.xlu0 %5731
    %vm5733 = vcmask 736256
    %v5734 = vsel %vm5733, %v5718, %v5720
    %v5735 = vsel %vm5733, %v5720, %v5722
    %v5736 = vsel %vm5733, %v5722, %v5724
    %v5737 = vsel %vm5733, %v5724, %v5726
    %v5738 = vsel %vm5733, %v5726, %v5728
    %v5739 = vsel %vm5733, %v5728, %v5730
    %v5740 = vsel %vm5733, %v5730, %v5732
    %v5749 = vpack.c.bf16 %v5512, %v5480
    %v5750 = vpack.c.bf16 %v5513, %v5481
    %v5751 = vpack.c.bf16 %v5514, %v5482
    %v5752 = vpack.c.bf16 %v5515, %v5483
    %v5753 = vpack.c.bf16 %v5516, %v5484
    %v5754 = vpack.c.bf16 %v5517, %v5485
    %v5755 = vpack.c.bf16 %v5518, %v5486
    %v5756 = vpack.c.bf16 %v5511, %v5487
    %v5757 = vpack.c.bf16 %v5575, %v5543
    %v5758 = vpack.c.bf16 %v5576, %v5544
    %v5759 = vpack.c.bf16 %v5577, %v5545
    %v5760 = vpack.c.bf16 %v5578, %v5546
    %v5761 = vpack.c.bf16 %v5579, %v5547
    %v5762 = vpack.c.bf16 %v5580, %v5548
    %v5763 = vpack.c.bf16 %v5581, %v5549
    %v5764 = vpack.c.bf16 %v5573, %v5542
    %v5765 = vpack.c.bf16 %v5638, %v5607
    %v5766 = vpack.c.bf16 %v5639, %v5608
    %v5767 = vpack.c.bf16 %v5640, %v5609
    %v5768 = vpack.c.bf16 %v5641, %v5610
    %v5769 = vpack.c.bf16 %v5642, %v5611
    %v5770 = vpack.c.bf16 %v5643, %v5612
    %v5771 = vpack.c.bf16 %v5644, %v5613
    %v5772 = vpack.c.bf16 %v5637, %v5605
    %v5773 = vpack.c.bf16 %v5702, %v5670
    %v5774 = vpack.c.bf16 %v5703, %v5671
    %v5775 = vpack.c.bf16 %v5704, %v5672
    %v5776 = vpack.c.bf16 %v5705, %v5673
    %v5777 = vpack.c.bf16 %v5706, %v5674
    %v5778 = vpack.c.bf16 %v5707, %v5675
    %v5779 = vpack.c.bf16 %v5708, %v5676
    %v5780 = vpack.c.bf16 %v5700, %v5668
    %v5781 = vpack.c.bf16 %v5734, %v5734
    %v5782 = vpack.c.bf16 %v5735, %v5735
    %v5783 = vpack.c.bf16 %v5736, %v5736
    %v5784 = vpack.c.bf16 %v5737, %v5737
    %v5785 = vpack.c.bf16 %v5738, %v5738
    %v5786 = vpack.c.bf16 %v5739, %v5739
    %v5787 = vpack.c.bf16 %v5740, %v5740
    %v5788 = vpack.c.bf16 %v5732, %v5732
    %5789 = vset.pattern.permute.xlu0 84
    %5790 = vperm.xlu0 %5789, %v869
    %v5791 = vpop.permute.xlu0 %5790
    %v5793 = vunpack.c.h.b16 %v856
    %v5794 = vpack.c.b16 %v5793, %v5793
    %5795 = vrot.lane.b32.xlu0 %v2322, 16
    %v5796 = vpop.permute.xlu0 %5795
    %5797 = vrot.lane.b32.xlu0 %v5794, 16
    %v5798 = vpop.permute.xlu0 %5797
    %vm5799 = vcmask 130048
    %v5800 = vsel %vm5799, %v5796, %v5798
    %5841 = vrot.lane.b32.xlu0 %v5749, 123
    %v5842 = vpop.permute.xlu0 %5841
    %5843 = vrot.lane.b32.xlu0 %v5750, 123
    %v5844 = vpop.permute.xlu0 %5843
    %5845 = vrot.lane.b32.xlu0 %v5751, 123
    %v5846 = vpop.permute.xlu0 %5845
    %5847 = vrot.lane.b32.xlu0 %v5752, 123
    %v5848 = vpop.permute.xlu0 %5847
    %5849 = vrot.lane.b32.xlu0 %v5753, 123
    %v5850 = vpop.permute.xlu0 %5849
    %5851 = vrot.lane.b32.xlu0 %v5754, 123
    %v5852 = vpop.permute.xlu0 %5851
    %5853 = vrot.lane.b32.xlu0 %v5755, 123
    %v5854 = vpop.permute.xlu0 %5853
    %5855 = vrot.lane.b32.xlu0 %v5756, 123
    %v5856 = vpop.permute.xlu0 %5855
    %5857 = vrot.lane.b32.xlu0 %v5757, 123
    %v5858 = vpop.permute.xlu0 %5857
    %5859 = vrot.lane.b32.xlu0 %v5758, 123
    %v5860 = vpop.permute.xlu0 %5859
    %5861 = vrot.lane.b32.xlu0 %v5759, 123
    %v5862 = vpop.permute.xlu0 %5861
    %5863 = vrot.lane.b32.xlu0 %v5760, 123
    %v5864 = vpop.permute.xlu0 %5863
    %5865 = vrot.lane.b32.xlu0 %v5761, 123
    %v5866 = vpop.permute.xlu0 %5865
    %5867 = vrot.lane.b32.xlu0 %v5762, 123
    %v5868 = vpop.permute.xlu0 %5867
    %5869 = vrot.lane.b32.xlu0 %v5763, 123
    %v5870 = vpop.permute.xlu0 %5869
    %5871 = vrot.lane.b32.xlu0 %v5764, 123
    %v5872 = vpop.permute.xlu0 %5871
    %5873 = vrot.lane.b32.xlu0 %v5765, 123
    %v5874 = vpop.permute.xlu0 %5873
    %5875 = vrot.lane.b32.xlu0 %v5766, 123
    %v5876 = vpop.permute.xlu0 %5875
    %5877 = vrot.lane.b32.xlu0 %v5767, 123
    %v5878 = vpop.permute.xlu0 %5877
    %5879 = vrot.lane.b32.xlu0 %v5768, 123
    %v5880 = vpop.permute.xlu0 %5879
    %5881 = vrot.lane.b32.xlu0 %v5769, 123
    %v5882 = vpop.permute.xlu0 %5881
    %5883 = vrot.lane.b32.xlu0 %v5770, 123
    %v5884 = vpop.permute.xlu0 %5883
    %5885 = vrot.lane.b32.xlu0 %v5771, 123
    %v5886 = vpop.permute.xlu0 %5885
    %5887 = vrot.lane.b32.xlu0 %v5772, 123
    %v5888 = vpop.permute.xlu0 %5887
    %5889 = vrot.lane.b32.xlu0 %v5773, 123
    %v5890 = vpop.permute.xlu0 %5889
    %5891 = vrot.lane.b32.xlu0 %v5774, 123
    %v5892 = vpop.permute.xlu0 %5891
    %5893 = vrot.lane.b32.xlu0 %v5775, 123
    %v5894 = vpop.permute.xlu0 %5893
    %5895 = vrot.lane.b32.xlu0 %v5776, 123
    %v5896 = vpop.permute.xlu0 %5895
    %5897 = vrot.lane.b32.xlu0 %v5777, 123
    %v5898 = vpop.permute.xlu0 %5897
    %5899 = vrot.lane.b32.xlu0 %v5778, 123
    %v5900 = vpop.permute.xlu0 %5899
    %5901 = vrot.lane.b32.xlu0 %v5779, 123
    %v5902 = vpop.permute.xlu0 %5901
    %5903 = vrot.lane.b32.xlu0 %v5780, 123
    %v5904 = vpop.permute.xlu0 %5903
    %5905 = vrot.lane.b32.xlu0 %v5781, 123
    %v5906 = vpop.permute.xlu0 %5905
    %5907 = vrot.lane.b32.xlu0 %v5782, 123
    %v5908 = vpop.permute.xlu0 %5907
    %5909 = vrot.lane.b32.xlu0 %v5783, 123
    %v5910 = vpop.permute.xlu0 %5909
    %5911 = vrot.lane.b32.xlu0 %v5784, 123
    %v5912 = vpop.permute.xlu0 %5911
    %5913 = vrot.lane.b32.xlu0 %v5785, 123
    %v5914 = vpop.permute.xlu0 %5913
    %5915 = vrot.lane.b32.xlu0 %v5786, 123
    %v5916 = vpop.permute.xlu0 %5915
    %5917 = vrot.lane.b32.xlu0 %v5787, 123
    %v5918 = vpop.permute.xlu0 %5917
    %5919 = vrot.lane.b32.xlu0 %v5788, 123
    %v5920 = vpop.permute.xlu0 %5919
    %v5921 = vsel %vm2168, %v5842, %v5844
    %v5922 = vsel %vm2168, %v5844, %v5846
    %v5923 = vsel %vm2168, %v5846, %v5848
    %v5924 = vsel %vm2168, %v5848, %v5850
    %v5925 = vsel %vm2168, %v5850, %v5852
    %v5926 = vsel %vm2168, %v5852, %v5854
    %v5927 = vsel %vm2168, %v5854, %v5856
    %v5928 = vsel %vm2168, %v5858, %v5860
    %v5929 = vsel %vm2168, %v5860, %v5862
    %v5930 = vsel %vm2168, %v5862, %v5864
    %v5931 = vsel %vm2168, %v5864, %v5866
    %v5932 = vsel %vm2168, %v5866, %v5868
    %v5933 = vsel %vm2168, %v5868, %v5870
    %v5934 = vsel %vm2168, %v5870, %v5872
    %v5935 = vsel %vm2168, %v5874, %v5876
    %v5936 = vsel %vm2168, %v5876, %v5878
    %v5937 = vsel %vm2168, %v5878, %v5880
    %v5938 = vsel %vm2168, %v5880, %v5882
    %v5939 = vsel %vm2168, %v5882, %v5884
    %v5940 = vsel %vm2168, %v5884, %v5886
    %v5941 = vsel %vm2168, %v5886, %v5888
    %v5942 = vsel %vm2168, %v5890, %v5892
    %v5943 = vsel %vm2168, %v5892, %v5894
    %v5944 = vsel %vm2168, %v5894, %v5896
    %v5945 = vsel %vm2168, %v5896, %v5898
    %v5946 = vsel %vm2168, %v5898, %v5900
    %v5947 = vsel %vm2168, %v5900, %v5902
    %v5948 = vsel %vm2168, %v5902, %v5904
    %v5949 = vsel %vm2168, %v5906, %v5908
    %v5950 = vsel %vm2168, %v5908, %v5910
    %v5951 = vsel %vm2168, %v5910, %v5912
    %v5952 = vsel %vm2168, %v5912, %v5914
    %v5953 = vsel %vm2168, %v5914, %v5916
    %v5954 = vsel %vm2168, %v5916, %v5918
    %v5955 = vsel %vm2168, %v5918, %v5920
    %v5985 = vsel %vm3071, %v5800, 0
    %v5988 = vsel %vm3075, %v5949, 0
    %v5991 = vsel %vm3075, %v5950, 0
    %v5994 = vsel %vm3075, %v5951, 0
    %v5997 = vsel %vm3075, %v5952, 0
    %v6000 = vsel %vm3075, %v5953, 0
    %v6003 = vsel %vm3075, %v5954, 0
    %v6006 = vsel %vm3075, %v5955, 0
    %6008 = vmatprep.subr.bf16.mxu0 %v5922
    %6009 = vmatpush1.bf16.msra.mxu0 %v5921
    %6010 = vmatprep.subr.bf16.mxu0 %v5929
    %6011 = vmatpush1.bf16.msra.mxu0 %v5928
    %6012 = vmatprep.subr.bf16.mxu0 %v5936
    %6013 = vmatpush1.bf16.msra.mxu0 %v5935
    %6014 = vmatprep.subr.bf16.mxu0 %v5943
    %6015 = vmatpush1.bf16.msra.mxu0 %v5942
    %6016 = vmatprep.subr.bf16.mxu0 %v5991
    %6017 = vmatpush1.bf16.msra.mxu0 %v5988
    %6018 = vmatprep.subr.bf16.mxu0 0
    %6019 = vmatpush1.bf16.msra.mxu0 0
    %6020 = vmatprep.subr.bf16.mxu0 0
    %6021 = vmatpush1.bf16.msra.mxu0 0
    %6022 = vmatprep.subr.bf16.mxu0 0
    %6023 = vmatpush1.bf16.msra.mxu0 0
    %6024 = vmatprep.subr.bf16.mxu0 0
    %6025 = vmatpush1.bf16.msra.mxu0 0
    %6026 = vmatprep.subr.bf16.mxu0 0
    %6027 = vmatpush1.bf16.msra.mxu0 0
    %6028 = vmatprep.subr.bf16.mxu0 0
    %6029 = vmatpush1.bf16.msra.mxu0 0
    %6030 = vmatprep.subr.bf16.mxu0 0
    %6031 = vmatpush1.bf16.msra.mxu0 0
    %6032 = vmatprep.subr.bf16.mxu0 0
    %6033 = vmatpush1.bf16.msra.mxu0 0
    %6034 = vmatprep.subr.bf16.mxu0 0
    %6035 = vmatpush1.bf16.msra.mxu0 0
    %6036 = vmatprep.subr.bf16.mxu0 0
    %6037 = vmatpush1.bf16.msra.mxu0 0
    %6038 = vmatprep.subr.bf16.mxu0 0
    %6039 = vmatpush1.bf16.msra.mxu0 0
    %6040 = vmatprep.mubr.bf16.mxu0 0
    %6041 = vmatmul.mubr.bf16.gmra.mrb[0].mxu0 %v5985
    %v6042 = vpop.f32.mrb[0].mxu0
    %v6043 = vadd.f32 %v5791, %v6042
    %v6044 = vpop.f32.mrb[0].mxu0
    %v6045 = vadd.f32 %v5791, %v6044
    %v6046 = vpop.f32.mrb[0].mxu0
    %v6047 = vpop.f32.mrb[0].mxu0
    %6048 = vdwg.mxu0
    %6049 = vmatprep.subr.bf16.mxu0 %v5924
    %6050 = vmatpush1.bf16.msra.mxu0 %v5923
    %6051 = vmatprep.subr.bf16.mxu0 %v5931
    %6052 = vmatpush1.bf16.msra.mxu0 %v5930
    %6053 = vmatprep.subr.bf16.mxu0 %v5938
    %6054 = vmatpush1.bf16.msra.mxu0 %v5937
    %6055 = vmatprep.subr.bf16.mxu0 %v5945
    %6056 = vmatpush1.bf16.msra.mxu0 %v5944
    %6057 = vmatprep.subr.bf16.mxu0 %v5997
    %6058 = vmatpush1.bf16.msra.mxu0 %v5994
    %6059 = vmatprep.subr.bf16.mxu0 0
    %6060 = vmatpush1.bf16.msra.mxu0 0
    %6061 = vmatprep.subr.bf16.mxu0 0
    %6062 = vmatpush1.bf16.msra.mxu0 0
    %6063 = vmatprep.subr.bf16.mxu0 0
    %6064 = vmatpush1.bf16.msra.mxu0 0
    %6065 = vmatprep.subr.bf16.mxu0 0
    %6066 = vmatpush1.bf16.msra.mxu0 0
    %6067 = vmatprep.subr.bf16.mxu0 0
    %6068 = vmatpush1.bf16.msra.mxu0 0
    %6069 = vmatprep.subr.bf16.mxu0 0
    %6070 = vmatpush1.bf16.msra.mxu0 0
    %6071 = vmatprep.subr.bf16.mxu0 0
    %6072 = vmatpush1.bf16.msra.mxu0 0
    %6073 = vmatprep.subr.bf16.mxu0 0
    %6074 = vmatpush1.bf16.msra.mxu0 0
    %6075 = vmatprep.subr.bf16.mxu0 0
    %6076 = vmatpush1.bf16.msra.mxu0 0
    %6077 = vmatprep.subr.bf16.mxu0 0
    %6078 = vmatpush1.bf16.msra.mxu0 0
    %6079 = vmatprep.subr.bf16.mxu0 0
    %6080 = vmatpush1.bf16.msra.mxu0 0
    %6081 = vmatprep.mubr.bf16.mxu0 0
    %6082 = vmatmul.mubr.bf16.gmra.mrb[0].mxu0 %v5985
    %v6083 = vpop.f32.mrb[0].mxu0
    %v6084 = vadd.f32 %v5791, %v6083
    %v6085 = vpop.f32.mrb[0].mxu0
    %v6086 = vadd.f32 %v5791, %v6085
    %v6087 = vpop.f32.mrb[0].mxu0
    %v6088 = vpop.f32.mrb[0].mxu0
    %6089 = vdwg.mxu0
    %6090 = vmatprep.subr.bf16.mxu0 %v5926
    %6091 = vmatpush1.bf16.msra.mxu0 %v5925
    %6092 = vmatprep.subr.bf16.mxu0 %v5933
    %6093 = vmatpush1.bf16.msra.mxu0 %v5932
    %6094 = vmatprep.subr.bf16.mxu0 %v5940
    %6095 = vmatpush1.bf16.msra.mxu0 %v5939
    %6096 = vmatprep.subr.bf16.mxu0 %v5947
    %6097 = vmatpush1.bf16.msra.mxu0 %v5946
    %6098 = vmatprep.subr.bf16.mxu0 %v6003
    %6099 = vmatpush1.bf16.msra.mxu0 %v6000
    %6100 = vmatprep.subr.bf16.mxu0 0
    %6101 = vmatpush1.bf16.msra.mxu0 0
    %6102 = vmatprep.subr.bf16.mxu0 0
    %6103 = vmatpush1.bf16.msra.mxu0 0
    %6104 = vmatprep.subr.bf16.mxu0 0
    %6105 = vmatpush1.bf16.msra.mxu0 0
    %6106 = vmatprep.subr.bf16.mxu0 0
    %6107 = vmatpush1.bf16.msra.mxu0 0
    %6108 = vmatprep.subr.bf16.mxu0 0
    %6109 = vmatpush1.bf16.msra.mxu0 0
    %6110 = vmatprep.subr.bf16.mxu0 0
    %6111 = vmatpush1.bf16.msra.mxu0 0
    %6112 = vmatprep.subr.bf16.mxu0 0
    %6113 = vmatpush1.bf16.msra.mxu0 0
    %6114 = vmatprep.subr.bf16.mxu0 0
    %6115 = vmatpush1.bf16.msra.mxu0 0
    %6116 = vmatprep.subr.bf16.mxu0 0
    %6117 = vmatpush1.bf16.msra.mxu0 0
    %6118 = vmatprep.subr.bf16.mxu0 0
    %6119 = vmatpush1.bf16.msra.mxu0 0
    %6120 = vmatprep.subr.bf16.mxu0 0
    %6121 = vmatpush1.bf16.msra.mxu0 0
    %6122 = vmatprep.mubr.bf16.mxu0 0
    %6123 = vmatmul.mubr.bf16.gmra.mrb[0].mxu0 %v5985
    %v6124 = vpop.f32.mrb[0].mxu0
    %v6125 = vadd.f32 %v5791, %v6124
    %v6126 = vpop.f32.mrb[0].mxu0
    %v6127 = vadd.f32 %v5791, %v6126
    %v6128 = vpop.f32.mrb[0].mxu0
    %v6129 = vpop.f32.mrb[0].mxu0
    %6130 = vdwg.mxu0
    %6131 = vmatprep.subr.bf16.mxu0 0
    %6132 = vmatpush1.bf16.msra.mxu0 %v5927
    %6133 = vmatprep.subr.bf16.mxu0 0
    %6134 = vmatpush1.bf16.msra.mxu0 %v5934
    %6135 = vmatprep.subr.bf16.mxu0 0
    %6136 = vmatpush1.bf16.msra.mxu0 %v5941
    %6137 = vmatprep.subr.bf16.mxu0 0
    %6138 = vmatpush1.bf16.msra.mxu0 %v5948
    %6139 = vmatprep.subr.bf16.mxu0 0
    %6140 = vmatpush1.bf16.msra.mxu0 %v6006
    %6141 = vmatprep.subr.bf16.mxu0 0
    %6142 = vmatpush1.bf16.msra.mxu0 0
    %6143 = vmatprep.subr.bf16.mxu0 0
    %6144 = vmatpush1.bf16.msra.mxu0 0
    %6145 = vmatprep.subr.bf16.mxu0 0
    %6146 = vmatpush1.bf16.msra.mxu0 0
    %6147 = vmatprep.subr.bf16.mxu0 0
    %6148 = vmatpush1.bf16.msra.mxu0 0
    %6149 = vmatprep.subr.bf16.mxu0 0
    %6150 = vmatpush1.bf16.msra.mxu0 0
    %6151 = vmatprep.subr.bf16.mxu0 0
    %6152 = vmatpush1.bf16.msra.mxu0 0
    %6153 = vmatprep.subr.bf16.mxu0 0
    %6154 = vmatpush1.bf16.msra.mxu0 0
    %6155 = vmatprep.subr.bf16.mxu0 0
    %6156 = vmatpush1.bf16.msra.mxu0 0
    %6157 = vmatprep.subr.bf16.mxu0 0
    %6158 = vmatpush1.bf16.msra.mxu0 0
    %6159 = vmatprep.subr.bf16.mxu0 0
    %6160 = vmatpush1.bf16.msra.mxu0 0
    %6161 = vmatprep.subr.bf16.mxu0 0
    %6162 = vmatpush1.bf16.msra.mxu0 0
    %6163 = vmatprep.mubr.bf16.mxu0 0
    %6164 = vmatmul.mubr.bf16.gmra.mrb[0].mxu0 %v5985
    %v6165 = vpop.f32.mrb[0].mxu0
    %v6166 = vadd.f32 %v5791, %v6165
    %v6167 = vpop.f32.mrb[0].mxu0
    %v6168 = vpop.f32.mrb[0].mxu0
    %v6169 = vpop.f32.mrb[0].mxu0
    %6170 = vdwg.mxu0
    %v6171 = vmax.f32 %v6043, 0.0
    %v6172 = vmax.f32 %v6045, 0.0
    %v6173 = vmax.f32 %v6084, 0.0
    %v6174 = vmax.f32 %v6086, 0.0
    %v6175 = vmax.f32 %v6125, 0.0
    %v6176 = vmax.f32 %v6127, 0.0
    %v6177 = vmax.f32 %v6166, 0.0
    %v6178 = vld [vmem:[#allocation9] sm:$0xff]
    %v6180 = vlaneseq
    %v6181 = vshrl.u32 %v6180, 7
    %v6182 = vsub.s32 0, %v6181
    %v6183 = vrot.slane %v6178, %v6182
    %v6184 = vlaneseq
    %v6185 = vshrl.u32 %v6184, 7
    %v6186 = vsub.s32 1, %v6185
    %v6187 = vrot.slane %v6178, %v6186
    %v6188 = vlaneseq
    %v6189 = vshrl.u32 %v6188, 7
    %v6190 = vsub.s32 2, %v6189
    %v6191 = vrot.slane %v6178, %v6190
    %v6192 = vlaneseq
    %v6193 = vshrl.u32 %v6192, 7
    %v6194 = vsub.s32 3, %v6193
    %v6195 = vrot.slane %v6178, %v6194
    %v6196 = vlaneseq
    %v6197 = vshrl.u32 %v6196, 7
    %v6198 = vsub.s32 4, %v6197
    %v6199 = vrot.slane %v6178, %v6198
    %v6200 = vlaneseq
    %v6201 = vshrl.u32 %v6200, 7
    %v6202 = vsub.s32 5, %v6201
    %v6203 = vrot.slane %v6178, %v6202
    %v6204 = vlaneseq
    %v6205 = vshrl.u32 %v6204, 7
    %v6206 = vsub.s32 6, %v6205
    %v6207 = vrot.slane %v6178, %v6206
    %v6215 = vmul.f32 %v6171, %v6183
    %v6216 = vmul.f32 %v6172, %v6187
    %v6217 = vmul.f32 %v6173, %v6191
    %v6218 = vmul.f32 %v6174, %v6195
    %v6219 = vmul.f32 %v6175, %v6199
    %v6220 = vmul.f32 %v6176, %v6203
    %v6221 = vmul.f32 %v6177, %v6207
    %6236 = vrot.lane.b32.xlu0 %v5473, 127
    %v6237 = vpop.permute.xlu0 %6236
    %6238 = vrot.lane.b32.xlu0 %v5474, 127
    %v6239 = vpop.permute.xlu0 %6238
    %6240 = vrot.lane.b32.xlu0 %v5475, 127
    %v6241 = vpop.permute.xlu0 %6240
    %6242 = vrot.lane.b32.xlu0 %v5476, 127
    %v6243 = vpop.permute.xlu0 %6242
    %6244 = vrot.lane.b32.xlu0 %v5477, 127
    %v6245 = vpop.permute.xlu0 %6244
    %6246 = vrot.lane.b32.xlu0 %v5478, 127
    %v6247 = vpop.permute.xlu0 %6246
    %6248 = vrot.lane.b32.xlu0 %v5479, 127
    %v6249 = vpop.permute.xlu0 %6248
    %6250 = vrot.lane.b32.xlu0 %v6215, 127
    %v6251 = vpop.permute.xlu0 %6250
    %6252 = vrot.lane.b32.xlu0 %v6216, 127
    %v6253 = vpop.permute.xlu0 %6252
    %6254 = vrot.lane.b32.xlu0 %v6217, 127
    %v6255 = vpop.permute.xlu0 %6254
    %6256 = vrot.lane.b32.xlu0 %v6218, 127
    %v6257 = vpop.permute.xlu0 %6256
    %6258 = vrot.lane.b32.xlu0 %v6219, 127
    %v6259 = vpop.permute.xlu0 %6258
    %6260 = vrot.lane.b32.xlu0 %v6220, 127
    %v6261 = vpop.permute.xlu0 %6260
    %6262 = vrot.lane.b32.xlu0 %v6221, 127
    %v6263 = vpop.permute.xlu0 %6262
    %v6264 = vsel %vm1781, %v6237, %v6239
    %v6265 = vsel %vm1781, %v6239, %v6241
    %v6266 = vsel %vm1781, %v6241, %v6243
    %v6267 = vsel %vm1781, %v6243, %v6245
    %v6268 = vsel %vm1781, %v6245, %v6247
    %v6269 = vsel %vm1781, %v6247, %v6249
    %v6270 = vsel %vm1781, %v6251, %v6253
    %v6271 = vsel %vm1781, %v6253, %v6255
    %v6272 = vsel %vm1781, %v6255, %v6257
    %v6273 = vsel %vm1781, %v6257, %v6259
    %v6274 = vsel %vm1781, %v6259, %v6261
    %v6275 = vsel %vm1781, %v6261, %v6263
    %6290 = vrot.lane.b32.xlu0 %v5473, 126
    %v6291 = vpop.permute.xlu0 %6290
    %6292 = vrot.lane.b32.xlu0 %v5474, 126
    %v6293 = vpop.permute.xlu0 %6292
    %6294 = vrot.lane.b32.xlu0 %v5475, 126
    %v6295 = vpop.permute.xlu0 %6294
    %6296 = vrot.lane.b32.xlu0 %v5476, 126
    %v6297 = vpop.permute.xlu0 %6296
    %6298 = vrot.lane.b32.xlu0 %v5477, 126
    %v6299 = vpop.permute.xlu0 %6298
    %6300 = vrot.lane.b32.xlu0 %v5478, 126
    %v6301 = vpop.permute.xlu0 %6300
    %6302 = vrot.lane.b32.xlu0 %v5479, 126
    %v6303 = vpop.permute.xlu0 %6302
    %6304 = vrot.lane.b32.xlu0 %v6215, 126
    %v6305 = vpop.permute.xlu0 %6304
    %6306 = vrot.lane.b32.xlu0 %v6216, 126
    %v6307 = vpop.permute.xlu0 %6306
    %6308 = vrot.lane.b32.xlu0 %v6217, 126
    %v6309 = vpop.permute.xlu0 %6308
    %6310 = vrot.lane.b32.xlu0 %v6218, 126
    %v6311 = vpop.permute.xlu0 %6310
    %6312 = vrot.lane.b32.xlu0 %v6219, 126
    %v6313 = vpop.permute.xlu0 %6312
    %6314 = vrot.lane.b32.xlu0 %v6220, 126
    %v6315 = vpop.permute.xlu0 %6314
    %6316 = vrot.lane.b32.xlu0 %v6221, 126
    %v6317 = vpop.permute.xlu0 %6316
    %v6318 = vsel %vm1810, %v6291, %v6293
    %v6319 = vsel %vm1810, %v6293, %v6295
    %v6320 = vsel %vm1810, %v6295, %v6297
    %v6321 = vsel %vm1810, %v6297, %v6299
    %v6322 = vsel %vm1810, %v6299, %v6301
    %v6323 = vsel %vm1810, %v6301, %v6303
    %v6324 = vsel %vm1810, %v6305, %v6307
    %v6325 = vsel %vm1810, %v6307, %v6309
    %v6326 = vsel %vm1810, %v6309, %v6311
    %v6327 = vsel %vm1810, %v6311, %v6313
    %v6328 = vsel %vm1810, %v6313, %v6315
    %v6329 = vsel %vm1810, %v6315, %v6317
    %6344 = vrot.lane.b32.xlu0 %v5473, 110
    %v6345 = vpop.permute.xlu0 %6344
    %6346 = vrot.lane.b32.xlu0 %v5474, 110
    %v6347 = vpop.permute.xlu0 %6346
    %6348 = vrot.lane.b32.xlu0 %v5475, 110
    %v6349 = vpop.permute.xlu0 %6348
    %6350 = vrot.lane.b32.xlu0 %v5476, 110
    %v6351 = vpop.permute.xlu0 %6350
    %6352 = vrot.lane.b32.xlu0 %v5477, 110
    %v6353 = vpop.permute.xlu0 %6352
    %6354 = vrot.lane.b32.xlu0 %v5478, 110
    %v6355 = vpop.permute.xlu0 %6354
    %6356 = vrot.lane.b32.xlu0 %v5479, 110
    %v6357 = vpop.permute.xlu0 %6356
    %6358 = vrot.lane.b32.xlu0 %v6215, 110
    %v6359 = vpop.permute.xlu0 %6358
    %6360 = vrot.lane.b32.xlu0 %v6216, 110
    %v6361 = vpop.permute.xlu0 %6360
    %6362 = vrot.lane.b32.xlu0 %v6217, 110
    %v6363 = vpop.permute.xlu0 %6362
    %6364 = vrot.lane.b32.xlu0 %v6218, 110
    %v6365 = vpop.permute.xlu0 %6364
    %6366 = vrot.lane.b32.xlu0 %v6219, 110
    %v6367 = vpop.permute.xlu0 %6366
    %6368 = vrot.lane.b32.xlu0 %v6220, 110
    %v6369 = vpop.permute.xlu0 %6368
    %6370 = vrot.lane.b32.xlu0 %v6221, 110
    %v6371 = vpop.permute.xlu0 %6370
    %v6372 = vsel %vm5574, %v6345, %v6347
    %v6373 = vsel %vm5574, %v6347, %v6349
    %v6374 = vsel %vm5574, %v6349, %v6351
    %v6375 = vsel %vm5574, %v6351, %v6353
    %v6376 = vsel %vm5574, %v6353, %v6355
    %v6377 = vsel %vm5574, %v6355, %v6357
    %v6378 = vsel %vm5574, %v6359, %v6361
    %v6379 = vsel %vm5574, %v6361, %v6363
    %v6380 = vsel %vm5574, %v6363, %v6365
    %v6381 = vsel %vm5574, %v6365, %v6367
    %v6382 = vsel %vm5574, %v6367, %v6369
    %v6383 = vsel %vm5574, %v6369, %v6371
    %6398 = vrot.lane.b32.xlu0 %v5473, 109
    %v6399 = vpop.permute.xlu0 %6398
    %6400 = vrot.lane.b32.xlu0 %v5474, 109
    %v6401 = vpop.permute.xlu0 %6400
    %6402 = vrot.lane.b32.xlu0 %v5475, 109
    %v6403 = vpop.permute.xlu0 %6402
    %6404 = vrot.lane.b32.xlu0 %v5476, 109
    %v6405 = vpop.permute.xlu0 %6404
    %6406 = vrot.lane.b32.xlu0 %v5477, 109
    %v6407 = vpop.permute.xlu0 %6406
    %6408 = vrot.lane.b32.xlu0 %v5478, 109
    %v6409 = vpop.permute.xlu0 %6408
    %6410 = vrot.lane.b32.xlu0 %v5479, 109
    %v6411 = vpop.permute.xlu0 %6410
    %6412 = vrot.lane.b32.xlu0 %v6215, 109
    %v6413 = vpop.permute.xlu0 %6412
    %6414 = vrot.lane.b32.xlu0 %v6216, 109
    %v6415 = vpop.permute.xlu0 %6414
    %6416 = vrot.lane.b32.xlu0 %v6217, 109
    %v6417 = vpop.permute.xlu0 %6416
    %6418 = vrot.lane.b32.xlu0 %v6218, 109
    %v6419 = vpop.permute.xlu0 %6418
    %6420 = vrot.lane.b32.xlu0 %v6219, 109
    %v6421 = vpop.permute.xlu0 %6420
    %6422 = vrot.lane.b32.xlu0 %v6220, 109
    %v6423 = vpop.permute.xlu0 %6422
    %6424 = vrot.lane.b32.xlu0 %v6221, 109
    %v6425 = vpop.permute.xlu0 %6424
    %v6426 = vsel %vm5606, %v6399, %v6401
    %v6427 = vsel %vm5606, %v6401, %v6403
    %v6428 = vsel %vm5606, %v6403, %v6405
    %v6429 = vsel %vm5606, %v6405, %v6407
    %v6430 = vsel %vm5606, %v6407, %v6409
    %v6431 = vsel %vm5606, %v6409, %v6411
    %v6432 = vsel %vm5606, %v6413, %v6415
    %v6433 = vsel %vm5606, %v6415, %v6417
    %v6434 = vsel %vm5606, %v6417, %v6419
    %v6435 = vsel %vm5606, %v6419, %v6421
    %v6436 = vsel %vm5606, %v6421, %v6423
    %v6437 = vsel %vm5606, %v6423, %v6425
    %6452 = vrot.lane.b32.xlu0 %v5473, 108
    %v6453 = vpop.permute.xlu0 %6452
    %6454 = vrot.lane.b32.xlu0 %v5474, 108
    %v6455 = vpop.permute.xlu0 %6454
    %6456 = vrot.lane.b32.xlu0 %v5475, 108
    %v6457 = vpop.permute.xlu0 %6456
    %6458 = vrot.lane.b32.xlu0 %v5476, 108
    %v6459 = vpop.permute.xlu0 %6458
    %6460 = vrot.lane.b32.xlu0 %v5477, 108
    %v6461 = vpop.permute.xlu0 %6460
    %6462 = vrot.lane.b32.xlu0 %v5478, 108
    %v6463 = vpop.permute.xlu0 %6462
    %6464 = vrot.lane.b32.xlu0 %v5479, 108
    %v6465 = vpop.permute.xlu0 %6464
    %6466 = vrot.lane.b32.xlu0 %v6215, 108
    %v6467 = vpop.permute.xlu0 %6466
    %6468 = vrot.lane.b32.xlu0 %v6216, 108
    %v6469 = vpop.permute.xlu0 %6468
    %6470 = vrot.lane.b32.xlu0 %v6217, 108
    %v6471 = vpop.permute.xlu0 %6470
    %6472 = vrot.lane.b32.xlu0 %v6218, 108
    %v6473 = vpop.permute.xlu0 %6472
    %6474 = vrot.lane.b32.xlu0 %v6219, 108
    %v6475 = vpop.permute.xlu0 %6474
    %6476 = vrot.lane.b32.xlu0 %v6220, 108
    %v6477 = vpop.permute.xlu0 %6476
    %6478 = vrot.lane.b32.xlu0 %v6221, 108
    %v6479 = vpop.permute.xlu0 %6478
    %v6480 = vsel %vm1926, %v6453, %v6455
    %v6481 = vsel %vm1926, %v6455, %v6457
    %v6482 = vsel %vm1926, %v6457, %v6459
    %v6483 = vsel %vm1926, %v6459, %v6461
    %v6484 = vsel %vm1926, %v6461, %v6463
    %v6485 = vsel %vm1926, %v6463, %v6465
    %v6486 = vsel %vm1926, %v6467, %v6469
    %v6487 = vsel %vm1926, %v6469, %v6471
    %v6488 = vsel %vm1926, %v6471, %v6473
    %v6489 = vsel %vm1926, %v6473, %v6475
    %v6490 = vsel %vm1926, %v6475, %v6477
    %v6491 = vsel %vm1926, %v6477, %v6479
    %6506 = vrot.lane.b32.xlu0 %v5473, 92
    %v6507 = vpop.permute.xlu0 %6506
    %6508 = vrot.lane.b32.xlu0 %v5474, 92
    %v6509 = vpop.permute.xlu0 %6508
    %6510 = vrot.lane.b32.xlu0 %v5475, 92
    %v6511 = vpop.permute.xlu0 %6510
    %6512 = vrot.lane.b32.xlu0 %v5476, 92
    %v6513 = vpop.permute.xlu0 %6512
    %6514 = vrot.lane.b32.xlu0 %v5477, 92
    %v6515 = vpop.permute.xlu0 %6514
    %6516 = vrot.lane.b32.xlu0 %v5478, 92
    %v6517 = vpop.permute.xlu0 %6516
    %6518 = vrot.lane.b32.xlu0 %v5479, 92
    %v6519 = vpop.permute.xlu0 %6518
    %6520 = vrot.lane.b32.xlu0 %v6215, 92
    %v6521 = vpop.permute.xlu0 %6520
    %6522 = vrot.lane.b32.xlu0 %v6216, 92
    %v6523 = vpop.permute.xlu0 %6522
    %6524 = vrot.lane.b32.xlu0 %v6217, 92
    %v6525 = vpop.permute.xlu0 %6524
    %6526 = vrot.lane.b32.xlu0 %v6218, 92
    %v6527 = vpop.permute.xlu0 %6526
    %6528 = vrot.lane.b32.xlu0 %v6219, 92
    %v6529 = vpop.permute.xlu0 %6528
    %6530 = vrot.lane.b32.xlu0 %v6220, 92
    %v6531 = vpop.permute.xlu0 %6530
    %6532 = vrot.lane.b32.xlu0 %v6221, 92
    %v6533 = vpop.permute.xlu0 %6532
    %v6534 = vsel %vm5669, %v6507, %v6509
    %v6535 = vsel %vm5669, %v6509, %v6511
    %v6536 = vsel %vm5669, %v6511, %v6513
    %v6537 = vsel %vm5669, %v6513, %v6515
    %v6538 = vsel %vm5669, %v6515, %v6517
    %v6539 = vsel %vm5669, %v6517, %v6519
    %v6540 = vsel %vm5669, %v6521, %v6523
    %v6541 = vsel %vm5669, %v6523, %v6525
    %v6542 = vsel %vm5669, %v6525, %v6527
    %v6543 = vsel %vm5669, %v6527, %v6529
    %v6544 = vsel %vm5669, %v6529, %v6531
    %v6545 = vsel %vm5669, %v6531, %v6533
    %6560 = vrot.lane.b32.xlu0 %v5473, 91
    %v6561 = vpop.permute.xlu0 %6560
    %6562 = vrot.lane.b32.xlu0 %v5474, 91
    %v6563 = vpop.permute.xlu0 %6562
    %6564 = vrot.lane.b32.xlu0 %v5475, 91
    %v6565 = vpop.permute.xlu0 %6564
    %6566 = vrot.lane.b32.xlu0 %v5476, 91
    %v6567 = vpop.permute.xlu0 %6566
    %6568 = vrot.lane.b32.xlu0 %v5477, 91
    %v6569 = vpop.permute.xlu0 %6568
    %6570 = vrot.lane.b32.xlu0 %v5478, 91
    %v6571 = vpop.permute.xlu0 %6570
    %6572 = vrot.lane.b32.xlu0 %v5479, 91
    %v6573 = vpop.permute.xlu0 %6572
    %6574 = vrot.lane.b32.xlu0 %v6215, 91
    %v6575 = vpop.permute.xlu0 %6574
    %6576 = vrot.lane.b32.xlu0 %v6216, 91
    %v6577 = vpop.permute.xlu0 %6576
    %6578 = vrot.lane.b32.xlu0 %v6217, 91
    %v6579 = vpop.permute.xlu0 %6578
    %6580 = vrot.lane.b32.xlu0 %v6218, 91
    %v6581 = vpop.permute.xlu0 %6580
    %6582 = vrot.lane.b32.xlu0 %v6219, 91
    %v6583 = vpop.permute.xlu0 %6582
    %6584 = vrot.lane.b32.xlu0 %v6220, 91
    %v6585 = vpop.permute.xlu0 %6584
    %6586 = vrot.lane.b32.xlu0 %v6221, 91
    %v6587 = vpop.permute.xlu0 %6586
    %v6588 = vsel %vm5701, %v6561, %v6563
    %v6589 = vsel %vm5701, %v6563, %v6565
    %v6590 = vsel %vm5701, %v6565, %v6567
    %v6591 = vsel %vm5701, %v6567, %v6569
    %v6592 = vsel %vm5701, %v6569, %v6571
    %v6593 = vsel %vm5701, %v6571, %v6573
    %v6594 = vsel %vm5701, %v6575, %v6577
    %v6595 = vsel %vm5701, %v6577, %v6579
    %v6596 = vsel %vm5701, %v6579, %v6581
    %v6597 = vsel %vm5701, %v6581, %v6583
    %v6598 = vsel %vm5701, %v6583, %v6585
    %v6599 = vsel %vm5701, %v6585, %v6587
    %6614 = vrot.lane.b32.xlu0 %v5473, 90
    %v6615 = vpop.permute.xlu0 %6614
    %6616 = vrot.lane.b32.xlu0 %v5474, 90
    %v6617 = vpop.permute.xlu0 %6616
    %6618 = vrot.lane.b32.xlu0 %v5475, 90
    %v6619 = vpop.permute.xlu0 %6618
    %6620 = vrot.lane.b32.xlu0 %v5476, 90
    %v6621 = vpop.permute.xlu0 %6620
    %6622 = vrot.lane.b32.xlu0 %v5477, 90
    %v6623 = vpop.permute.xlu0 %6622
    %6624 = vrot.lane.b32.xlu0 %v5478, 90
    %v6625 = vpop.permute.xlu0 %6624
    %6626 = vrot.lane.b32.xlu0 %v5479, 90
    %v6627 = vpop.permute.xlu0 %6626
    %6628 = vrot.lane.b32.xlu0 %v6215, 90
    %v6629 = vpop.permute.xlu0 %6628
    %6630 = vrot.lane.b32.xlu0 %v6216, 90
    %v6631 = vpop.permute.xlu0 %6630
    %6632 = vrot.lane.b32.xlu0 %v6217, 90
    %v6633 = vpop.permute.xlu0 %6632
    %6634 = vrot.lane.b32.xlu0 %v6218, 90
    %v6635 = vpop.permute.xlu0 %6634
    %6636 = vrot.lane.b32.xlu0 %v6219, 90
    %v6637 = vpop.permute.xlu0 %6636
    %6638 = vrot.lane.b32.xlu0 %v6220, 90
    %v6639 = vpop.permute.xlu0 %6638
    %6640 = vrot.lane.b32.xlu0 %v6221, 90
    %v6641 = vpop.permute.xlu0 %6640
    %v6642 = vsel %vm5733, %v6615, %v6617
    %v6643 = vsel %vm5733, %v6617, %v6619
    %v6644 = vsel %vm5733, %v6619, %v6621
    %v6645 = vsel %vm5733, %v6621, %v6623
    %v6646 = vsel %vm5733, %v6623, %v6625
    %v6647 = vsel %vm5733, %v6625, %v6627
    %v6648 = vsel %vm5733, %v6629, %v6631
    %v6649 = vsel %vm5733, %v6631, %v6633
    %v6650 = vsel %vm5733, %v6633, %v6635
    %v6651 = vsel %vm5733, %v6635, %v6637
    %v6652 = vsel %vm5733, %v6637, %v6639
    %v6653 = vsel %vm5733, %v6639, %v6641
    %v6668 = vpack.c.bf16 %v6215, %v5473
    %v6669 = vpack.c.bf16 %v6216, %v5474
    %v6670 = vpack.c.bf16 %v6217, %v5475
    %v6671 = vpack.c.bf16 %v6218, %v5476
    %v6672 = vpack.c.bf16 %v6219, %v5477
    %v6673 = vpack.c.bf16 %v6220, %v5478
    %v6674 = vpack.c.bf16 %v6221, %v5479
    %v6675 = vpack.c.bf16 %v6270, %v6264
    %v6676 = vpack.c.bf16 %v6271, %v6265
    %v6677 = vpack.c.bf16 %v6272, %v6266
    %v6678 = vpack.c.bf16 %v6273, %v6267
    %v6679 = vpack.c.bf16 %v6274, %v6268
    %v6680 = vpack.c.bf16 %v6275, %v6269
    %v6681 = vpack.c.bf16 %v6263, %v6249
    %v6682 = vpack.c.bf16 %v6324, %v6318
    %v6683 = vpack.c.bf16 %v6325, %v6319
    %v6684 = vpack.c.bf16 %v6326, %v6320
    %v6685 = vpack.c.bf16 %v6327, %v6321
    %v6686 = vpack.c.bf16 %v6328, %v6322
    %v6687 = vpack.c.bf16 %v6329, %v6323
    %v6688 = vpack.c.bf16 %v6317, %v6303
    %v6689 = vpack.c.bf16 %v6378, %v6372
    %v6690 = vpack.c.bf16 %v6379, %v6373
    %v6691 = vpack.c.bf16 %v6380, %v6374
    %v6692 = vpack.c.bf16 %v6381, %v6375
    %v6693 = vpack.c.bf16 %v6382, %v6376
    %v6694 = vpack.c.bf16 %v6383, %v6377
    %v6695 = vpack.c.bf16 %v6371, %v6357
    %v6696 = vpack.c.bf16 %v6432, %v6426
    %v6697 = vpack.c.bf16 %v6433, %v6427
    %v6698 = vpack.c.bf16 %v6434, %v6428
    %v6699 = vpack.c.bf16 %v6435, %v6429
    %v6700 = vpack.c.bf16 %v6436, %v6430
    %v6701 = vpack.c.bf16 %v6437, %v6431
    %v6702 = vpack.c.bf16 %v6425, %v6411
    %v6703 = vpack.c.bf16 %v6486, %v6480
    %v6704 = vpack.c.bf16 %v6487, %v6481
    %v6705 = vpack.c.bf16 %v6488, %v6482
    %v6706 = vpack.c.bf16 %v6489, %v6483
    %v6707 = vpack.c.bf16 %v6490, %v6484
    %v6708 = vpack.c.bf16 %v6491, %v6485
    %v6709 = vpack.c.bf16 %v6479, %v6465
    %v6710 = vpack.c.bf16 %v6540, %v6534
    %v6711 = vpack.c.bf16 %v6541, %v6535
    %v6712 = vpack.c.bf16 %v6542, %v6536
    %v6713 = vpack.c.bf16 %v6543, %v6537
    %v6714 = vpack.c.bf16 %v6544, %v6538
    %v6715 = vpack.c.bf16 %v6545, %v6539
    %v6716 = vpack.c.bf16 %v6533, %v6519
    %v6717 = vpack.c.bf16 %v6594, %v6588
    %v6718 = vpack.c.bf16 %v6595, %v6589
    %v6719 = vpack.c.bf16 %v6596, %v6590
    %v6720 = vpack.c.bf16 %v6597, %v6591
    %v6721 = vpack.c.bf16 %v6598, %v6592
    %v6722 = vpack.c.bf16 %v6599, %v6593
    %v6723 = vpack.c.bf16 %v6587, %v6573
    %v6724 = vpack.c.bf16 %v6648, %v6642
    %v6725 = vpack.c.bf16 %v6649, %v6643
    %v6726 = vpack.c.bf16 %v6650, %v6644
    %v6727 = vpack.c.bf16 %v6651, %v6645
    %v6728 = vpack.c.bf16 %v6652, %v6646
    %v6729 = vpack.c.bf16 %v6653, %v6647
    %v6730 = vpack.c.bf16 %v6641, %v6627
    %6731 = vset.pattern.permute.xlu0 85
    %6732 = vperm.xlu0 %6731, %v869
    %v6733 = vpop.permute.xlu0 %6732
    %v6736 = vunpack.c.l.b16 %v857
    %v6737 = vpack.c.b16 %v6736, %v6736
    %6738 = vrot.lane.b32.xlu0 %v5794, 72
    %v6739 = vpop.permute.xlu0 %6738
    %6740 = vrot.lane.b32.xlu0 %v6737, 72
    %v6741 = vpop.permute.xlu0 %6740
    %vm6742 = vcmask 588800
    %v6743 = vsel %vm6742, %v6739, %v6741
    %6808 = vrot.lane.b32.xlu0 %v6668, 123
    %v6809 = vpop.permute.xlu0 %6808
    %6810 = vrot.lane.b32.xlu0 %v6669, 123
    %v6811 = vpop.permute.xlu0 %6810
    %6812 = vrot.lane.b32.xlu0 %v6670, 123
    %v6813 = vpop.permute.xlu0 %6812
    %6814 = vrot.lane.b32.xlu0 %v6671, 123
    %v6815 = vpop.permute.xlu0 %6814
    %6816 = vrot.lane.b32.xlu0 %v6672, 123
    %v6817 = vpop.permute.xlu0 %6816
    %6818 = vrot.lane.b32.xlu0 %v6673, 123
    %v6819 = vpop.permute.xlu0 %6818
    %6820 = vrot.lane.b32.xlu0 %v6674, 123
    %v6821 = vpop.permute.xlu0 %6820
    %6822 = vrot.lane.b32.xlu0 %v6675, 123
    %v6823 = vpop.permute.xlu0 %6822
    %6824 = vrot.lane.b32.xlu0 %v6676, 123
    %v6825 = vpop.permute.xlu0 %6824
    %6826 = vrot.lane.b32.xlu0 %v6677, 123
    %v6827 = vpop.permute.xlu0 %6826
    %6828 = vrot.lane.b32.xlu0 %v6678, 123
    %v6829 = vpop.permute.xlu0 %6828
    %6830 = vrot.lane.b32.xlu0 %v6679, 123
    %v6831 = vpop.permute.xlu0 %6830
    %6832 = vrot.lane.b32.xlu0 %v6680, 123
    %v6833 = vpop.permute.xlu0 %6832
    %6834 = vrot.lane.b32.xlu0 %v6681, 123
    %v6835 = vpop.permute.xlu0 %6834
    %6836 = vrot.lane.b32.xlu0 %v6682, 123
    %v6837 = vpop.permute.xlu0 %6836
    %6838 = vrot.lane.b32.xlu0 %v6683, 123
    %v6839 = vpop.permute.xlu0 %6838
    %6840 = vrot.lane.b32.xlu0 %v6684, 123
    %v6841 = vpop.permute.xlu0 %6840
    %6842 = vrot.lane.b32.xlu0 %v6685, 123
    %v6843 = vpop.permute.xlu0 %6842
    %6844 = vrot.lane.b32.xlu0 %v6686, 123
    %v6845 = vpop.permute.xlu0 %6844
    %6846 = vrot.lane.b32.xlu0 %v6687, 123
    %v6847 = vpop.permute.xlu0 %6846
    %6848 = vrot.lane.b32.xlu0 %v6688, 123
    %v6849 = vpop.permute.xlu0 %6848
    %6850 = vrot.lane.b32.xlu0 %v6689, 123
    %v6851 = vpop.permute.xlu0 %6850
    %6852 = vrot.lane.b32.xlu0 %v6690, 123
    %v6853 = vpop.permute.xlu0 %6852
    %6854 = vrot.lane.b32.xlu0 %v6691, 123
    %v6855 = vpop.permute.xlu0 %6854
    %6856 = vrot.lane.b32.xlu0 %v6692, 123
    %v6857 = vpop.permute.xlu0 %6856
    %6858 = vrot.lane.b32.xlu0 %v6693, 123
    %v6859 = vpop.permute.xlu0 %6858
    %6860 = vrot.lane.b32.xlu0 %v6694, 123
    %v6861 = vpop.permute.xlu0 %6860
    %6862 = vrot.lane.b32.xlu0 %v6695, 123
    %v6863 = vpop.permute.xlu0 %6862
    %6864 = vrot.lane.b32.xlu0 %v6696, 123
    %v6865 = vpop.permute.xlu0 %6864
    %6866 = vrot.lane.b32.xlu0 %v6697, 123
    %v6867 = vpop.permute.xlu0 %6866
    %6868 = vrot.lane.b32.xlu0 %v6698, 123
    %v6869 = vpop.permute.xlu0 %6868
    %6870 = vrot.lane.b32.xlu0 %v6699, 123
    %v6871 = vpop.permute.xlu0 %6870
    %6872 = vrot.lane.b32.xlu0 %v6700, 123
    %v6873 = vpop.permute.xlu0 %6872
    %6874 = vrot.lane.b32.xlu0 %v6701, 123
    %v6875 = vpop.permute.xlu0 %6874
    %6876 = vrot.lane.b32.xlu0 %v6702, 123
    %v6877 = vpop.permute.xlu0 %6876
    %6878 = vrot.lane.b32.xlu0 %v6703, 123
    %v6879 = vpop.permute.xlu0 %6878
    %6880 = vrot.lane.b32.xlu0 %v6704, 123
    %v6881 = vpop.permute.xlu0 %6880
    %6882 = vrot.lane.b32.xlu0 %v6705, 123
    %v6883 = vpop.permute.xlu0 %6882
    %6884 = vrot.lane.b32.xlu0 %v6706, 123
    %v6885 = vpop.permute.xlu0 %6884
    %6886 = vrot.lane.b32.xlu0 %v6707, 123
    %v6887 = vpop.permute.xlu0 %6886
    %6888 = vrot.lane.b32.xlu0 %v6708, 123
    %v6889 = vpop.permute.xlu0 %6888
    %6890 = vrot.lane.b32.xlu0 %v6709, 123
    %v6891 = vpop.permute.xlu0 %6890
    %6892 = vrot.lane.b32.xlu0 %v6710, 123
    %v6893 = vpop.permute.xlu0 %6892
    %6894 = vrot.lane.b32.xlu0 %v6711, 123
    %v6895 = vpop.permute.xlu0 %6894
    %6896 = vrot.lane.b32.xlu0 %v6712, 123
    %v6897 = vpop.permute.xlu0 %6896
    %6898 = vrot.lane.b32.xlu0 %v6713, 123
    %v6899 = vpop.permute.xlu0 %6898
    %6900 = vrot.lane.b32.xlu0 %v6714, 123
    %v6901 = vpop.permute.xlu0 %6900
    %6902 = vrot.lane.b32.xlu0 %v6715, 123
    %v6903 = vpop.permute.xlu0 %6902
    %6904 = vrot.lane.b32.xlu0 %v6716, 123
    %v6905 = vpop.permute.xlu0 %6904
    %6906 = vrot.lane.b32.xlu0 %v6717, 123
    %v6907 = vpop.permute.xlu0 %6906
    %6908 = vrot.lane.b32.xlu0 %v6718, 123
    %v6909 = vpop.permute.xlu0 %6908
    %6910 = vrot.lane.b32.xlu0 %v6719, 123
    %v6911 = vpop.permute.xlu0 %6910
    %6912 = vrot.lane.b32.xlu0 %v6720, 123
    %v6913 = vpop.permute.xlu0 %6912
    %6914 = vrot.lane.b32.xlu0 %v6721, 123
    %v6915 = vpop.permute.xlu0 %6914
    %6916 = vrot.lane.b32.xlu0 %v6722, 123
    %v6917 = vpop.permute.xlu0 %6916
    %6918 = vrot.lane.b32.xlu0 %v6723, 123
    %v6919 = vpop.permute.xlu0 %6918
    %6920 = vrot.lane.b32.xlu0 %v6724, 123
    %v6921 = vpop.permute.xlu0 %6920
    %6922 = vrot.lane.b32.xlu0 %v6725, 123
    %v6923 = vpop.permute.xlu0 %6922
    %6924 = vrot.lane.b32.xlu0 %v6726, 123
    %v6925 = vpop.permute.xlu0 %6924
    %6926 = vrot.lane.b32.xlu0 %v6727, 123
    %v6927 = vpop.permute.xlu0 %6926
    %6928 = vrot.lane.b32.xlu0 %v6728, 123
    %v6929 = vpop.permute.xlu0 %6928
    %6930 = vrot.lane.b32.xlu0 %v6729, 123
    %v6931 = vpop.permute.xlu0 %6930
    %6932 = vrot.lane.b32.xlu0 %v6730, 123
    %v6933 = vpop.permute.xlu0 %6932
    %v6934 = vsel %vm2168, %v6809, %v6811
    %v6935 = vsel %vm2168, %v6811, %v6813
    %v6936 = vsel %vm2168, %v6813, %v6815
    %v6937 = vsel %vm2168, %v6815, %v6817
    %v6938 = vsel %vm2168, %v6817, %v6819
    %v6939 = vsel %vm2168, %v6819, %v6821
    %v6940 = vsel %vm2168, %v6823, %v6825
    %v6941 = vsel %vm2168, %v6825, %v6827
    %v6942 = vsel %vm2168, %v6827, %v6829
    %v6943 = vsel %vm2168, %v6829, %v6831
    %v6944 = vsel %vm2168, %v6831, %v6833
    %v6945 = vsel %vm2168, %v6833, %v6835
    %v6946 = vsel %vm2168, %v6837, %v6839
    %v6947 = vsel %vm2168, %v6839, %v6841
    %v6948 = vsel %vm2168, %v6841, %v6843
    %v6949 = vsel %vm2168, %v6843, %v6845
    %v6950 = vsel %vm2168, %v6845, %v6847
    %v6951 = vsel %vm2168, %v6847, %v6849
    %v6952 = vsel %vm2168, %v6851, %v6853
    %v6953 = vsel %vm2168, %v6853, %v6855
    %v6954 = vsel %vm2168, %v6855, %v6857
    %v6955 = vsel %vm2168, %v6857, %v6859
    %v6956 = vsel %vm2168, %v6859, %v6861
    %v6957 = vsel %vm2168, %v6861, %v6863
    %v6958 = vsel %vm2168, %v6865, %v6867
    %v6959 = vsel %vm2168, %v6867, %v6869
    %v6960 = vsel %vm2168, %v6869, %v6871
    %v6961 = vsel %vm2168, %v6871, %v6873
    %v6962 = vsel %vm2168, %v6873, %v6875
    %v6963 = vsel %vm2168, %v6875, %v6877
    %v6964 = vsel %vm2168, %v6879, %v6881
    %v6965 = vsel %vm2168, %v6881, %v6883
    %v6966 = vsel %vm2168, %v6883, %v6885
    %v6967 = vsel %vm2168, %v6885, %v6887
    %v6968 = vsel %vm2168, %v6887, %v6889
    %v6969 = vsel %vm2168, %v6889, %v6891
    %v6970 = vsel %vm2168, %v6893, %v6895
    %v6971 = vsel %vm2168, %v6895, %v6897
    %v6972 = vsel %vm2168, %v6897, %v6899
    %v6973 = vsel %vm2168, %v6899, %v6901
    %v6974 = vsel %vm2168, %v6901, %v6903
    %v6975 = vsel %vm2168, %v6903, %v6905
    %v6976 = vsel %vm2168, %v6907, %v6909
    %v6977 = vsel %vm2168, %v6909, %v6911
    %v6978 = vsel %vm2168, %v6911, %v6913
    %v6979 = vsel %vm2168, %v6913, %v6915
    %v6980 = vsel %vm2168, %v6915, %v6917
    %v6981 = vsel %vm2168, %v6917, %v6919
    %v6982 = vsel %vm2168, %v6921, %v6923
    %v6983 = vsel %vm2168, %v6923, %v6925
    %v6984 = vsel %vm2168, %v6925, %v6927
    %v6985 = vsel %vm2168, %v6927, %v6929
    %v6986 = vsel %vm2168, %v6929, %v6931
    %v6987 = vsel %vm2168, %v6931, %v6933
    %v7043 = vsel %vm2325, %v6741, 0
    %7045 = vmatprep.subr.bf16.mxu0 %v6935
    %7046 = vmatpush1.bf16.msra.mxu0 %v6934
    %7047 = vmatprep.subr.bf16.mxu0 %v6941
    %7048 = vmatpush1.bf16.msra.mxu0 %v6940
    %7049 = vmatprep.subr.bf16.mxu0 %v6947
    %7050 = vmatpush1.bf16.msra.mxu0 %v6946
    %7051 = vmatprep.subr.bf16.mxu0 %v6953
    %7052 = vmatpush1.bf16.msra.mxu0 %v6952
    %7053 = vmatprep.subr.bf16.mxu0 %v6959
    %7054 = vmatpush1.bf16.msra.mxu0 %v6958
    %7055 = vmatprep.subr.bf16.mxu0 %v6965
    %7056 = vmatpush1.bf16.msra.mxu0 %v6964
    %7057 = vmatprep.subr.bf16.mxu0 %v6971
    %7058 = vmatpush1.bf16.msra.mxu0 %v6970
    %7059 = vmatprep.subr.bf16.mxu0 %v6977
    %7060 = vmatpush1.bf16.msra.mxu0 %v6976
    %7061 = vmatprep.subr.bf16.mxu0 %v6983
    %7062 = vmatpush1.bf16.msra.mxu0 %v6982
    %7063 = vmatprep.subr.bf16.mxu0 0
    %7064 = vmatpush1.bf16.msra.mxu0 0
    %7065 = vmatprep.subr.bf16.mxu0 0
    %7066 = vmatpush1.bf16.msra.mxu0 0
    %7067 = vmatprep.subr.bf16.mxu0 0
    %7068 = vmatpush1.bf16.msra.mxu0 0
    %7069 = vmatprep.subr.bf16.mxu0 0
    %7070 = vmatpush1.bf16.msra.mxu0 0
    %7071 = vmatprep.subr.bf16.mxu0 0
    %7072 = vmatpush1.bf16.msra.mxu0 0
    %7073 = vmatprep.subr.bf16.mxu0 0
    %7074 = vmatpush1.bf16.msra.mxu0 0
    %7075 = vmatprep.subr.bf16.mxu0 0
    %7076 = vmatpush1.bf16.msra.mxu0 0
    %7077 = vmatprep.mubr.bf16.mxu0 %v7043
    %7078 = vmatmul.mubr.bf16.gmra.mrb[0].mxu0 %v6743
    %v7079 = vpop.f32.mrb[0].mxu0
    %v7080 = vadd.f32 %v6733, %v7079
    %v7081 = vpop.f32.mrb[0].mxu0
    %v7082 = vadd.f32 %v6733, %v7081
    %v7083 = vpop.f32.mrb[0].mxu0
    %v7084 = vpop.f32.mrb[0].mxu0
    %7085 = vdwg.mxu0
    %7086 = vmatprep.subr.bf16.mxu0 %v6937
    %7087 = vmatpush1.bf16.msra.mxu0 %v6936
    %7088 = vmatprep.subr.bf16.mxu0 %v6943
    %7089 = vmatpush1.bf16.msra.mxu0 %v6942
    %7090 = vmatprep.subr.bf16.mxu0 %v6949
    %7091 = vmatpush1.bf16.msra.mxu0 %v6948
    %7092 = vmatprep.subr.bf16.mxu0 %v6955
    %7093 = vmatpush1.bf16.msra.mxu0 %v6954
    %7094 = vmatprep.subr.bf16.mxu0 %v6961
    %7095 = vmatpush1.bf16.msra.mxu0 %v6960
    %7096 = vmatprep.subr.bf16.mxu0 %v6967
    %7097 = vmatpush1.bf16.msra.mxu0 %v6966
    %7098 = vmatprep.subr.bf16.mxu0 %v6973
    %7099 = vmatpush1.bf16.msra.mxu0 %v6972
    %7100 = vmatprep.subr.bf16.mxu0 %v6979
    %7101 = vmatpush1.bf16.msra.mxu0 %v6978
    %7102 = vmatprep.subr.bf16.mxu0 %v6985
    %7103 = vmatpush1.bf16.msra.mxu0 %v6984
    %7104 = vmatprep.subr.bf16.mxu0 0
    %7105 = vmatpush1.bf16.msra.mxu0 0
    %7106 = vmatprep.subr.bf16.mxu0 0
    %7107 = vmatpush1.bf16.msra.mxu0 0
    %7108 = vmatprep.subr.bf16.mxu0 0
    %7109 = vmatpush1.bf16.msra.mxu0 0
    %7110 = vmatprep.subr.bf16.mxu0 0
    %7111 = vmatpush1.bf16.msra.mxu0 0
    %7112 = vmatprep.subr.bf16.mxu0 0
    %7113 = vmatpush1.bf16.msra.mxu0 0
    %7114 = vmatprep.subr.bf16.mxu0 0
    %7115 = vmatpush1.bf16.msra.mxu0 0
    %7116 = vmatprep.subr.bf16.mxu0 0
    %7117 = vmatpush1.bf16.msra.mxu0 0
    %7118 = vmatprep.mubr.bf16.mxu0 %v7043
    %7119 = vmatmul.mubr.bf16.gmra.mrb[0].mxu0 %v6743
    %v7120 = vpop.f32.mrb[0].mxu0
    %v7121 = vadd.f32 %v6733, %v7120
    %v7122 = vpop.f32.mrb[0].mxu0
    %v7123 = vadd.f32 %v6733, %v7122
    %v7124 = vpop.f32.mrb[0].mxu0
    %v7125 = vpop.f32.mrb[0].mxu0
    %7126 = vdwg.mxu0
    %7127 = vmatprep.subr.bf16.mxu0 %v6939
    %7128 = vmatpush1.bf16.msra.mxu0 %v6938
    %7129 = vmatprep.subr.bf16.mxu0 %v6945
    %7130 = vmatpush1.bf16.msra.mxu0 %v6944
    %7131 = vmatprep.subr.bf16.mxu0 %v6951
    %7132 = vmatpush1.bf16.msra.mxu0 %v6950
    %7133 = vmatprep.subr.bf16.mxu0 %v6957
    %7134 = vmatpush1.bf16.msra.mxu0 %v6956
    %7135 = vmatprep.subr.bf16.mxu0 %v6963
    %7136 = vmatpush1.bf16.msra.mxu0 %v6962
    %7137 = vmatprep.subr.bf16.mxu0 %v6969
    %7138 = vmatpush1.bf16.msra.mxu0 %v6968
    %7139 = vmatprep.subr.bf16.mxu0 %v6975
    %7140 = vmatpush1.bf16.msra.mxu0 %v6974
    %7141 = vmatprep.subr.bf16.mxu0 %v6981
    %7142 = vmatpush1.bf16.msra.mxu0 %v6980
    %7143 = vmatprep.subr.bf16.mxu0 %v6987
    %7144 = vmatpush1.bf16.msra.mxu0 %v6986
    %7145 = vmatprep.subr.bf16.mxu0 0
    %7146 = vmatpush1.bf16.msra.mxu0 0
    %7147 = vmatprep.subr.bf16.mxu0 0
    %7148 = vmatpush1.bf16.msra.mxu0 0
    %7149 = vmatprep.subr.bf16.mxu0 0
    %7150 = vmatpush1.bf16.msra.mxu0 0
    %7151 = vmatprep.subr.bf16.mxu0 0
    %7152 = vmatpush1.bf16.msra.mxu0 0
    %7153 = vmatprep.subr.bf16.mxu0 0
    %7154 = vmatpush1.bf16.msra.mxu0 0
    %7155 = vmatprep.subr.bf16.mxu0 0
    %7156 = vmatpush1.bf16.msra.mxu0 0
    %7157 = vmatprep.subr.bf16.mxu0 0
    %7158 = vmatpush1.bf16.msra.mxu0 0
    %7159 = vmatprep.mubr.bf16.mxu0 %v7043
    %7160 = vmatmul.mubr.bf16.gmra.mrb[0].mxu0 %v6743
    %v7161 = vpop.f32.mrb[0].mxu0
    %v7162 = vadd.f32 %v6733, %v7161
    %v7163 = vpop.f32.mrb[0].mxu0
    %v7164 = vadd.f32 %v6733, %v7163
    %v7165 = vpop.f32.mrb[0].mxu0
    %v7166 = vpop.f32.mrb[0].mxu0
    %7167 = vdwg.mxu0
    %v7168 = vmax.f32 %v7080, 0.0
    %v7169 = vmax.f32 %v7082, 0.0
    %v7170 = vmax.f32 %v7121, 0.0
    %v7171 = vmax.f32 %v7123, 0.0
    %v7172 = vmax.f32 %v7162, 0.0
    %v7173 = vmax.f32 %v7164, 0.0
    %v7174 = vpack.c.bf16 %v7168, %v7168
    %v7175 = vpack.c.bf16 %v7169, %v7169
    %v7176 = vpack.c.bf16 %v7170, %v7170
    %v7177 = vpack.c.bf16 %v7171, %v7171
    %v7178 = vpack.c.bf16 %v7172, %v7172
    %v7179 = vpack.c.bf16 %v7173, %v7173
    %7180 = vset.pattern.permute.xlu0 86
    %7181 = vperm.xlu0 %7180, %v869
    %v7182 = vpop.permute.xlu0 %7181
    %7184 = vrot.lane.b32.xlu0 %v6737, 56
    %v7185 = vpop.permute.xlu0 %7184
    %vm7186 = vcmask 64512
    %v7188 = vsel %vm7186, %v7185, 0
    %v7191 = vsel %vm3075, %v7174, 0
    %v7194 = vsel %vm3075, %v7175, 0
    %v7197 = vsel %vm3075, %v7176, 0
    %v7200 = vsel %vm3075, %v7177, 0
    %v7203 = vsel %vm3075, %v7178, 0
    %v7206 = vsel %vm3075, %v7179, 0
    %7208 = vmatprep.subr.bf16.mxu0 %v7194
    %7209 = vmatpush1.bf16.msra.mxu0 %v7191
    %7210 = vmatprep.subr.bf16.mxu0 0
    %7211 = vmatpush1.bf16.msra.mxu0 0
    %7212 = vmatprep.subr.bf16.mxu0 0
    %7213 = vmatpush1.bf16.msra.mxu0 0
    %7214 = vmatprep.subr.bf16.mxu0 0
    %7215 = vmatpush1.bf16.msra.mxu0 0
    %7216 = vmatprep.subr.bf16.mxu0 0
    %7217 = vmatpush1.bf16.msra.mxu0 0
    %7218 = vmatprep.subr.bf16.mxu0 0
    %7219 = vmatpush1.bf16.msra.mxu0 0
    %7220 = vmatprep.subr.bf16.mxu0 0
    %7221 = vmatpush1.bf16.msra.mxu0 0
    %7222 = vmatprep.subr.bf16.mxu0 0
    %7223 = vmatpush1.bf16.msra.mxu0 0
    %7224 = vmatprep.subr.bf16.mxu0 0
    %7225 = vmatpush1.bf16.msra.mxu0 0
    %7226 = vmatprep.subr.bf16.mxu0 0
    %7227 = vmatpush1.bf16.msra.mxu0 0
    %7228 = vmatprep.subr.bf16.mxu0 0
    %7229 = vmatpush1.bf16.msra.mxu0 0
    %7230 = vmatprep.subr.bf16.mxu0 0
    %7231 = vmatpush1.bf16.msra.mxu0 0
    %7232 = vmatprep.subr.bf16.mxu0 0
    %7233 = vmatpush1.bf16.msra.mxu0 0
    %7234 = vmatprep.subr.bf16.mxu0 0
    %7235 = vmatpush1.bf16.msra.mxu0 0
    %7236 = vmatprep.subr.bf16.mxu0 0
    %7237 = vmatpush1.bf16.msra.mxu0 0
    %7238 = vmatprep.subr.bf16.mxu0 0
    %7239 = vmatpush1.bf16.msra.mxu0 0
    %7240 = vmatprep.mubr.bf16.mxu0 0
    %7241 = vmatmul.mubr.bf16.gmra.mrb[0].mxu0 %v7188
    %v7242 = vpop.f32.mrb[0].mxu0
    %v7243 = vadd.f32 %v7182, %v7242
    %v7244 = vpop.f32.mrb[0].mxu0
    %v7245 = vadd.f32 %v7182, %v7244
    %v7246 = vpop.f32.mrb[0].mxu0
    %v7247 = vpop.f32.mrb[0].mxu0
    %7248 = vdwg.mxu0
    %7249 = vmatprep.subr.bf16.mxu0 %v7200
    %7250 = vmatpush1.bf16.msra.mxu0 %v7197
    %7251 = vmatprep.subr.bf16.mxu0 0
    %7252 = vmatpush1.bf16.msra.mxu0 0
    %7253 = vmatprep.subr.bf16.mxu0 0
    %7254 = vmatpush1.bf16.msra.mxu0 0
    %7255 = vmatprep.subr.bf16.mxu0 0
    %7256 = vmatpush1.bf16.msra.mxu0 0
    %7257 = vmatprep.subr.bf16.mxu0 0
    %7258 = vmatpush1.bf16.msra.mxu0 0
    %7259 = vmatprep.subr.bf16.mxu0 0
    %7260 = vmatpush1.bf16.msra.mxu0 0
    %7261 = vmatprep.subr.bf16.mxu0 0
    %7262 = vmatpush1.bf16.msra.mxu0 0
    %7263 = vmatprep.subr.bf16.mxu0 0
    %7264 = vmatpush1.bf16.msra.mxu0 0
    %7265 = vmatprep.subr.bf16.mxu0 0
    %7266 = vmatpush1.bf16.msra.mxu0 0
    %7267 = vmatprep.subr.bf16.mxu0 0
    %7268 = vmatpush1.bf16.msra.mxu0 0
    %7269 = vmatprep.subr.bf16.mxu0 0
    %7270 = vmatpush1.bf16.msra.mxu0 0
    %7271 = vmatprep.subr.bf16.mxu0 0
    %7272 = vmatpush1.bf16.msra.mxu0 0
    %7273 = vmatprep.subr.bf16.mxu0 0
    %7274 = vmatpush1.bf16.msra.mxu0 0
    %7275 = vmatprep.subr.bf16.mxu0 0
    %7276 = vmatpush1.bf16.msra.mxu0 0
    %7277 = vmatprep.subr.bf16.mxu0 0
    %7278 = vmatpush1.bf16.msra.mxu0 0
    %7279 = vmatprep.subr.bf16.mxu0 0
    %7280 = vmatpush1.bf16.msra.mxu0 0
    %7281 = vmatprep.mubr.bf16.mxu0 0
    %7282 = vmatmul.mubr.bf16.gmra.mrb[0].mxu0 %v7188
    %v7283 = vpop.f32.mrb[0].mxu0
    %v7284 = vadd.f32 %v7182, %v7283
    %v7285 = vpop.f32.mrb[0].mxu0
    %v7286 = vadd.f32 %v7182, %v7285
    %v7287 = vpop.f32.mrb[0].mxu0
    %v7288 = vpop.f32.mrb[0].mxu0
    %7289 = vdwg.mxu0
    %7290 = vmatprep.subr.bf16.mxu0 %v7206
    %7291 = vmatpush1.bf16.msra.mxu0 %v7203
    %7292 = vmatprep.subr.bf16.mxu0 0
    %7293 = vmatpush1.bf16.msra.mxu0 0
    %7294 = vmatprep.subr.bf16.mxu0 0
    %7295 = vmatpush1.bf16.msra.mxu0 0
    %7296 = vmatprep.subr.bf16.mxu0 0
    %7297 = vmatpush1.bf16.msra.mxu0 0
    %7298 = vmatprep.subr.bf16.mxu0 0
    %7299 = vmatpush1.bf16.msra.mxu0 0
    %7300 = vmatprep.subr.bf16.mxu0 0
    %7301 = vmatpush1.bf16.msra.mxu0 0
    %7302 = vmatprep.subr.bf16.mxu0 0
    %7303 = vmatpush1.bf16.msra.mxu0 0
    %7304 = vmatprep.subr.bf16.mxu0 0
    %7305 = vmatpush1.bf16.msra.mxu0 0
    %7306 = vmatprep.subr.bf16.mxu0 0
    %7307 = vmatpush1.bf16.msra.mxu0 0
    %7308 = vmatprep.subr.bf16.mxu0 0
    %7309 = vmatpush1.bf16.msra.mxu0 0
    %7310 = vmatprep.subr.bf16.mxu0 0
    %7311 = vmatpush1.bf16.msra.mxu0 0
    %7312 = vmatprep.subr.bf16.mxu0 0
    %7313 = vmatpush1.bf16.msra.mxu0 0
    %7314 = vmatprep.subr.bf16.mxu0 0
    %7315 = vmatpush1.bf16.msra.mxu0 0
    %7316 = vmatprep.subr.bf16.mxu0 0
    %7317 = vmatpush1.bf16.msra.mxu0 0
    %7318 = vmatprep.subr.bf16.mxu0 0
    %7319 = vmatpush1.bf16.msra.mxu0 0
    %7320 = vmatprep.subr.bf16.mxu0 0
    %7321 = vmatpush1.bf16.msra.mxu0 0
    %7322 = vmatprep.mubr.bf16.mxu0 0
    %7323 = vmatmul.mubr.bf16.gmra.mrb[0].mxu0 %v7188
    %v7324 = vpop.f32.mrb[0].mxu0
    %v7325 = vadd.f32 %v7182, %v7324
    %v7326 = vpop.f32.mrb[0].mxu0
    %v7327 = vadd.f32 %v7182, %v7326
    %v7328 = vpop.f32.mrb[0].mxu0
    %v7329 = vpop.f32.mrb[0].mxu0
    %7330 = vdwg.mxu0
    %7331 = vst [vmem:[%s7] sm:$0xff] %v7243
    %7332 = vst [vmem:[%s7 + $0x8] sm:$0xff] %v7245
    %7333 = vst [vmem:[%s7 + $0x10] sm:$0xff] %v7284
    %7334 = vst [vmem:[%s7 + $0x18] sm:$0xff] %v7286
    %7335 = vst [vmem:[%s7 + $0x20] sm:$0xff] %v7325
    %7336 = vst [vmem:[%s7 + $0x28] sm:$0xff] %v7327
    // Predicated region
    $region50: #{testunetr_forward.1} parent=1 // pred_check
      _
    $region51: #{testunetr_forward.1} parent=1 // pred_check_branch
      %7338 = sbr.rel (0) target = $region53
    $region52: #{testunetr_forward.1} parent=1 // pred_region
      _
    $region53: #{testunetr_forward.1} parent=1 // pred_fallthru
      _
    // Predicated region
    $region54: #{testunetr_forward.1} parent=1 // pred_check
      _
    $region55: #{testunetr_forward.1} parent=1 // pred_check_branch
      %7340 = sbr.rel (0) target = $region57
    $region56: #{testunetr_forward.1} parent=1 // pred_region
      _
    $region57: #{testunetr_forward.1} parent=1 // pred_fallthru
      _
    %7341 = vsyncpa [#allocation3], 1
    %7342 = vsyncpa [#allocation5], 1
    %7343 = vsyncpa [#allocation8], 1

</llo_original>
